<compile_context>
chip_gen: v7x
topology: tpu7x:2x2x1
jax: 0.10.0
libtpu: 0.0.40
codegen_flags: <defaults>
</compile_context>

<pallas_src>
import jax
import jax.numpy as jnp
from jax import lax
from jax.experimental import pallas as pl
from jax.experimental.pallas import tpu as pltpu


# ---------------- fused Pallas kernel + wrapper ----------------

def mixing_network_forward(agent_qs, states, p):
    B, N = agent_qs.shape
    _, _, C, H, W = states.shape
    E = p["hyper_b1_w"].shape[0]
    f32 = jnp.float32

    BN = B * N
    Hp, Wd = H + 3, W + 3            # padded plane (pad=1 top/left, 2 bottom/right)
    L = Hp * Wd                      # flattened lane axis (16*16 = 256 for 13x13)
    Hq, Wq = H // 4, W // 4          # pool2 logical dims
    Hp1, Wp1 = H // 2, W // 2        # pool1 logical dims
    NE = N * E
    assert 2 * NE <= L and 4 * E <= L, "packed parameter rows must fit in Hp*Wd lanes"
    # NOTE: slab geometry validated for odd H=W=13 (module default).

    # ---- wrapper-side layout plumbing (cheap XLA ops; keeps the kernel lane-dense) ----
    # (B,N,C,H,W) -> (C, B*N, Hp*Wd): channel-major, zero-padded, plane flattened onto lanes.
    xs = jnp.transpose(states.astype(f32), (2, 0, 1, 3, 4)).reshape(C, BN, H, W)
    xs = jnp.pad(xs, ((0, 0), (0, 0), (1, 2), (1, 2))).reshape(C, BN, L)

    # pool1 validity mask: ones exactly at the sparse stride-2 grid positions (2a, 2b).
    mask2d = jnp.zeros((Hp, Wd), f32).at[0:2 * Hp1:2, 0:2 * Wp1:2].set(1.0)
    mask_row = mask2d.reshape(1, L)

    # fc_state weights scattered onto the sparse pool2 grid (valid positions (4u, 4v)).
    wfc = jnp.zeros((C, Hp, Wd), f32).at[:, 0:4 * Hq:4, 0:4 * Wq:4].set(
        p["fc_state_w"].reshape(C, Hq, Wq).astype(f32)).reshape(C, L)

    # hypernetwork params + agent_qs packed into full-lane rows (one DMA instead of eight).
    w1row = (jnp.zeros((1, L), f32)
             .at[0, 0:NE].set(p["hyper_w1_w"][:, 0].astype(f32))
             .at[0, NE:2 * NE].set(p["hyper_w1_b"].astype(f32)))
    small = (jnp.zeros((1, L), f32)
             .at[0, 0:E].set(p["hyper_b1_w"][:, 0].astype(f32))
             .at[0, E:2 * E].set(p["hyper_b1_b"].astype(f32))
             .at[0, 2 * E:3 * E].set(p["hyper_w2_w"][:, 0].astype(f32))
             .at[0, 3 * E:4 * E].set(p["hyper_w2_b"].astype(f32)))
    qs_rows = (jnp.zeros((B, L), f32)
               .at[:, 0:NE].set(jnp.repeat(agent_qs.astype(f32), E, axis=1)))
    vp = jnp.concatenate([mask_row, w1row, small, qs_rows, wfc], axis=0)   # (3+B+C, L)

    # conv weights/biases + leftover scalars packed into one SMEM array.
    sp = jnp.concatenate([
        p["conv1_w"].reshape(-1), p["conv1_b"].reshape(-1),
        p["conv2_w"].reshape(-1), p["conv2_b"].reshape(-1),
        p["fc_state_b"].reshape(-1), p["hyper_b2_w"].reshape(-1),
        p["hyper_b2_b"].reshape(-1)]).astype(f32)

    K9 = C * C * 9
    W1OFF, B1OFF = 0, K9
    W2OFF, B2OFF = K9 + C, K9 + C + K9
    FCB, B2W, B2B = 2 * K9 + 2 * C, 2 * K9 + 2 * C + 1, 2 * K9 + 2 * C + 2

    def kernel(sp_ref, x_ref, vp_ref, out_ref):

        def rot(x, s):
            # result[..., i] = x[..., (i + s) mod L]  (explicit concat rotation; wrap lands
            # only on garbage / masked-zero positions, verified for the slab geometry).
            s = s % L
            if s == 0:
                return x
            return jnp.concatenate([x[..., s:], x[..., :s]], axis=-1)

        mask = vp_ref[0:1, :]                                       # (1, L)

        # ---- conv1 (3x3, pad 1): ci-outer / tap / co-inner, C live accumulators ----
        acc1 = [jnp.zeros((BN, L), f32) for _ in range(C)]
        for ci in range(C):
            xp = x_ref[ci]                                          # (BN, L): 2 vregs
            for kh in range(3):
                for kw in range(3):
                    sh = rot(xp, kh * Wd + kw)
                    for co in range(C):
                        acc1[co] = acc1[co] + (
                            sp_ref[W1OFF + ((co * C + ci) * 3 + kh) * 3 + kw] * sh)

        # ---- bias + ReLU + maxpool(2) + validity mask (stays on the sparse grid) ----
        pooled = []
        for co in range(C):
            y = jnp.maximum(acc1[co] + sp_ref[B1OFF + co], 0.0)
            pv = jnp.maximum(jnp.maximum(y, rot(y, 1)),
                             jnp.maximum(rot(y, Wd), rot(y, Wd + 1)))
            pooled.append(pv * mask)                                # off-grid -> exact 0

        # ---- conv2 (3x3 on the sparse grid -> signed stride-2 shifts) ----
        acc2 = [jnp.zeros((BN, L), f32) for _ in range(C)]
        for ci in range(C):
            pm = pooled[ci]
            for kh in range(3):
                for kw in range(3):
                    sh = rot(pm, 2 * (kh - 1) * Wd + 2 * (kw - 1))
                    for co in range(C):
                        acc2[co] = acc2[co] + (
                            sp_ref[W2OFF + ((co * C + ci) * 3 + kh) * 3 + kw] * sh)

        # ---- bias + ReLU + pool2 + fc_state dot (fc weights pre-scattered; garbage x 0) ----
        dot_acc = jnp.zeros((BN, L), f32)
        for co in range(C):
            y = jnp.maximum(acc2[co] + sp_ref[B2OFF + co], 0.0)
            pv = jnp.maximum(jnp.maximum(y, rot(y, 2)),
                             jnp.maximum(rot(y, 2 * Wd), rot(y, 2 * Wd + 2)))
            dot_acc = dot_acc + pv * vp_ref[3 + B + co:4 + B + co, :]

        s8 = jnp.sum(dot_acc, axis=-1, keepdims=True)               # (BN, 1) per-sample dot

        # ---- hypernetwork mixing on (1, N*E) lane-dense tiles ----
        w1row_v = vp_ref[1:2, :]
        wh1, bh1 = w1row_v[:, 0:NE], w1row_v[:, NE:2 * NE]
        small_v = vp_ref[2:3, :]
        wb1, bb1 = small_v[:, 0:E], small_v[:, E:2 * E]
        wh2, bh2 = small_v[:, 2 * E:3 * E], small_v[:, 3 * E:4 * E]
        fcb, b2w, b2b = sp_ref[FCB], sp_ref[B2W], sp_ref[B2B]

        rows = lax.broadcasted_iota(jnp.int32, (BN, 1), 0)
        for b in range(B):
            sel = jnp.where((rows >= b * N) & (rows < (b + 1) * N), 1.0, 0.0)
            g = jnp.sum(s8 * sel, axis=0, keepdims=True) * (1.0 / N) + fcb   # (1,1) global state
            qs_b = vp_ref[3 + b:4 + b, 0:NE]                                  # (1, N*E)
            w1a = jnp.abs(g * wh1 + bh1)                                      # (1, N*E)
            contrib = qs_b * w1a
            hp = contrib[:, 0:E]
            for n in range(1, N):
                hp = hp + contrib[:, n * E:(n + 1) * E]
            hid = jnp.maximum(hp + (g * wb1 + bb1), 0.0)                      # (1, E)
            w2a = jnp.abs(g * wh2 + bh2)
            qb = jnp.sum(hid * w2a, axis=-1, keepdims=True) + g * b2w + b2b   # (1, 1)
            out_ref[b:b + 1, :] = qb

    smem = pl.BlockSpec(memory_space=pltpu.MemorySpace.SMEM)
    vmem = pl.BlockSpec(memory_space=pltpu.MemorySpace.VMEM)
    return pl.pallas_call(
        kernel,
        out_shape=jax.ShapeDtypeStruct((B, 1), f32),
        in_specs=[smem, vmem, vmem],
        out_specs=vmem,
    )(sp, xs, vp)


# ---------------- pure-JAX reference (PyTorch semantics, NCHW, f32) ----------------

def reference_forward(agent_qs, states, p):
    B, N = agent_qs.shape
    _, _, C, H, W = states.shape
    E = p["hyper_b1_w"].shape[0]
    hp = lax.Precision.HIGHEST
    x = states.reshape(B * N, C, H, W)

    def conv(x, w, b):
        y = lax.conv_general_dilated(x, w, (1, 1), [(1, 1), (1, 1)],
                                     dimension_numbers=("NCHW", "OIHW", "NCHW"),
                                     precision=hp)
        return jax.nn.relu(y + b[None, :, None, None])

    def pool(x):
        return lax.reduce_window(x, -jnp.inf, lax.max,
                                 (1, 1, 2, 2), (1, 1, 2, 2), "VALID")

    x = pool(conv(x, p["conv1_w"], p["conv1_b"]))
    x = pool(conv(x, p["conv2_w"], p["conv2_b"]))
    feats = x.reshape(B * N, -1)
    s = jnp.dot(feats, p["fc_state_w"].T, precision=hp) + p["fc_state_b"]
    g = s.reshape(B, N, 1).mean(axis=1)                                    # (B, 1)
    w1 = jnp.abs(jnp.dot(g, p["hyper_w1_w"].T, precision=hp)
                 + p["hyper_w1_b"]).reshape(B, N, E)
    b1 = (jnp.dot(g, p["hyper_b1_w"].T, precision=hp)
          + p["hyper_b1_b"]).reshape(B, 1, E)
    w2 = jnp.abs(jnp.dot(g, p["hyper_w2_w"].T, precision=hp)
                 + p["hyper_w2_b"]).reshape(B, E, 1)
    b2 = (jnp.dot(g, p["hyper_b2_w"].T, precision=hp)
          + p["hyper_b2_b"]).reshape(B, 1, 1)
    hidden = jax.nn.relu(
        jnp.einsum("bn,bne->be", agent_qs, w1, precision=hp)[:, None, :] + b1)
    q = jnp.einsum("bqe,beo->bqo", hidden, w2, precision=hp) + b2
    return q[..., 0]                                                       # (B, 1)


if __name__ == "__main__":
    B, N, C, H, W, E = 2, 4, 5, 13, 13, 32
    cnn_out_dim = (H // 4) * (W // 4) * C                                  # 45
    key = jax.random.PRNGKey(0)
    ks = jax.random.split(key, 16)
    f32 = jnp.float32
    p = dict(
        conv1_w=0.1 * jax.random.normal(ks[0], (C, C, 3, 3), f32),
        conv1_b=0.1 * jax.random.normal(ks[1], (C,), f32),
        conv2_w=0.1 * jax.random.normal(ks[2], (C, C, 3, 3), f32),
        conv2_b=0.1 * jax.random.normal(ks[3], (C,), f32),
        fc_state_w=0.1 * jax.random.normal(ks[4], (1, cnn_out_dim), f32),
        fc_state_b=0.1 * jax.random.normal(ks[5], (1,), f32),
        hyper_w1_w=0.1 * jax.random.normal(ks[6], (N * E, 1), f32),
        hyper_w1_b=0.1 * jax.random.normal(ks[7], (N * E,), f32),
        hyper_b1_w=0.1 * jax.random.normal(ks[8], (E, 1), f32),
        hyper_b1_b=0.1 * jax.random.normal(ks[9], (E,), f32),
        hyper_w2_w=0.1 * jax.random.normal(ks[10], (E, 1), f32),
        hyper_w2_b=0.1 * jax.random.normal(ks[11], (E,), f32),
        hyper_b2_w=0.1 * jax.random.normal(ks[12], (1, 1), f32),
        hyper_b2_b=0.1 * jax.random.normal(ks[13], (1,), f32),
    )
    agent_qs = jax.random.normal(ks[14], (B, N), f32)
    states = jax.random.normal(ks[15], (B, N, C, H, W), f32)

    out = jax.block_until_ready(mixing_network_forward(agent_qs, states, p))
    ref = jax.block_until_ready(reference_forward(agent_qs, states, p))
    assert out.shape == (B, 1), out.shape
    assert jnp.allclose(out, ref, atol=1e-4, rtol=1e-4), (out, ref)
    print("KERNEL_OK")
</pallas_src>

<mosaic_0001>
module attributes {stable_mosaic.version = 11 : i64} {
  func.func @kernel(%arg0: memref<463xf32, #tpu.memory_space<smem>>, %arg1: memref<5x8x256xf32, #tpu.memory_space<vmem>>, %arg2: memref<10x256xf32, #tpu.memory_space<vmem>>, %arg3: memref<2x1xf32, #tpu.memory_space<vmem>>) attributes {dimension_semantics = [], scalar_prefetch = 0 : i64, scratch_operands = 0 : i64, tpu.core_type = #tpu.core_type<tc>} {
    %c0 = arith.constant 0 : index
    %c0_0 = arith.constant 0 : index
    %0 = vector.load %arg2[%c0, %c0_0] : memref<10x256xf32, #tpu.memory_space<vmem>>, vector<1x256xf32>
    %cst = arith.constant 0.000000e+00 : f32
    %1 = vector.broadcast %cst : f32 to vector<8x256xf32>
    %cst_1 = arith.constant 0.000000e+00 : f32
    %2 = vector.broadcast %cst_1 : f32 to vector<8x256xf32>
    %cst_2 = arith.constant 0.000000e+00 : f32
    %3 = vector.broadcast %cst_2 : f32 to vector<8x256xf32>
    %cst_3 = arith.constant 0.000000e+00 : f32
    %4 = vector.broadcast %cst_3 : f32 to vector<8x256xf32>
    %cst_4 = arith.constant 0.000000e+00 : f32
    %5 = vector.broadcast %cst_4 : f32 to vector<8x256xf32>
    %c0_5 = arith.constant 0 : index
    %c0_6 = arith.constant 0 : index
    %c0_7 = arith.constant 0 : index
    %6 = vector.load %arg1[%c0_5, %c0_6, %c0_7] : memref<5x8x256xf32, #tpu.memory_space<vmem>>, vector<1x8x256xf32>
    %7 = vector.shape_cast %6 : vector<1x8x256xf32> to vector<8x256xf32>
    %c0_8 = arith.constant 0 : index
    %8 = memref.load %arg0[%c0_8] : memref<463xf32, #tpu.memory_space<smem>>
    %9 = vector.broadcast %8 : f32 to vector<8x256xf32>
    %10 = arith.mulf %9, %7 : vector<8x256xf32>
    %11 = arith.addf %1, %10 : vector<8x256xf32>
    %c45 = arith.constant 45 : index
    %12 = memref.load %arg0[%c45] : memref<463xf32, #tpu.memory_space<smem>>
    %13 = vector.broadcast %12 : f32 to vector<8x256xf32>
    %14 = arith.mulf %13, %7 : vector<8x256xf32>
    %15 = arith.addf %2, %14 : vector<8x256xf32>
    %c90 = arith.constant 90 : index
    %16 = memref.load %arg0[%c90] : memref<463xf32, #tpu.memory_space<smem>>
    %17 = vector.broadcast %16 : f32 to vector<8x256xf32>
    %18 = arith.mulf %17, %7 : vector<8x256xf32>
    %19 = arith.addf %3, %18 : vector<8x256xf32>
    %c135 = arith.constant 135 : index
    %20 = memref.load %arg0[%c135] : memref<463xf32, #tpu.memory_space<smem>>
    %21 = vector.broadcast %20 : f32 to vector<8x256xf32>
    %22 = arith.mulf %21, %7 : vector<8x256xf32>
    %23 = arith.addf %4, %22 : vector<8x256xf32>
    %c180 = arith.constant 180 : index
    %24 = memref.load %arg0[%c180] : memref<463xf32, #tpu.memory_space<smem>>
    %25 = vector.broadcast %24 : f32 to vector<8x256xf32>
    %26 = arith.mulf %25, %7 : vector<8x256xf32>
    %27 = arith.addf %5, %26 : vector<8x256xf32>
    %28 = vector.extract_strided_slice %7 {offsets = [0, 1], sizes = [8, 255], strides = [1, 1]} : vector<8x256xf32> to vector<8x255xf32>
    %29 = vector.extract_strided_slice %7 {offsets = [0, 0], sizes = [8, 1], strides = [1, 1]} : vector<8x256xf32> to vector<8x1xf32>
    %30 = tpu.concatenate %28, %29 in 1 : vector<8x255xf32>, vector<8x1xf32> -> vector<8x256xf32>
    %c1 = arith.constant 1 : index
    %31 = memref.load %arg0[%c1] : memref<463xf32, #tpu.memory_space<smem>>
    %32 = vector.broadcast %31 : f32 to vector<8x256xf32>
    %33 = arith.mulf %32, %30 : vector<8x256xf32>
    %34 = arith.addf %11, %33 : vector<8x256xf32>
    %c46 = arith.constant 46 : index
    %35 = memref.load %arg0[%c46] : memref<463xf32, #tpu.memory_space<smem>>
    %36 = vector.broadcast %35 : f32 to vector<8x256xf32>
    %37 = arith.mulf %36, %30 : vector<8x256xf32>
    %38 = arith.addf %15, %37 : vector<8x256xf32>
    %c91 = arith.constant 91 : index
    %39 = memref.load %arg0[%c91] : memref<463xf32, #tpu.memory_space<smem>>
    %40 = vector.broadcast %39 : f32 to vector<8x256xf32>
    %41 = arith.mulf %40, %30 : vector<8x256xf32>
    %42 = arith.addf %19, %41 : vector<8x256xf32>
    %c136 = arith.constant 136 : index
    %43 = memref.load %arg0[%c136] : memref<463xf32, #tpu.memory_space<smem>>
    %44 = vector.broadcast %43 : f32 to vector<8x256xf32>
    %45 = arith.mulf %44, %30 : vector<8x256xf32>
    %46 = arith.addf %23, %45 : vector<8x256xf32>
    %c181 = arith.constant 181 : index
    %47 = memref.load %arg0[%c181] : memref<463xf32, #tpu.memory_space<smem>>
    %48 = vector.broadcast %47 : f32 to vector<8x256xf32>
    %49 = arith.mulf %48, %30 : vector<8x256xf32>
    %50 = arith.addf %27, %49 : vector<8x256xf32>
    %51 = vector.extract_strided_slice %7 {offsets = [0, 2], sizes = [8, 254], strides = [1, 1]} : vector<8x256xf32> to vector<8x254xf32>
    %52 = vector.extract_strided_slice %7 {offsets = [0, 0], sizes = [8, 2], strides = [1, 1]} : vector<8x256xf32> to vector<8x2xf32>
    %53 = tpu.concatenate %51, %52 in 1 : vector<8x254xf32>, vector<8x2xf32> -> vector<8x256xf32>
    %c2 = arith.constant 2 : index
    %54 = memref.load %arg0[%c2] : memref<463xf32, #tpu.memory_space<smem>>
    %55 = vector.broadcast %54 : f32 to vector<8x256xf32>
    %56 = arith.mulf %55, %53 : vector<8x256xf32>
    %57 = arith.addf %34, %56 : vector<8x256xf32>
    %c47 = arith.constant 47 : index
    %58 = memref.load %arg0[%c47] : memref<463xf32, #tpu.memory_space<smem>>
    %59 = vector.broadcast %58 : f32 to vector<8x256xf32>
    %60 = arith.mulf %59, %53 : vector<8x256xf32>
    %61 = arith.addf %38, %60 : vector<8x256xf32>
    %c92 = arith.constant 92 : index
    %62 = memref.load %arg0[%c92] : memref<463xf32, #tpu.memory_space<smem>>
    %63 = vector.broadcast %62 : f32 to vector<8x256xf32>
    %64 = arith.mulf %63, %53 : vector<8x256xf32>
    %65 = arith.addf %42, %64 : vector<8x256xf32>
    %c137 = arith.constant 137 : index
    %66 = memref.load %arg0[%c137] : memref<463xf32, #tpu.memory_space<smem>>
    %67 = vector.broadcast %66 : f32 to vector<8x256xf32>
    %68 = arith.mulf %67, %53 : vector<8x256xf32>
    %69 = arith.addf %46, %68 : vector<8x256xf32>
    %c182 = arith.constant 182 : index
    %70 = memref.load %arg0[%c182] : memref<463xf32, #tpu.memory_space<smem>>
    %71 = vector.broadcast %70 : f32 to vector<8x256xf32>
    %72 = arith.mulf %71, %53 : vector<8x256xf32>
    %73 = arith.addf %50, %72 : vector<8x256xf32>
    %74 = vector.extract_strided_slice %7 {offsets = [0, 16], sizes = [8, 240], strides = [1, 1]} : vector<8x256xf32> to vector<8x240xf32>
    %75 = vector.extract_strided_slice %7 {offsets = [0, 0], sizes = [8, 16], strides = [1, 1]} : vector<8x256xf32> to vector<8x16xf32>
    %76 = tpu.concatenate %74, %75 in 1 : vector<8x240xf32>, vector<8x16xf32> -> vector<8x256xf32>
    %c3 = arith.constant 3 : index
    %77 = memref.load %arg0[%c3] : memref<463xf32, #tpu.memory_space<smem>>
    %78 = vector.broadcast %77 : f32 to vector<8x256xf32>
    %79 = arith.mulf %78, %76 : vector<8x256xf32>
    %80 = arith.addf %57, %79 : vector<8x256xf32>
    %c48 = arith.constant 48 : index
    %81 = memref.load %arg0[%c48] : memref<463xf32, #tpu.memory_space<smem>>
    %82 = vector.broadcast %81 : f32 to vector<8x256xf32>
    %83 = arith.mulf %82, %76 : vector<8x256xf32>
    %84 = arith.addf %61, %83 : vector<8x256xf32>
    %c93 = arith.constant 93 : index
    %85 = memref.load %arg0[%c93] : memref<463xf32, #tpu.memory_space<smem>>
    %86 = vector.broadcast %85 : f32 to vector<8x256xf32>
    %87 = arith.mulf %86, %76 : vector<8x256xf32>
    %88 = arith.addf %65, %87 : vector<8x256xf32>
    %c138 = arith.constant 138 : index
    %89 = memref.load %arg0[%c138] : memref<463xf32, #tpu.memory_space<smem>>
    %90 = vector.broadcast %89 : f32 to vector<8x256xf32>
    %91 = arith.mulf %90, %76 : vector<8x256xf32>
    %92 = arith.addf %69, %91 : vector<8x256xf32>
    %c183 = arith.constant 183 : index
    %93 = memref.load %arg0[%c183] : memref<463xf32, #tpu.memory_space<smem>>
    %94 = vector.broadcast %93 : f32 to vector<8x256xf32>
    %95 = arith.mulf %94, %76 : vector<8x256xf32>
    %96 = arith.addf %73, %95 : vector<8x256xf32>
    %97 = vector.extract_strided_slice %7 {offsets = [0, 17], sizes = [8, 239], strides = [1, 1]} : vector<8x256xf32> to vector<8x239xf32>
    %98 = vector.extract_strided_slice %7 {offsets = [0, 0], sizes = [8, 17], strides = [1, 1]} : vector<8x256xf32> to vector<8x17xf32>
    %99 = tpu.concatenate %97, %98 in 1 : vector<8x239xf32>, vector<8x17xf32> -> vector<8x256xf32>
    %c4 = arith.constant 4 : index
    %100 = memref.load %arg0[%c4] : memref<463xf32, #tpu.memory_space<smem>>
    %101 = vector.broadcast %100 : f32 to vector<8x256xf32>
    %102 = arith.mulf %101, %99 : vector<8x256xf32>
    %103 = arith.addf %80, %102 : vector<8x256xf32>
    %c49 = arith.constant 49 : index
    %104 = memref.load %arg0[%c49] : memref<463xf32, #tpu.memory_space<smem>>
    %105 = vector.broadcast %104 : f32 to vector<8x256xf32>
    %106 = arith.mulf %105, %99 : vector<8x256xf32>
    %107 = arith.addf %84, %106 : vector<8x256xf32>
    %c94 = arith.constant 94 : index
    %108 = memref.load %arg0[%c94] : memref<463xf32, #tpu.memory_space<smem>>
    %109 = vector.broadcast %108 : f32 to vector<8x256xf32>
    %110 = arith.mulf %109, %99 : vector<8x256xf32>
    %111 = arith.addf %88, %110 : vector<8x256xf32>
    %c139 = arith.constant 139 : index
    %112 = memref.load %arg0[%c139] : memref<463xf32, #tpu.memory_space<smem>>
    %113 = vector.broadcast %112 : f32 to vector<8x256xf32>
    %114 = arith.mulf %113, %99 : vector<8x256xf32>
    %115 = arith.addf %92, %114 : vector<8x256xf32>
    %c184 = arith.constant 184 : index
    %116 = memref.load %arg0[%c184] : memref<463xf32, #tpu.memory_space<smem>>
    %117 = vector.broadcast %116 : f32 to vector<8x256xf32>
    %118 = arith.mulf %117, %99 : vector<8x256xf32>
    %119 = arith.addf %96, %118 : vector<8x256xf32>
    %120 = vector.extract_strided_slice %7 {offsets = [0, 18], sizes = [8, 238], strides = [1, 1]} : vector<8x256xf32> to vector<8x238xf32>
    %121 = vector.extract_strided_slice %7 {offsets = [0, 0], sizes = [8, 18], strides = [1, 1]} : vector<8x256xf32> to vector<8x18xf32>
    %122 = tpu.concatenate %120, %121 in 1 : vector<8x238xf32>, vector<8x18xf32> -> vector<8x256xf32>
    %c5 = arith.constant 5 : index
    %123 = memref.load %arg0[%c5] : memref<463xf32, #tpu.memory_space<smem>>
    %124 = vector.broadcast %123 : f32 to vector<8x256xf32>
    %125 = arith.mulf %124, %122 : vector<8x256xf32>
    %126 = arith.addf %103, %125 : vector<8x256xf32>
    %c50 = arith.constant 50 : index
    %127 = memref.load %arg0[%c50] : memref<463xf32, #tpu.memory_space<smem>>
    %128 = vector.broadcast %127 : f32 to vector<8x256xf32>
    %129 = arith.mulf %128, %122 : vector<8x256xf32>
    %130 = arith.addf %107, %129 : vector<8x256xf32>
    %c95 = arith.constant 95 : index
    %131 = memref.load %arg0[%c95] : memref<463xf32, #tpu.memory_space<smem>>
    %132 = vector.broadcast %131 : f32 to vector<8x256xf32>
    %133 = arith.mulf %132, %122 : vector<8x256xf32>
    %134 = arith.addf %111, %133 : vector<8x256xf32>
    %c140 = arith.constant 140 : index
    %135 = memref.load %arg0[%c140] : memref<463xf32, #tpu.memory_space<smem>>
    %136 = vector.broadcast %135 : f32 to vector<8x256xf32>
    %137 = arith.mulf %136, %122 : vector<8x256xf32>
    %138 = arith.addf %115, %137 : vector<8x256xf32>
    %c185 = arith.constant 185 : index
    %139 = memref.load %arg0[%c185] : memref<463xf32, #tpu.memory_space<smem>>
    %140 = vector.broadcast %139 : f32 to vector<8x256xf32>
    %141 = arith.mulf %140, %122 : vector<8x256xf32>
    %142 = arith.addf %119, %141 : vector<8x256xf32>
    %143 = vector.extract_strided_slice %7 {offsets = [0, 32], sizes = [8, 224], strides = [1, 1]} : vector<8x256xf32> to vector<8x224xf32>
    %144 = vector.extract_strided_slice %7 {offsets = [0, 0], sizes = [8, 32], strides = [1, 1]} : vector<8x256xf32> to vector<8x32xf32>
    %145 = tpu.concatenate %143, %144 in 1 : vector<8x224xf32>, vector<8x32xf32> -> vector<8x256xf32>
    %c6 = arith.constant 6 : index
    %146 = memref.load %arg0[%c6] : memref<463xf32, #tpu.memory_space<smem>>
    %147 = vector.broadcast %146 : f32 to vector<8x256xf32>
    %148 = arith.mulf %147, %145 : vector<8x256xf32>
    %149 = arith.addf %126, %148 : vector<8x256xf32>
    %c51 = arith.constant 51 : index
    %150 = memref.load %arg0[%c51] : memref<463xf32, #tpu.memory_space<smem>>
    %151 = vector.broadcast %150 : f32 to vector<8x256xf32>
    %152 = arith.mulf %151, %145 : vector<8x256xf32>
    %153 = arith.addf %130, %152 : vector<8x256xf32>
    %c96 = arith.constant 96 : index
    %154 = memref.load %arg0[%c96] : memref<463xf32, #tpu.memory_space<smem>>
    %155 = vector.broadcast %154 : f32 to vector<8x256xf32>
    %156 = arith.mulf %155, %145 : vector<8x256xf32>
    %157 = arith.addf %134, %156 : vector<8x256xf32>
    %c141 = arith.constant 141 : index
    %158 = memref.load %arg0[%c141] : memref<463xf32, #tpu.memory_space<smem>>
    %159 = vector.broadcast %158 : f32 to vector<8x256xf32>
    %160 = arith.mulf %159, %145 : vector<8x256xf32>
    %161 = arith.addf %138, %160 : vector<8x256xf32>
    %c186 = arith.constant 186 : index
    %162 = memref.load %arg0[%c186] : memref<463xf32, #tpu.memory_space<smem>>
    %163 = vector.broadcast %162 : f32 to vector<8x256xf32>
    %164 = arith.mulf %163, %145 : vector<8x256xf32>
    %165 = arith.addf %142, %164 : vector<8x256xf32>
    %166 = vector.extract_strided_slice %7 {offsets = [0, 33], sizes = [8, 223], strides = [1, 1]} : vector<8x256xf32> to vector<8x223xf32>
    %167 = vector.extract_strided_slice %7 {offsets = [0, 0], sizes = [8, 33], strides = [1, 1]} : vector<8x256xf32> to vector<8x33xf32>
    %168 = tpu.concatenate %166, %167 in 1 : vector<8x223xf32>, vector<8x33xf32> -> vector<8x256xf32>
    %c7 = arith.constant 7 : index
    %169 = memref.load %arg0[%c7] : memref<463xf32, #tpu.memory_space<smem>>
    %170 = vector.broadcast %169 : f32 to vector<8x256xf32>
    %171 = arith.mulf %170, %168 : vector<8x256xf32>
    %172 = arith.addf %149, %171 : vector<8x256xf32>
    %c52 = arith.constant 52 : index
    %173 = memref.load %arg0[%c52] : memref<463xf32, #tpu.memory_space<smem>>
    %174 = vector.broadcast %173 : f32 to vector<8x256xf32>
    %175 = arith.mulf %174, %168 : vector<8x256xf32>
    %176 = arith.addf %153, %175 : vector<8x256xf32>
    %c97 = arith.constant 97 : index
    %177 = memref.load %arg0[%c97] : memref<463xf32, #tpu.memory_space<smem>>
    %178 = vector.broadcast %177 : f32 to vector<8x256xf32>
    %179 = arith.mulf %178, %168 : vector<8x256xf32>
    %180 = arith.addf %157, %179 : vector<8x256xf32>
    %c142 = arith.constant 142 : index
    %181 = memref.load %arg0[%c142] : memref<463xf32, #tpu.memory_space<smem>>
    %182 = vector.broadcast %181 : f32 to vector<8x256xf32>
    %183 = arith.mulf %182, %168 : vector<8x256xf32>
    %184 = arith.addf %161, %183 : vector<8x256xf32>
    %c187 = arith.constant 187 : index
    %185 = memref.load %arg0[%c187] : memref<463xf32, #tpu.memory_space<smem>>
    %186 = vector.broadcast %185 : f32 to vector<8x256xf32>
    %187 = arith.mulf %186, %168 : vector<8x256xf32>
    %188 = arith.addf %165, %187 : vector<8x256xf32>
    %189 = vector.extract_strided_slice %7 {offsets = [0, 34], sizes = [8, 222], strides = [1, 1]} : vector<8x256xf32> to vector<8x222xf32>
    %190 = vector.extract_strided_slice %7 {offsets = [0, 0], sizes = [8, 34], strides = [1, 1]} : vector<8x256xf32> to vector<8x34xf32>
    %191 = tpu.concatenate %189, %190 in 1 : vector<8x222xf32>, vector<8x34xf32> -> vector<8x256xf32>
    %c8 = arith.constant 8 : index
    %192 = memref.load %arg0[%c8] : memref<463xf32, #tpu.memory_space<smem>>
    %193 = vector.broadcast %192 : f32 to vector<8x256xf32>
    %194 = arith.mulf %193, %191 : vector<8x256xf32>
    %195 = arith.addf %172, %194 : vector<8x256xf32>
    %c53 = arith.constant 53 : index
    %196 = memref.load %arg0[%c53] : memref<463xf32, #tpu.memory_space<smem>>
    %197 = vector.broadcast %196 : f32 to vector<8x256xf32>
    %198 = arith.mulf %197, %191 : vector<8x256xf32>
    %199 = arith.addf %176, %198 : vector<8x256xf32>
    %c98 = arith.constant 98 : index
    %200 = memref.load %arg0[%c98] : memref<463xf32, #tpu.memory_space<smem>>
    %201 = vector.broadcast %200 : f32 to vector<8x256xf32>
    %202 = arith.mulf %201, %191 : vector<8x256xf32>
    %203 = arith.addf %180, %202 : vector<8x256xf32>
    %c143 = arith.constant 143 : index
    %204 = memref.load %arg0[%c143] : memref<463xf32, #tpu.memory_space<smem>>
    %205 = vector.broadcast %204 : f32 to vector<8x256xf32>
    %206 = arith.mulf %205, %191 : vector<8x256xf32>
    %207 = arith.addf %184, %206 : vector<8x256xf32>
    %c188 = arith.constant 188 : index
    %208 = memref.load %arg0[%c188] : memref<463xf32, #tpu.memory_space<smem>>
    %209 = vector.broadcast %208 : f32 to vector<8x256xf32>
    %210 = arith.mulf %209, %191 : vector<8x256xf32>
    %211 = arith.addf %188, %210 : vector<8x256xf32>
    %c1_9 = arith.constant 1 : index
    %c0_10 = arith.constant 0 : index
    %c0_11 = arith.constant 0 : index
    %212 = vector.load %arg1[%c1_9, %c0_10, %c0_11] : memref<5x8x256xf32, #tpu.memory_space<vmem>>, vector<1x8x256xf32>
    %213 = vector.shape_cast %212 : vector<1x8x256xf32> to vector<8x256xf32>
    %c9 = arith.constant 9 : index
    %214 = memref.load %arg0[%c9] : memref<463xf32, #tpu.memory_space<smem>>
    %215 = vector.broadcast %214 : f32 to vector<8x256xf32>
    %216 = arith.mulf %215, %213 : vector<8x256xf32>
    %217 = arith.addf %195, %216 : vector<8x256xf32>
    %c54 = arith.constant 54 : index
    %218 = memref.load %arg0[%c54] : memref<463xf32, #tpu.memory_space<smem>>
    %219 = vector.broadcast %218 : f32 to vector<8x256xf32>
    %220 = arith.mulf %219, %213 : vector<8x256xf32>
    %221 = arith.addf %199, %220 : vector<8x256xf32>
    %c99 = arith.constant 99 : index
    %222 = memref.load %arg0[%c99] : memref<463xf32, #tpu.memory_space<smem>>
    %223 = vector.broadcast %222 : f32 to vector<8x256xf32>
    %224 = arith.mulf %223, %213 : vector<8x256xf32>
    %225 = arith.addf %203, %224 : vector<8x256xf32>
    %c144 = arith.constant 144 : index
    %226 = memref.load %arg0[%c144] : memref<463xf32, #tpu.memory_space<smem>>
    %227 = vector.broadcast %226 : f32 to vector<8x256xf32>
    %228 = arith.mulf %227, %213 : vector<8x256xf32>
    %229 = arith.addf %207, %228 : vector<8x256xf32>
    %c189 = arith.constant 189 : index
    %230 = memref.load %arg0[%c189] : memref<463xf32, #tpu.memory_space<smem>>
    %231 = vector.broadcast %230 : f32 to vector<8x256xf32>
    %232 = arith.mulf %231, %213 : vector<8x256xf32>
    %233 = arith.addf %211, %232 : vector<8x256xf32>
    %234 = vector.extract_strided_slice %213 {offsets = [0, 1], sizes = [8, 255], strides = [1, 1]} : vector<8x256xf32> to vector<8x255xf32>
    %235 = vector.extract_strided_slice %213 {offsets = [0, 0], sizes = [8, 1], strides = [1, 1]} : vector<8x256xf32> to vector<8x1xf32>
    %236 = tpu.concatenate %234, %235 in 1 : vector<8x255xf32>, vector<8x1xf32> -> vector<8x256xf32>
    %c10 = arith.constant 10 : index
    %237 = memref.load %arg0[%c10] : memref<463xf32, #tpu.memory_space<smem>>
    %238 = vector.broadcast %237 : f32 to vector<8x256xf32>
    %239 = arith.mulf %238, %236 : vector<8x256xf32>
    %240 = arith.addf %217, %239 : vector<8x256xf32>
    %c55 = arith.constant 55 : index
    %241 = memref.load %arg0[%c55] : memref<463xf32, #tpu.memory_space<smem>>
    %242 = vector.broadcast %241 : f32 to vector<8x256xf32>
    %243 = arith.mulf %242, %236 : vector<8x256xf32>
    %244 = arith.addf %221, %243 : vector<8x256xf32>
    %c100 = arith.constant 100 : index
    %245 = memref.load %arg0[%c100] : memref<463xf32, #tpu.memory_space<smem>>
    %246 = vector.broadcast %245 : f32 to vector<8x256xf32>
    %247 = arith.mulf %246, %236 : vector<8x256xf32>
    %248 = arith.addf %225, %247 : vector<8x256xf32>
    %c145 = arith.constant 145 : index
    %249 = memref.load %arg0[%c145] : memref<463xf32, #tpu.memory_space<smem>>
    %250 = vector.broadcast %249 : f32 to vector<8x256xf32>
    %251 = arith.mulf %250, %236 : vector<8x256xf32>
    %252 = arith.addf %229, %251 : vector<8x256xf32>
    %c190 = arith.constant 190 : index
    %253 = memref.load %arg0[%c190] : memref<463xf32, #tpu.memory_space<smem>>
    %254 = vector.broadcast %253 : f32 to vector<8x256xf32>
    %255 = arith.mulf %254, %236 : vector<8x256xf32>
    %256 = arith.addf %233, %255 : vector<8x256xf32>
    %257 = vector.extract_strided_slice %213 {offsets = [0, 2], sizes = [8, 254], strides = [1, 1]} : vector<8x256xf32> to vector<8x254xf32>
    %258 = vector.extract_strided_slice %213 {offsets = [0, 0], sizes = [8, 2], strides = [1, 1]} : vector<8x256xf32> to vector<8x2xf32>
    %259 = tpu.concatenate %257, %258 in 1 : vector<8x254xf32>, vector<8x2xf32> -> vector<8x256xf32>
    %c11 = arith.constant 11 : index
    %260 = memref.load %arg0[%c11] : memref<463xf32, #tpu.memory_space<smem>>
    %261 = vector.broadcast %260 : f32 to vector<8x256xf32>
    %262 = arith.mulf %261, %259 : vector<8x256xf32>
    %263 = arith.addf %240, %262 : vector<8x256xf32>
    %c56 = arith.constant 56 : index
    %264 = memref.load %arg0[%c56] : memref<463xf32, #tpu.memory_space<smem>>
    %265 = vector.broadcast %264 : f32 to vector<8x256xf32>
    %266 = arith.mulf %265, %259 : vector<8x256xf32>
    %267 = arith.addf %244, %266 : vector<8x256xf32>
    %c101 = arith.constant 101 : index
    %268 = memref.load %arg0[%c101] : memref<463xf32, #tpu.memory_space<smem>>
    %269 = vector.broadcast %268 : f32 to vector<8x256xf32>
    %270 = arith.mulf %269, %259 : vector<8x256xf32>
    %271 = arith.addf %248, %270 : vector<8x256xf32>
    %c146 = arith.constant 146 : index
    %272 = memref.load %arg0[%c146] : memref<463xf32, #tpu.memory_space<smem>>
    %273 = vector.broadcast %272 : f32 to vector<8x256xf32>
    %274 = arith.mulf %273, %259 : vector<8x256xf32>
    %275 = arith.addf %252, %274 : vector<8x256xf32>
    %c191 = arith.constant 191 : index
    %276 = memref.load %arg0[%c191] : memref<463xf32, #tpu.memory_space<smem>>
    %277 = vector.broadcast %276 : f32 to vector<8x256xf32>
    %278 = arith.mulf %277, %259 : vector<8x256xf32>
    %279 = arith.addf %256, %278 : vector<8x256xf32>
    %280 = vector.extract_strided_slice %213 {offsets = [0, 16], sizes = [8, 240], strides = [1, 1]} : vector<8x256xf32> to vector<8x240xf32>
    %281 = vector.extract_strided_slice %213 {offsets = [0, 0], sizes = [8, 16], strides = [1, 1]} : vector<8x256xf32> to vector<8x16xf32>
    %282 = tpu.concatenate %280, %281 in 1 : vector<8x240xf32>, vector<8x16xf32> -> vector<8x256xf32>
    %c12 = arith.constant 12 : index
    %283 = memref.load %arg0[%c12] : memref<463xf32, #tpu.memory_space<smem>>
    %284 = vector.broadcast %283 : f32 to vector<8x256xf32>
    %285 = arith.mulf %284, %282 : vector<8x256xf32>
    %286 = arith.addf %263, %285 : vector<8x256xf32>
    %c57 = arith.constant 57 : index
    %287 = memref.load %arg0[%c57] : memref<463xf32, #tpu.memory_space<smem>>
    %288 = vector.broadcast %287 : f32 to vector<8x256xf32>
    %289 = arith.mulf %288, %282 : vector<8x256xf32>
    %290 = arith.addf %267, %289 : vector<8x256xf32>
    %c102 = arith.constant 102 : index
    %291 = memref.load %arg0[%c102] : memref<463xf32, #tpu.memory_space<smem>>
    %292 = vector.broadcast %291 : f32 to vector<8x256xf32>
    %293 = arith.mulf %292, %282 : vector<8x256xf32>
    %294 = arith.addf %271, %293 : vector<8x256xf32>
    %c147 = arith.constant 147 : index
    %295 = memref.load %arg0[%c147] : memref<463xf32, #tpu.memory_space<smem>>
    %296 = vector.broadcast %295 : f32 to vector<8x256xf32>
    %297 = arith.mulf %296, %282 : vector<8x256xf32>
    %298 = arith.addf %275, %297 : vector<8x256xf32>
    %c192 = arith.constant 192 : index
    %299 = memref.load %arg0[%c192] : memref<463xf32, #tpu.memory_space<smem>>
    %300 = vector.broadcast %299 : f32 to vector<8x256xf32>
    %301 = arith.mulf %300, %282 : vector<8x256xf32>
    %302 = arith.addf %279, %301 : vector<8x256xf32>
    %303 = vector.extract_strided_slice %213 {offsets = [0, 17], sizes = [8, 239], strides = [1, 1]} : vector<8x256xf32> to vector<8x239xf32>
    %304 = vector.extract_strided_slice %213 {offsets = [0, 0], sizes = [8, 17], strides = [1, 1]} : vector<8x256xf32> to vector<8x17xf32>
    %305 = tpu.concatenate %303, %304 in 1 : vector<8x239xf32>, vector<8x17xf32> -> vector<8x256xf32>
    %c13 = arith.constant 13 : index
    %306 = memref.load %arg0[%c13] : memref<463xf32, #tpu.memory_space<smem>>
    %307 = vector.broadcast %306 : f32 to vector<8x256xf32>
    %308 = arith.mulf %307, %305 : vector<8x256xf32>
    %309 = arith.addf %286, %308 : vector<8x256xf32>
    %c58 = arith.constant 58 : index
    %310 = memref.load %arg0[%c58] : memref<463xf32, #tpu.memory_space<smem>>
    %311 = vector.broadcast %310 : f32 to vector<8x256xf32>
    %312 = arith.mulf %311, %305 : vector<8x256xf32>
    %313 = arith.addf %290, %312 : vector<8x256xf32>
    %c103 = arith.constant 103 : index
    %314 = memref.load %arg0[%c103] : memref<463xf32, #tpu.memory_space<smem>>
    %315 = vector.broadcast %314 : f32 to vector<8x256xf32>
    %316 = arith.mulf %315, %305 : vector<8x256xf32>
    %317 = arith.addf %294, %316 : vector<8x256xf32>
    %c148 = arith.constant 148 : index
    %318 = memref.load %arg0[%c148] : memref<463xf32, #tpu.memory_space<smem>>
    %319 = vector.broadcast %318 : f32 to vector<8x256xf32>
    %320 = arith.mulf %319, %305 : vector<8x256xf32>
    %321 = arith.addf %298, %320 : vector<8x256xf32>
    %c193 = arith.constant 193 : index
    %322 = memref.load %arg0[%c193] : memref<463xf32, #tpu.memory_space<smem>>
    %323 = vector.broadcast %322 : f32 to vector<8x256xf32>
    %324 = arith.mulf %323, %305 : vector<8x256xf32>
    %325 = arith.addf %302, %324 : vector<8x256xf32>
    %326 = vector.extract_strided_slice %213 {offsets = [0, 18], sizes = [8, 238], strides = [1, 1]} : vector<8x256xf32> to vector<8x238xf32>
    %327 = vector.extract_strided_slice %213 {offsets = [0, 0], sizes = [8, 18], strides = [1, 1]} : vector<8x256xf32> to vector<8x18xf32>
    %328 = tpu.concatenate %326, %327 in 1 : vector<8x238xf32>, vector<8x18xf32> -> vector<8x256xf32>
    %c14 = arith.constant 14 : index
    %329 = memref.load %arg0[%c14] : memref<463xf32, #tpu.memory_space<smem>>
    %330 = vector.broadcast %329 : f32 to vector<8x256xf32>
    %331 = arith.mulf %330, %328 : vector<8x256xf32>
    %332 = arith.addf %309, %331 : vector<8x256xf32>
    %c59 = arith.constant 59 : index
    %333 = memref.load %arg0[%c59] : memref<463xf32, #tpu.memory_space<smem>>
    %334 = vector.broadcast %333 : f32 to vector<8x256xf32>
    %335 = arith.mulf %334, %328 : vector<8x256xf32>
    %336 = arith.addf %313, %335 : vector<8x256xf32>
    %c104 = arith.constant 104 : index
    %337 = memref.load %arg0[%c104] : memref<463xf32, #tpu.memory_space<smem>>
    %338 = vector.broadcast %337 : f32 to vector<8x256xf32>
    %339 = arith.mulf %338, %328 : vector<8x256xf32>
    %340 = arith.addf %317, %339 : vector<8x256xf32>
    %c149 = arith.constant 149 : index
    %341 = memref.load %arg0[%c149] : memref<463xf32, #tpu.memory_space<smem>>
    %342 = vector.broadcast %341 : f32 to vector<8x256xf32>
    %343 = arith.mulf %342, %328 : vector<8x256xf32>
    %344 = arith.addf %321, %343 : vector<8x256xf32>
    %c194 = arith.constant 194 : index
    %345 = memref.load %arg0[%c194] : memref<463xf32, #tpu.memory_space<smem>>
    %346 = vector.broadcast %345 : f32 to vector<8x256xf32>
    %347 = arith.mulf %346, %328 : vector<8x256xf32>
    %348 = arith.addf %325, %347 : vector<8x256xf32>
    %349 = vector.extract_strided_slice %213 {offsets = [0, 32], sizes = [8, 224], strides = [1, 1]} : vector<8x256xf32> to vector<8x224xf32>
    %350 = vector.extract_strided_slice %213 {offsets = [0, 0], sizes = [8, 32], strides = [1, 1]} : vector<8x256xf32> to vector<8x32xf32>
    %351 = tpu.concatenate %349, %350 in 1 : vector<8x224xf32>, vector<8x32xf32> -> vector<8x256xf32>
    %c15 = arith.constant 15 : index
    %352 = memref.load %arg0[%c15] : memref<463xf32, #tpu.memory_space<smem>>
    %353 = vector.broadcast %352 : f32 to vector<8x256xf32>
    %354 = arith.mulf %353, %351 : vector<8x256xf32>
    %355 = arith.addf %332, %354 : vector<8x256xf32>
    %c60 = arith.constant 60 : index
    %356 = memref.load %arg0[%c60] : memref<463xf32, #tpu.memory_space<smem>>
    %357 = vector.broadcast %356 : f32 to vector<8x256xf32>
    %358 = arith.mulf %357, %351 : vector<8x256xf32>
    %359 = arith.addf %336, %358 : vector<8x256xf32>
    %c105 = arith.constant 105 : index
    %360 = memref.load %arg0[%c105] : memref<463xf32, #tpu.memory_space<smem>>
    %361 = vector.broadcast %360 : f32 to vector<8x256xf32>
    %362 = arith.mulf %361, %351 : vector<8x256xf32>
    %363 = arith.addf %340, %362 : vector<8x256xf32>
    %c150 = arith.constant 150 : index
    %364 = memref.load %arg0[%c150] : memref<463xf32, #tpu.memory_space<smem>>
    %365 = vector.broadcast %364 : f32 to vector<8x256xf32>
    %366 = arith.mulf %365, %351 : vector<8x256xf32>
    %367 = arith.addf %344, %366 : vector<8x256xf32>
    %c195 = arith.constant 195 : index
    %368 = memref.load %arg0[%c195] : memref<463xf32, #tpu.memory_space<smem>>
    %369 = vector.broadcast %368 : f32 to vector<8x256xf32>
    %370 = arith.mulf %369, %351 : vector<8x256xf32>
    %371 = arith.addf %348, %370 : vector<8x256xf32>
    %372 = vector.extract_strided_slice %213 {offsets = [0, 33], sizes = [8, 223], strides = [1, 1]} : vector<8x256xf32> to vector<8x223xf32>
    %373 = vector.extract_strided_slice %213 {offsets = [0, 0], sizes = [8, 33], strides = [1, 1]} : vector<8x256xf32> to vector<8x33xf32>
    %374 = tpu.concatenate %372, %373 in 1 : vector<8x223xf32>, vector<8x33xf32> -> vector<8x256xf32>
    %c16 = arith.constant 16 : index
    %375 = memref.load %arg0[%c16] : memref<463xf32, #tpu.memory_space<smem>>
    %376 = vector.broadcast %375 : f32 to vector<8x256xf32>
    %377 = arith.mulf %376, %374 : vector<8x256xf32>
    %378 = arith.addf %355, %377 : vector<8x256xf32>
    %c61 = arith.constant 61 : index
    %379 = memref.load %arg0[%c61] : memref<463xf32, #tpu.memory_space<smem>>
    %380 = vector.broadcast %379 : f32 to vector<8x256xf32>
    %381 = arith.mulf %380, %374 : vector<8x256xf32>
    %382 = arith.addf %359, %381 : vector<8x256xf32>
    %c106 = arith.constant 106 : index
    %383 = memref.load %arg0[%c106] : memref<463xf32, #tpu.memory_space<smem>>
    %384 = vector.broadcast %383 : f32 to vector<8x256xf32>
    %385 = arith.mulf %384, %374 : vector<8x256xf32>
    %386 = arith.addf %363, %385 : vector<8x256xf32>
    %c151 = arith.constant 151 : index
    %387 = memref.load %arg0[%c151] : memref<463xf32, #tpu.memory_space<smem>>
    %388 = vector.broadcast %387 : f32 to vector<8x256xf32>
    %389 = arith.mulf %388, %374 : vector<8x256xf32>
    %390 = arith.addf %367, %389 : vector<8x256xf32>
    %c196 = arith.constant 196 : index
    %391 = memref.load %arg0[%c196] : memref<463xf32, #tpu.memory_space<smem>>
    %392 = vector.broadcast %391 : f32 to vector<8x256xf32>
    %393 = arith.mulf %392, %374 : vector<8x256xf32>
    %394 = arith.addf %371, %393 : vector<8x256xf32>
    %395 = vector.extract_strided_slice %213 {offsets = [0, 34], sizes = [8, 222], strides = [1, 1]} : vector<8x256xf32> to vector<8x222xf32>
    %396 = vector.extract_strided_slice %213 {offsets = [0, 0], sizes = [8, 34], strides = [1, 1]} : vector<8x256xf32> to vector<8x34xf32>
    %397 = tpu.concatenate %395, %396 in 1 : vector<8x222xf32>, vector<8x34xf32> -> vector<8x256xf32>
    %c17 = arith.constant 17 : index
    %398 = memref.load %arg0[%c17] : memref<463xf32, #tpu.memory_space<smem>>
    %399 = vector.broadcast %398 : f32 to vector<8x256xf32>
    %400 = arith.mulf %399, %397 : vector<8x256xf32>
    %401 = arith.addf %378, %400 : vector<8x256xf32>
    %c62 = arith.constant 62 : index
    %402 = memref.load %arg0[%c62] : memref<463xf32, #tpu.memory_space<smem>>
    %403 = vector.broadcast %402 : f32 to vector<8x256xf32>
    %404 = arith.mulf %403, %397 : vector<8x256xf32>
    %405 = arith.addf %382, %404 : vector<8x256xf32>
    %c107 = arith.constant 107 : index
    %406 = memref.load %arg0[%c107] : memref<463xf32, #tpu.memory_space<smem>>
    %407 = vector.broadcast %406 : f32 to vector<8x256xf32>
    %408 = arith.mulf %407, %397 : vector<8x256xf32>
    %409 = arith.addf %386, %408 : vector<8x256xf32>
    %c152 = arith.constant 152 : index
    %410 = memref.load %arg0[%c152] : memref<463xf32, #tpu.memory_space<smem>>
    %411 = vector.broadcast %410 : f32 to vector<8x256xf32>
    %412 = arith.mulf %411, %397 : vector<8x256xf32>
    %413 = arith.addf %390, %412 : vector<8x256xf32>
    %c197 = arith.constant 197 : index
    %414 = memref.load %arg0[%c197] : memref<463xf32, #tpu.memory_space<smem>>
    %415 = vector.broadcast %414 : f32 to vector<8x256xf32>
    %416 = arith.mulf %415, %397 : vector<8x256xf32>
    %417 = arith.addf %394, %416 : vector<8x256xf32>
    %c2_12 = arith.constant 2 : index
    %c0_13 = arith.constant 0 : index
    %c0_14 = arith.constant 0 : index
    %418 = vector.load %arg1[%c2_12, %c0_13, %c0_14] : memref<5x8x256xf32, #tpu.memory_space<vmem>>, vector<1x8x256xf32>
    %419 = vector.shape_cast %418 : vector<1x8x256xf32> to vector<8x256xf32>
    %c18 = arith.constant 18 : index
    %420 = memref.load %arg0[%c18] : memref<463xf32, #tpu.memory_space<smem>>
    %421 = vector.broadcast %420 : f32 to vector<8x256xf32>
    %422 = arith.mulf %421, %419 : vector<8x256xf32>
    %423 = arith.addf %401, %422 : vector<8x256xf32>
    %c63 = arith.constant 63 : index
    %424 = memref.load %arg0[%c63] : memref<463xf32, #tpu.memory_space<smem>>
    %425 = vector.broadcast %424 : f32 to vector<8x256xf32>
    %426 = arith.mulf %425, %419 : vector<8x256xf32>
    %427 = arith.addf %405, %426 : vector<8x256xf32>
    %c108 = arith.constant 108 : index
    %428 = memref.load %arg0[%c108] : memref<463xf32, #tpu.memory_space<smem>>
    %429 = vector.broadcast %428 : f32 to vector<8x256xf32>
    %430 = arith.mulf %429, %419 : vector<8x256xf32>
    %431 = arith.addf %409, %430 : vector<8x256xf32>
    %c153 = arith.constant 153 : index
    %432 = memref.load %arg0[%c153] : memref<463xf32, #tpu.memory_space<smem>>
    %433 = vector.broadcast %432 : f32 to vector<8x256xf32>
    %434 = arith.mulf %433, %419 : vector<8x256xf32>
    %435 = arith.addf %413, %434 : vector<8x256xf32>
    %c198 = arith.constant 198 : index
    %436 = memref.load %arg0[%c198] : memref<463xf32, #tpu.memory_space<smem>>
    %437 = vector.broadcast %436 : f32 to vector<8x256xf32>
    %438 = arith.mulf %437, %419 : vector<8x256xf32>
    %439 = arith.addf %417, %438 : vector<8x256xf32>
    %440 = vector.extract_strided_slice %419 {offsets = [0, 1], sizes = [8, 255], strides = [1, 1]} : vector<8x256xf32> to vector<8x255xf32>
    %441 = vector.extract_strided_slice %419 {offsets = [0, 0], sizes = [8, 1], strides = [1, 1]} : vector<8x256xf32> to vector<8x1xf32>
    %442 = tpu.concatenate %440, %441 in 1 : vector<8x255xf32>, vector<8x1xf32> -> vector<8x256xf32>
    %c19 = arith.constant 19 : index
    %443 = memref.load %arg0[%c19] : memref<463xf32, #tpu.memory_space<smem>>
    %444 = vector.broadcast %443 : f32 to vector<8x256xf32>
    %445 = arith.mulf %444, %442 : vector<8x256xf32>
    %446 = arith.addf %423, %445 : vector<8x256xf32>
    %c64 = arith.constant 64 : index
    %447 = memref.load %arg0[%c64] : memref<463xf32, #tpu.memory_space<smem>>
    %448 = vector.broadcast %447 : f32 to vector<8x256xf32>
    %449 = arith.mulf %448, %442 : vector<8x256xf32>
    %450 = arith.addf %427, %449 : vector<8x256xf32>
    %c109 = arith.constant 109 : index
    %451 = memref.load %arg0[%c109] : memref<463xf32, #tpu.memory_space<smem>>
    %452 = vector.broadcast %451 : f32 to vector<8x256xf32>
    %453 = arith.mulf %452, %442 : vector<8x256xf32>
    %454 = arith.addf %431, %453 : vector<8x256xf32>
    %c154 = arith.constant 154 : index
    %455 = memref.load %arg0[%c154] : memref<463xf32, #tpu.memory_space<smem>>
    %456 = vector.broadcast %455 : f32 to vector<8x256xf32>
    %457 = arith.mulf %456, %442 : vector<8x256xf32>
    %458 = arith.addf %435, %457 : vector<8x256xf32>
    %c199 = arith.constant 199 : index
    %459 = memref.load %arg0[%c199] : memref<463xf32, #tpu.memory_space<smem>>
    %460 = vector.broadcast %459 : f32 to vector<8x256xf32>
    %461 = arith.mulf %460, %442 : vector<8x256xf32>
    %462 = arith.addf %439, %461 : vector<8x256xf32>
    %463 = vector.extract_strided_slice %419 {offsets = [0, 2], sizes = [8, 254], strides = [1, 1]} : vector<8x256xf32> to vector<8x254xf32>
    %464 = vector.extract_strided_slice %419 {offsets = [0, 0], sizes = [8, 2], strides = [1, 1]} : vector<8x256xf32> to vector<8x2xf32>
    %465 = tpu.concatenate %463, %464 in 1 : vector<8x254xf32>, vector<8x2xf32> -> vector<8x256xf32>
    %c20 = arith.constant 20 : index
    %466 = memref.load %arg0[%c20] : memref<463xf32, #tpu.memory_space<smem>>
    %467 = vector.broadcast %466 : f32 to vector<8x256xf32>
    %468 = arith.mulf %467, %465 : vector<8x256xf32>
    %469 = arith.addf %446, %468 : vector<8x256xf32>
    %c65 = arith.constant 65 : index
    %470 = memref.load %arg0[%c65] : memref<463xf32, #tpu.memory_space<smem>>
    %471 = vector.broadcast %470 : f32 to vector<8x256xf32>
    %472 = arith.mulf %471, %465 : vector<8x256xf32>
    %473 = arith.addf %450, %472 : vector<8x256xf32>
    %c110 = arith.constant 110 : index
    %474 = memref.load %arg0[%c110] : memref<463xf32, #tpu.memory_space<smem>>
    %475 = vector.broadcast %474 : f32 to vector<8x256xf32>
    %476 = arith.mulf %475, %465 : vector<8x256xf32>
    %477 = arith.addf %454, %476 : vector<8x256xf32>
    %c155 = arith.constant 155 : index
    %478 = memref.load %arg0[%c155] : memref<463xf32, #tpu.memory_space<smem>>
    %479 = vector.broadcast %478 : f32 to vector<8x256xf32>
    %480 = arith.mulf %479, %465 : vector<8x256xf32>
    %481 = arith.addf %458, %480 : vector<8x256xf32>
    %c200 = arith.constant 200 : index
    %482 = memref.load %arg0[%c200] : memref<463xf32, #tpu.memory_space<smem>>
    %483 = vector.broadcast %482 : f32 to vector<8x256xf32>
    %484 = arith.mulf %483, %465 : vector<8x256xf32>
    %485 = arith.addf %462, %484 : vector<8x256xf32>
    %486 = vector.extract_strided_slice %419 {offsets = [0, 16], sizes = [8, 240], strides = [1, 1]} : vector<8x256xf32> to vector<8x240xf32>
    %487 = vector.extract_strided_slice %419 {offsets = [0, 0], sizes = [8, 16], strides = [1, 1]} : vector<8x256xf32> to vector<8x16xf32>
    %488 = tpu.concatenate %486, %487 in 1 : vector<8x240xf32>, vector<8x16xf32> -> vector<8x256xf32>
    %c21 = arith.constant 21 : index
    %489 = memref.load %arg0[%c21] : memref<463xf32, #tpu.memory_space<smem>>
    %490 = vector.broadcast %489 : f32 to vector<8x256xf32>
    %491 = arith.mulf %490, %488 : vector<8x256xf32>
    %492 = arith.addf %469, %491 : vector<8x256xf32>
    %c66 = arith.constant 66 : index
    %493 = memref.load %arg0[%c66] : memref<463xf32, #tpu.memory_space<smem>>
    %494 = vector.broadcast %493 : f32 to vector<8x256xf32>
    %495 = arith.mulf %494, %488 : vector<8x256xf32>
    %496 = arith.addf %473, %495 : vector<8x256xf32>
    %c111 = arith.constant 111 : index
    %497 = memref.load %arg0[%c111] : memref<463xf32, #tpu.memory_space<smem>>
    %498 = vector.broadcast %497 : f32 to vector<8x256xf32>
    %499 = arith.mulf %498, %488 : vector<8x256xf32>
    %500 = arith.addf %477, %499 : vector<8x256xf32>
    %c156 = arith.constant 156 : index
    %501 = memref.load %arg0[%c156] : memref<463xf32, #tpu.memory_space<smem>>
    %502 = vector.broadcast %501 : f32 to vector<8x256xf32>
    %503 = arith.mulf %502, %488 : vector<8x256xf32>
    %504 = arith.addf %481, %503 : vector<8x256xf32>
    %c201 = arith.constant 201 : index
    %505 = memref.load %arg0[%c201] : memref<463xf32, #tpu.memory_space<smem>>
    %506 = vector.broadcast %505 : f32 to vector<8x256xf32>
    %507 = arith.mulf %506, %488 : vector<8x256xf32>
    %508 = arith.addf %485, %507 : vector<8x256xf32>
    %509 = vector.extract_strided_slice %419 {offsets = [0, 17], sizes = [8, 239], strides = [1, 1]} : vector<8x256xf32> to vector<8x239xf32>
    %510 = vector.extract_strided_slice %419 {offsets = [0, 0], sizes = [8, 17], strides = [1, 1]} : vector<8x256xf32> to vector<8x17xf32>
    %511 = tpu.concatenate %509, %510 in 1 : vector<8x239xf32>, vector<8x17xf32> -> vector<8x256xf32>
    %c22 = arith.constant 22 : index
    %512 = memref.load %arg0[%c22] : memref<463xf32, #tpu.memory_space<smem>>
    %513 = vector.broadcast %512 : f32 to vector<8x256xf32>
    %514 = arith.mulf %513, %511 : vector<8x256xf32>
    %515 = arith.addf %492, %514 : vector<8x256xf32>
    %c67 = arith.constant 67 : index
    %516 = memref.load %arg0[%c67] : memref<463xf32, #tpu.memory_space<smem>>
    %517 = vector.broadcast %516 : f32 to vector<8x256xf32>
    %518 = arith.mulf %517, %511 : vector<8x256xf32>
    %519 = arith.addf %496, %518 : vector<8x256xf32>
    %c112 = arith.constant 112 : index
    %520 = memref.load %arg0[%c112] : memref<463xf32, #tpu.memory_space<smem>>
    %521 = vector.broadcast %520 : f32 to vector<8x256xf32>
    %522 = arith.mulf %521, %511 : vector<8x256xf32>
    %523 = arith.addf %500, %522 : vector<8x256xf32>
    %c157 = arith.constant 157 : index
    %524 = memref.load %arg0[%c157] : memref<463xf32, #tpu.memory_space<smem>>
    %525 = vector.broadcast %524 : f32 to vector<8x256xf32>
    %526 = arith.mulf %525, %511 : vector<8x256xf32>
    %527 = arith.addf %504, %526 : vector<8x256xf32>
    %c202 = arith.constant 202 : index
    %528 = memref.load %arg0[%c202] : memref<463xf32, #tpu.memory_space<smem>>
    %529 = vector.broadcast %528 : f32 to vector<8x256xf32>
    %530 = arith.mulf %529, %511 : vector<8x256xf32>
    %531 = arith.addf %508, %530 : vector<8x256xf32>
    %532 = vector.extract_strided_slice %419 {offsets = [0, 18], sizes = [8, 238], strides = [1, 1]} : vector<8x256xf32> to vector<8x238xf32>
    %533 = vector.extract_strided_slice %419 {offsets = [0, 0], sizes = [8, 18], strides = [1, 1]} : vector<8x256xf32> to vector<8x18xf32>
    %534 = tpu.concatenate %532, %533 in 1 : vector<8x238xf32>, vector<8x18xf32> -> vector<8x256xf32>
    %c23 = arith.constant 23 : index
    %535 = memref.load %arg0[%c23] : memref<463xf32, #tpu.memory_space<smem>>
    %536 = vector.broadcast %535 : f32 to vector<8x256xf32>
    %537 = arith.mulf %536, %534 : vector<8x256xf32>
    %538 = arith.addf %515, %537 : vector<8x256xf32>
    %c68 = arith.constant 68 : index
    %539 = memref.load %arg0[%c68] : memref<463xf32, #tpu.memory_space<smem>>
    %540 = vector.broadcast %539 : f32 to vector<8x256xf32>
    %541 = arith.mulf %540, %534 : vector<8x256xf32>
    %542 = arith.addf %519, %541 : vector<8x256xf32>
    %c113 = arith.constant 113 : index
    %543 = memref.load %arg0[%c113] : memref<463xf32, #tpu.memory_space<smem>>
    %544 = vector.broadcast %543 : f32 to vector<8x256xf32>
    %545 = arith.mulf %544, %534 : vector<8x256xf32>
    %546 = arith.addf %523, %545 : vector<8x256xf32>
    %c158 = arith.constant 158 : index
    %547 = memref.load %arg0[%c158] : memref<463xf32, #tpu.memory_space<smem>>
    %548 = vector.broadcast %547 : f32 to vector<8x256xf32>
    %549 = arith.mulf %548, %534 : vector<8x256xf32>
    %550 = arith.addf %527, %549 : vector<8x256xf32>
    %c203 = arith.constant 203 : index
    %551 = memref.load %arg0[%c203] : memref<463xf32, #tpu.memory_space<smem>>
    %552 = vector.broadcast %551 : f32 to vector<8x256xf32>
    %553 = arith.mulf %552, %534 : vector<8x256xf32>
    %554 = arith.addf %531, %553 : vector<8x256xf32>
    %555 = vector.extract_strided_slice %419 {offsets = [0, 32], sizes = [8, 224], strides = [1, 1]} : vector<8x256xf32> to vector<8x224xf32>
    %556 = vector.extract_strided_slice %419 {offsets = [0, 0], sizes = [8, 32], strides = [1, 1]} : vector<8x256xf32> to vector<8x32xf32>
    %557 = tpu.concatenate %555, %556 in 1 : vector<8x224xf32>, vector<8x32xf32> -> vector<8x256xf32>
    %c24 = arith.constant 24 : index
    %558 = memref.load %arg0[%c24] : memref<463xf32, #tpu.memory_space<smem>>
    %559 = vector.broadcast %558 : f32 to vector<8x256xf32>
    %560 = arith.mulf %559, %557 : vector<8x256xf32>
    %561 = arith.addf %538, %560 : vector<8x256xf32>
    %c69 = arith.constant 69 : index
    %562 = memref.load %arg0[%c69] : memref<463xf32, #tpu.memory_space<smem>>
    %563 = vector.broadcast %562 : f32 to vector<8x256xf32>
    %564 = arith.mulf %563, %557 : vector<8x256xf32>
    %565 = arith.addf %542, %564 : vector<8x256xf32>
    %c114 = arith.constant 114 : index
    %566 = memref.load %arg0[%c114] : memref<463xf32, #tpu.memory_space<smem>>
    %567 = vector.broadcast %566 : f32 to vector<8x256xf32>
    %568 = arith.mulf %567, %557 : vector<8x256xf32>
    %569 = arith.addf %546, %568 : vector<8x256xf32>
    %c159 = arith.constant 159 : index
    %570 = memref.load %arg0[%c159] : memref<463xf32, #tpu.memory_space<smem>>
    %571 = vector.broadcast %570 : f32 to vector<8x256xf32>
    %572 = arith.mulf %571, %557 : vector<8x256xf32>
    %573 = arith.addf %550, %572 : vector<8x256xf32>
    %c204 = arith.constant 204 : index
    %574 = memref.load %arg0[%c204] : memref<463xf32, #tpu.memory_space<smem>>
    %575 = vector.broadcast %574 : f32 to vector<8x256xf32>
    %576 = arith.mulf %575, %557 : vector<8x256xf32>
    %577 = arith.addf %554, %576 : vector<8x256xf32>
    %578 = vector.extract_strided_slice %419 {offsets = [0, 33], sizes = [8, 223], strides = [1, 1]} : vector<8x256xf32> to vector<8x223xf32>
    %579 = vector.extract_strided_slice %419 {offsets = [0, 0], sizes = [8, 33], strides = [1, 1]} : vector<8x256xf32> to vector<8x33xf32>
    %580 = tpu.concatenate %578, %579 in 1 : vector<8x223xf32>, vector<8x33xf32> -> vector<8x256xf32>
    %c25 = arith.constant 25 : index
    %581 = memref.load %arg0[%c25] : memref<463xf32, #tpu.memory_space<smem>>
    %582 = vector.broadcast %581 : f32 to vector<8x256xf32>
    %583 = arith.mulf %582, %580 : vector<8x256xf32>
    %584 = arith.addf %561, %583 : vector<8x256xf32>
    %c70 = arith.constant 70 : index
    %585 = memref.load %arg0[%c70] : memref<463xf32, #tpu.memory_space<smem>>
    %586 = vector.broadcast %585 : f32 to vector<8x256xf32>
    %587 = arith.mulf %586, %580 : vector<8x256xf32>
    %588 = arith.addf %565, %587 : vector<8x256xf32>
    %c115 = arith.constant 115 : index
    %589 = memref.load %arg0[%c115] : memref<463xf32, #tpu.memory_space<smem>>
    %590 = vector.broadcast %589 : f32 to vector<8x256xf32>
    %591 = arith.mulf %590, %580 : vector<8x256xf32>
    %592 = arith.addf %569, %591 : vector<8x256xf32>
    %c160 = arith.constant 160 : index
    %593 = memref.load %arg0[%c160] : memref<463xf32, #tpu.memory_space<smem>>
    %594 = vector.broadcast %593 : f32 to vector<8x256xf32>
    %595 = arith.mulf %594, %580 : vector<8x256xf32>
    %596 = arith.addf %573, %595 : vector<8x256xf32>
    %c205 = arith.constant 205 : index
    %597 = memref.load %arg0[%c205] : memref<463xf32, #tpu.memory_space<smem>>
    %598 = vector.broadcast %597 : f32 to vector<8x256xf32>
    %599 = arith.mulf %598, %580 : vector<8x256xf32>
    %600 = arith.addf %577, %599 : vector<8x256xf32>
    %601 = vector.extract_strided_slice %419 {offsets = [0, 34], sizes = [8, 222], strides = [1, 1]} : vector<8x256xf32> to vector<8x222xf32>
    %602 = vector.extract_strided_slice %419 {offsets = [0, 0], sizes = [8, 34], strides = [1, 1]} : vector<8x256xf32> to vector<8x34xf32>
    %603 = tpu.concatenate %601, %602 in 1 : vector<8x222xf32>, vector<8x34xf32> -> vector<8x256xf32>
    %c26 = arith.constant 26 : index
    %604 = memref.load %arg0[%c26] : memref<463xf32, #tpu.memory_space<smem>>
    %605 = vector.broadcast %604 : f32 to vector<8x256xf32>
    %606 = arith.mulf %605, %603 : vector<8x256xf32>
    %607 = arith.addf %584, %606 : vector<8x256xf32>
    %c71 = arith.constant 71 : index
    %608 = memref.load %arg0[%c71] : memref<463xf32, #tpu.memory_space<smem>>
    %609 = vector.broadcast %608 : f32 to vector<8x256xf32>
    %610 = arith.mulf %609, %603 : vector<8x256xf32>
    %611 = arith.addf %588, %610 : vector<8x256xf32>
    %c116 = arith.constant 116 : index
    %612 = memref.load %arg0[%c116] : memref<463xf32, #tpu.memory_space<smem>>
    %613 = vector.broadcast %612 : f32 to vector<8x256xf32>
    %614 = arith.mulf %613, %603 : vector<8x256xf32>
    %615 = arith.addf %592, %614 : vector<8x256xf32>
    %c161 = arith.constant 161 : index
    %616 = memref.load %arg0[%c161] : memref<463xf32, #tpu.memory_space<smem>>
    %617 = vector.broadcast %616 : f32 to vector<8x256xf32>
    %618 = arith.mulf %617, %603 : vector<8x256xf32>
    %619 = arith.addf %596, %618 : vector<8x256xf32>
    %c206 = arith.constant 206 : index
    %620 = memref.load %arg0[%c206] : memref<463xf32, #tpu.memory_space<smem>>
    %621 = vector.broadcast %620 : f32 to vector<8x256xf32>
    %622 = arith.mulf %621, %603 : vector<8x256xf32>
    %623 = arith.addf %600, %622 : vector<8x256xf32>
    %c3_15 = arith.constant 3 : index
    %c0_16 = arith.constant 0 : index
    %c0_17 = arith.constant 0 : index
    %624 = vector.load %arg1[%c3_15, %c0_16, %c0_17] : memref<5x8x256xf32, #tpu.memory_space<vmem>>, vector<1x8x256xf32>
    %625 = vector.shape_cast %624 : vector<1x8x256xf32> to vector<8x256xf32>
    %c27 = arith.constant 27 : index
    %626 = memref.load %arg0[%c27] : memref<463xf32, #tpu.memory_space<smem>>
    %627 = vector.broadcast %626 : f32 to vector<8x256xf32>
    %628 = arith.mulf %627, %625 : vector<8x256xf32>
    %629 = arith.addf %607, %628 : vector<8x256xf32>
    %c72 = arith.constant 72 : index
    %630 = memref.load %arg0[%c72] : memref<463xf32, #tpu.memory_space<smem>>
    %631 = vector.broadcast %630 : f32 to vector<8x256xf32>
    %632 = arith.mulf %631, %625 : vector<8x256xf32>
    %633 = arith.addf %611, %632 : vector<8x256xf32>
    %c117 = arith.constant 117 : index
    %634 = memref.load %arg0[%c117] : memref<463xf32, #tpu.memory_space<smem>>
    %635 = vector.broadcast %634 : f32 to vector<8x256xf32>
    %636 = arith.mulf %635, %625 : vector<8x256xf32>
    %637 = arith.addf %615, %636 : vector<8x256xf32>
    %c162 = arith.constant 162 : index
    %638 = memref.load %arg0[%c162] : memref<463xf32, #tpu.memory_space<smem>>
    %639 = vector.broadcast %638 : f32 to vector<8x256xf32>
    %640 = arith.mulf %639, %625 : vector<8x256xf32>
    %641 = arith.addf %619, %640 : vector<8x256xf32>
    %c207 = arith.constant 207 : index
    %642 = memref.load %arg0[%c207] : memref<463xf32, #tpu.memory_space<smem>>
    %643 = vector.broadcast %642 : f32 to vector<8x256xf32>
    %644 = arith.mulf %643, %625 : vector<8x256xf32>
    %645 = arith.addf %623, %644 : vector<8x256xf32>
    %646 = vector.extract_strided_slice %625 {offsets = [0, 1], sizes = [8, 255], strides = [1, 1]} : vector<8x256xf32> to vector<8x255xf32>
    %647 = vector.extract_strided_slice %625 {offsets = [0, 0], sizes = [8, 1], strides = [1, 1]} : vector<8x256xf32> to vector<8x1xf32>
    %648 = tpu.concatenate %646, %647 in 1 : vector<8x255xf32>, vector<8x1xf32> -> vector<8x256xf32>
    %c28 = arith.constant 28 : index
    %649 = memref.load %arg0[%c28] : memref<463xf32, #tpu.memory_space<smem>>
    %650 = vector.broadcast %649 : f32 to vector<8x256xf32>
    %651 = arith.mulf %650, %648 : vector<8x256xf32>
    %652 = arith.addf %629, %651 : vector<8x256xf32>
    %c73 = arith.constant 73 : index
    %653 = memref.load %arg0[%c73] : memref<463xf32, #tpu.memory_space<smem>>
    %654 = vector.broadcast %653 : f32 to vector<8x256xf32>
    %655 = arith.mulf %654, %648 : vector<8x256xf32>
    %656 = arith.addf %633, %655 : vector<8x256xf32>
    %c118 = arith.constant 118 : index
    %657 = memref.load %arg0[%c118] : memref<463xf32, #tpu.memory_space<smem>>
    %658 = vector.broadcast %657 : f32 to vector<8x256xf32>
    %659 = arith.mulf %658, %648 : vector<8x256xf32>
    %660 = arith.addf %637, %659 : vector<8x256xf32>
    %c163 = arith.constant 163 : index
    %661 = memref.load %arg0[%c163] : memref<463xf32, #tpu.memory_space<smem>>
    %662 = vector.broadcast %661 : f32 to vector<8x256xf32>
    %663 = arith.mulf %662, %648 : vector<8x256xf32>
    %664 = arith.addf %641, %663 : vector<8x256xf32>
    %c208 = arith.constant 208 : index
    %665 = memref.load %arg0[%c208] : memref<463xf32, #tpu.memory_space<smem>>
    %666 = vector.broadcast %665 : f32 to vector<8x256xf32>
    %667 = arith.mulf %666, %648 : vector<8x256xf32>
    %668 = arith.addf %645, %667 : vector<8x256xf32>
    %669 = vector.extract_strided_slice %625 {offsets = [0, 2], sizes = [8, 254], strides = [1, 1]} : vector<8x256xf32> to vector<8x254xf32>
    %670 = vector.extract_strided_slice %625 {offsets = [0, 0], sizes = [8, 2], strides = [1, 1]} : vector<8x256xf32> to vector<8x2xf32>
    %671 = tpu.concatenate %669, %670 in 1 : vector<8x254xf32>, vector<8x2xf32> -> vector<8x256xf32>
    %c29 = arith.constant 29 : index
    %672 = memref.load %arg0[%c29] : memref<463xf32, #tpu.memory_space<smem>>
    %673 = vector.broadcast %672 : f32 to vector<8x256xf32>
    %674 = arith.mulf %673, %671 : vector<8x256xf32>
    %675 = arith.addf %652, %674 : vector<8x256xf32>
    %c74 = arith.constant 74 : index
    %676 = memref.load %arg0[%c74] : memref<463xf32, #tpu.memory_space<smem>>
    %677 = vector.broadcast %676 : f32 to vector<8x256xf32>
    %678 = arith.mulf %677, %671 : vector<8x256xf32>
    %679 = arith.addf %656, %678 : vector<8x256xf32>
    %c119 = arith.constant 119 : index
    %680 = memref.load %arg0[%c119] : memref<463xf32, #tpu.memory_space<smem>>
    %681 = vector.broadcast %680 : f32 to vector<8x256xf32>
    %682 = arith.mulf %681, %671 : vector<8x256xf32>
    %683 = arith.addf %660, %682 : vector<8x256xf32>
    %c164 = arith.constant 164 : index
    %684 = memref.load %arg0[%c164] : memref<463xf32, #tpu.memory_space<smem>>
    %685 = vector.broadcast %684 : f32 to vector<8x256xf32>
    %686 = arith.mulf %685, %671 : vector<8x256xf32>
    %687 = arith.addf %664, %686 : vector<8x256xf32>
    %c209 = arith.constant 209 : index
    %688 = memref.load %arg0[%c209] : memref<463xf32, #tpu.memory_space<smem>>
    %689 = vector.broadcast %688 : f32 to vector<8x256xf32>
    %690 = arith.mulf %689, %671 : vector<8x256xf32>
    %691 = arith.addf %668, %690 : vector<8x256xf32>
    %692 = vector.extract_strided_slice %625 {offsets = [0, 16], sizes = [8, 240], strides = [1, 1]} : vector<8x256xf32> to vector<8x240xf32>
    %693 = vector.extract_strided_slice %625 {offsets = [0, 0], sizes = [8, 16], strides = [1, 1]} : vector<8x256xf32> to vector<8x16xf32>
    %694 = tpu.concatenate %692, %693 in 1 : vector<8x240xf32>, vector<8x16xf32> -> vector<8x256xf32>
    %c30 = arith.constant 30 : index
    %695 = memref.load %arg0[%c30] : memref<463xf32, #tpu.memory_space<smem>>
    %696 = vector.broadcast %695 : f32 to vector<8x256xf32>
    %697 = arith.mulf %696, %694 : vector<8x256xf32>
    %698 = arith.addf %675, %697 : vector<8x256xf32>
    %c75 = arith.constant 75 : index
    %699 = memref.load %arg0[%c75] : memref<463xf32, #tpu.memory_space<smem>>
    %700 = vector.broadcast %699 : f32 to vector<8x256xf32>
    %701 = arith.mulf %700, %694 : vector<8x256xf32>
    %702 = arith.addf %679, %701 : vector<8x256xf32>
    %c120 = arith.constant 120 : index
    %703 = memref.load %arg0[%c120] : memref<463xf32, #tpu.memory_space<smem>>
    %704 = vector.broadcast %703 : f32 to vector<8x256xf32>
    %705 = arith.mulf %704, %694 : vector<8x256xf32>
    %706 = arith.addf %683, %705 : vector<8x256xf32>
    %c165 = arith.constant 165 : index
    %707 = memref.load %arg0[%c165] : memref<463xf32, #tpu.memory_space<smem>>
    %708 = vector.broadcast %707 : f32 to vector<8x256xf32>
    %709 = arith.mulf %708, %694 : vector<8x256xf32>
    %710 = arith.addf %687, %709 : vector<8x256xf32>
    %c210 = arith.constant 210 : index
    %711 = memref.load %arg0[%c210] : memref<463xf32, #tpu.memory_space<smem>>
    %712 = vector.broadcast %711 : f32 to vector<8x256xf32>
    %713 = arith.mulf %712, %694 : vector<8x256xf32>
    %714 = arith.addf %691, %713 : vector<8x256xf32>
    %715 = vector.extract_strided_slice %625 {offsets = [0, 17], sizes = [8, 239], strides = [1, 1]} : vector<8x256xf32> to vector<8x239xf32>
    %716 = vector.extract_strided_slice %625 {offsets = [0, 0], sizes = [8, 17], strides = [1, 1]} : vector<8x256xf32> to vector<8x17xf32>
    %717 = tpu.concatenate %715, %716 in 1 : vector<8x239xf32>, vector<8x17xf32> -> vector<8x256xf32>
    %c31 = arith.constant 31 : index
    %718 = memref.load %arg0[%c31] : memref<463xf32, #tpu.memory_space<smem>>
    %719 = vector.broadcast %718 : f32 to vector<8x256xf32>
    %720 = arith.mulf %719, %717 : vector<8x256xf32>
    %721 = arith.addf %698, %720 : vector<8x256xf32>
    %c76 = arith.constant 76 : index
    %722 = memref.load %arg0[%c76] : memref<463xf32, #tpu.memory_space<smem>>
    %723 = vector.broadcast %722 : f32 to vector<8x256xf32>
    %724 = arith.mulf %723, %717 : vector<8x256xf32>
    %725 = arith.addf %702, %724 : vector<8x256xf32>
    %c121 = arith.constant 121 : index
    %726 = memref.load %arg0[%c121] : memref<463xf32, #tpu.memory_space<smem>>
    %727 = vector.broadcast %726 : f32 to vector<8x256xf32>
    %728 = arith.mulf %727, %717 : vector<8x256xf32>
    %729 = arith.addf %706, %728 : vector<8x256xf32>
    %c166 = arith.constant 166 : index
    %730 = memref.load %arg0[%c166] : memref<463xf32, #tpu.memory_space<smem>>
    %731 = vector.broadcast %730 : f32 to vector<8x256xf32>
    %732 = arith.mulf %731, %717 : vector<8x256xf32>
    %733 = arith.addf %710, %732 : vector<8x256xf32>
    %c211 = arith.constant 211 : index
    %734 = memref.load %arg0[%c211] : memref<463xf32, #tpu.memory_space<smem>>
    %735 = vector.broadcast %734 : f32 to vector<8x256xf32>
    %736 = arith.mulf %735, %717 : vector<8x256xf32>
    %737 = arith.addf %714, %736 : vector<8x256xf32>
    %738 = vector.extract_strided_slice %625 {offsets = [0, 18], sizes = [8, 238], strides = [1, 1]} : vector<8x256xf32> to vector<8x238xf32>
    %739 = vector.extract_strided_slice %625 {offsets = [0, 0], sizes = [8, 18], strides = [1, 1]} : vector<8x256xf32> to vector<8x18xf32>
    %740 = tpu.concatenate %738, %739 in 1 : vector<8x238xf32>, vector<8x18xf32> -> vector<8x256xf32>
    %c32 = arith.constant 32 : index
    %741 = memref.load %arg0[%c32] : memref<463xf32, #tpu.memory_space<smem>>
    %742 = vector.broadcast %741 : f32 to vector<8x256xf32>
    %743 = arith.mulf %742, %740 : vector<8x256xf32>
    %744 = arith.addf %721, %743 : vector<8x256xf32>
    %c77 = arith.constant 77 : index
    %745 = memref.load %arg0[%c77] : memref<463xf32, #tpu.memory_space<smem>>
    %746 = vector.broadcast %745 : f32 to vector<8x256xf32>
    %747 = arith.mulf %746, %740 : vector<8x256xf32>
    %748 = arith.addf %725, %747 : vector<8x256xf32>
    %c122 = arith.constant 122 : index
    %749 = memref.load %arg0[%c122] : memref<463xf32, #tpu.memory_space<smem>>
    %750 = vector.broadcast %749 : f32 to vector<8x256xf32>
    %751 = arith.mulf %750, %740 : vector<8x256xf32>
    %752 = arith.addf %729, %751 : vector<8x256xf32>
    %c167 = arith.constant 167 : index
    %753 = memref.load %arg0[%c167] : memref<463xf32, #tpu.memory_space<smem>>
    %754 = vector.broadcast %753 : f32 to vector<8x256xf32>
    %755 = arith.mulf %754, %740 : vector<8x256xf32>
    %756 = arith.addf %733, %755 : vector<8x256xf32>
    %c212 = arith.constant 212 : index
    %757 = memref.load %arg0[%c212] : memref<463xf32, #tpu.memory_space<smem>>
    %758 = vector.broadcast %757 : f32 to vector<8x256xf32>
    %759 = arith.mulf %758, %740 : vector<8x256xf32>
    %760 = arith.addf %737, %759 : vector<8x256xf32>
    %761 = vector.extract_strided_slice %625 {offsets = [0, 32], sizes = [8, 224], strides = [1, 1]} : vector<8x256xf32> to vector<8x224xf32>
    %762 = vector.extract_strided_slice %625 {offsets = [0, 0], sizes = [8, 32], strides = [1, 1]} : vector<8x256xf32> to vector<8x32xf32>
    %763 = tpu.concatenate %761, %762 in 1 : vector<8x224xf32>, vector<8x32xf32> -> vector<8x256xf32>
    %c33 = arith.constant 33 : index
    %764 = memref.load %arg0[%c33] : memref<463xf32, #tpu.memory_space<smem>>
    %765 = vector.broadcast %764 : f32 to vector<8x256xf32>
    %766 = arith.mulf %765, %763 : vector<8x256xf32>
    %767 = arith.addf %744, %766 : vector<8x256xf32>
    %c78 = arith.constant 78 : index
    %768 = memref.load %arg0[%c78] : memref<463xf32, #tpu.memory_space<smem>>
    %769 = vector.broadcast %768 : f32 to vector<8x256xf32>
    %770 = arith.mulf %769, %763 : vector<8x256xf32>
    %771 = arith.addf %748, %770 : vector<8x256xf32>
    %c123 = arith.constant 123 : index
    %772 = memref.load %arg0[%c123] : memref<463xf32, #tpu.memory_space<smem>>
    %773 = vector.broadcast %772 : f32 to vector<8x256xf32>
    %774 = arith.mulf %773, %763 : vector<8x256xf32>
    %775 = arith.addf %752, %774 : vector<8x256xf32>
    %c168 = arith.constant 168 : index
    %776 = memref.load %arg0[%c168] : memref<463xf32, #tpu.memory_space<smem>>
    %777 = vector.broadcast %776 : f32 to vector<8x256xf32>
    %778 = arith.mulf %777, %763 : vector<8x256xf32>
    %779 = arith.addf %756, %778 : vector<8x256xf32>
    %c213 = arith.constant 213 : index
    %780 = memref.load %arg0[%c213] : memref<463xf32, #tpu.memory_space<smem>>
    %781 = vector.broadcast %780 : f32 to vector<8x256xf32>
    %782 = arith.mulf %781, %763 : vector<8x256xf32>
    %783 = arith.addf %760, %782 : vector<8x256xf32>
    %784 = vector.extract_strided_slice %625 {offsets = [0, 33], sizes = [8, 223], strides = [1, 1]} : vector<8x256xf32> to vector<8x223xf32>
    %785 = vector.extract_strided_slice %625 {offsets = [0, 0], sizes = [8, 33], strides = [1, 1]} : vector<8x256xf32> to vector<8x33xf32>
    %786 = tpu.concatenate %784, %785 in 1 : vector<8x223xf32>, vector<8x33xf32> -> vector<8x256xf32>
    %c34 = arith.constant 34 : index
    %787 = memref.load %arg0[%c34] : memref<463xf32, #tpu.memory_space<smem>>
    %788 = vector.broadcast %787 : f32 to vector<8x256xf32>
    %789 = arith.mulf %788, %786 : vector<8x256xf32>
    %790 = arith.addf %767, %789 : vector<8x256xf32>
    %c79 = arith.constant 79 : index
    %791 = memref.load %arg0[%c79] : memref<463xf32, #tpu.memory_space<smem>>
    %792 = vector.broadcast %791 : f32 to vector<8x256xf32>
    %793 = arith.mulf %792, %786 : vector<8x256xf32>
    %794 = arith.addf %771, %793 : vector<8x256xf32>
    %c124 = arith.constant 124 : index
    %795 = memref.load %arg0[%c124] : memref<463xf32, #tpu.memory_space<smem>>
    %796 = vector.broadcast %795 : f32 to vector<8x256xf32>
    %797 = arith.mulf %796, %786 : vector<8x256xf32>
    %798 = arith.addf %775, %797 : vector<8x256xf32>
    %c169 = arith.constant 169 : index
    %799 = memref.load %arg0[%c169] : memref<463xf32, #tpu.memory_space<smem>>
    %800 = vector.broadcast %799 : f32 to vector<8x256xf32>
    %801 = arith.mulf %800, %786 : vector<8x256xf32>
    %802 = arith.addf %779, %801 : vector<8x256xf32>
    %c214 = arith.constant 214 : index
    %803 = memref.load %arg0[%c214] : memref<463xf32, #tpu.memory_space<smem>>
    %804 = vector.broadcast %803 : f32 to vector<8x256xf32>
    %805 = arith.mulf %804, %786 : vector<8x256xf32>
    %806 = arith.addf %783, %805 : vector<8x256xf32>
    %807 = vector.extract_strided_slice %625 {offsets = [0, 34], sizes = [8, 222], strides = [1, 1]} : vector<8x256xf32> to vector<8x222xf32>
    %808 = vector.extract_strided_slice %625 {offsets = [0, 0], sizes = [8, 34], strides = [1, 1]} : vector<8x256xf32> to vector<8x34xf32>
    %809 = tpu.concatenate %807, %808 in 1 : vector<8x222xf32>, vector<8x34xf32> -> vector<8x256xf32>
    %c35 = arith.constant 35 : index
    %810 = memref.load %arg0[%c35] : memref<463xf32, #tpu.memory_space<smem>>
    %811 = vector.broadcast %810 : f32 to vector<8x256xf32>
    %812 = arith.mulf %811, %809 : vector<8x256xf32>
    %813 = arith.addf %790, %812 : vector<8x256xf32>
    %c80 = arith.constant 80 : index
    %814 = memref.load %arg0[%c80] : memref<463xf32, #tpu.memory_space<smem>>
    %815 = vector.broadcast %814 : f32 to vector<8x256xf32>
    %816 = arith.mulf %815, %809 : vector<8x256xf32>
    %817 = arith.addf %794, %816 : vector<8x256xf32>
    %c125 = arith.constant 125 : index
    %818 = memref.load %arg0[%c125] : memref<463xf32, #tpu.memory_space<smem>>
    %819 = vector.broadcast %818 : f32 to vector<8x256xf32>
    %820 = arith.mulf %819, %809 : vector<8x256xf32>
    %821 = arith.addf %798, %820 : vector<8x256xf32>
    %c170 = arith.constant 170 : index
    %822 = memref.load %arg0[%c170] : memref<463xf32, #tpu.memory_space<smem>>
    %823 = vector.broadcast %822 : f32 to vector<8x256xf32>
    %824 = arith.mulf %823, %809 : vector<8x256xf32>
    %825 = arith.addf %802, %824 : vector<8x256xf32>
    %c215 = arith.constant 215 : index
    %826 = memref.load %arg0[%c215] : memref<463xf32, #tpu.memory_space<smem>>
    %827 = vector.broadcast %826 : f32 to vector<8x256xf32>
    %828 = arith.mulf %827, %809 : vector<8x256xf32>
    %829 = arith.addf %806, %828 : vector<8x256xf32>
    %c4_18 = arith.constant 4 : index
    %c0_19 = arith.constant 0 : index
    %c0_20 = arith.constant 0 : index
    %830 = vector.load %arg1[%c4_18, %c0_19, %c0_20] : memref<5x8x256xf32, #tpu.memory_space<vmem>>, vector<1x8x256xf32>
    %831 = vector.shape_cast %830 : vector<1x8x256xf32> to vector<8x256xf32>
    %c36 = arith.constant 36 : index
    %832 = memref.load %arg0[%c36] : memref<463xf32, #tpu.memory_space<smem>>
    %833 = vector.broadcast %832 : f32 to vector<8x256xf32>
    %834 = arith.mulf %833, %831 : vector<8x256xf32>
    %835 = arith.addf %813, %834 : vector<8x256xf32>
    %c81 = arith.constant 81 : index
    %836 = memref.load %arg0[%c81] : memref<463xf32, #tpu.memory_space<smem>>
    %837 = vector.broadcast %836 : f32 to vector<8x256xf32>
    %838 = arith.mulf %837, %831 : vector<8x256xf32>
    %839 = arith.addf %817, %838 : vector<8x256xf32>
    %c126 = arith.constant 126 : index
    %840 = memref.load %arg0[%c126] : memref<463xf32, #tpu.memory_space<smem>>
    %841 = vector.broadcast %840 : f32 to vector<8x256xf32>
    %842 = arith.mulf %841, %831 : vector<8x256xf32>
    %843 = arith.addf %821, %842 : vector<8x256xf32>
    %c171 = arith.constant 171 : index
    %844 = memref.load %arg0[%c171] : memref<463xf32, #tpu.memory_space<smem>>
    %845 = vector.broadcast %844 : f32 to vector<8x256xf32>
    %846 = arith.mulf %845, %831 : vector<8x256xf32>
    %847 = arith.addf %825, %846 : vector<8x256xf32>
    %c216 = arith.constant 216 : index
    %848 = memref.load %arg0[%c216] : memref<463xf32, #tpu.memory_space<smem>>
    %849 = vector.broadcast %848 : f32 to vector<8x256xf32>
    %850 = arith.mulf %849, %831 : vector<8x256xf32>
    %851 = arith.addf %829, %850 : vector<8x256xf32>
    %852 = vector.extract_strided_slice %831 {offsets = [0, 1], sizes = [8, 255], strides = [1, 1]} : vector<8x256xf32> to vector<8x255xf32>
    %853 = vector.extract_strided_slice %831 {offsets = [0, 0], sizes = [8, 1], strides = [1, 1]} : vector<8x256xf32> to vector<8x1xf32>
    %854 = tpu.concatenate %852, %853 in 1 : vector<8x255xf32>, vector<8x1xf32> -> vector<8x256xf32>
    %c37 = arith.constant 37 : index
    %855 = memref.load %arg0[%c37] : memref<463xf32, #tpu.memory_space<smem>>
    %856 = vector.broadcast %855 : f32 to vector<8x256xf32>
    %857 = arith.mulf %856, %854 : vector<8x256xf32>
    %858 = arith.addf %835, %857 : vector<8x256xf32>
    %c82 = arith.constant 82 : index
    %859 = memref.load %arg0[%c82] : memref<463xf32, #tpu.memory_space<smem>>
    %860 = vector.broadcast %859 : f32 to vector<8x256xf32>
    %861 = arith.mulf %860, %854 : vector<8x256xf32>
    %862 = arith.addf %839, %861 : vector<8x256xf32>
    %c127 = arith.constant 127 : index
    %863 = memref.load %arg0[%c127] : memref<463xf32, #tpu.memory_space<smem>>
    %864 = vector.broadcast %863 : f32 to vector<8x256xf32>
    %865 = arith.mulf %864, %854 : vector<8x256xf32>
    %866 = arith.addf %843, %865 : vector<8x256xf32>
    %c172 = arith.constant 172 : index
    %867 = memref.load %arg0[%c172] : memref<463xf32, #tpu.memory_space<smem>>
    %868 = vector.broadcast %867 : f32 to vector<8x256xf32>
    %869 = arith.mulf %868, %854 : vector<8x256xf32>
    %870 = arith.addf %847, %869 : vector<8x256xf32>
    %c217 = arith.constant 217 : index
    %871 = memref.load %arg0[%c217] : memref<463xf32, #tpu.memory_space<smem>>
    %872 = vector.broadcast %871 : f32 to vector<8x256xf32>
    %873 = arith.mulf %872, %854 : vector<8x256xf32>
    %874 = arith.addf %851, %873 : vector<8x256xf32>
    %875 = vector.extract_strided_slice %831 {offsets = [0, 2], sizes = [8, 254], strides = [1, 1]} : vector<8x256xf32> to vector<8x254xf32>
    %876 = vector.extract_strided_slice %831 {offsets = [0, 0], sizes = [8, 2], strides = [1, 1]} : vector<8x256xf32> to vector<8x2xf32>
    %877 = tpu.concatenate %875, %876 in 1 : vector<8x254xf32>, vector<8x2xf32> -> vector<8x256xf32>
    %c38 = arith.constant 38 : index
    %878 = memref.load %arg0[%c38] : memref<463xf32, #tpu.memory_space<smem>>
    %879 = vector.broadcast %878 : f32 to vector<8x256xf32>
    %880 = arith.mulf %879, %877 : vector<8x256xf32>
    %881 = arith.addf %858, %880 : vector<8x256xf32>
    %c83 = arith.constant 83 : index
    %882 = memref.load %arg0[%c83] : memref<463xf32, #tpu.memory_space<smem>>
    %883 = vector.broadcast %882 : f32 to vector<8x256xf32>
    %884 = arith.mulf %883, %877 : vector<8x256xf32>
    %885 = arith.addf %862, %884 : vector<8x256xf32>
    %c128 = arith.constant 128 : index
    %886 = memref.load %arg0[%c128] : memref<463xf32, #tpu.memory_space<smem>>
    %887 = vector.broadcast %886 : f32 to vector<8x256xf32>
    %888 = arith.mulf %887, %877 : vector<8x256xf32>
    %889 = arith.addf %866, %888 : vector<8x256xf32>
    %c173 = arith.constant 173 : index
    %890 = memref.load %arg0[%c173] : memref<463xf32, #tpu.memory_space<smem>>
    %891 = vector.broadcast %890 : f32 to vector<8x256xf32>
    %892 = arith.mulf %891, %877 : vector<8x256xf32>
    %893 = arith.addf %870, %892 : vector<8x256xf32>
    %c218 = arith.constant 218 : index
    %894 = memref.load %arg0[%c218] : memref<463xf32, #tpu.memory_space<smem>>
    %895 = vector.broadcast %894 : f32 to vector<8x256xf32>
    %896 = arith.mulf %895, %877 : vector<8x256xf32>
    %897 = arith.addf %874, %896 : vector<8x256xf32>
    %898 = vector.extract_strided_slice %831 {offsets = [0, 16], sizes = [8, 240], strides = [1, 1]} : vector<8x256xf32> to vector<8x240xf32>
    %899 = vector.extract_strided_slice %831 {offsets = [0, 0], sizes = [8, 16], strides = [1, 1]} : vector<8x256xf32> to vector<8x16xf32>
    %900 = tpu.concatenate %898, %899 in 1 : vector<8x240xf32>, vector<8x16xf32> -> vector<8x256xf32>
    %c39 = arith.constant 39 : index
    %901 = memref.load %arg0[%c39] : memref<463xf32, #tpu.memory_space<smem>>
    %902 = vector.broadcast %901 : f32 to vector<8x256xf32>
    %903 = arith.mulf %902, %900 : vector<8x256xf32>
    %904 = arith.addf %881, %903 : vector<8x256xf32>
    %c84 = arith.constant 84 : index
    %905 = memref.load %arg0[%c84] : memref<463xf32, #tpu.memory_space<smem>>
    %906 = vector.broadcast %905 : f32 to vector<8x256xf32>
    %907 = arith.mulf %906, %900 : vector<8x256xf32>
    %908 = arith.addf %885, %907 : vector<8x256xf32>
    %c129 = arith.constant 129 : index
    %909 = memref.load %arg0[%c129] : memref<463xf32, #tpu.memory_space<smem>>
    %910 = vector.broadcast %909 : f32 to vector<8x256xf32>
    %911 = arith.mulf %910, %900 : vector<8x256xf32>
    %912 = arith.addf %889, %911 : vector<8x256xf32>
    %c174 = arith.constant 174 : index
    %913 = memref.load %arg0[%c174] : memref<463xf32, #tpu.memory_space<smem>>
    %914 = vector.broadcast %913 : f32 to vector<8x256xf32>
    %915 = arith.mulf %914, %900 : vector<8x256xf32>
    %916 = arith.addf %893, %915 : vector<8x256xf32>
    %c219 = arith.constant 219 : index
    %917 = memref.load %arg0[%c219] : memref<463xf32, #tpu.memory_space<smem>>
    %918 = vector.broadcast %917 : f32 to vector<8x256xf32>
    %919 = arith.mulf %918, %900 : vector<8x256xf32>
    %920 = arith.addf %897, %919 : vector<8x256xf32>
    %921 = vector.extract_strided_slice %831 {offsets = [0, 17], sizes = [8, 239], strides = [1, 1]} : vector<8x256xf32> to vector<8x239xf32>
    %922 = vector.extract_strided_slice %831 {offsets = [0, 0], sizes = [8, 17], strides = [1, 1]} : vector<8x256xf32> to vector<8x17xf32>
    %923 = tpu.concatenate %921, %922 in 1 : vector<8x239xf32>, vector<8x17xf32> -> vector<8x256xf32>
    %c40 = arith.constant 40 : index
    %924 = memref.load %arg0[%c40] : memref<463xf32, #tpu.memory_space<smem>>
    %925 = vector.broadcast %924 : f32 to vector<8x256xf32>
    %926 = arith.mulf %925, %923 : vector<8x256xf32>
    %927 = arith.addf %904, %926 : vector<8x256xf32>
    %c85 = arith.constant 85 : index
    %928 = memref.load %arg0[%c85] : memref<463xf32, #tpu.memory_space<smem>>
    %929 = vector.broadcast %928 : f32 to vector<8x256xf32>
    %930 = arith.mulf %929, %923 : vector<8x256xf32>
    %931 = arith.addf %908, %930 : vector<8x256xf32>
    %c130 = arith.constant 130 : index
    %932 = memref.load %arg0[%c130] : memref<463xf32, #tpu.memory_space<smem>>
    %933 = vector.broadcast %932 : f32 to vector<8x256xf32>
    %934 = arith.mulf %933, %923 : vector<8x256xf32>
    %935 = arith.addf %912, %934 : vector<8x256xf32>
    %c175 = arith.constant 175 : index
    %936 = memref.load %arg0[%c175] : memref<463xf32, #tpu.memory_space<smem>>
    %937 = vector.broadcast %936 : f32 to vector<8x256xf32>
    %938 = arith.mulf %937, %923 : vector<8x256xf32>
    %939 = arith.addf %916, %938 : vector<8x256xf32>
    %c220 = arith.constant 220 : index
    %940 = memref.load %arg0[%c220] : memref<463xf32, #tpu.memory_space<smem>>
    %941 = vector.broadcast %940 : f32 to vector<8x256xf32>
    %942 = arith.mulf %941, %923 : vector<8x256xf32>
    %943 = arith.addf %920, %942 : vector<8x256xf32>
    %944 = vector.extract_strided_slice %831 {offsets = [0, 18], sizes = [8, 238], strides = [1, 1]} : vector<8x256xf32> to vector<8x238xf32>
    %945 = vector.extract_strided_slice %831 {offsets = [0, 0], sizes = [8, 18], strides = [1, 1]} : vector<8x256xf32> to vector<8x18xf32>
    %946 = tpu.concatenate %944, %945 in 1 : vector<8x238xf32>, vector<8x18xf32> -> vector<8x256xf32>
    %c41 = arith.constant 41 : index
    %947 = memref.load %arg0[%c41] : memref<463xf32, #tpu.memory_space<smem>>
    %948 = vector.broadcast %947 : f32 to vector<8x256xf32>
    %949 = arith.mulf %948, %946 : vector<8x256xf32>
    %950 = arith.addf %927, %949 : vector<8x256xf32>
    %c86 = arith.constant 86 : index
    %951 = memref.load %arg0[%c86] : memref<463xf32, #tpu.memory_space<smem>>
    %952 = vector.broadcast %951 : f32 to vector<8x256xf32>
    %953 = arith.mulf %952, %946 : vector<8x256xf32>
    %954 = arith.addf %931, %953 : vector<8x256xf32>
    %c131 = arith.constant 131 : index
    %955 = memref.load %arg0[%c131] : memref<463xf32, #tpu.memory_space<smem>>
    %956 = vector.broadcast %955 : f32 to vector<8x256xf32>
    %957 = arith.mulf %956, %946 : vector<8x256xf32>
    %958 = arith.addf %935, %957 : vector<8x256xf32>
    %c176 = arith.constant 176 : index
    %959 = memref.load %arg0[%c176] : memref<463xf32, #tpu.memory_space<smem>>
    %960 = vector.broadcast %959 : f32 to vector<8x256xf32>
    %961 = arith.mulf %960, %946 : vector<8x256xf32>
    %962 = arith.addf %939, %961 : vector<8x256xf32>
    %c221 = arith.constant 221 : index
    %963 = memref.load %arg0[%c221] : memref<463xf32, #tpu.memory_space<smem>>
    %964 = vector.broadcast %963 : f32 to vector<8x256xf32>
    %965 = arith.mulf %964, %946 : vector<8x256xf32>
    %966 = arith.addf %943, %965 : vector<8x256xf32>
    %967 = vector.extract_strided_slice %831 {offsets = [0, 32], sizes = [8, 224], strides = [1, 1]} : vector<8x256xf32> to vector<8x224xf32>
    %968 = vector.extract_strided_slice %831 {offsets = [0, 0], sizes = [8, 32], strides = [1, 1]} : vector<8x256xf32> to vector<8x32xf32>
    %969 = tpu.concatenate %967, %968 in 1 : vector<8x224xf32>, vector<8x32xf32> -> vector<8x256xf32>
    %c42 = arith.constant 42 : index
    %970 = memref.load %arg0[%c42] : memref<463xf32, #tpu.memory_space<smem>>
    %971 = vector.broadcast %970 : f32 to vector<8x256xf32>
    %972 = arith.mulf %971, %969 : vector<8x256xf32>
    %973 = arith.addf %950, %972 : vector<8x256xf32>
    %c87 = arith.constant 87 : index
    %974 = memref.load %arg0[%c87] : memref<463xf32, #tpu.memory_space<smem>>
    %975 = vector.broadcast %974 : f32 to vector<8x256xf32>
    %976 = arith.mulf %975, %969 : vector<8x256xf32>
    %977 = arith.addf %954, %976 : vector<8x256xf32>
    %c132 = arith.constant 132 : index
    %978 = memref.load %arg0[%c132] : memref<463xf32, #tpu.memory_space<smem>>
    %979 = vector.broadcast %978 : f32 to vector<8x256xf32>
    %980 = arith.mulf %979, %969 : vector<8x256xf32>
    %981 = arith.addf %958, %980 : vector<8x256xf32>
    %c177 = arith.constant 177 : index
    %982 = memref.load %arg0[%c177] : memref<463xf32, #tpu.memory_space<smem>>
    %983 = vector.broadcast %982 : f32 to vector<8x256xf32>
    %984 = arith.mulf %983, %969 : vector<8x256xf32>
    %985 = arith.addf %962, %984 : vector<8x256xf32>
    %c222 = arith.constant 222 : index
    %986 = memref.load %arg0[%c222] : memref<463xf32, #tpu.memory_space<smem>>
    %987 = vector.broadcast %986 : f32 to vector<8x256xf32>
    %988 = arith.mulf %987, %969 : vector<8x256xf32>
    %989 = arith.addf %966, %988 : vector<8x256xf32>
    %990 = vector.extract_strided_slice %831 {offsets = [0, 33], sizes = [8, 223], strides = [1, 1]} : vector<8x256xf32> to vector<8x223xf32>
    %991 = vector.extract_strided_slice %831 {offsets = [0, 0], sizes = [8, 33], strides = [1, 1]} : vector<8x256xf32> to vector<8x33xf32>
    %992 = tpu.concatenate %990, %991 in 1 : vector<8x223xf32>, vector<8x33xf32> -> vector<8x256xf32>
    %c43 = arith.constant 43 : index
    %993 = memref.load %arg0[%c43] : memref<463xf32, #tpu.memory_space<smem>>
    %994 = vector.broadcast %993 : f32 to vector<8x256xf32>
    %995 = arith.mulf %994, %992 : vector<8x256xf32>
    %996 = arith.addf %973, %995 : vector<8x256xf32>
    %c88 = arith.constant 88 : index
    %997 = memref.load %arg0[%c88] : memref<463xf32, #tpu.memory_space<smem>>
    %998 = vector.broadcast %997 : f32 to vector<8x256xf32>
    %999 = arith.mulf %998, %992 : vector<8x256xf32>
    %1000 = arith.addf %977, %999 : vector<8x256xf32>
    %c133 = arith.constant 133 : index
    %1001 = memref.load %arg0[%c133] : memref<463xf32, #tpu.memory_space<smem>>
    %1002 = vector.broadcast %1001 : f32 to vector<8x256xf32>
    %1003 = arith.mulf %1002, %992 : vector<8x256xf32>
    %1004 = arith.addf %981, %1003 : vector<8x256xf32>
    %c178 = arith.constant 178 : index
    %1005 = memref.load %arg0[%c178] : memref<463xf32, #tpu.memory_space<smem>>
    %1006 = vector.broadcast %1005 : f32 to vector<8x256xf32>
    %1007 = arith.mulf %1006, %992 : vector<8x256xf32>
    %1008 = arith.addf %985, %1007 : vector<8x256xf32>
    %c223 = arith.constant 223 : index
    %1009 = memref.load %arg0[%c223] : memref<463xf32, #tpu.memory_space<smem>>
    %1010 = vector.broadcast %1009 : f32 to vector<8x256xf32>
    %1011 = arith.mulf %1010, %992 : vector<8x256xf32>
    %1012 = arith.addf %989, %1011 : vector<8x256xf32>
    %1013 = vector.extract_strided_slice %831 {offsets = [0, 34], sizes = [8, 222], strides = [1, 1]} : vector<8x256xf32> to vector<8x222xf32>
    %1014 = vector.extract_strided_slice %831 {offsets = [0, 0], sizes = [8, 34], strides = [1, 1]} : vector<8x256xf32> to vector<8x34xf32>
    %1015 = tpu.concatenate %1013, %1014 in 1 : vector<8x222xf32>, vector<8x34xf32> -> vector<8x256xf32>
    %c44 = arith.constant 44 : index
    %1016 = memref.load %arg0[%c44] : memref<463xf32, #tpu.memory_space<smem>>
    %1017 = vector.broadcast %1016 : f32 to vector<8x256xf32>
    %1018 = arith.mulf %1017, %1015 : vector<8x256xf32>
    %1019 = arith.addf %996, %1018 : vector<8x256xf32>
    %c89 = arith.constant 89 : index
    %1020 = memref.load %arg0[%c89] : memref<463xf32, #tpu.memory_space<smem>>
    %1021 = vector.broadcast %1020 : f32 to vector<8x256xf32>
    %1022 = arith.mulf %1021, %1015 : vector<8x256xf32>
    %1023 = arith.addf %1000, %1022 : vector<8x256xf32>
    %c134 = arith.constant 134 : index
    %1024 = memref.load %arg0[%c134] : memref<463xf32, #tpu.memory_space<smem>>
    %1025 = vector.broadcast %1024 : f32 to vector<8x256xf32>
    %1026 = arith.mulf %1025, %1015 : vector<8x256xf32>
    %1027 = arith.addf %1004, %1026 : vector<8x256xf32>
    %c179 = arith.constant 179 : index
    %1028 = memref.load %arg0[%c179] : memref<463xf32, #tpu.memory_space<smem>>
    %1029 = vector.broadcast %1028 : f32 to vector<8x256xf32>
    %1030 = arith.mulf %1029, %1015 : vector<8x256xf32>
    %1031 = arith.addf %1008, %1030 : vector<8x256xf32>
    %c224 = arith.constant 224 : index
    %1032 = memref.load %arg0[%c224] : memref<463xf32, #tpu.memory_space<smem>>
    %1033 = vector.broadcast %1032 : f32 to vector<8x256xf32>
    %1034 = arith.mulf %1033, %1015 : vector<8x256xf32>
    %1035 = arith.addf %1012, %1034 : vector<8x256xf32>
    %c225 = arith.constant 225 : index
    %1036 = memref.load %arg0[%c225] : memref<463xf32, #tpu.memory_space<smem>>
    %1037 = vector.broadcast %1036 : f32 to vector<8x256xf32>
    %1038 = arith.addf %1019, %1037 : vector<8x256xf32>
    %cst_21 = arith.constant 0.000000e+00 : f32
    %1039 = vector.broadcast %cst_21 : f32 to vector<8x256xf32>
    %1040 = arith.maximumf %1038, %1039 : vector<8x256xf32>
    %1041 = vector.extract_strided_slice %1040 {offsets = [0, 1], sizes = [8, 255], strides = [1, 1]} : vector<8x256xf32> to vector<8x255xf32>
    %1042 = vector.extract_strided_slice %1040 {offsets = [0, 0], sizes = [8, 1], strides = [1, 1]} : vector<8x256xf32> to vector<8x1xf32>
    %1043 = tpu.concatenate %1041, %1042 in 1 : vector<8x255xf32>, vector<8x1xf32> -> vector<8x256xf32>
    %1044 = arith.maximumf %1040, %1043 : vector<8x256xf32>
    %1045 = vector.extract_strided_slice %1040 {offsets = [0, 16], sizes = [8, 240], strides = [1, 1]} : vector<8x256xf32> to vector<8x240xf32>
    %1046 = vector.extract_strided_slice %1040 {offsets = [0, 0], sizes = [8, 16], strides = [1, 1]} : vector<8x256xf32> to vector<8x16xf32>
    %1047 = tpu.concatenate %1045, %1046 in 1 : vector<8x240xf32>, vector<8x16xf32> -> vector<8x256xf32>
    %1048 = vector.extract_strided_slice %1040 {offsets = [0, 17], sizes = [8, 239], strides = [1, 1]} : vector<8x256xf32> to vector<8x239xf32>
    %1049 = vector.extract_strided_slice %1040 {offsets = [0, 0], sizes = [8, 17], strides = [1, 1]} : vector<8x256xf32> to vector<8x17xf32>
    %1050 = tpu.concatenate %1048, %1049 in 1 : vector<8x239xf32>, vector<8x17xf32> -> vector<8x256xf32>
    %1051 = arith.maximumf %1047, %1050 : vector<8x256xf32>
    %1052 = arith.maximumf %1044, %1051 : vector<8x256xf32>
    %1053 = vector.broadcast %0 : vector<1x256xf32> to vector<8x256xf32>
    %1054 = arith.mulf %1052, %1053 : vector<8x256xf32>
    %c226 = arith.constant 226 : index
    %1055 = memref.load %arg0[%c226] : memref<463xf32, #tpu.memory_space<smem>>
    %1056 = vector.broadcast %1055 : f32 to vector<8x256xf32>
    %1057 = arith.addf %1023, %1056 : vector<8x256xf32>
    %cst_22 = arith.constant 0.000000e+00 : f32
    %1058 = vector.broadcast %cst_22 : f32 to vector<8x256xf32>
    %1059 = arith.maximumf %1057, %1058 : vector<8x256xf32>
    %1060 = vector.extract_strided_slice %1059 {offsets = [0, 1], sizes = [8, 255], strides = [1, 1]} : vector<8x256xf32> to vector<8x255xf32>
    %1061 = vector.extract_strided_slice %1059 {offsets = [0, 0], sizes = [8, 1], strides = [1, 1]} : vector<8x256xf32> to vector<8x1xf32>
    %1062 = tpu.concatenate %1060, %1061 in 1 : vector<8x255xf32>, vector<8x1xf32> -> vector<8x256xf32>
    %1063 = arith.maximumf %1059, %1062 : vector<8x256xf32>
    %1064 = vector.extract_strided_slice %1059 {offsets = [0, 16], sizes = [8, 240], strides = [1, 1]} : vector<8x256xf32> to vector<8x240xf32>
    %1065 = vector.extract_strided_slice %1059 {offsets = [0, 0], sizes = [8, 16], strides = [1, 1]} : vector<8x256xf32> to vector<8x16xf32>
    %1066 = tpu.concatenate %1064, %1065 in 1 : vector<8x240xf32>, vector<8x16xf32> -> vector<8x256xf32>
    %1067 = vector.extract_strided_slice %1059 {offsets = [0, 17], sizes = [8, 239], strides = [1, 1]} : vector<8x256xf32> to vector<8x239xf32>
    %1068 = vector.extract_strided_slice %1059 {offsets = [0, 0], sizes = [8, 17], strides = [1, 1]} : vector<8x256xf32> to vector<8x17xf32>
    %1069 = tpu.concatenate %1067, %1068 in 1 : vector<8x239xf32>, vector<8x17xf32> -> vector<8x256xf32>
    %1070 = arith.maximumf %1066, %1069 : vector<8x256xf32>
    %1071 = arith.maximumf %1063, %1070 : vector<8x256xf32>
    %1072 = vector.broadcast %0 : vector<1x256xf32> to vector<8x256xf32>
    %1073 = arith.mulf %1071, %1072 : vector<8x256xf32>
    %c227 = arith.constant 227 : index
    %1074 = memref.load %arg0[%c227] : memref<463xf32, #tpu.memory_space<smem>>
    %1075 = vector.broadcast %1074 : f32 to vector<8x256xf32>
    %1076 = arith.addf %1027, %1075 : vector<8x256xf32>
    %cst_23 = arith.constant 0.000000e+00 : f32
    %1077 = vector.broadcast %cst_23 : f32 to vector<8x256xf32>
    %1078 = arith.maximumf %1076, %1077 : vector<8x256xf32>
    %1079 = vector.extract_strided_slice %1078 {offsets = [0, 1], sizes = [8, 255], strides = [1, 1]} : vector<8x256xf32> to vector<8x255xf32>
    %1080 = vector.extract_strided_slice %1078 {offsets = [0, 0], sizes = [8, 1], strides = [1, 1]} : vector<8x256xf32> to vector<8x1xf32>
    %1081 = tpu.concatenate %1079, %1080 in 1 : vector<8x255xf32>, vector<8x1xf32> -> vector<8x256xf32>
    %1082 = arith.maximumf %1078, %1081 : vector<8x256xf32>
    %1083 = vector.extract_strided_slice %1078 {offsets = [0, 16], sizes = [8, 240], strides = [1, 1]} : vector<8x256xf32> to vector<8x240xf32>
    %1084 = vector.extract_strided_slice %1078 {offsets = [0, 0], sizes = [8, 16], strides = [1, 1]} : vector<8x256xf32> to vector<8x16xf32>
    %1085 = tpu.concatenate %1083, %1084 in 1 : vector<8x240xf32>, vector<8x16xf32> -> vector<8x256xf32>
    %1086 = vector.extract_strided_slice %1078 {offsets = [0, 17], sizes = [8, 239], strides = [1, 1]} : vector<8x256xf32> to vector<8x239xf32>
    %1087 = vector.extract_strided_slice %1078 {offsets = [0, 0], sizes = [8, 17], strides = [1, 1]} : vector<8x256xf32> to vector<8x17xf32>
    %1088 = tpu.concatenate %1086, %1087 in 1 : vector<8x239xf32>, vector<8x17xf32> -> vector<8x256xf32>
    %1089 = arith.maximumf %1085, %1088 : vector<8x256xf32>
    %1090 = arith.maximumf %1082, %1089 : vector<8x256xf32>
    %1091 = vector.broadcast %0 : vector<1x256xf32> to vector<8x256xf32>
    %1092 = arith.mulf %1090, %1091 : vector<8x256xf32>
    %c228 = arith.constant 228 : index
    %1093 = memref.load %arg0[%c228] : memref<463xf32, #tpu.memory_space<smem>>
    %1094 = vector.broadcast %1093 : f32 to vector<8x256xf32>
    %1095 = arith.addf %1031, %1094 : vector<8x256xf32>
    %cst_24 = arith.constant 0.000000e+00 : f32
    %1096 = vector.broadcast %cst_24 : f32 to vector<8x256xf32>
    %1097 = arith.maximumf %1095, %1096 : vector<8x256xf32>
    %1098 = vector.extract_strided_slice %1097 {offsets = [0, 1], sizes = [8, 255], strides = [1, 1]} : vector<8x256xf32> to vector<8x255xf32>
    %1099 = vector.extract_strided_slice %1097 {offsets = [0, 0], sizes = [8, 1], strides = [1, 1]} : vector<8x256xf32> to vector<8x1xf32>
    %1100 = tpu.concatenate %1098, %1099 in 1 : vector<8x255xf32>, vector<8x1xf32> -> vector<8x256xf32>
    %1101 = arith.maximumf %1097, %1100 : vector<8x256xf32>
    %1102 = vector.extract_strided_slice %1097 {offsets = [0, 16], sizes = [8, 240], strides = [1, 1]} : vector<8x256xf32> to vector<8x240xf32>
    %1103 = vector.extract_strided_slice %1097 {offsets = [0, 0], sizes = [8, 16], strides = [1, 1]} : vector<8x256xf32> to vector<8x16xf32>
    %1104 = tpu.concatenate %1102, %1103 in 1 : vector<8x240xf32>, vector<8x16xf32> -> vector<8x256xf32>
    %1105 = vector.extract_strided_slice %1097 {offsets = [0, 17], sizes = [8, 239], strides = [1, 1]} : vector<8x256xf32> to vector<8x239xf32>
    %1106 = vector.extract_strided_slice %1097 {offsets = [0, 0], sizes = [8, 17], strides = [1, 1]} : vector<8x256xf32> to vector<8x17xf32>
    %1107 = tpu.concatenate %1105, %1106 in 1 : vector<8x239xf32>, vector<8x17xf32> -> vector<8x256xf32>
    %1108 = arith.maximumf %1104, %1107 : vector<8x256xf32>
    %1109 = arith.maximumf %1101, %1108 : vector<8x256xf32>
    %1110 = vector.broadcast %0 : vector<1x256xf32> to vector<8x256xf32>
    %1111 = arith.mulf %1109, %1110 : vector<8x256xf32>
    %c229 = arith.constant 229 : index
    %1112 = memref.load %arg0[%c229] : memref<463xf32, #tpu.memory_space<smem>>
    %1113 = vector.broadcast %1112 : f32 to vector<8x256xf32>
    %1114 = arith.addf %1035, %1113 : vector<8x256xf32>
    %cst_25 = arith.constant 0.000000e+00 : f32
    %1115 = vector.broadcast %cst_25 : f32 to vector<8x256xf32>
    %1116 = arith.maximumf %1114, %1115 : vector<8x256xf32>
    %1117 = vector.extract_strided_slice %1116 {offsets = [0, 1], sizes = [8, 255], strides = [1, 1]} : vector<8x256xf32> to vector<8x255xf32>
    %1118 = vector.extract_strided_slice %1116 {offsets = [0, 0], sizes = [8, 1], strides = [1, 1]} : vector<8x256xf32> to vector<8x1xf32>
    %1119 = tpu.concatenate %1117, %1118 in 1 : vector<8x255xf32>, vector<8x1xf32> -> vector<8x256xf32>
    %1120 = arith.maximumf %1116, %1119 : vector<8x256xf32>
    %1121 = vector.extract_strided_slice %1116 {offsets = [0, 16], sizes = [8, 240], strides = [1, 1]} : vector<8x256xf32> to vector<8x240xf32>
    %1122 = vector.extract_strided_slice %1116 {offsets = [0, 0], sizes = [8, 16], strides = [1, 1]} : vector<8x256xf32> to vector<8x16xf32>
    %1123 = tpu.concatenate %1121, %1122 in 1 : vector<8x240xf32>, vector<8x16xf32> -> vector<8x256xf32>
    %1124 = vector.extract_strided_slice %1116 {offsets = [0, 17], sizes = [8, 239], strides = [1, 1]} : vector<8x256xf32> to vector<8x239xf32>
    %1125 = vector.extract_strided_slice %1116 {offsets = [0, 0], sizes = [8, 17], strides = [1, 1]} : vector<8x256xf32> to vector<8x17xf32>
    %1126 = tpu.concatenate %1124, %1125 in 1 : vector<8x239xf32>, vector<8x17xf32> -> vector<8x256xf32>
    %1127 = arith.maximumf %1123, %1126 : vector<8x256xf32>
    %1128 = arith.maximumf %1120, %1127 : vector<8x256xf32>
    %1129 = vector.broadcast %0 : vector<1x256xf32> to vector<8x256xf32>
    %1130 = arith.mulf %1128, %1129 : vector<8x256xf32>
    %cst_26 = arith.constant 0.000000e+00 : f32
    %1131 = vector.broadcast %cst_26 : f32 to vector<8x256xf32>
    %cst_27 = arith.constant 0.000000e+00 : f32
    %1132 = vector.broadcast %cst_27 : f32 to vector<8x256xf32>
    %cst_28 = arith.constant 0.000000e+00 : f32
    %1133 = vector.broadcast %cst_28 : f32 to vector<8x256xf32>
    %cst_29 = arith.constant 0.000000e+00 : f32
    %1134 = vector.broadcast %cst_29 : f32 to vector<8x256xf32>
    %cst_30 = arith.constant 0.000000e+00 : f32
    %1135 = vector.broadcast %cst_30 : f32 to vector<8x256xf32>
    %1136 = vector.extract_strided_slice %1054 {offsets = [0, 222], sizes = [8, 34], strides = [1, 1]} : vector<8x256xf32> to vector<8x34xf32>
    %1137 = vector.extract_strided_slice %1054 {offsets = [0, 0], sizes = [8, 222], strides = [1, 1]} : vector<8x256xf32> to vector<8x222xf32>
    %1138 = tpu.concatenate %1136, %1137 in 1 : vector<8x34xf32>, vector<8x222xf32> -> vector<8x256xf32>
    %c230 = arith.constant 230 : index
    %1139 = memref.load %arg0[%c230] : memref<463xf32, #tpu.memory_space<smem>>
    %1140 = vector.broadcast %1139 : f32 to vector<8x256xf32>
    %1141 = arith.mulf %1140, %1138 : vector<8x256xf32>
    %1142 = arith.addf %1131, %1141 : vector<8x256xf32>
    %c275 = arith.constant 275 : index
    %1143 = memref.load %arg0[%c275] : memref<463xf32, #tpu.memory_space<smem>>
    %1144 = vector.broadcast %1143 : f32 to vector<8x256xf32>
    %1145 = arith.mulf %1144, %1138 : vector<8x256xf32>
    %1146 = arith.addf %1132, %1145 : vector<8x256xf32>
    %c320 = arith.constant 320 : index
    %1147 = memref.load %arg0[%c320] : memref<463xf32, #tpu.memory_space<smem>>
    %1148 = vector.broadcast %1147 : f32 to vector<8x256xf32>
    %1149 = arith.mulf %1148, %1138 : vector<8x256xf32>
    %1150 = arith.addf %1133, %1149 : vector<8x256xf32>
    %c365 = arith.constant 365 : index
    %1151 = memref.load %arg0[%c365] : memref<463xf32, #tpu.memory_space<smem>>
    %1152 = vector.broadcast %1151 : f32 to vector<8x256xf32>
    %1153 = arith.mulf %1152, %1138 : vector<8x256xf32>
    %1154 = arith.addf %1134, %1153 : vector<8x256xf32>
    %c410 = arith.constant 410 : index
    %1155 = memref.load %arg0[%c410] : memref<463xf32, #tpu.memory_space<smem>>
    %1156 = vector.broadcast %1155 : f32 to vector<8x256xf32>
    %1157 = arith.mulf %1156, %1138 : vector<8x256xf32>
    %1158 = arith.addf %1135, %1157 : vector<8x256xf32>
    %1159 = vector.extract_strided_slice %1054 {offsets = [0, 224], sizes = [8, 32], strides = [1, 1]} : vector<8x256xf32> to vector<8x32xf32>
    %1160 = vector.extract_strided_slice %1054 {offsets = [0, 0], sizes = [8, 224], strides = [1, 1]} : vector<8x256xf32> to vector<8x224xf32>
    %1161 = tpu.concatenate %1159, %1160 in 1 : vector<8x32xf32>, vector<8x224xf32> -> vector<8x256xf32>
    %c231 = arith.constant 231 : index
    %1162 = memref.load %arg0[%c231] : memref<463xf32, #tpu.memory_space<smem>>
    %1163 = vector.broadcast %1162 : f32 to vector<8x256xf32>
    %1164 = arith.mulf %1163, %1161 : vector<8x256xf32>
    %1165 = arith.addf %1142, %1164 : vector<8x256xf32>
    %c276 = arith.constant 276 : index
    %1166 = memref.load %arg0[%c276] : memref<463xf32, #tpu.memory_space<smem>>
    %1167 = vector.broadcast %1166 : f32 to vector<8x256xf32>
    %1168 = arith.mulf %1167, %1161 : vector<8x256xf32>
    %1169 = arith.addf %1146, %1168 : vector<8x256xf32>
    %c321 = arith.constant 321 : index
    %1170 = memref.load %arg0[%c321] : memref<463xf32, #tpu.memory_space<smem>>
    %1171 = vector.broadcast %1170 : f32 to vector<8x256xf32>
    %1172 = arith.mulf %1171, %1161 : vector<8x256xf32>
    %1173 = arith.addf %1150, %1172 : vector<8x256xf32>
    %c366 = arith.constant 366 : index
    %1174 = memref.load %arg0[%c366] : memref<463xf32, #tpu.memory_space<smem>>
    %1175 = vector.broadcast %1174 : f32 to vector<8x256xf32>
    %1176 = arith.mulf %1175, %1161 : vector<8x256xf32>
    %1177 = arith.addf %1154, %1176 : vector<8x256xf32>
    %c411 = arith.constant 411 : index
    %1178 = memref.load %arg0[%c411] : memref<463xf32, #tpu.memory_space<smem>>
    %1179 = vector.broadcast %1178 : f32 to vector<8x256xf32>
    %1180 = arith.mulf %1179, %1161 : vector<8x256xf32>
    %1181 = arith.addf %1158, %1180 : vector<8x256xf32>
    %1182 = vector.extract_strided_slice %1054 {offsets = [0, 226], sizes = [8, 30], strides = [1, 1]} : vector<8x256xf32> to vector<8x30xf32>
    %1183 = vector.extract_strided_slice %1054 {offsets = [0, 0], sizes = [8, 226], strides = [1, 1]} : vector<8x256xf32> to vector<8x226xf32>
    %1184 = tpu.concatenate %1182, %1183 in 1 : vector<8x30xf32>, vector<8x226xf32> -> vector<8x256xf32>
    %c232 = arith.constant 232 : index
    %1185 = memref.load %arg0[%c232] : memref<463xf32, #tpu.memory_space<smem>>
    %1186 = vector.broadcast %1185 : f32 to vector<8x256xf32>
    %1187 = arith.mulf %1186, %1184 : vector<8x256xf32>
    %1188 = arith.addf %1165, %1187 : vector<8x256xf32>
    %c277 = arith.constant 277 : index
    %1189 = memref.load %arg0[%c277] : memref<463xf32, #tpu.memory_space<smem>>
    %1190 = vector.broadcast %1189 : f32 to vector<8x256xf32>
    %1191 = arith.mulf %1190, %1184 : vector<8x256xf32>
    %1192 = arith.addf %1169, %1191 : vector<8x256xf32>
    %c322 = arith.constant 322 : index
    %1193 = memref.load %arg0[%c322] : memref<463xf32, #tpu.memory_space<smem>>
    %1194 = vector.broadcast %1193 : f32 to vector<8x256xf32>
    %1195 = arith.mulf %1194, %1184 : vector<8x256xf32>
    %1196 = arith.addf %1173, %1195 : vector<8x256xf32>
    %c367 = arith.constant 367 : index
    %1197 = memref.load %arg0[%c367] : memref<463xf32, #tpu.memory_space<smem>>
    %1198 = vector.broadcast %1197 : f32 to vector<8x256xf32>
    %1199 = arith.mulf %1198, %1184 : vector<8x256xf32>
    %1200 = arith.addf %1177, %1199 : vector<8x256xf32>
    %c412 = arith.constant 412 : index
    %1201 = memref.load %arg0[%c412] : memref<463xf32, #tpu.memory_space<smem>>
    %1202 = vector.broadcast %1201 : f32 to vector<8x256xf32>
    %1203 = arith.mulf %1202, %1184 : vector<8x256xf32>
    %1204 = arith.addf %1181, %1203 : vector<8x256xf32>
    %1205 = vector.extract_strided_slice %1054 {offsets = [0, 254], sizes = [8, 2], strides = [1, 1]} : vector<8x256xf32> to vector<8x2xf32>
    %1206 = vector.extract_strided_slice %1054 {offsets = [0, 0], sizes = [8, 254], strides = [1, 1]} : vector<8x256xf32> to vector<8x254xf32>
    %1207 = tpu.concatenate %1205, %1206 in 1 : vector<8x2xf32>, vector<8x254xf32> -> vector<8x256xf32>
    %c233 = arith.constant 233 : index
    %1208 = memref.load %arg0[%c233] : memref<463xf32, #tpu.memory_space<smem>>
    %1209 = vector.broadcast %1208 : f32 to vector<8x256xf32>
    %1210 = arith.mulf %1209, %1207 : vector<8x256xf32>
    %1211 = arith.addf %1188, %1210 : vector<8x256xf32>
    %c278 = arith.constant 278 : index
    %1212 = memref.load %arg0[%c278] : memref<463xf32, #tpu.memory_space<smem>>
    %1213 = vector.broadcast %1212 : f32 to vector<8x256xf32>
    %1214 = arith.mulf %1213, %1207 : vector<8x256xf32>
    %1215 = arith.addf %1192, %1214 : vector<8x256xf32>
    %c323 = arith.constant 323 : index
    %1216 = memref.load %arg0[%c323] : memref<463xf32, #tpu.memory_space<smem>>
    %1217 = vector.broadcast %1216 : f32 to vector<8x256xf32>
    %1218 = arith.mulf %1217, %1207 : vector<8x256xf32>
    %1219 = arith.addf %1196, %1218 : vector<8x256xf32>
    %c368 = arith.constant 368 : index
    %1220 = memref.load %arg0[%c368] : memref<463xf32, #tpu.memory_space<smem>>
    %1221 = vector.broadcast %1220 : f32 to vector<8x256xf32>
    %1222 = arith.mulf %1221, %1207 : vector<8x256xf32>
    %1223 = arith.addf %1200, %1222 : vector<8x256xf32>
    %c413 = arith.constant 413 : index
    %1224 = memref.load %arg0[%c413] : memref<463xf32, #tpu.memory_space<smem>>
    %1225 = vector.broadcast %1224 : f32 to vector<8x256xf32>
    %1226 = arith.mulf %1225, %1207 : vector<8x256xf32>
    %1227 = arith.addf %1204, %1226 : vector<8x256xf32>
    %c234 = arith.constant 234 : index
    %1228 = memref.load %arg0[%c234] : memref<463xf32, #tpu.memory_space<smem>>
    %1229 = vector.broadcast %1228 : f32 to vector<8x256xf32>
    %1230 = arith.mulf %1229, %1054 : vector<8x256xf32>
    %1231 = arith.addf %1211, %1230 : vector<8x256xf32>
    %c279 = arith.constant 279 : index
    %1232 = memref.load %arg0[%c279] : memref<463xf32, #tpu.memory_space<smem>>
    %1233 = vector.broadcast %1232 : f32 to vector<8x256xf32>
    %1234 = arith.mulf %1233, %1054 : vector<8x256xf32>
    %1235 = arith.addf %1215, %1234 : vector<8x256xf32>
    %c324 = arith.constant 324 : index
    %1236 = memref.load %arg0[%c324] : memref<463xf32, #tpu.memory_space<smem>>
    %1237 = vector.broadcast %1236 : f32 to vector<8x256xf32>
    %1238 = arith.mulf %1237, %1054 : vector<8x256xf32>
    %1239 = arith.addf %1219, %1238 : vector<8x256xf32>
    %c369 = arith.constant 369 : index
    %1240 = memref.load %arg0[%c369] : memref<463xf32, #tpu.memory_space<smem>>
    %1241 = vector.broadcast %1240 : f32 to vector<8x256xf32>
    %1242 = arith.mulf %1241, %1054 : vector<8x256xf32>
    %1243 = arith.addf %1223, %1242 : vector<8x256xf32>
    %c414 = arith.constant 414 : index
    %1244 = memref.load %arg0[%c414] : memref<463xf32, #tpu.memory_space<smem>>
    %1245 = vector.broadcast %1244 : f32 to vector<8x256xf32>
    %1246 = arith.mulf %1245, %1054 : vector<8x256xf32>
    %1247 = arith.addf %1227, %1246 : vector<8x256xf32>
    %1248 = vector.extract_strided_slice %1054 {offsets = [0, 2], sizes = [8, 254], strides = [1, 1]} : vector<8x256xf32> to vector<8x254xf32>
    %1249 = vector.extract_strided_slice %1054 {offsets = [0, 0], sizes = [8, 2], strides = [1, 1]} : vector<8x256xf32> to vector<8x2xf32>
    %1250 = tpu.concatenate %1248, %1249 in 1 : vector<8x254xf32>, vector<8x2xf32> -> vector<8x256xf32>
    %c235 = arith.constant 235 : index
    %1251 = memref.load %arg0[%c235] : memref<463xf32, #tpu.memory_space<smem>>
    %1252 = vector.broadcast %1251 : f32 to vector<8x256xf32>
    %1253 = arith.mulf %1252, %1250 : vector<8x256xf32>
    %1254 = arith.addf %1231, %1253 : vector<8x256xf32>
    %c280 = arith.constant 280 : index
    %1255 = memref.load %arg0[%c280] : memref<463xf32, #tpu.memory_space<smem>>
    %1256 = vector.broadcast %1255 : f32 to vector<8x256xf32>
    %1257 = arith.mulf %1256, %1250 : vector<8x256xf32>
    %1258 = arith.addf %1235, %1257 : vector<8x256xf32>
    %c325 = arith.constant 325 : index
    %1259 = memref.load %arg0[%c325] : memref<463xf32, #tpu.memory_space<smem>>
    %1260 = vector.broadcast %1259 : f32 to vector<8x256xf32>
    %1261 = arith.mulf %1260, %1250 : vector<8x256xf32>
    %1262 = arith.addf %1239, %1261 : vector<8x256xf32>
    %c370 = arith.constant 370 : index
    %1263 = memref.load %arg0[%c370] : memref<463xf32, #tpu.memory_space<smem>>
    %1264 = vector.broadcast %1263 : f32 to vector<8x256xf32>
    %1265 = arith.mulf %1264, %1250 : vector<8x256xf32>
    %1266 = arith.addf %1243, %1265 : vector<8x256xf32>
    %c415 = arith.constant 415 : index
    %1267 = memref.load %arg0[%c415] : memref<463xf32, #tpu.memory_space<smem>>
    %1268 = vector.broadcast %1267 : f32 to vector<8x256xf32>
    %1269 = arith.mulf %1268, %1250 : vector<8x256xf32>
    %1270 = arith.addf %1247, %1269 : vector<8x256xf32>
    %1271 = vector.extract_strided_slice %1054 {offsets = [0, 30], sizes = [8, 226], strides = [1, 1]} : vector<8x256xf32> to vector<8x226xf32>
    %1272 = vector.extract_strided_slice %1054 {offsets = [0, 0], sizes = [8, 30], strides = [1, 1]} : vector<8x256xf32> to vector<8x30xf32>
    %1273 = tpu.concatenate %1271, %1272 in 1 : vector<8x226xf32>, vector<8x30xf32> -> vector<8x256xf32>
    %c236 = arith.constant 236 : index
    %1274 = memref.load %arg0[%c236] : memref<463xf32, #tpu.memory_space<smem>>
    %1275 = vector.broadcast %1274 : f32 to vector<8x256xf32>
    %1276 = arith.mulf %1275, %1273 : vector<8x256xf32>
    %1277 = arith.addf %1254, %1276 : vector<8x256xf32>
    %c281 = arith.constant 281 : index
    %1278 = memref.load %arg0[%c281] : memref<463xf32, #tpu.memory_space<smem>>
    %1279 = vector.broadcast %1278 : f32 to vector<8x256xf32>
    %1280 = arith.mulf %1279, %1273 : vector<8x256xf32>
    %1281 = arith.addf %1258, %1280 : vector<8x256xf32>
    %c326 = arith.constant 326 : index
    %1282 = memref.load %arg0[%c326] : memref<463xf32, #tpu.memory_space<smem>>
    %1283 = vector.broadcast %1282 : f32 to vector<8x256xf32>
    %1284 = arith.mulf %1283, %1273 : vector<8x256xf32>
    %1285 = arith.addf %1262, %1284 : vector<8x256xf32>
    %c371 = arith.constant 371 : index
    %1286 = memref.load %arg0[%c371] : memref<463xf32, #tpu.memory_space<smem>>
    %1287 = vector.broadcast %1286 : f32 to vector<8x256xf32>
    %1288 = arith.mulf %1287, %1273 : vector<8x256xf32>
    %1289 = arith.addf %1266, %1288 : vector<8x256xf32>
    %c416 = arith.constant 416 : index
    %1290 = memref.load %arg0[%c416] : memref<463xf32, #tpu.memory_space<smem>>
    %1291 = vector.broadcast %1290 : f32 to vector<8x256xf32>
    %1292 = arith.mulf %1291, %1273 : vector<8x256xf32>
    %1293 = arith.addf %1270, %1292 : vector<8x256xf32>
    %1294 = vector.extract_strided_slice %1054 {offsets = [0, 32], sizes = [8, 224], strides = [1, 1]} : vector<8x256xf32> to vector<8x224xf32>
    %1295 = vector.extract_strided_slice %1054 {offsets = [0, 0], sizes = [8, 32], strides = [1, 1]} : vector<8x256xf32> to vector<8x32xf32>
    %1296 = tpu.concatenate %1294, %1295 in 1 : vector<8x224xf32>, vector<8x32xf32> -> vector<8x256xf32>
    %c237 = arith.constant 237 : index
    %1297 = memref.load %arg0[%c237] : memref<463xf32, #tpu.memory_space<smem>>
    %1298 = vector.broadcast %1297 : f32 to vector<8x256xf32>
    %1299 = arith.mulf %1298, %1296 : vector<8x256xf32>
    %1300 = arith.addf %1277, %1299 : vector<8x256xf32>
    %c282 = arith.constant 282 : index
    %1301 = memref.load %arg0[%c282] : memref<463xf32, #tpu.memory_space<smem>>
    %1302 = vector.broadcast %1301 : f32 to vector<8x256xf32>
    %1303 = arith.mulf %1302, %1296 : vector<8x256xf32>
    %1304 = arith.addf %1281, %1303 : vector<8x256xf32>
    %c327 = arith.constant 327 : index
    %1305 = memref.load %arg0[%c327] : memref<463xf32, #tpu.memory_space<smem>>
    %1306 = vector.broadcast %1305 : f32 to vector<8x256xf32>
    %1307 = arith.mulf %1306, %1296 : vector<8x256xf32>
    %1308 = arith.addf %1285, %1307 : vector<8x256xf32>
    %c372 = arith.constant 372 : index
    %1309 = memref.load %arg0[%c372] : memref<463xf32, #tpu.memory_space<smem>>
    %1310 = vector.broadcast %1309 : f32 to vector<8x256xf32>
    %1311 = arith.mulf %1310, %1296 : vector<8x256xf32>
    %1312 = arith.addf %1289, %1311 : vector<8x256xf32>
    %c417 = arith.constant 417 : index
    %1313 = memref.load %arg0[%c417] : memref<463xf32, #tpu.memory_space<smem>>
    %1314 = vector.broadcast %1313 : f32 to vector<8x256xf32>
    %1315 = arith.mulf %1314, %1296 : vector<8x256xf32>
    %1316 = arith.addf %1293, %1315 : vector<8x256xf32>
    %1317 = vector.extract_strided_slice %1054 {offsets = [0, 34], sizes = [8, 222], strides = [1, 1]} : vector<8x256xf32> to vector<8x222xf32>
    %1318 = vector.extract_strided_slice %1054 {offsets = [0, 0], sizes = [8, 34], strides = [1, 1]} : vector<8x256xf32> to vector<8x34xf32>
    %1319 = tpu.concatenate %1317, %1318 in 1 : vector<8x222xf32>, vector<8x34xf32> -> vector<8x256xf32>
    %c238 = arith.constant 238 : index
    %1320 = memref.load %arg0[%c238] : memref<463xf32, #tpu.memory_space<smem>>
    %1321 = vector.broadcast %1320 : f32 to vector<8x256xf32>
    %1322 = arith.mulf %1321, %1319 : vector<8x256xf32>
    %1323 = arith.addf %1300, %1322 : vector<8x256xf32>
    %c283 = arith.constant 283 : index
    %1324 = memref.load %arg0[%c283] : memref<463xf32, #tpu.memory_space<smem>>
    %1325 = vector.broadcast %1324 : f32 to vector<8x256xf32>
    %1326 = arith.mulf %1325, %1319 : vector<8x256xf32>
    %1327 = arith.addf %1304, %1326 : vector<8x256xf32>
    %c328 = arith.constant 328 : index
    %1328 = memref.load %arg0[%c328] : memref<463xf32, #tpu.memory_space<smem>>
    %1329 = vector.broadcast %1328 : f32 to vector<8x256xf32>
    %1330 = arith.mulf %1329, %1319 : vector<8x256xf32>
    %1331 = arith.addf %1308, %1330 : vector<8x256xf32>
    %c373 = arith.constant 373 : index
    %1332 = memref.load %arg0[%c373] : memref<463xf32, #tpu.memory_space<smem>>
    %1333 = vector.broadcast %1332 : f32 to vector<8x256xf32>
    %1334 = arith.mulf %1333, %1319 : vector<8x256xf32>
    %1335 = arith.addf %1312, %1334 : vector<8x256xf32>
    %c418 = arith.constant 418 : index
    %1336 = memref.load %arg0[%c418] : memref<463xf32, #tpu.memory_space<smem>>
    %1337 = vector.broadcast %1336 : f32 to vector<8x256xf32>
    %1338 = arith.mulf %1337, %1319 : vector<8x256xf32>
    %1339 = arith.addf %1316, %1338 : vector<8x256xf32>
    %1340 = vector.extract_strided_slice %1073 {offsets = [0, 222], sizes = [8, 34], strides = [1, 1]} : vector<8x256xf32> to vector<8x34xf32>
    %1341 = vector.extract_strided_slice %1073 {offsets = [0, 0], sizes = [8, 222], strides = [1, 1]} : vector<8x256xf32> to vector<8x222xf32>
    %1342 = tpu.concatenate %1340, %1341 in 1 : vector<8x34xf32>, vector<8x222xf32> -> vector<8x256xf32>
    %c239 = arith.constant 239 : index
    %1343 = memref.load %arg0[%c239] : memref<463xf32, #tpu.memory_space<smem>>
    %1344 = vector.broadcast %1343 : f32 to vector<8x256xf32>
    %1345 = arith.mulf %1344, %1342 : vector<8x256xf32>
    %1346 = arith.addf %1323, %1345 : vector<8x256xf32>
    %c284 = arith.constant 284 : index
    %1347 = memref.load %arg0[%c284] : memref<463xf32, #tpu.memory_space<smem>>
    %1348 = vector.broadcast %1347 : f32 to vector<8x256xf32>
    %1349 = arith.mulf %1348, %1342 : vector<8x256xf32>
    %1350 = arith.addf %1327, %1349 : vector<8x256xf32>
    %c329 = arith.constant 329 : index
    %1351 = memref.load %arg0[%c329] : memref<463xf32, #tpu.memory_space<smem>>
    %1352 = vector.broadcast %1351 : f32 to vector<8x256xf32>
    %1353 = arith.mulf %1352, %1342 : vector<8x256xf32>
    %1354 = arith.addf %1331, %1353 : vector<8x256xf32>
    %c374 = arith.constant 374 : index
    %1355 = memref.load %arg0[%c374] : memref<463xf32, #tpu.memory_space<smem>>
    %1356 = vector.broadcast %1355 : f32 to vector<8x256xf32>
    %1357 = arith.mulf %1356, %1342 : vector<8x256xf32>
    %1358 = arith.addf %1335, %1357 : vector<8x256xf32>
    %c419 = arith.constant 419 : index
    %1359 = memref.load %arg0[%c419] : memref<463xf32, #tpu.memory_space<smem>>
    %1360 = vector.broadcast %1359 : f32 to vector<8x256xf32>
    %1361 = arith.mulf %1360, %1342 : vector<8x256xf32>
    %1362 = arith.addf %1339, %1361 : vector<8x256xf32>
    %1363 = vector.extract_strided_slice %1073 {offsets = [0, 224], sizes = [8, 32], strides = [1, 1]} : vector<8x256xf32> to vector<8x32xf32>
    %1364 = vector.extract_strided_slice %1073 {offsets = [0, 0], sizes = [8, 224], strides = [1, 1]} : vector<8x256xf32> to vector<8x224xf32>
    %1365 = tpu.concatenate %1363, %1364 in 1 : vector<8x32xf32>, vector<8x224xf32> -> vector<8x256xf32>
    %c240 = arith.constant 240 : index
    %1366 = memref.load %arg0[%c240] : memref<463xf32, #tpu.memory_space<smem>>
    %1367 = vector.broadcast %1366 : f32 to vector<8x256xf32>
    %1368 = arith.mulf %1367, %1365 : vector<8x256xf32>
    %1369 = arith.addf %1346, %1368 : vector<8x256xf32>
    %c285 = arith.constant 285 : index
    %1370 = memref.load %arg0[%c285] : memref<463xf32, #tpu.memory_space<smem>>
    %1371 = vector.broadcast %1370 : f32 to vector<8x256xf32>
    %1372 = arith.mulf %1371, %1365 : vector<8x256xf32>
    %1373 = arith.addf %1350, %1372 : vector<8x256xf32>
    %c330 = arith.constant 330 : index
    %1374 = memref.load %arg0[%c330] : memref<463xf32, #tpu.memory_space<smem>>
    %1375 = vector.broadcast %1374 : f32 to vector<8x256xf32>
    %1376 = arith.mulf %1375, %1365 : vector<8x256xf32>
    %1377 = arith.addf %1354, %1376 : vector<8x256xf32>
    %c375 = arith.constant 375 : index
    %1378 = memref.load %arg0[%c375] : memref<463xf32, #tpu.memory_space<smem>>
    %1379 = vector.broadcast %1378 : f32 to vector<8x256xf32>
    %1380 = arith.mulf %1379, %1365 : vector<8x256xf32>
    %1381 = arith.addf %1358, %1380 : vector<8x256xf32>
    %c420 = arith.constant 420 : index
    %1382 = memref.load %arg0[%c420] : memref<463xf32, #tpu.memory_space<smem>>
    %1383 = vector.broadcast %1382 : f32 to vector<8x256xf32>
    %1384 = arith.mulf %1383, %1365 : vector<8x256xf32>
    %1385 = arith.addf %1362, %1384 : vector<8x256xf32>
    %1386 = vector.extract_strided_slice %1073 {offsets = [0, 226], sizes = [8, 30], strides = [1, 1]} : vector<8x256xf32> to vector<8x30xf32>
    %1387 = vector.extract_strided_slice %1073 {offsets = [0, 0], sizes = [8, 226], strides = [1, 1]} : vector<8x256xf32> to vector<8x226xf32>
    %1388 = tpu.concatenate %1386, %1387 in 1 : vector<8x30xf32>, vector<8x226xf32> -> vector<8x256xf32>
    %c241 = arith.constant 241 : index
    %1389 = memref.load %arg0[%c241] : memref<463xf32, #tpu.memory_space<smem>>
    %1390 = vector.broadcast %1389 : f32 to vector<8x256xf32>
    %1391 = arith.mulf %1390, %1388 : vector<8x256xf32>
    %1392 = arith.addf %1369, %1391 : vector<8x256xf32>
    %c286 = arith.constant 286 : index
    %1393 = memref.load %arg0[%c286] : memref<463xf32, #tpu.memory_space<smem>>
    %1394 = vector.broadcast %1393 : f32 to vector<8x256xf32>
    %1395 = arith.mulf %1394, %1388 : vector<8x256xf32>
    %1396 = arith.addf %1373, %1395 : vector<8x256xf32>
    %c331 = arith.constant 331 : index
    %1397 = memref.load %arg0[%c331] : memref<463xf32, #tpu.memory_space<smem>>
    %1398 = vector.broadcast %1397 : f32 to vector<8x256xf32>
    %1399 = arith.mulf %1398, %1388 : vector<8x256xf32>
    %1400 = arith.addf %1377, %1399 : vector<8x256xf32>
    %c376 = arith.constant 376 : index
    %1401 = memref.load %arg0[%c376] : memref<463xf32, #tpu.memory_space<smem>>
    %1402 = vector.broadcast %1401 : f32 to vector<8x256xf32>
    %1403 = arith.mulf %1402, %1388 : vector<8x256xf32>
    %1404 = arith.addf %1381, %1403 : vector<8x256xf32>
    %c421 = arith.constant 421 : index
    %1405 = memref.load %arg0[%c421] : memref<463xf32, #tpu.memory_space<smem>>
    %1406 = vector.broadcast %1405 : f32 to vector<8x256xf32>
    %1407 = arith.mulf %1406, %1388 : vector<8x256xf32>
    %1408 = arith.addf %1385, %1407 : vector<8x256xf32>
    %1409 = vector.extract_strided_slice %1073 {offsets = [0, 254], sizes = [8, 2], strides = [1, 1]} : vector<8x256xf32> to vector<8x2xf32>
    %1410 = vector.extract_strided_slice %1073 {offsets = [0, 0], sizes = [8, 254], strides = [1, 1]} : vector<8x256xf32> to vector<8x254xf32>
    %1411 = tpu.concatenate %1409, %1410 in 1 : vector<8x2xf32>, vector<8x254xf32> -> vector<8x256xf32>
    %c242 = arith.constant 242 : index
    %1412 = memref.load %arg0[%c242] : memref<463xf32, #tpu.memory_space<smem>>
    %1413 = vector.broadcast %1412 : f32 to vector<8x256xf32>
    %1414 = arith.mulf %1413, %1411 : vector<8x256xf32>
    %1415 = arith.addf %1392, %1414 : vector<8x256xf32>
    %c287 = arith.constant 287 : index
    %1416 = memref.load %arg0[%c287] : memref<463xf32, #tpu.memory_space<smem>>
    %1417 = vector.broadcast %1416 : f32 to vector<8x256xf32>
    %1418 = arith.mulf %1417, %1411 : vector<8x256xf32>
    %1419 = arith.addf %1396, %1418 : vector<8x256xf32>
    %c332 = arith.constant 332 : index
    %1420 = memref.load %arg0[%c332] : memref<463xf32, #tpu.memory_space<smem>>
    %1421 = vector.broadcast %1420 : f32 to vector<8x256xf32>
    %1422 = arith.mulf %1421, %1411 : vector<8x256xf32>
    %1423 = arith.addf %1400, %1422 : vector<8x256xf32>
    %c377 = arith.constant 377 : index
    %1424 = memref.load %arg0[%c377] : memref<463xf32, #tpu.memory_space<smem>>
    %1425 = vector.broadcast %1424 : f32 to vector<8x256xf32>
    %1426 = arith.mulf %1425, %1411 : vector<8x256xf32>
    %1427 = arith.addf %1404, %1426 : vector<8x256xf32>
    %c422 = arith.constant 422 : index
    %1428 = memref.load %arg0[%c422] : memref<463xf32, #tpu.memory_space<smem>>
    %1429 = vector.broadcast %1428 : f32 to vector<8x256xf32>
    %1430 = arith.mulf %1429, %1411 : vector<8x256xf32>
    %1431 = arith.addf %1408, %1430 : vector<8x256xf32>
    %c243 = arith.constant 243 : index
    %1432 = memref.load %arg0[%c243] : memref<463xf32, #tpu.memory_space<smem>>
    %1433 = vector.broadcast %1432 : f32 to vector<8x256xf32>
    %1434 = arith.mulf %1433, %1073 : vector<8x256xf32>
    %1435 = arith.addf %1415, %1434 : vector<8x256xf32>
    %c288 = arith.constant 288 : index
    %1436 = memref.load %arg0[%c288] : memref<463xf32, #tpu.memory_space<smem>>
    %1437 = vector.broadcast %1436 : f32 to vector<8x256xf32>
    %1438 = arith.mulf %1437, %1073 : vector<8x256xf32>
    %1439 = arith.addf %1419, %1438 : vector<8x256xf32>
    %c333 = arith.constant 333 : index
    %1440 = memref.load %arg0[%c333] : memref<463xf32, #tpu.memory_space<smem>>
    %1441 = vector.broadcast %1440 : f32 to vector<8x256xf32>
    %1442 = arith.mulf %1441, %1073 : vector<8x256xf32>
    %1443 = arith.addf %1423, %1442 : vector<8x256xf32>
    %c378 = arith.constant 378 : index
    %1444 = memref.load %arg0[%c378] : memref<463xf32, #tpu.memory_space<smem>>
    %1445 = vector.broadcast %1444 : f32 to vector<8x256xf32>
    %1446 = arith.mulf %1445, %1073 : vector<8x256xf32>
    %1447 = arith.addf %1427, %1446 : vector<8x256xf32>
    %c423 = arith.constant 423 : index
    %1448 = memref.load %arg0[%c423] : memref<463xf32, #tpu.memory_space<smem>>
    %1449 = vector.broadcast %1448 : f32 to vector<8x256xf32>
    %1450 = arith.mulf %1449, %1073 : vector<8x256xf32>
    %1451 = arith.addf %1431, %1450 : vector<8x256xf32>
    %1452 = vector.extract_strided_slice %1073 {offsets = [0, 2], sizes = [8, 254], strides = [1, 1]} : vector<8x256xf32> to vector<8x254xf32>
    %1453 = vector.extract_strided_slice %1073 {offsets = [0, 0], sizes = [8, 2], strides = [1, 1]} : vector<8x256xf32> to vector<8x2xf32>
    %1454 = tpu.concatenate %1452, %1453 in 1 : vector<8x254xf32>, vector<8x2xf32> -> vector<8x256xf32>
    %c244 = arith.constant 244 : index
    %1455 = memref.load %arg0[%c244] : memref<463xf32, #tpu.memory_space<smem>>
    %1456 = vector.broadcast %1455 : f32 to vector<8x256xf32>
    %1457 = arith.mulf %1456, %1454 : vector<8x256xf32>
    %1458 = arith.addf %1435, %1457 : vector<8x256xf32>
    %c289 = arith.constant 289 : index
    %1459 = memref.load %arg0[%c289] : memref<463xf32, #tpu.memory_space<smem>>
    %1460 = vector.broadcast %1459 : f32 to vector<8x256xf32>
    %1461 = arith.mulf %1460, %1454 : vector<8x256xf32>
    %1462 = arith.addf %1439, %1461 : vector<8x256xf32>
    %c334 = arith.constant 334 : index
    %1463 = memref.load %arg0[%c334] : memref<463xf32, #tpu.memory_space<smem>>
    %1464 = vector.broadcast %1463 : f32 to vector<8x256xf32>
    %1465 = arith.mulf %1464, %1454 : vector<8x256xf32>
    %1466 = arith.addf %1443, %1465 : vector<8x256xf32>
    %c379 = arith.constant 379 : index
    %1467 = memref.load %arg0[%c379] : memref<463xf32, #tpu.memory_space<smem>>
    %1468 = vector.broadcast %1467 : f32 to vector<8x256xf32>
    %1469 = arith.mulf %1468, %1454 : vector<8x256xf32>
    %1470 = arith.addf %1447, %1469 : vector<8x256xf32>
    %c424 = arith.constant 424 : index
    %1471 = memref.load %arg0[%c424] : memref<463xf32, #tpu.memory_space<smem>>
    %1472 = vector.broadcast %1471 : f32 to vector<8x256xf32>
    %1473 = arith.mulf %1472, %1454 : vector<8x256xf32>
    %1474 = arith.addf %1451, %1473 : vector<8x256xf32>
    %1475 = vector.extract_strided_slice %1073 {offsets = [0, 30], sizes = [8, 226], strides = [1, 1]} : vector<8x256xf32> to vector<8x226xf32>
    %1476 = vector.extract_strided_slice %1073 {offsets = [0, 0], sizes = [8, 30], strides = [1, 1]} : vector<8x256xf32> to vector<8x30xf32>
    %1477 = tpu.concatenate %1475, %1476 in 1 : vector<8x226xf32>, vector<8x30xf32> -> vector<8x256xf32>
    %c245 = arith.constant 245 : index
    %1478 = memref.load %arg0[%c245] : memref<463xf32, #tpu.memory_space<smem>>
    %1479 = vector.broadcast %1478 : f32 to vector<8x256xf32>
    %1480 = arith.mulf %1479, %1477 : vector<8x256xf32>
    %1481 = arith.addf %1458, %1480 : vector<8x256xf32>
    %c290 = arith.constant 290 : index
    %1482 = memref.load %arg0[%c290] : memref<463xf32, #tpu.memory_space<smem>>
    %1483 = vector.broadcast %1482 : f32 to vector<8x256xf32>
    %1484 = arith.mulf %1483, %1477 : vector<8x256xf32>
    %1485 = arith.addf %1462, %1484 : vector<8x256xf32>
    %c335 = arith.constant 335 : index
    %1486 = memref.load %arg0[%c335] : memref<463xf32, #tpu.memory_space<smem>>
    %1487 = vector.broadcast %1486 : f32 to vector<8x256xf32>
    %1488 = arith.mulf %1487, %1477 : vector<8x256xf32>
    %1489 = arith.addf %1466, %1488 : vector<8x256xf32>
    %c380 = arith.constant 380 : index
    %1490 = memref.load %arg0[%c380] : memref<463xf32, #tpu.memory_space<smem>>
    %1491 = vector.broadcast %1490 : f32 to vector<8x256xf32>
    %1492 = arith.mulf %1491, %1477 : vector<8x256xf32>
    %1493 = arith.addf %1470, %1492 : vector<8x256xf32>
    %c425 = arith.constant 425 : index
    %1494 = memref.load %arg0[%c425] : memref<463xf32, #tpu.memory_space<smem>>
    %1495 = vector.broadcast %1494 : f32 to vector<8x256xf32>
    %1496 = arith.mulf %1495, %1477 : vector<8x256xf32>
    %1497 = arith.addf %1474, %1496 : vector<8x256xf32>
    %1498 = vector.extract_strided_slice %1073 {offsets = [0, 32], sizes = [8, 224], strides = [1, 1]} : vector<8x256xf32> to vector<8x224xf32>
    %1499 = vector.extract_strided_slice %1073 {offsets = [0, 0], sizes = [8, 32], strides = [1, 1]} : vector<8x256xf32> to vector<8x32xf32>
    %1500 = tpu.concatenate %1498, %1499 in 1 : vector<8x224xf32>, vector<8x32xf32> -> vector<8x256xf32>
    %c246 = arith.constant 246 : index
    %1501 = memref.load %arg0[%c246] : memref<463xf32, #tpu.memory_space<smem>>
    %1502 = vector.broadcast %1501 : f32 to vector<8x256xf32>
    %1503 = arith.mulf %1502, %1500 : vector<8x256xf32>
    %1504 = arith.addf %1481, %1503 : vector<8x256xf32>
    %c291 = arith.constant 291 : index
    %1505 = memref.load %arg0[%c291] : memref<463xf32, #tpu.memory_space<smem>>
    %1506 = vector.broadcast %1505 : f32 to vector<8x256xf32>
    %1507 = arith.mulf %1506, %1500 : vector<8x256xf32>
    %1508 = arith.addf %1485, %1507 : vector<8x256xf32>
    %c336 = arith.constant 336 : index
    %1509 = memref.load %arg0[%c336] : memref<463xf32, #tpu.memory_space<smem>>
    %1510 = vector.broadcast %1509 : f32 to vector<8x256xf32>
    %1511 = arith.mulf %1510, %1500 : vector<8x256xf32>
    %1512 = arith.addf %1489, %1511 : vector<8x256xf32>
    %c381 = arith.constant 381 : index
    %1513 = memref.load %arg0[%c381] : memref<463xf32, #tpu.memory_space<smem>>
    %1514 = vector.broadcast %1513 : f32 to vector<8x256xf32>
    %1515 = arith.mulf %1514, %1500 : vector<8x256xf32>
    %1516 = arith.addf %1493, %1515 : vector<8x256xf32>
    %c426 = arith.constant 426 : index
    %1517 = memref.load %arg0[%c426] : memref<463xf32, #tpu.memory_space<smem>>
    %1518 = vector.broadcast %1517 : f32 to vector<8x256xf32>
    %1519 = arith.mulf %1518, %1500 : vector<8x256xf32>
    %1520 = arith.addf %1497, %1519 : vector<8x256xf32>
    %1521 = vector.extract_strided_slice %1073 {offsets = [0, 34], sizes = [8, 222], strides = [1, 1]} : vector<8x256xf32> to vector<8x222xf32>
    %1522 = vector.extract_strided_slice %1073 {offsets = [0, 0], sizes = [8, 34], strides = [1, 1]} : vector<8x256xf32> to vector<8x34xf32>
    %1523 = tpu.concatenate %1521, %1522 in 1 : vector<8x222xf32>, vector<8x34xf32> -> vector<8x256xf32>
    %c247 = arith.constant 247 : index
    %1524 = memref.load %arg0[%c247] : memref<463xf32, #tpu.memory_space<smem>>
    %1525 = vector.broadcast %1524 : f32 to vector<8x256xf32>
    %1526 = arith.mulf %1525, %1523 : vector<8x256xf32>
    %1527 = arith.addf %1504, %1526 : vector<8x256xf32>
    %c292 = arith.constant 292 : index
    %1528 = memref.load %arg0[%c292] : memref<463xf32, #tpu.memory_space<smem>>
    %1529 = vector.broadcast %1528 : f32 to vector<8x256xf32>
    %1530 = arith.mulf %1529, %1523 : vector<8x256xf32>
    %1531 = arith.addf %1508, %1530 : vector<8x256xf32>
    %c337 = arith.constant 337 : index
    %1532 = memref.load %arg0[%c337] : memref<463xf32, #tpu.memory_space<smem>>
    %1533 = vector.broadcast %1532 : f32 to vector<8x256xf32>
    %1534 = arith.mulf %1533, %1523 : vector<8x256xf32>
    %1535 = arith.addf %1512, %1534 : vector<8x256xf32>
    %c382 = arith.constant 382 : index
    %1536 = memref.load %arg0[%c382] : memref<463xf32, #tpu.memory_space<smem>>
    %1537 = vector.broadcast %1536 : f32 to vector<8x256xf32>
    %1538 = arith.mulf %1537, %1523 : vector<8x256xf32>
    %1539 = arith.addf %1516, %1538 : vector<8x256xf32>
    %c427 = arith.constant 427 : index
    %1540 = memref.load %arg0[%c427] : memref<463xf32, #tpu.memory_space<smem>>
    %1541 = vector.broadcast %1540 : f32 to vector<8x256xf32>
    %1542 = arith.mulf %1541, %1523 : vector<8x256xf32>
    %1543 = arith.addf %1520, %1542 : vector<8x256xf32>
    %1544 = vector.extract_strided_slice %1092 {offsets = [0, 222], sizes = [8, 34], strides = [1, 1]} : vector<8x256xf32> to vector<8x34xf32>
    %1545 = vector.extract_strided_slice %1092 {offsets = [0, 0], sizes = [8, 222], strides = [1, 1]} : vector<8x256xf32> to vector<8x222xf32>
    %1546 = tpu.concatenate %1544, %1545 in 1 : vector<8x34xf32>, vector<8x222xf32> -> vector<8x256xf32>
    %c248 = arith.constant 248 : index
    %1547 = memref.load %arg0[%c248] : memref<463xf32, #tpu.memory_space<smem>>
    %1548 = vector.broadcast %1547 : f32 to vector<8x256xf32>
    %1549 = arith.mulf %1548, %1546 : vector<8x256xf32>
    %1550 = arith.addf %1527, %1549 : vector<8x256xf32>
    %c293 = arith.constant 293 : index
    %1551 = memref.load %arg0[%c293] : memref<463xf32, #tpu.memory_space<smem>>
    %1552 = vector.broadcast %1551 : f32 to vector<8x256xf32>
    %1553 = arith.mulf %1552, %1546 : vector<8x256xf32>
    %1554 = arith.addf %1531, %1553 : vector<8x256xf32>
    %c338 = arith.constant 338 : index
    %1555 = memref.load %arg0[%c338] : memref<463xf32, #tpu.memory_space<smem>>
    %1556 = vector.broadcast %1555 : f32 to vector<8x256xf32>
    %1557 = arith.mulf %1556, %1546 : vector<8x256xf32>
    %1558 = arith.addf %1535, %1557 : vector<8x256xf32>
    %c383 = arith.constant 383 : index
    %1559 = memref.load %arg0[%c383] : memref<463xf32, #tpu.memory_space<smem>>
    %1560 = vector.broadcast %1559 : f32 to vector<8x256xf32>
    %1561 = arith.mulf %1560, %1546 : vector<8x256xf32>
    %1562 = arith.addf %1539, %1561 : vector<8x256xf32>
    %c428 = arith.constant 428 : index
    %1563 = memref.load %arg0[%c428] : memref<463xf32, #tpu.memory_space<smem>>
    %1564 = vector.broadcast %1563 : f32 to vector<8x256xf32>
    %1565 = arith.mulf %1564, %1546 : vector<8x256xf32>
    %1566 = arith.addf %1543, %1565 : vector<8x256xf32>
    %1567 = vector.extract_strided_slice %1092 {offsets = [0, 224], sizes = [8, 32], strides = [1, 1]} : vector<8x256xf32> to vector<8x32xf32>
    %1568 = vector.extract_strided_slice %1092 {offsets = [0, 0], sizes = [8, 224], strides = [1, 1]} : vector<8x256xf32> to vector<8x224xf32>
    %1569 = tpu.concatenate %1567, %1568 in 1 : vector<8x32xf32>, vector<8x224xf32> -> vector<8x256xf32>
    %c249 = arith.constant 249 : index
    %1570 = memref.load %arg0[%c249] : memref<463xf32, #tpu.memory_space<smem>>
    %1571 = vector.broadcast %1570 : f32 to vector<8x256xf32>
    %1572 = arith.mulf %1571, %1569 : vector<8x256xf32>
    %1573 = arith.addf %1550, %1572 : vector<8x256xf32>
    %c294 = arith.constant 294 : index
    %1574 = memref.load %arg0[%c294] : memref<463xf32, #tpu.memory_space<smem>>
    %1575 = vector.broadcast %1574 : f32 to vector<8x256xf32>
    %1576 = arith.mulf %1575, %1569 : vector<8x256xf32>
    %1577 = arith.addf %1554, %1576 : vector<8x256xf32>
    %c339 = arith.constant 339 : index
    %1578 = memref.load %arg0[%c339] : memref<463xf32, #tpu.memory_space<smem>>
    %1579 = vector.broadcast %1578 : f32 to vector<8x256xf32>
    %1580 = arith.mulf %1579, %1569 : vector<8x256xf32>
    %1581 = arith.addf %1558, %1580 : vector<8x256xf32>
    %c384 = arith.constant 384 : index
    %1582 = memref.load %arg0[%c384] : memref<463xf32, #tpu.memory_space<smem>>
    %1583 = vector.broadcast %1582 : f32 to vector<8x256xf32>
    %1584 = arith.mulf %1583, %1569 : vector<8x256xf32>
    %1585 = arith.addf %1562, %1584 : vector<8x256xf32>
    %c429 = arith.constant 429 : index
    %1586 = memref.load %arg0[%c429] : memref<463xf32, #tpu.memory_space<smem>>
    %1587 = vector.broadcast %1586 : f32 to vector<8x256xf32>
    %1588 = arith.mulf %1587, %1569 : vector<8x256xf32>
    %1589 = arith.addf %1566, %1588 : vector<8x256xf32>
    %1590 = vector.extract_strided_slice %1092 {offsets = [0, 226], sizes = [8, 30], strides = [1, 1]} : vector<8x256xf32> to vector<8x30xf32>
    %1591 = vector.extract_strided_slice %1092 {offsets = [0, 0], sizes = [8, 226], strides = [1, 1]} : vector<8x256xf32> to vector<8x226xf32>
    %1592 = tpu.concatenate %1590, %1591 in 1 : vector<8x30xf32>, vector<8x226xf32> -> vector<8x256xf32>
    %c250 = arith.constant 250 : index
    %1593 = memref.load %arg0[%c250] : memref<463xf32, #tpu.memory_space<smem>>
    %1594 = vector.broadcast %1593 : f32 to vector<8x256xf32>
    %1595 = arith.mulf %1594, %1592 : vector<8x256xf32>
    %1596 = arith.addf %1573, %1595 : vector<8x256xf32>
    %c295 = arith.constant 295 : index
    %1597 = memref.load %arg0[%c295] : memref<463xf32, #tpu.memory_space<smem>>
    %1598 = vector.broadcast %1597 : f32 to vector<8x256xf32>
    %1599 = arith.mulf %1598, %1592 : vector<8x256xf32>
    %1600 = arith.addf %1577, %1599 : vector<8x256xf32>
    %c340 = arith.constant 340 : index
    %1601 = memref.load %arg0[%c340] : memref<463xf32, #tpu.memory_space<smem>>
    %1602 = vector.broadcast %1601 : f32 to vector<8x256xf32>
    %1603 = arith.mulf %1602, %1592 : vector<8x256xf32>
    %1604 = arith.addf %1581, %1603 : vector<8x256xf32>
    %c385 = arith.constant 385 : index
    %1605 = memref.load %arg0[%c385] : memref<463xf32, #tpu.memory_space<smem>>
    %1606 = vector.broadcast %1605 : f32 to vector<8x256xf32>
    %1607 = arith.mulf %1606, %1592 : vector<8x256xf32>
    %1608 = arith.addf %1585, %1607 : vector<8x256xf32>
    %c430 = arith.constant 430 : index
    %1609 = memref.load %arg0[%c430] : memref<463xf32, #tpu.memory_space<smem>>
    %1610 = vector.broadcast %1609 : f32 to vector<8x256xf32>
    %1611 = arith.mulf %1610, %1592 : vector<8x256xf32>
    %1612 = arith.addf %1589, %1611 : vector<8x256xf32>
    %1613 = vector.extract_strided_slice %1092 {offsets = [0, 254], sizes = [8, 2], strides = [1, 1]} : vector<8x256xf32> to vector<8x2xf32>
    %1614 = vector.extract_strided_slice %1092 {offsets = [0, 0], sizes = [8, 254], strides = [1, 1]} : vector<8x256xf32> to vector<8x254xf32>
    %1615 = tpu.concatenate %1613, %1614 in 1 : vector<8x2xf32>, vector<8x254xf32> -> vector<8x256xf32>
    %c251 = arith.constant 251 : index
    %1616 = memref.load %arg0[%c251] : memref<463xf32, #tpu.memory_space<smem>>
    %1617 = vector.broadcast %1616 : f32 to vector<8x256xf32>
    %1618 = arith.mulf %1617, %1615 : vector<8x256xf32>
    %1619 = arith.addf %1596, %1618 : vector<8x256xf32>
    %c296 = arith.constant 296 : index
    %1620 = memref.load %arg0[%c296] : memref<463xf32, #tpu.memory_space<smem>>
    %1621 = vector.broadcast %1620 : f32 to vector<8x256xf32>
    %1622 = arith.mulf %1621, %1615 : vector<8x256xf32>
    %1623 = arith.addf %1600, %1622 : vector<8x256xf32>
    %c341 = arith.constant 341 : index
    %1624 = memref.load %arg0[%c341] : memref<463xf32, #tpu.memory_space<smem>>
    %1625 = vector.broadcast %1624 : f32 to vector<8x256xf32>
    %1626 = arith.mulf %1625, %1615 : vector<8x256xf32>
    %1627 = arith.addf %1604, %1626 : vector<8x256xf32>
    %c386 = arith.constant 386 : index
    %1628 = memref.load %arg0[%c386] : memref<463xf32, #tpu.memory_space<smem>>
    %1629 = vector.broadcast %1628 : f32 to vector<8x256xf32>
    %1630 = arith.mulf %1629, %1615 : vector<8x256xf32>
    %1631 = arith.addf %1608, %1630 : vector<8x256xf32>
    %c431 = arith.constant 431 : index
    %1632 = memref.load %arg0[%c431] : memref<463xf32, #tpu.memory_space<smem>>
    %1633 = vector.broadcast %1632 : f32 to vector<8x256xf32>
    %1634 = arith.mulf %1633, %1615 : vector<8x256xf32>
    %1635 = arith.addf %1612, %1634 : vector<8x256xf32>
    %c252 = arith.constant 252 : index
    %1636 = memref.load %arg0[%c252] : memref<463xf32, #tpu.memory_space<smem>>
    %1637 = vector.broadcast %1636 : f32 to vector<8x256xf32>
    %1638 = arith.mulf %1637, %1092 : vector<8x256xf32>
    %1639 = arith.addf %1619, %1638 : vector<8x256xf32>
    %c297 = arith.constant 297 : index
    %1640 = memref.load %arg0[%c297] : memref<463xf32, #tpu.memory_space<smem>>
    %1641 = vector.broadcast %1640 : f32 to vector<8x256xf32>
    %1642 = arith.mulf %1641, %1092 : vector<8x256xf32>
    %1643 = arith.addf %1623, %1642 : vector<8x256xf32>
    %c342 = arith.constant 342 : index
    %1644 = memref.load %arg0[%c342] : memref<463xf32, #tpu.memory_space<smem>>
    %1645 = vector.broadcast %1644 : f32 to vector<8x256xf32>
    %1646 = arith.mulf %1645, %1092 : vector<8x256xf32>
    %1647 = arith.addf %1627, %1646 : vector<8x256xf32>
    %c387 = arith.constant 387 : index
    %1648 = memref.load %arg0[%c387] : memref<463xf32, #tpu.memory_space<smem>>
    %1649 = vector.broadcast %1648 : f32 to vector<8x256xf32>
    %1650 = arith.mulf %1649, %1092 : vector<8x256xf32>
    %1651 = arith.addf %1631, %1650 : vector<8x256xf32>
    %c432 = arith.constant 432 : index
    %1652 = memref.load %arg0[%c432] : memref<463xf32, #tpu.memory_space<smem>>
    %1653 = vector.broadcast %1652 : f32 to vector<8x256xf32>
    %1654 = arith.mulf %1653, %1092 : vector<8x256xf32>
    %1655 = arith.addf %1635, %1654 : vector<8x256xf32>
    %1656 = vector.extract_strided_slice %1092 {offsets = [0, 2], sizes = [8, 254], strides = [1, 1]} : vector<8x256xf32> to vector<8x254xf32>
    %1657 = vector.extract_strided_slice %1092 {offsets = [0, 0], sizes = [8, 2], strides = [1, 1]} : vector<8x256xf32> to vector<8x2xf32>
    %1658 = tpu.concatenate %1656, %1657 in 1 : vector<8x254xf32>, vector<8x2xf32> -> vector<8x256xf32>
    %c253 = arith.constant 253 : index
    %1659 = memref.load %arg0[%c253] : memref<463xf32, #tpu.memory_space<smem>>
    %1660 = vector.broadcast %1659 : f32 to vector<8x256xf32>
    %1661 = arith.mulf %1660, %1658 : vector<8x256xf32>
    %1662 = arith.addf %1639, %1661 : vector<8x256xf32>
    %c298 = arith.constant 298 : index
    %1663 = memref.load %arg0[%c298] : memref<463xf32, #tpu.memory_space<smem>>
    %1664 = vector.broadcast %1663 : f32 to vector<8x256xf32>
    %1665 = arith.mulf %1664, %1658 : vector<8x256xf32>
    %1666 = arith.addf %1643, %1665 : vector<8x256xf32>
    %c343 = arith.constant 343 : index
    %1667 = memref.load %arg0[%c343] : memref<463xf32, #tpu.memory_space<smem>>
    %1668 = vector.broadcast %1667 : f32 to vector<8x256xf32>
    %1669 = arith.mulf %1668, %1658 : vector<8x256xf32>
    %1670 = arith.addf %1647, %1669 : vector<8x256xf32>
    %c388 = arith.constant 388 : index
    %1671 = memref.load %arg0[%c388] : memref<463xf32, #tpu.memory_space<smem>>
    %1672 = vector.broadcast %1671 : f32 to vector<8x256xf32>
    %1673 = arith.mulf %1672, %1658 : vector<8x256xf32>
    %1674 = arith.addf %1651, %1673 : vector<8x256xf32>
    %c433 = arith.constant 433 : index
    %1675 = memref.load %arg0[%c433] : memref<463xf32, #tpu.memory_space<smem>>
    %1676 = vector.broadcast %1675 : f32 to vector<8x256xf32>
    %1677 = arith.mulf %1676, %1658 : vector<8x256xf32>
    %1678 = arith.addf %1655, %1677 : vector<8x256xf32>
    %1679 = vector.extract_strided_slice %1092 {offsets = [0, 30], sizes = [8, 226], strides = [1, 1]} : vector<8x256xf32> to vector<8x226xf32>
    %1680 = vector.extract_strided_slice %1092 {offsets = [0, 0], sizes = [8, 30], strides = [1, 1]} : vector<8x256xf32> to vector<8x30xf32>
    %1681 = tpu.concatenate %1679, %1680 in 1 : vector<8x226xf32>, vector<8x30xf32> -> vector<8x256xf32>
    %c254 = arith.constant 254 : index
    %1682 = memref.load %arg0[%c254] : memref<463xf32, #tpu.memory_space<smem>>
    %1683 = vector.broadcast %1682 : f32 to vector<8x256xf32>
    %1684 = arith.mulf %1683, %1681 : vector<8x256xf32>
    %1685 = arith.addf %1662, %1684 : vector<8x256xf32>
    %c299 = arith.constant 299 : index
    %1686 = memref.load %arg0[%c299] : memref<463xf32, #tpu.memory_space<smem>>
    %1687 = vector.broadcast %1686 : f32 to vector<8x256xf32>
    %1688 = arith.mulf %1687, %1681 : vector<8x256xf32>
    %1689 = arith.addf %1666, %1688 : vector<8x256xf32>
    %c344 = arith.constant 344 : index
    %1690 = memref.load %arg0[%c344] : memref<463xf32, #tpu.memory_space<smem>>
    %1691 = vector.broadcast %1690 : f32 to vector<8x256xf32>
    %1692 = arith.mulf %1691, %1681 : vector<8x256xf32>
    %1693 = arith.addf %1670, %1692 : vector<8x256xf32>
    %c389 = arith.constant 389 : index
    %1694 = memref.load %arg0[%c389] : memref<463xf32, #tpu.memory_space<smem>>
    %1695 = vector.broadcast %1694 : f32 to vector<8x256xf32>
    %1696 = arith.mulf %1695, %1681 : vector<8x256xf32>
    %1697 = arith.addf %1674, %1696 : vector<8x256xf32>
    %c434 = arith.constant 434 : index
    %1698 = memref.load %arg0[%c434] : memref<463xf32, #tpu.memory_space<smem>>
    %1699 = vector.broadcast %1698 : f32 to vector<8x256xf32>
    %1700 = arith.mulf %1699, %1681 : vector<8x256xf32>
    %1701 = arith.addf %1678, %1700 : vector<8x256xf32>
    %1702 = vector.extract_strided_slice %1092 {offsets = [0, 32], sizes = [8, 224], strides = [1, 1]} : vector<8x256xf32> to vector<8x224xf32>
    %1703 = vector.extract_strided_slice %1092 {offsets = [0, 0], sizes = [8, 32], strides = [1, 1]} : vector<8x256xf32> to vector<8x32xf32>
    %1704 = tpu.concatenate %1702, %1703 in 1 : vector<8x224xf32>, vector<8x32xf32> -> vector<8x256xf32>
    %c255 = arith.constant 255 : index
    %1705 = memref.load %arg0[%c255] : memref<463xf32, #tpu.memory_space<smem>>
    %1706 = vector.broadcast %1705 : f32 to vector<8x256xf32>
    %1707 = arith.mulf %1706, %1704 : vector<8x256xf32>
    %1708 = arith.addf %1685, %1707 : vector<8x256xf32>
    %c300 = arith.constant 300 : index
    %1709 = memref.load %arg0[%c300] : memref<463xf32, #tpu.memory_space<smem>>
    %1710 = vector.broadcast %1709 : f32 to vector<8x256xf32>
    %1711 = arith.mulf %1710, %1704 : vector<8x256xf32>
    %1712 = arith.addf %1689, %1711 : vector<8x256xf32>
    %c345 = arith.constant 345 : index
    %1713 = memref.load %arg0[%c345] : memref<463xf32, #tpu.memory_space<smem>>
    %1714 = vector.broadcast %1713 : f32 to vector<8x256xf32>
    %1715 = arith.mulf %1714, %1704 : vector<8x256xf32>
    %1716 = arith.addf %1693, %1715 : vector<8x256xf32>
    %c390 = arith.constant 390 : index
    %1717 = memref.load %arg0[%c390] : memref<463xf32, #tpu.memory_space<smem>>
    %1718 = vector.broadcast %1717 : f32 to vector<8x256xf32>
    %1719 = arith.mulf %1718, %1704 : vector<8x256xf32>
    %1720 = arith.addf %1697, %1719 : vector<8x256xf32>
    %c435 = arith.constant 435 : index
    %1721 = memref.load %arg0[%c435] : memref<463xf32, #tpu.memory_space<smem>>
    %1722 = vector.broadcast %1721 : f32 to vector<8x256xf32>
    %1723 = arith.mulf %1722, %1704 : vector<8x256xf32>
    %1724 = arith.addf %1701, %1723 : vector<8x256xf32>
    %1725 = vector.extract_strided_slice %1092 {offsets = [0, 34], sizes = [8, 222], strides = [1, 1]} : vector<8x256xf32> to vector<8x222xf32>
    %1726 = vector.extract_strided_slice %1092 {offsets = [0, 0], sizes = [8, 34], strides = [1, 1]} : vector<8x256xf32> to vector<8x34xf32>
    %1727 = tpu.concatenate %1725, %1726 in 1 : vector<8x222xf32>, vector<8x34xf32> -> vector<8x256xf32>
    %c256 = arith.constant 256 : index
    %1728 = memref.load %arg0[%c256] : memref<463xf32, #tpu.memory_space<smem>>
    %1729 = vector.broadcast %1728 : f32 to vector<8x256xf32>
    %1730 = arith.mulf %1729, %1727 : vector<8x256xf32>
    %1731 = arith.addf %1708, %1730 : vector<8x256xf32>
    %c301 = arith.constant 301 : index
    %1732 = memref.load %arg0[%c301] : memref<463xf32, #tpu.memory_space<smem>>
    %1733 = vector.broadcast %1732 : f32 to vector<8x256xf32>
    %1734 = arith.mulf %1733, %1727 : vector<8x256xf32>
    %1735 = arith.addf %1712, %1734 : vector<8x256xf32>
    %c346 = arith.constant 346 : index
    %1736 = memref.load %arg0[%c346] : memref<463xf32, #tpu.memory_space<smem>>
    %1737 = vector.broadcast %1736 : f32 to vector<8x256xf32>
    %1738 = arith.mulf %1737, %1727 : vector<8x256xf32>
    %1739 = arith.addf %1716, %1738 : vector<8x256xf32>
    %c391 = arith.constant 391 : index
    %1740 = memref.load %arg0[%c391] : memref<463xf32, #tpu.memory_space<smem>>
    %1741 = vector.broadcast %1740 : f32 to vector<8x256xf32>
    %1742 = arith.mulf %1741, %1727 : vector<8x256xf32>
    %1743 = arith.addf %1720, %1742 : vector<8x256xf32>
    %c436 = arith.constant 436 : index
    %1744 = memref.load %arg0[%c436] : memref<463xf32, #tpu.memory_space<smem>>
    %1745 = vector.broadcast %1744 : f32 to vector<8x256xf32>
    %1746 = arith.mulf %1745, %1727 : vector<8x256xf32>
    %1747 = arith.addf %1724, %1746 : vector<8x256xf32>
    %1748 = vector.extract_strided_slice %1111 {offsets = [0, 222], sizes = [8, 34], strides = [1, 1]} : vector<8x256xf32> to vector<8x34xf32>
    %1749 = vector.extract_strided_slice %1111 {offsets = [0, 0], sizes = [8, 222], strides = [1, 1]} : vector<8x256xf32> to vector<8x222xf32>
    %1750 = tpu.concatenate %1748, %1749 in 1 : vector<8x34xf32>, vector<8x222xf32> -> vector<8x256xf32>
    %c257 = arith.constant 257 : index
    %1751 = memref.load %arg0[%c257] : memref<463xf32, #tpu.memory_space<smem>>
    %1752 = vector.broadcast %1751 : f32 to vector<8x256xf32>
    %1753 = arith.mulf %1752, %1750 : vector<8x256xf32>
    %1754 = arith.addf %1731, %1753 : vector<8x256xf32>
    %c302 = arith.constant 302 : index
    %1755 = memref.load %arg0[%c302] : memref<463xf32, #tpu.memory_space<smem>>
    %1756 = vector.broadcast %1755 : f32 to vector<8x256xf32>
    %1757 = arith.mulf %1756, %1750 : vector<8x256xf32>
    %1758 = arith.addf %1735, %1757 : vector<8x256xf32>
    %c347 = arith.constant 347 : index
    %1759 = memref.load %arg0[%c347] : memref<463xf32, #tpu.memory_space<smem>>
    %1760 = vector.broadcast %1759 : f32 to vector<8x256xf32>
    %1761 = arith.mulf %1760, %1750 : vector<8x256xf32>
    %1762 = arith.addf %1739, %1761 : vector<8x256xf32>
    %c392 = arith.constant 392 : index
    %1763 = memref.load %arg0[%c392] : memref<463xf32, #tpu.memory_space<smem>>
    %1764 = vector.broadcast %1763 : f32 to vector<8x256xf32>
    %1765 = arith.mulf %1764, %1750 : vector<8x256xf32>
    %1766 = arith.addf %1743, %1765 : vector<8x256xf32>
    %c437 = arith.constant 437 : index
    %1767 = memref.load %arg0[%c437] : memref<463xf32, #tpu.memory_space<smem>>
    %1768 = vector.broadcast %1767 : f32 to vector<8x256xf32>
    %1769 = arith.mulf %1768, %1750 : vector<8x256xf32>
    %1770 = arith.addf %1747, %1769 : vector<8x256xf32>
    %1771 = vector.extract_strided_slice %1111 {offsets = [0, 224], sizes = [8, 32], strides = [1, 1]} : vector<8x256xf32> to vector<8x32xf32>
    %1772 = vector.extract_strided_slice %1111 {offsets = [0, 0], sizes = [8, 224], strides = [1, 1]} : vector<8x256xf32> to vector<8x224xf32>
    %1773 = tpu.concatenate %1771, %1772 in 1 : vector<8x32xf32>, vector<8x224xf32> -> vector<8x256xf32>
    %c258 = arith.constant 258 : index
    %1774 = memref.load %arg0[%c258] : memref<463xf32, #tpu.memory_space<smem>>
    %1775 = vector.broadcast %1774 : f32 to vector<8x256xf32>
    %1776 = arith.mulf %1775, %1773 : vector<8x256xf32>
    %1777 = arith.addf %1754, %1776 : vector<8x256xf32>
    %c303 = arith.constant 303 : index
    %1778 = memref.load %arg0[%c303] : memref<463xf32, #tpu.memory_space<smem>>
    %1779 = vector.broadcast %1778 : f32 to vector<8x256xf32>
    %1780 = arith.mulf %1779, %1773 : vector<8x256xf32>
    %1781 = arith.addf %1758, %1780 : vector<8x256xf32>
    %c348 = arith.constant 348 : index
    %1782 = memref.load %arg0[%c348] : memref<463xf32, #tpu.memory_space<smem>>
    %1783 = vector.broadcast %1782 : f32 to vector<8x256xf32>
    %1784 = arith.mulf %1783, %1773 : vector<8x256xf32>
    %1785 = arith.addf %1762, %1784 : vector<8x256xf32>
    %c393 = arith.constant 393 : index
    %1786 = memref.load %arg0[%c393] : memref<463xf32, #tpu.memory_space<smem>>
    %1787 = vector.broadcast %1786 : f32 to vector<8x256xf32>
    %1788 = arith.mulf %1787, %1773 : vector<8x256xf32>
    %1789 = arith.addf %1766, %1788 : vector<8x256xf32>
    %c438 = arith.constant 438 : index
    %1790 = memref.load %arg0[%c438] : memref<463xf32, #tpu.memory_space<smem>>
    %1791 = vector.broadcast %1790 : f32 to vector<8x256xf32>
    %1792 = arith.mulf %1791, %1773 : vector<8x256xf32>
    %1793 = arith.addf %1770, %1792 : vector<8x256xf32>
    %1794 = vector.extract_strided_slice %1111 {offsets = [0, 226], sizes = [8, 30], strides = [1, 1]} : vector<8x256xf32> to vector<8x30xf32>
    %1795 = vector.extract_strided_slice %1111 {offsets = [0, 0], sizes = [8, 226], strides = [1, 1]} : vector<8x256xf32> to vector<8x226xf32>
    %1796 = tpu.concatenate %1794, %1795 in 1 : vector<8x30xf32>, vector<8x226xf32> -> vector<8x256xf32>
    %c259 = arith.constant 259 : index
    %1797 = memref.load %arg0[%c259] : memref<463xf32, #tpu.memory_space<smem>>
    %1798 = vector.broadcast %1797 : f32 to vector<8x256xf32>
    %1799 = arith.mulf %1798, %1796 : vector<8x256xf32>
    %1800 = arith.addf %1777, %1799 : vector<8x256xf32>
    %c304 = arith.constant 304 : index
    %1801 = memref.load %arg0[%c304] : memref<463xf32, #tpu.memory_space<smem>>
    %1802 = vector.broadcast %1801 : f32 to vector<8x256xf32>
    %1803 = arith.mulf %1802, %1796 : vector<8x256xf32>
    %1804 = arith.addf %1781, %1803 : vector<8x256xf32>
    %c349 = arith.constant 349 : index
    %1805 = memref.load %arg0[%c349] : memref<463xf32, #tpu.memory_space<smem>>
    %1806 = vector.broadcast %1805 : f32 to vector<8x256xf32>
    %1807 = arith.mulf %1806, %1796 : vector<8x256xf32>
    %1808 = arith.addf %1785, %1807 : vector<8x256xf32>
    %c394 = arith.constant 394 : index
    %1809 = memref.load %arg0[%c394] : memref<463xf32, #tpu.memory_space<smem>>
    %1810 = vector.broadcast %1809 : f32 to vector<8x256xf32>
    %1811 = arith.mulf %1810, %1796 : vector<8x256xf32>
    %1812 = arith.addf %1789, %1811 : vector<8x256xf32>
    %c439 = arith.constant 439 : index
    %1813 = memref.load %arg0[%c439] : memref<463xf32, #tpu.memory_space<smem>>
    %1814 = vector.broadcast %1813 : f32 to vector<8x256xf32>
    %1815 = arith.mulf %1814, %1796 : vector<8x256xf32>
    %1816 = arith.addf %1793, %1815 : vector<8x256xf32>
    %1817 = vector.extract_strided_slice %1111 {offsets = [0, 254], sizes = [8, 2], strides = [1, 1]} : vector<8x256xf32> to vector<8x2xf32>
    %1818 = vector.extract_strided_slice %1111 {offsets = [0, 0], sizes = [8, 254], strides = [1, 1]} : vector<8x256xf32> to vector<8x254xf32>
    %1819 = tpu.concatenate %1817, %1818 in 1 : vector<8x2xf32>, vector<8x254xf32> -> vector<8x256xf32>
    %c260 = arith.constant 260 : index
    %1820 = memref.load %arg0[%c260] : memref<463xf32, #tpu.memory_space<smem>>
    %1821 = vector.broadcast %1820 : f32 to vector<8x256xf32>
    %1822 = arith.mulf %1821, %1819 : vector<8x256xf32>
    %1823 = arith.addf %1800, %1822 : vector<8x256xf32>
    %c305 = arith.constant 305 : index
    %1824 = memref.load %arg0[%c305] : memref<463xf32, #tpu.memory_space<smem>>
    %1825 = vector.broadcast %1824 : f32 to vector<8x256xf32>
    %1826 = arith.mulf %1825, %1819 : vector<8x256xf32>
    %1827 = arith.addf %1804, %1826 : vector<8x256xf32>
    %c350 = arith.constant 350 : index
    %1828 = memref.load %arg0[%c350] : memref<463xf32, #tpu.memory_space<smem>>
    %1829 = vector.broadcast %1828 : f32 to vector<8x256xf32>
    %1830 = arith.mulf %1829, %1819 : vector<8x256xf32>
    %1831 = arith.addf %1808, %1830 : vector<8x256xf32>
    %c395 = arith.constant 395 : index
    %1832 = memref.load %arg0[%c395] : memref<463xf32, #tpu.memory_space<smem>>
    %1833 = vector.broadcast %1832 : f32 to vector<8x256xf32>
    %1834 = arith.mulf %1833, %1819 : vector<8x256xf32>
    %1835 = arith.addf %1812, %1834 : vector<8x256xf32>
    %c440 = arith.constant 440 : index
    %1836 = memref.load %arg0[%c440] : memref<463xf32, #tpu.memory_space<smem>>
    %1837 = vector.broadcast %1836 : f32 to vector<8x256xf32>
    %1838 = arith.mulf %1837, %1819 : vector<8x256xf32>
    %1839 = arith.addf %1816, %1838 : vector<8x256xf32>
    %c261 = arith.constant 261 : index
    %1840 = memref.load %arg0[%c261] : memref<463xf32, #tpu.memory_space<smem>>
    %1841 = vector.broadcast %1840 : f32 to vector<8x256xf32>
    %1842 = arith.mulf %1841, %1111 : vector<8x256xf32>
    %1843 = arith.addf %1823, %1842 : vector<8x256xf32>
    %c306 = arith.constant 306 : index
    %1844 = memref.load %arg0[%c306] : memref<463xf32, #tpu.memory_space<smem>>
    %1845 = vector.broadcast %1844 : f32 to vector<8x256xf32>
    %1846 = arith.mulf %1845, %1111 : vector<8x256xf32>
    %1847 = arith.addf %1827, %1846 : vector<8x256xf32>
    %c351 = arith.constant 351 : index
    %1848 = memref.load %arg0[%c351] : memref<463xf32, #tpu.memory_space<smem>>
    %1849 = vector.broadcast %1848 : f32 to vector<8x256xf32>
    %1850 = arith.mulf %1849, %1111 : vector<8x256xf32>
    %1851 = arith.addf %1831, %1850 : vector<8x256xf32>
    %c396 = arith.constant 396 : index
    %1852 = memref.load %arg0[%c396] : memref<463xf32, #tpu.memory_space<smem>>
    %1853 = vector.broadcast %1852 : f32 to vector<8x256xf32>
    %1854 = arith.mulf %1853, %1111 : vector<8x256xf32>
    %1855 = arith.addf %1835, %1854 : vector<8x256xf32>
    %c441 = arith.constant 441 : index
    %1856 = memref.load %arg0[%c441] : memref<463xf32, #tpu.memory_space<smem>>
    %1857 = vector.broadcast %1856 : f32 to vector<8x256xf32>
    %1858 = arith.mulf %1857, %1111 : vector<8x256xf32>
    %1859 = arith.addf %1839, %1858 : vector<8x256xf32>
    %1860 = vector.extract_strided_slice %1111 {offsets = [0, 2], sizes = [8, 254], strides = [1, 1]} : vector<8x256xf32> to vector<8x254xf32>
    %1861 = vector.extract_strided_slice %1111 {offsets = [0, 0], sizes = [8, 2], strides = [1, 1]} : vector<8x256xf32> to vector<8x2xf32>
    %1862 = tpu.concatenate %1860, %1861 in 1 : vector<8x254xf32>, vector<8x2xf32> -> vector<8x256xf32>
    %c262 = arith.constant 262 : index
    %1863 = memref.load %arg0[%c262] : memref<463xf32, #tpu.memory_space<smem>>
    %1864 = vector.broadcast %1863 : f32 to vector<8x256xf32>
    %1865 = arith.mulf %1864, %1862 : vector<8x256xf32>
    %1866 = arith.addf %1843, %1865 : vector<8x256xf32>
    %c307 = arith.constant 307 : index
    %1867 = memref.load %arg0[%c307] : memref<463xf32, #tpu.memory_space<smem>>
    %1868 = vector.broadcast %1867 : f32 to vector<8x256xf32>
    %1869 = arith.mulf %1868, %1862 : vector<8x256xf32>
    %1870 = arith.addf %1847, %1869 : vector<8x256xf32>
    %c352 = arith.constant 352 : index
    %1871 = memref.load %arg0[%c352] : memref<463xf32, #tpu.memory_space<smem>>
    %1872 = vector.broadcast %1871 : f32 to vector<8x256xf32>
    %1873 = arith.mulf %1872, %1862 : vector<8x256xf32>
    %1874 = arith.addf %1851, %1873 : vector<8x256xf32>
    %c397 = arith.constant 397 : index
    %1875 = memref.load %arg0[%c397] : memref<463xf32, #tpu.memory_space<smem>>
    %1876 = vector.broadcast %1875 : f32 to vector<8x256xf32>
    %1877 = arith.mulf %1876, %1862 : vector<8x256xf32>
    %1878 = arith.addf %1855, %1877 : vector<8x256xf32>
    %c442 = arith.constant 442 : index
    %1879 = memref.load %arg0[%c442] : memref<463xf32, #tpu.memory_space<smem>>
    %1880 = vector.broadcast %1879 : f32 to vector<8x256xf32>
    %1881 = arith.mulf %1880, %1862 : vector<8x256xf32>
    %1882 = arith.addf %1859, %1881 : vector<8x256xf32>
    %1883 = vector.extract_strided_slice %1111 {offsets = [0, 30], sizes = [8, 226], strides = [1, 1]} : vector<8x256xf32> to vector<8x226xf32>
    %1884 = vector.extract_strided_slice %1111 {offsets = [0, 0], sizes = [8, 30], strides = [1, 1]} : vector<8x256xf32> to vector<8x30xf32>
    %1885 = tpu.concatenate %1883, %1884 in 1 : vector<8x226xf32>, vector<8x30xf32> -> vector<8x256xf32>
    %c263 = arith.constant 263 : index
    %1886 = memref.load %arg0[%c263] : memref<463xf32, #tpu.memory_space<smem>>
    %1887 = vector.broadcast %1886 : f32 to vector<8x256xf32>
    %1888 = arith.mulf %1887, %1885 : vector<8x256xf32>
    %1889 = arith.addf %1866, %1888 : vector<8x256xf32>
    %c308 = arith.constant 308 : index
    %1890 = memref.load %arg0[%c308] : memref<463xf32, #tpu.memory_space<smem>>
    %1891 = vector.broadcast %1890 : f32 to vector<8x256xf32>
    %1892 = arith.mulf %1891, %1885 : vector<8x256xf32>
    %1893 = arith.addf %1870, %1892 : vector<8x256xf32>
    %c353 = arith.constant 353 : index
    %1894 = memref.load %arg0[%c353] : memref<463xf32, #tpu.memory_space<smem>>
    %1895 = vector.broadcast %1894 : f32 to vector<8x256xf32>
    %1896 = arith.mulf %1895, %1885 : vector<8x256xf32>
    %1897 = arith.addf %1874, %1896 : vector<8x256xf32>
    %c398 = arith.constant 398 : index
    %1898 = memref.load %arg0[%c398] : memref<463xf32, #tpu.memory_space<smem>>
    %1899 = vector.broadcast %1898 : f32 to vector<8x256xf32>
    %1900 = arith.mulf %1899, %1885 : vector<8x256xf32>
    %1901 = arith.addf %1878, %1900 : vector<8x256xf32>
    %c443 = arith.constant 443 : index
    %1902 = memref.load %arg0[%c443] : memref<463xf32, #tpu.memory_space<smem>>
    %1903 = vector.broadcast %1902 : f32 to vector<8x256xf32>
    %1904 = arith.mulf %1903, %1885 : vector<8x256xf32>
    %1905 = arith.addf %1882, %1904 : vector<8x256xf32>
    %1906 = vector.extract_strided_slice %1111 {offsets = [0, 32], sizes = [8, 224], strides = [1, 1]} : vector<8x256xf32> to vector<8x224xf32>
    %1907 = vector.extract_strided_slice %1111 {offsets = [0, 0], sizes = [8, 32], strides = [1, 1]} : vector<8x256xf32> to vector<8x32xf32>
    %1908 = tpu.concatenate %1906, %1907 in 1 : vector<8x224xf32>, vector<8x32xf32> -> vector<8x256xf32>
    %c264 = arith.constant 264 : index
    %1909 = memref.load %arg0[%c264] : memref<463xf32, #tpu.memory_space<smem>>
    %1910 = vector.broadcast %1909 : f32 to vector<8x256xf32>
    %1911 = arith.mulf %1910, %1908 : vector<8x256xf32>
    %1912 = arith.addf %1889, %1911 : vector<8x256xf32>
    %c309 = arith.constant 309 : index
    %1913 = memref.load %arg0[%c309] : memref<463xf32, #tpu.memory_space<smem>>
    %1914 = vector.broadcast %1913 : f32 to vector<8x256xf32>
    %1915 = arith.mulf %1914, %1908 : vector<8x256xf32>
    %1916 = arith.addf %1893, %1915 : vector<8x256xf32>
    %c354 = arith.constant 354 : index
    %1917 = memref.load %arg0[%c354] : memref<463xf32, #tpu.memory_space<smem>>
    %1918 = vector.broadcast %1917 : f32 to vector<8x256xf32>
    %1919 = arith.mulf %1918, %1908 : vector<8x256xf32>
    %1920 = arith.addf %1897, %1919 : vector<8x256xf32>
    %c399 = arith.constant 399 : index
    %1921 = memref.load %arg0[%c399] : memref<463xf32, #tpu.memory_space<smem>>
    %1922 = vector.broadcast %1921 : f32 to vector<8x256xf32>
    %1923 = arith.mulf %1922, %1908 : vector<8x256xf32>
    %1924 = arith.addf %1901, %1923 : vector<8x256xf32>
    %c444 = arith.constant 444 : index
    %1925 = memref.load %arg0[%c444] : memref<463xf32, #tpu.memory_space<smem>>
    %1926 = vector.broadcast %1925 : f32 to vector<8x256xf32>
    %1927 = arith.mulf %1926, %1908 : vector<8x256xf32>
    %1928 = arith.addf %1905, %1927 : vector<8x256xf32>
    %1929 = vector.extract_strided_slice %1111 {offsets = [0, 34], sizes = [8, 222], strides = [1, 1]} : vector<8x256xf32> to vector<8x222xf32>
    %1930 = vector.extract_strided_slice %1111 {offsets = [0, 0], sizes = [8, 34], strides = [1, 1]} : vector<8x256xf32> to vector<8x34xf32>
    %1931 = tpu.concatenate %1929, %1930 in 1 : vector<8x222xf32>, vector<8x34xf32> -> vector<8x256xf32>
    %c265 = arith.constant 265 : index
    %1932 = memref.load %arg0[%c265] : memref<463xf32, #tpu.memory_space<smem>>
    %1933 = vector.broadcast %1932 : f32 to vector<8x256xf32>
    %1934 = arith.mulf %1933, %1931 : vector<8x256xf32>
    %1935 = arith.addf %1912, %1934 : vector<8x256xf32>
    %c310 = arith.constant 310 : index
    %1936 = memref.load %arg0[%c310] : memref<463xf32, #tpu.memory_space<smem>>
    %1937 = vector.broadcast %1936 : f32 to vector<8x256xf32>
    %1938 = arith.mulf %1937, %1931 : vector<8x256xf32>
    %1939 = arith.addf %1916, %1938 : vector<8x256xf32>
    %c355 = arith.constant 355 : index
    %1940 = memref.load %arg0[%c355] : memref<463xf32, #tpu.memory_space<smem>>
    %1941 = vector.broadcast %1940 : f32 to vector<8x256xf32>
    %1942 = arith.mulf %1941, %1931 : vector<8x256xf32>
    %1943 = arith.addf %1920, %1942 : vector<8x256xf32>
    %c400 = arith.constant 400 : index
    %1944 = memref.load %arg0[%c400] : memref<463xf32, #tpu.memory_space<smem>>
    %1945 = vector.broadcast %1944 : f32 to vector<8x256xf32>
    %1946 = arith.mulf %1945, %1931 : vector<8x256xf32>
    %1947 = arith.addf %1924, %1946 : vector<8x256xf32>
    %c445 = arith.constant 445 : index
    %1948 = memref.load %arg0[%c445] : memref<463xf32, #tpu.memory_space<smem>>
    %1949 = vector.broadcast %1948 : f32 to vector<8x256xf32>
    %1950 = arith.mulf %1949, %1931 : vector<8x256xf32>
    %1951 = arith.addf %1928, %1950 : vector<8x256xf32>
    %1952 = vector.extract_strided_slice %1130 {offsets = [0, 222], sizes = [8, 34], strides = [1, 1]} : vector<8x256xf32> to vector<8x34xf32>
    %1953 = vector.extract_strided_slice %1130 {offsets = [0, 0], sizes = [8, 222], strides = [1, 1]} : vector<8x256xf32> to vector<8x222xf32>
    %1954 = tpu.concatenate %1952, %1953 in 1 : vector<8x34xf32>, vector<8x222xf32> -> vector<8x256xf32>
    %c266 = arith.constant 266 : index
    %1955 = memref.load %arg0[%c266] : memref<463xf32, #tpu.memory_space<smem>>
    %1956 = vector.broadcast %1955 : f32 to vector<8x256xf32>
    %1957 = arith.mulf %1956, %1954 : vector<8x256xf32>
    %1958 = arith.addf %1935, %1957 : vector<8x256xf32>
    %c311 = arith.constant 311 : index
    %1959 = memref.load %arg0[%c311] : memref<463xf32, #tpu.memory_space<smem>>
    %1960 = vector.broadcast %1959 : f32 to vector<8x256xf32>
    %1961 = arith.mulf %1960, %1954 : vector<8x256xf32>
    %1962 = arith.addf %1939, %1961 : vector<8x256xf32>
    %c356 = arith.constant 356 : index
    %1963 = memref.load %arg0[%c356] : memref<463xf32, #tpu.memory_space<smem>>
    %1964 = vector.broadcast %1963 : f32 to vector<8x256xf32>
    %1965 = arith.mulf %1964, %1954 : vector<8x256xf32>
    %1966 = arith.addf %1943, %1965 : vector<8x256xf32>
    %c401 = arith.constant 401 : index
    %1967 = memref.load %arg0[%c401] : memref<463xf32, #tpu.memory_space<smem>>
    %1968 = vector.broadcast %1967 : f32 to vector<8x256xf32>
    %1969 = arith.mulf %1968, %1954 : vector<8x256xf32>
    %1970 = arith.addf %1947, %1969 : vector<8x256xf32>
    %c446 = arith.constant 446 : index
    %1971 = memref.load %arg0[%c446] : memref<463xf32, #tpu.memory_space<smem>>
    %1972 = vector.broadcast %1971 : f32 to vector<8x256xf32>
    %1973 = arith.mulf %1972, %1954 : vector<8x256xf32>
    %1974 = arith.addf %1951, %1973 : vector<8x256xf32>
    %1975 = vector.extract_strided_slice %1130 {offsets = [0, 224], sizes = [8, 32], strides = [1, 1]} : vector<8x256xf32> to vector<8x32xf32>
    %1976 = vector.extract_strided_slice %1130 {offsets = [0, 0], sizes = [8, 224], strides = [1, 1]} : vector<8x256xf32> to vector<8x224xf32>
    %1977 = tpu.concatenate %1975, %1976 in 1 : vector<8x32xf32>, vector<8x224xf32> -> vector<8x256xf32>
    %c267 = arith.constant 267 : index
    %1978 = memref.load %arg0[%c267] : memref<463xf32, #tpu.memory_space<smem>>
    %1979 = vector.broadcast %1978 : f32 to vector<8x256xf32>
    %1980 = arith.mulf %1979, %1977 : vector<8x256xf32>
    %1981 = arith.addf %1958, %1980 : vector<8x256xf32>
    %c312 = arith.constant 312 : index
    %1982 = memref.load %arg0[%c312] : memref<463xf32, #tpu.memory_space<smem>>
    %1983 = vector.broadcast %1982 : f32 to vector<8x256xf32>
    %1984 = arith.mulf %1983, %1977 : vector<8x256xf32>
    %1985 = arith.addf %1962, %1984 : vector<8x256xf32>
    %c357 = arith.constant 357 : index
    %1986 = memref.load %arg0[%c357] : memref<463xf32, #tpu.memory_space<smem>>
    %1987 = vector.broadcast %1986 : f32 to vector<8x256xf32>
    %1988 = arith.mulf %1987, %1977 : vector<8x256xf32>
    %1989 = arith.addf %1966, %1988 : vector<8x256xf32>
    %c402 = arith.constant 402 : index
    %1990 = memref.load %arg0[%c402] : memref<463xf32, #tpu.memory_space<smem>>
    %1991 = vector.broadcast %1990 : f32 to vector<8x256xf32>
    %1992 = arith.mulf %1991, %1977 : vector<8x256xf32>
    %1993 = arith.addf %1970, %1992 : vector<8x256xf32>
    %c447 = arith.constant 447 : index
    %1994 = memref.load %arg0[%c447] : memref<463xf32, #tpu.memory_space<smem>>
    %1995 = vector.broadcast %1994 : f32 to vector<8x256xf32>
    %1996 = arith.mulf %1995, %1977 : vector<8x256xf32>
    %1997 = arith.addf %1974, %1996 : vector<8x256xf32>
    %1998 = vector.extract_strided_slice %1130 {offsets = [0, 226], sizes = [8, 30], strides = [1, 1]} : vector<8x256xf32> to vector<8x30xf32>
    %1999 = vector.extract_strided_slice %1130 {offsets = [0, 0], sizes = [8, 226], strides = [1, 1]} : vector<8x256xf32> to vector<8x226xf32>
    %2000 = tpu.concatenate %1998, %1999 in 1 : vector<8x30xf32>, vector<8x226xf32> -> vector<8x256xf32>
    %c268 = arith.constant 268 : index
    %2001 = memref.load %arg0[%c268] : memref<463xf32, #tpu.memory_space<smem>>
    %2002 = vector.broadcast %2001 : f32 to vector<8x256xf32>
    %2003 = arith.mulf %2002, %2000 : vector<8x256xf32>
    %2004 = arith.addf %1981, %2003 : vector<8x256xf32>
    %c313 = arith.constant 313 : index
    %2005 = memref.load %arg0[%c313] : memref<463xf32, #tpu.memory_space<smem>>
    %2006 = vector.broadcast %2005 : f32 to vector<8x256xf32>
    %2007 = arith.mulf %2006, %2000 : vector<8x256xf32>
    %2008 = arith.addf %1985, %2007 : vector<8x256xf32>
    %c358 = arith.constant 358 : index
    %2009 = memref.load %arg0[%c358] : memref<463xf32, #tpu.memory_space<smem>>
    %2010 = vector.broadcast %2009 : f32 to vector<8x256xf32>
    %2011 = arith.mulf %2010, %2000 : vector<8x256xf32>
    %2012 = arith.addf %1989, %2011 : vector<8x256xf32>
    %c403 = arith.constant 403 : index
    %2013 = memref.load %arg0[%c403] : memref<463xf32, #tpu.memory_space<smem>>
    %2014 = vector.broadcast %2013 : f32 to vector<8x256xf32>
    %2015 = arith.mulf %2014, %2000 : vector<8x256xf32>
    %2016 = arith.addf %1993, %2015 : vector<8x256xf32>
    %c448 = arith.constant 448 : index
    %2017 = memref.load %arg0[%c448] : memref<463xf32, #tpu.memory_space<smem>>
    %2018 = vector.broadcast %2017 : f32 to vector<8x256xf32>
    %2019 = arith.mulf %2018, %2000 : vector<8x256xf32>
    %2020 = arith.addf %1997, %2019 : vector<8x256xf32>
    %2021 = vector.extract_strided_slice %1130 {offsets = [0, 254], sizes = [8, 2], strides = [1, 1]} : vector<8x256xf32> to vector<8x2xf32>
    %2022 = vector.extract_strided_slice %1130 {offsets = [0, 0], sizes = [8, 254], strides = [1, 1]} : vector<8x256xf32> to vector<8x254xf32>
    %2023 = tpu.concatenate %2021, %2022 in 1 : vector<8x2xf32>, vector<8x254xf32> -> vector<8x256xf32>
    %c269 = arith.constant 269 : index
    %2024 = memref.load %arg0[%c269] : memref<463xf32, #tpu.memory_space<smem>>
    %2025 = vector.broadcast %2024 : f32 to vector<8x256xf32>
    %2026 = arith.mulf %2025, %2023 : vector<8x256xf32>
    %2027 = arith.addf %2004, %2026 : vector<8x256xf32>
    %c314 = arith.constant 314 : index
    %2028 = memref.load %arg0[%c314] : memref<463xf32, #tpu.memory_space<smem>>
    %2029 = vector.broadcast %2028 : f32 to vector<8x256xf32>
    %2030 = arith.mulf %2029, %2023 : vector<8x256xf32>
    %2031 = arith.addf %2008, %2030 : vector<8x256xf32>
    %c359 = arith.constant 359 : index
    %2032 = memref.load %arg0[%c359] : memref<463xf32, #tpu.memory_space<smem>>
    %2033 = vector.broadcast %2032 : f32 to vector<8x256xf32>
    %2034 = arith.mulf %2033, %2023 : vector<8x256xf32>
    %2035 = arith.addf %2012, %2034 : vector<8x256xf32>
    %c404 = arith.constant 404 : index
    %2036 = memref.load %arg0[%c404] : memref<463xf32, #tpu.memory_space<smem>>
    %2037 = vector.broadcast %2036 : f32 to vector<8x256xf32>
    %2038 = arith.mulf %2037, %2023 : vector<8x256xf32>
    %2039 = arith.addf %2016, %2038 : vector<8x256xf32>
    %c449 = arith.constant 449 : index
    %2040 = memref.load %arg0[%c449] : memref<463xf32, #tpu.memory_space<smem>>
    %2041 = vector.broadcast %2040 : f32 to vector<8x256xf32>
    %2042 = arith.mulf %2041, %2023 : vector<8x256xf32>
    %2043 = arith.addf %2020, %2042 : vector<8x256xf32>
    %c270 = arith.constant 270 : index
    %2044 = memref.load %arg0[%c270] : memref<463xf32, #tpu.memory_space<smem>>
    %2045 = vector.broadcast %2044 : f32 to vector<8x256xf32>
    %2046 = arith.mulf %2045, %1130 : vector<8x256xf32>
    %2047 = arith.addf %2027, %2046 : vector<8x256xf32>
    %c315 = arith.constant 315 : index
    %2048 = memref.load %arg0[%c315] : memref<463xf32, #tpu.memory_space<smem>>
    %2049 = vector.broadcast %2048 : f32 to vector<8x256xf32>
    %2050 = arith.mulf %2049, %1130 : vector<8x256xf32>
    %2051 = arith.addf %2031, %2050 : vector<8x256xf32>
    %c360 = arith.constant 360 : index
    %2052 = memref.load %arg0[%c360] : memref<463xf32, #tpu.memory_space<smem>>
    %2053 = vector.broadcast %2052 : f32 to vector<8x256xf32>
    %2054 = arith.mulf %2053, %1130 : vector<8x256xf32>
    %2055 = arith.addf %2035, %2054 : vector<8x256xf32>
    %c405 = arith.constant 405 : index
    %2056 = memref.load %arg0[%c405] : memref<463xf32, #tpu.memory_space<smem>>
    %2057 = vector.broadcast %2056 : f32 to vector<8x256xf32>
    %2058 = arith.mulf %2057, %1130 : vector<8x256xf32>
    %2059 = arith.addf %2039, %2058 : vector<8x256xf32>
    %c450 = arith.constant 450 : index
    %2060 = memref.load %arg0[%c450] : memref<463xf32, #tpu.memory_space<smem>>
    %2061 = vector.broadcast %2060 : f32 to vector<8x256xf32>
    %2062 = arith.mulf %2061, %1130 : vector<8x256xf32>
    %2063 = arith.addf %2043, %2062 : vector<8x256xf32>
    %2064 = vector.extract_strided_slice %1130 {offsets = [0, 2], sizes = [8, 254], strides = [1, 1]} : vector<8x256xf32> to vector<8x254xf32>
    %2065 = vector.extract_strided_slice %1130 {offsets = [0, 0], sizes = [8, 2], strides = [1, 1]} : vector<8x256xf32> to vector<8x2xf32>
    %2066 = tpu.concatenate %2064, %2065 in 1 : vector<8x254xf32>, vector<8x2xf32> -> vector<8x256xf32>
    %c271 = arith.constant 271 : index
    %2067 = memref.load %arg0[%c271] : memref<463xf32, #tpu.memory_space<smem>>
    %2068 = vector.broadcast %2067 : f32 to vector<8x256xf32>
    %2069 = arith.mulf %2068, %2066 : vector<8x256xf32>
    %2070 = arith.addf %2047, %2069 : vector<8x256xf32>
    %c316 = arith.constant 316 : index
    %2071 = memref.load %arg0[%c316] : memref<463xf32, #tpu.memory_space<smem>>
    %2072 = vector.broadcast %2071 : f32 to vector<8x256xf32>
    %2073 = arith.mulf %2072, %2066 : vector<8x256xf32>
    %2074 = arith.addf %2051, %2073 : vector<8x256xf32>
    %c361 = arith.constant 361 : index
    %2075 = memref.load %arg0[%c361] : memref<463xf32, #tpu.memory_space<smem>>
    %2076 = vector.broadcast %2075 : f32 to vector<8x256xf32>
    %2077 = arith.mulf %2076, %2066 : vector<8x256xf32>
    %2078 = arith.addf %2055, %2077 : vector<8x256xf32>
    %c406 = arith.constant 406 : index
    %2079 = memref.load %arg0[%c406] : memref<463xf32, #tpu.memory_space<smem>>
    %2080 = vector.broadcast %2079 : f32 to vector<8x256xf32>
    %2081 = arith.mulf %2080, %2066 : vector<8x256xf32>
    %2082 = arith.addf %2059, %2081 : vector<8x256xf32>
    %c451 = arith.constant 451 : index
    %2083 = memref.load %arg0[%c451] : memref<463xf32, #tpu.memory_space<smem>>
    %2084 = vector.broadcast %2083 : f32 to vector<8x256xf32>
    %2085 = arith.mulf %2084, %2066 : vector<8x256xf32>
    %2086 = arith.addf %2063, %2085 : vector<8x256xf32>
    %2087 = vector.extract_strided_slice %1130 {offsets = [0, 30], sizes = [8, 226], strides = [1, 1]} : vector<8x256xf32> to vector<8x226xf32>
    %2088 = vector.extract_strided_slice %1130 {offsets = [0, 0], sizes = [8, 30], strides = [1, 1]} : vector<8x256xf32> to vector<8x30xf32>
    %2089 = tpu.concatenate %2087, %2088 in 1 : vector<8x226xf32>, vector<8x30xf32> -> vector<8x256xf32>
    %c272 = arith.constant 272 : index
    %2090 = memref.load %arg0[%c272] : memref<463xf32, #tpu.memory_space<smem>>
    %2091 = vector.broadcast %2090 : f32 to vector<8x256xf32>
    %2092 = arith.mulf %2091, %2089 : vector<8x256xf32>
    %2093 = arith.addf %2070, %2092 : vector<8x256xf32>
    %c317 = arith.constant 317 : index
    %2094 = memref.load %arg0[%c317] : memref<463xf32, #tpu.memory_space<smem>>
    %2095 = vector.broadcast %2094 : f32 to vector<8x256xf32>
    %2096 = arith.mulf %2095, %2089 : vector<8x256xf32>
    %2097 = arith.addf %2074, %2096 : vector<8x256xf32>
    %c362 = arith.constant 362 : index
    %2098 = memref.load %arg0[%c362] : memref<463xf32, #tpu.memory_space<smem>>
    %2099 = vector.broadcast %2098 : f32 to vector<8x256xf32>
    %2100 = arith.mulf %2099, %2089 : vector<8x256xf32>
    %2101 = arith.addf %2078, %2100 : vector<8x256xf32>
    %c407 = arith.constant 407 : index
    %2102 = memref.load %arg0[%c407] : memref<463xf32, #tpu.memory_space<smem>>
    %2103 = vector.broadcast %2102 : f32 to vector<8x256xf32>
    %2104 = arith.mulf %2103, %2089 : vector<8x256xf32>
    %2105 = arith.addf %2082, %2104 : vector<8x256xf32>
    %c452 = arith.constant 452 : index
    %2106 = memref.load %arg0[%c452] : memref<463xf32, #tpu.memory_space<smem>>
    %2107 = vector.broadcast %2106 : f32 to vector<8x256xf32>
    %2108 = arith.mulf %2107, %2089 : vector<8x256xf32>
    %2109 = arith.addf %2086, %2108 : vector<8x256xf32>
    %2110 = vector.extract_strided_slice %1130 {offsets = [0, 32], sizes = [8, 224], strides = [1, 1]} : vector<8x256xf32> to vector<8x224xf32>
    %2111 = vector.extract_strided_slice %1130 {offsets = [0, 0], sizes = [8, 32], strides = [1, 1]} : vector<8x256xf32> to vector<8x32xf32>
    %2112 = tpu.concatenate %2110, %2111 in 1 : vector<8x224xf32>, vector<8x32xf32> -> vector<8x256xf32>
    %c273 = arith.constant 273 : index
    %2113 = memref.load %arg0[%c273] : memref<463xf32, #tpu.memory_space<smem>>
    %2114 = vector.broadcast %2113 : f32 to vector<8x256xf32>
    %2115 = arith.mulf %2114, %2112 : vector<8x256xf32>
    %2116 = arith.addf %2093, %2115 : vector<8x256xf32>
    %c318 = arith.constant 318 : index
    %2117 = memref.load %arg0[%c318] : memref<463xf32, #tpu.memory_space<smem>>
    %2118 = vector.broadcast %2117 : f32 to vector<8x256xf32>
    %2119 = arith.mulf %2118, %2112 : vector<8x256xf32>
    %2120 = arith.addf %2097, %2119 : vector<8x256xf32>
    %c363 = arith.constant 363 : index
    %2121 = memref.load %arg0[%c363] : memref<463xf32, #tpu.memory_space<smem>>
    %2122 = vector.broadcast %2121 : f32 to vector<8x256xf32>
    %2123 = arith.mulf %2122, %2112 : vector<8x256xf32>
    %2124 = arith.addf %2101, %2123 : vector<8x256xf32>
    %c408 = arith.constant 408 : index
    %2125 = memref.load %arg0[%c408] : memref<463xf32, #tpu.memory_space<smem>>
    %2126 = vector.broadcast %2125 : f32 to vector<8x256xf32>
    %2127 = arith.mulf %2126, %2112 : vector<8x256xf32>
    %2128 = arith.addf %2105, %2127 : vector<8x256xf32>
    %c453 = arith.constant 453 : index
    %2129 = memref.load %arg0[%c453] : memref<463xf32, #tpu.memory_space<smem>>
    %2130 = vector.broadcast %2129 : f32 to vector<8x256xf32>
    %2131 = arith.mulf %2130, %2112 : vector<8x256xf32>
    %2132 = arith.addf %2109, %2131 : vector<8x256xf32>
    %2133 = vector.extract_strided_slice %1130 {offsets = [0, 34], sizes = [8, 222], strides = [1, 1]} : vector<8x256xf32> to vector<8x222xf32>
    %2134 = vector.extract_strided_slice %1130 {offsets = [0, 0], sizes = [8, 34], strides = [1, 1]} : vector<8x256xf32> to vector<8x34xf32>
    %2135 = tpu.concatenate %2133, %2134 in 1 : vector<8x222xf32>, vector<8x34xf32> -> vector<8x256xf32>
    %c274 = arith.constant 274 : index
    %2136 = memref.load %arg0[%c274] : memref<463xf32, #tpu.memory_space<smem>>
    %2137 = vector.broadcast %2136 : f32 to vector<8x256xf32>
    %2138 = arith.mulf %2137, %2135 : vector<8x256xf32>
    %2139 = arith.addf %2116, %2138 : vector<8x256xf32>
    %c319 = arith.constant 319 : index
    %2140 = memref.load %arg0[%c319] : memref<463xf32, #tpu.memory_space<smem>>
    %2141 = vector.broadcast %2140 : f32 to vector<8x256xf32>
    %2142 = arith.mulf %2141, %2135 : vector<8x256xf32>
    %2143 = arith.addf %2120, %2142 : vector<8x256xf32>
    %c364 = arith.constant 364 : index
    %2144 = memref.load %arg0[%c364] : memref<463xf32, #tpu.memory_space<smem>>
    %2145 = vector.broadcast %2144 : f32 to vector<8x256xf32>
    %2146 = arith.mulf %2145, %2135 : vector<8x256xf32>
    %2147 = arith.addf %2124, %2146 : vector<8x256xf32>
    %c409 = arith.constant 409 : index
    %2148 = memref.load %arg0[%c409] : memref<463xf32, #tpu.memory_space<smem>>
    %2149 = vector.broadcast %2148 : f32 to vector<8x256xf32>
    %2150 = arith.mulf %2149, %2135 : vector<8x256xf32>
    %2151 = arith.addf %2128, %2150 : vector<8x256xf32>
    %c454 = arith.constant 454 : index
    %2152 = memref.load %arg0[%c454] : memref<463xf32, #tpu.memory_space<smem>>
    %2153 = vector.broadcast %2152 : f32 to vector<8x256xf32>
    %2154 = arith.mulf %2153, %2135 : vector<8x256xf32>
    %2155 = arith.addf %2132, %2154 : vector<8x256xf32>
    %cst_31 = arith.constant 0.000000e+00 : f32
    %2156 = vector.broadcast %cst_31 : f32 to vector<8x256xf32>
    %c455 = arith.constant 455 : index
    %2157 = memref.load %arg0[%c455] : memref<463xf32, #tpu.memory_space<smem>>
    %2158 = vector.broadcast %2157 : f32 to vector<8x256xf32>
    %2159 = arith.addf %2139, %2158 : vector<8x256xf32>
    %cst_32 = arith.constant 0.000000e+00 : f32
    %2160 = vector.broadcast %cst_32 : f32 to vector<8x256xf32>
    %2161 = arith.maximumf %2159, %2160 : vector<8x256xf32>
    %2162 = vector.extract_strided_slice %2161 {offsets = [0, 2], sizes = [8, 254], strides = [1, 1]} : vector<8x256xf32> to vector<8x254xf32>
    %2163 = vector.extract_strided_slice %2161 {offsets = [0, 0], sizes = [8, 2], strides = [1, 1]} : vector<8x256xf32> to vector<8x2xf32>
    %2164 = tpu.concatenate %2162, %2163 in 1 : vector<8x254xf32>, vector<8x2xf32> -> vector<8x256xf32>
    %2165 = arith.maximumf %2161, %2164 : vector<8x256xf32>
    %2166 = vector.extract_strided_slice %2161 {offsets = [0, 32], sizes = [8, 224], strides = [1, 1]} : vector<8x256xf32> to vector<8x224xf32>
    %2167 = vector.extract_strided_slice %2161 {offsets = [0, 0], sizes = [8, 32], strides = [1, 1]} : vector<8x256xf32> to vector<8x32xf32>
    %2168 = tpu.concatenate %2166, %2167 in 1 : vector<8x224xf32>, vector<8x32xf32> -> vector<8x256xf32>
    %2169 = vector.extract_strided_slice %2161 {offsets = [0, 34], sizes = [8, 222], strides = [1, 1]} : vector<8x256xf32> to vector<8x222xf32>
    %2170 = vector.extract_strided_slice %2161 {offsets = [0, 0], sizes = [8, 34], strides = [1, 1]} : vector<8x256xf32> to vector<8x34xf32>
    %2171 = tpu.concatenate %2169, %2170 in 1 : vector<8x222xf32>, vector<8x34xf32> -> vector<8x256xf32>
    %2172 = arith.maximumf %2168, %2171 : vector<8x256xf32>
    %2173 = arith.maximumf %2165, %2172 : vector<8x256xf32>
    %c5_33 = arith.constant 5 : index
    %c0_34 = arith.constant 0 : index
    %2174 = vector.load %arg2[%c5_33, %c0_34] : memref<10x256xf32, #tpu.memory_space<vmem>>, vector<1x256xf32>
    %2175 = vector.broadcast %2174 : vector<1x256xf32> to vector<8x256xf32>
    %2176 = arith.mulf %2173, %2175 : vector<8x256xf32>
    %2177 = arith.addf %2156, %2176 : vector<8x256xf32>
    %c456 = arith.constant 456 : index
    %2178 = memref.load %arg0[%c456] : memref<463xf32, #tpu.memory_space<smem>>
    %2179 = vector.broadcast %2178 : f32 to vector<8x256xf32>
    %2180 = arith.addf %2143, %2179 : vector<8x256xf32>
    %cst_35 = arith.constant 0.000000e+00 : f32
    %2181 = vector.broadcast %cst_35 : f32 to vector<8x256xf32>
    %2182 = arith.maximumf %2180, %2181 : vector<8x256xf32>
    %2183 = vector.extract_strided_slice %2182 {offsets = [0, 2], sizes = [8, 254], strides = [1, 1]} : vector<8x256xf32> to vector<8x254xf32>
    %2184 = vector.extract_strided_slice %2182 {offsets = [0, 0], sizes = [8, 2], strides = [1, 1]} : vector<8x256xf32> to vector<8x2xf32>
    %2185 = tpu.concatenate %2183, %2184 in 1 : vector<8x254xf32>, vector<8x2xf32> -> vector<8x256xf32>
    %2186 = arith.maximumf %2182, %2185 : vector<8x256xf32>
    %2187 = vector.extract_strided_slice %2182 {offsets = [0, 32], sizes = [8, 224], strides = [1, 1]} : vector<8x256xf32> to vector<8x224xf32>
    %2188 = vector.extract_strided_slice %2182 {offsets = [0, 0], sizes = [8, 32], strides = [1, 1]} : vector<8x256xf32> to vector<8x32xf32>
    %2189 = tpu.concatenate %2187, %2188 in 1 : vector<8x224xf32>, vector<8x32xf32> -> vector<8x256xf32>
    %2190 = vector.extract_strided_slice %2182 {offsets = [0, 34], sizes = [8, 222], strides = [1, 1]} : vector<8x256xf32> to vector<8x222xf32>
    %2191 = vector.extract_strided_slice %2182 {offsets = [0, 0], sizes = [8, 34], strides = [1, 1]} : vector<8x256xf32> to vector<8x34xf32>
    %2192 = tpu.concatenate %2190, %2191 in 1 : vector<8x222xf32>, vector<8x34xf32> -> vector<8x256xf32>
    %2193 = arith.maximumf %2189, %2192 : vector<8x256xf32>
    %2194 = arith.maximumf %2186, %2193 : vector<8x256xf32>
    %c6_36 = arith.constant 6 : index
    %c0_37 = arith.constant 0 : index
    %2195 = vector.load %arg2[%c6_36, %c0_37] : memref<10x256xf32, #tpu.memory_space<vmem>>, vector<1x256xf32>
    %2196 = vector.broadcast %2195 : vector<1x256xf32> to vector<8x256xf32>
    %2197 = arith.mulf %2194, %2196 : vector<8x256xf32>
    %2198 = arith.addf %2177, %2197 : vector<8x256xf32>
    %c457 = arith.constant 457 : index
    %2199 = memref.load %arg0[%c457] : memref<463xf32, #tpu.memory_space<smem>>
    %2200 = vector.broadcast %2199 : f32 to vector<8x256xf32>
    %2201 = arith.addf %2147, %2200 : vector<8x256xf32>
    %cst_38 = arith.constant 0.000000e+00 : f32
    %2202 = vector.broadcast %cst_38 : f32 to vector<8x256xf32>
    %2203 = arith.maximumf %2201, %2202 : vector<8x256xf32>
    %2204 = vector.extract_strided_slice %2203 {offsets = [0, 2], sizes = [8, 254], strides = [1, 1]} : vector<8x256xf32> to vector<8x254xf32>
    %2205 = vector.extract_strided_slice %2203 {offsets = [0, 0], sizes = [8, 2], strides = [1, 1]} : vector<8x256xf32> to vector<8x2xf32>
    %2206 = tpu.concatenate %2204, %2205 in 1 : vector<8x254xf32>, vector<8x2xf32> -> vector<8x256xf32>
    %2207 = arith.maximumf %2203, %2206 : vector<8x256xf32>
    %2208 = vector.extract_strided_slice %2203 {offsets = [0, 32], sizes = [8, 224], strides = [1, 1]} : vector<8x256xf32> to vector<8x224xf32>
    %2209 = vector.extract_strided_slice %2203 {offsets = [0, 0], sizes = [8, 32], strides = [1, 1]} : vector<8x256xf32> to vector<8x32xf32>
    %2210 = tpu.concatenate %2208, %2209 in 1 : vector<8x224xf32>, vector<8x32xf32> -> vector<8x256xf32>
    %2211 = vector.extract_strided_slice %2203 {offsets = [0, 34], sizes = [8, 222], strides = [1, 1]} : vector<8x256xf32> to vector<8x222xf32>
    %2212 = vector.extract_strided_slice %2203 {offsets = [0, 0], sizes = [8, 34], strides = [1, 1]} : vector<8x256xf32> to vector<8x34xf32>
    %2213 = tpu.concatenate %2211, %2212 in 1 : vector<8x222xf32>, vector<8x34xf32> -> vector<8x256xf32>
    %2214 = arith.maximumf %2210, %2213 : vector<8x256xf32>
    %2215 = arith.maximumf %2207, %2214 : vector<8x256xf32>
    %c7_39 = arith.constant 7 : index
    %c0_40 = arith.constant 0 : index
    %2216 = vector.load %arg2[%c7_39, %c0_40] : memref<10x256xf32, #tpu.memory_space<vmem>>, vector<1x256xf32>
    %2217 = vector.broadcast %2216 : vector<1x256xf32> to vector<8x256xf32>
    %2218 = arith.mulf %2215, %2217 : vector<8x256xf32>
    %2219 = arith.addf %2198, %2218 : vector<8x256xf32>
    %c458 = arith.constant 458 : index
    %2220 = memref.load %arg0[%c458] : memref<463xf32, #tpu.memory_space<smem>>
    %2221 = vector.broadcast %2220 : f32 to vector<8x256xf32>
    %2222 = arith.addf %2151, %2221 : vector<8x256xf32>
    %cst_41 = arith.constant 0.000000e+00 : f32
    %2223 = vector.broadcast %cst_41 : f32 to vector<8x256xf32>
    %2224 = arith.maximumf %2222, %2223 : vector<8x256xf32>
    %2225 = vector.extract_strided_slice %2224 {offsets = [0, 2], sizes = [8, 254], strides = [1, 1]} : vector<8x256xf32> to vector<8x254xf32>
    %2226 = vector.extract_strided_slice %2224 {offsets = [0, 0], sizes = [8, 2], strides = [1, 1]} : vector<8x256xf32> to vector<8x2xf32>
    %2227 = tpu.concatenate %2225, %2226 in 1 : vector<8x254xf32>, vector<8x2xf32> -> vector<8x256xf32>
    %2228 = arith.maximumf %2224, %2227 : vector<8x256xf32>
    %2229 = vector.extract_strided_slice %2224 {offsets = [0, 32], sizes = [8, 224], strides = [1, 1]} : vector<8x256xf32> to vector<8x224xf32>
    %2230 = vector.extract_strided_slice %2224 {offsets = [0, 0], sizes = [8, 32], strides = [1, 1]} : vector<8x256xf32> to vector<8x32xf32>
    %2231 = tpu.concatenate %2229, %2230 in 1 : vector<8x224xf32>, vector<8x32xf32> -> vector<8x256xf32>
    %2232 = vector.extract_strided_slice %2224 {offsets = [0, 34], sizes = [8, 222], strides = [1, 1]} : vector<8x256xf32> to vector<8x222xf32>
    %2233 = vector.extract_strided_slice %2224 {offsets = [0, 0], sizes = [8, 34], strides = [1, 1]} : vector<8x256xf32> to vector<8x34xf32>
    %2234 = tpu.concatenate %2232, %2233 in 1 : vector<8x222xf32>, vector<8x34xf32> -> vector<8x256xf32>
    %2235 = arith.maximumf %2231, %2234 : vector<8x256xf32>
    %2236 = arith.maximumf %2228, %2235 : vector<8x256xf32>
    %c8_42 = arith.constant 8 : index
    %c0_43 = arith.constant 0 : index
    %2237 = vector.load %arg2[%c8_42, %c0_43] : memref<10x256xf32, #tpu.memory_space<vmem>>, vector<1x256xf32>
    %2238 = vector.broadcast %2237 : vector<1x256xf32> to vector<8x256xf32>
    %2239 = arith.mulf %2236, %2238 : vector<8x256xf32>
    %2240 = arith.addf %2219, %2239 : vector<8x256xf32>
    %c459 = arith.constant 459 : index
    %2241 = memref.load %arg0[%c459] : memref<463xf32, #tpu.memory_space<smem>>
    %2242 = vector.broadcast %2241 : f32 to vector<8x256xf32>
    %2243 = arith.addf %2155, %2242 : vector<8x256xf32>
    %cst_44 = arith.constant 0.000000e+00 : f32
    %2244 = vector.broadcast %cst_44 : f32 to vector<8x256xf32>
    %2245 = arith.maximumf %2243, %2244 : vector<8x256xf32>
    %2246 = vector.extract_strided_slice %2245 {offsets = [0, 2], sizes = [8, 254], strides = [1, 1]} : vector<8x256xf32> to vector<8x254xf32>
    %2247 = vector.extract_strided_slice %2245 {offsets = [0, 0], sizes = [8, 2], strides = [1, 1]} : vector<8x256xf32> to vector<8x2xf32>
    %2248 = tpu.concatenate %2246, %2247 in 1 : vector<8x254xf32>, vector<8x2xf32> -> vector<8x256xf32>
    %2249 = arith.maximumf %2245, %2248 : vector<8x256xf32>
    %2250 = vector.extract_strided_slice %2245 {offsets = [0, 32], sizes = [8, 224], strides = [1, 1]} : vector<8x256xf32> to vector<8x224xf32>
    %2251 = vector.extract_strided_slice %2245 {offsets = [0, 0], sizes = [8, 32], strides = [1, 1]} : vector<8x256xf32> to vector<8x32xf32>
    %2252 = tpu.concatenate %2250, %2251 in 1 : vector<8x224xf32>, vector<8x32xf32> -> vector<8x256xf32>
    %2253 = vector.extract_strided_slice %2245 {offsets = [0, 34], sizes = [8, 222], strides = [1, 1]} : vector<8x256xf32> to vector<8x222xf32>
    %2254 = vector.extract_strided_slice %2245 {offsets = [0, 0], sizes = [8, 34], strides = [1, 1]} : vector<8x256xf32> to vector<8x34xf32>
    %2255 = tpu.concatenate %2253, %2254 in 1 : vector<8x222xf32>, vector<8x34xf32> -> vector<8x256xf32>
    %2256 = arith.maximumf %2252, %2255 : vector<8x256xf32>
    %2257 = arith.maximumf %2249, %2256 : vector<8x256xf32>
    %c9_45 = arith.constant 9 : index
    %c0_46 = arith.constant 0 : index
    %2258 = vector.load %arg2[%c9_45, %c0_46] : memref<10x256xf32, #tpu.memory_space<vmem>>, vector<1x256xf32>
    %2259 = vector.broadcast %2258 : vector<1x256xf32> to vector<8x256xf32>
    %2260 = arith.mulf %2257, %2259 : vector<8x256xf32>
    %2261 = arith.addf %2240, %2260 : vector<8x256xf32>
    %cst_47 = arith.constant dense<0.000000e+00> : vector<8xf32>
    %2262 = vector.multi_reduction <add>, %2261, %cst_47 [1] : vector<8x256xf32> to vector<8xf32>
    %2263 = vector.shape_cast %2262 : vector<8xf32> to vector<8x1xf32>
    %c1_48 = arith.constant 1 : index
    %c0_49 = arith.constant 0 : index
    %2264 = vector.load %arg2[%c1_48, %c0_49] : memref<10x256xf32, #tpu.memory_space<vmem>>, vector<1x256xf32>
    %2265 = vector.extract_strided_slice %2264 {offsets = [0, 0], sizes = [1, 128], strides = [1, 1]} : vector<1x256xf32> to vector<1x128xf32>
    %2266 = vector.extract_strided_slice %2264 {offsets = [0, 128], sizes = [1, 128], strides = [1, 1]} : vector<1x256xf32> to vector<1x128xf32>
    %c2_50 = arith.constant 2 : index
    %c0_51 = arith.constant 0 : index
    %2267 = vector.load %arg2[%c2_50, %c0_51] : memref<10x256xf32, #tpu.memory_space<vmem>>, vector<1x256xf32>
    %2268 = vector.extract_strided_slice %2267 {offsets = [0, 0], sizes = [1, 32], strides = [1, 1]} : vector<1x256xf32> to vector<1x32xf32>
    %2269 = vector.extract_strided_slice %2267 {offsets = [0, 32], sizes = [1, 32], strides = [1, 1]} : vector<1x256xf32> to vector<1x32xf32>
    %2270 = vector.extract_strided_slice %2267 {offsets = [0, 64], sizes = [1, 32], strides = [1, 1]} : vector<1x256xf32> to vector<1x32xf32>
    %2271 = vector.extract_strided_slice %2267 {offsets = [0, 96], sizes = [1, 32], strides = [1, 1]} : vector<1x256xf32> to vector<1x32xf32>
    %c460 = arith.constant 460 : index
    %2272 = memref.load %arg0[%c460] : memref<463xf32, #tpu.memory_space<smem>>
    %c461 = arith.constant 461 : index
    %2273 = memref.load %arg0[%c461] : memref<463xf32, #tpu.memory_space<smem>>
    %c462 = arith.constant 462 : index
    %2274 = memref.load %arg0[%c462] : memref<463xf32, #tpu.memory_space<smem>>
    %2275 = tpu.iota {dimensions = array<i32: 0>} : vector<8x1xi32>
    %c0_i32 = arith.constant 0 : i32
    %2276 = vector.broadcast %c0_i32 : i32 to vector<8x1xi32>
    %2277 = arith.cmpi sge, %2275, %2276 : vector<8x1xi32>
    %c4_i32 = arith.constant 4 : i32
    %2278 = vector.broadcast %c4_i32 : i32 to vector<8x1xi32>
    %2279 = arith.cmpi slt, %2275, %2278 : vector<8x1xi32>
    %2280 = arith.andi %2277, %2279 : vector<8x1xi1>
    %cst_52 = arith.constant 1.000000e+00 : f32
    %cst_53 = arith.constant 0.000000e+00 : f32
    %2281 = vector.broadcast %cst_52 : f32 to vector<8x1xf32>
    %2282 = vector.broadcast %cst_53 : f32 to vector<8x1xf32>
    %2283 = arith.select %2280, %2281, %2282 : vector<8x1xi1>, vector<8x1xf32>
    %2284 = arith.mulf %2263, %2283 : vector<8x1xf32>
    %cst_54 = arith.constant dense<0.000000e+00> : vector<1xf32>
    %2285 = vector.multi_reduction <add>, %2284, %cst_54 [0] : vector<8x1xf32> to vector<1xf32>
    %2286 = vector.shape_cast %2285 : vector<1xf32> to vector<1x1xf32>
    %cst_55 = arith.constant 2.500000e-01 : f32
    %2287 = vector.broadcast %cst_55 : f32 to vector<1x1xf32>
    %2288 = arith.mulf %2286, %2287 : vector<1x1xf32>
    %2289 = vector.broadcast %2272 : f32 to vector<1x1xf32>
    %2290 = arith.addf %2288, %2289 : vector<1x1xf32>
    %c3_56 = arith.constant 3 : index
    %c0_57 = arith.constant 0 : index
    %2291 = vector.load %arg2[%c3_56, %c0_57] : memref<10x256xf32, #tpu.memory_space<vmem>>, vector<1x128xf32>
    %2292 = vector.broadcast %2290 : vector<1x1xf32> to vector<1x128xf32>
    %2293 = arith.mulf %2292, %2265 : vector<1x128xf32>
    %2294 = arith.addf %2293, %2266 : vector<1x128xf32>
    %2295 = math.absf %2294 : vector<1x128xf32>
    %2296 = arith.mulf %2291, %2295 : vector<1x128xf32>
    %2297 = vector.extract_strided_slice %2296 {offsets = [0, 0], sizes = [1, 32], strides = [1, 1]} : vector<1x128xf32> to vector<1x32xf32>
    %2298 = vector.extract_strided_slice %2296 {offsets = [0, 32], sizes = [1, 32], strides = [1, 1]} : vector<1x128xf32> to vector<1x32xf32>
    %2299 = arith.addf %2297, %2298 : vector<1x32xf32>
    %2300 = vector.extract_strided_slice %2296 {offsets = [0, 64], sizes = [1, 32], strides = [1, 1]} : vector<1x128xf32> to vector<1x32xf32>
    %2301 = arith.addf %2299, %2300 : vector<1x32xf32>
    %2302 = vector.extract_strided_slice %2296 {offsets = [0, 96], sizes = [1, 32], strides = [1, 1]} : vector<1x128xf32> to vector<1x32xf32>
    %2303 = arith.addf %2301, %2302 : vector<1x32xf32>
    %2304 = vector.broadcast %2290 : vector<1x1xf32> to vector<1x32xf32>
    %2305 = arith.mulf %2304, %2268 : vector<1x32xf32>
    %2306 = arith.addf %2305, %2269 : vector<1x32xf32>
    %2307 = arith.addf %2303, %2306 : vector<1x32xf32>
    %cst_58 = arith.constant 0.000000e+00 : f32
    %2308 = vector.broadcast %cst_58 : f32 to vector<1x32xf32>
    %2309 = arith.maximumf %2307, %2308 : vector<1x32xf32>
    %2310 = vector.broadcast %2290 : vector<1x1xf32> to vector<1x32xf32>
    %2311 = arith.mulf %2310, %2270 : vector<1x32xf32>
    %2312 = arith.addf %2311, %2271 : vector<1x32xf32>
    %2313 = math.absf %2312 : vector<1x32xf32>
    %2314 = arith.mulf %2309, %2313 : vector<1x32xf32>
    %cst_59 = arith.constant dense<0.000000e+00> : vector<1xf32>
    %2315 = vector.multi_reduction <add>, %2314, %cst_59 [1] : vector<1x32xf32> to vector<1xf32>
    %2316 = vector.shape_cast %2315 : vector<1xf32> to vector<1x1xf32>
    %2317 = vector.broadcast %2273 : f32 to vector<1x1xf32>
    %2318 = arith.mulf %2290, %2317 : vector<1x1xf32>
    %2319 = arith.addf %2316, %2318 : vector<1x1xf32>
    %2320 = vector.broadcast %2274 : f32 to vector<1x1xf32>
    %2321 = arith.addf %2319, %2320 : vector<1x1xf32>
    %c0_60 = arith.constant 0 : index
    %c0_61 = arith.constant 0 : index
    %2322 = vector.load %arg3[%c0_60, %c0_61] : memref<2x1xf32, #tpu.memory_space<vmem>>, vector<1x1xf32>
    tpu.vector_store %arg3[%c0_60, %c0_61], %2321 {strides = array<i32>} : memref<2x1xf32, #tpu.memory_space<vmem>>, vector<1x1xf32>,
    %c4_i32_62 = arith.constant 4 : i32
    %2323 = vector.broadcast %c4_i32_62 : i32 to vector<8x1xi32>
    %2324 = arith.cmpi sge, %2275, %2323 : vector<8x1xi32>
    %c8_i32 = arith.constant 8 : i32
    %2325 = vector.broadcast %c8_i32 : i32 to vector<8x1xi32>
    %2326 = arith.cmpi slt, %2275, %2325 : vector<8x1xi32>
    %2327 = arith.andi %2324, %2326 : vector<8x1xi1>
    %cst_63 = arith.constant 1.000000e+00 : f32
    %cst_64 = arith.constant 0.000000e+00 : f32
    %2328 = vector.broadcast %cst_63 : f32 to vector<8x1xf32>
    %2329 = vector.broadcast %cst_64 : f32 to vector<8x1xf32>
    %2330 = arith.select %2327, %2328, %2329 : vector<8x1xi1>, vector<8x1xf32>
    %2331 = arith.mulf %2263, %2330 : vector<8x1xf32>
    %cst_65 = arith.constant dense<0.000000e+00> : vector<1xf32>
    %2332 = vector.multi_reduction <add>, %2331, %cst_65 [0] : vector<8x1xf32> to vector<1xf32>
    %2333 = vector.shape_cast %2332 : vector<1xf32> to vector<1x1xf32>
    %cst_66 = arith.constant 2.500000e-01 : f32
    %2334 = vector.broadcast %cst_66 : f32 to vector<1x1xf32>
    %2335 = arith.mulf %2333, %2334 : vector<1x1xf32>
    %2336 = vector.broadcast %2272 : f32 to vector<1x1xf32>
    %2337 = arith.addf %2335, %2336 : vector<1x1xf32>
    %c4_67 = arith.constant 4 : index
    %c0_68 = arith.constant 0 : index
    %2338 = vector.load %arg2[%c4_67, %c0_68] : memref<10x256xf32, #tpu.memory_space<vmem>>, vector<1x128xf32>
    %2339 = vector.broadcast %2337 : vector<1x1xf32> to vector<1x128xf32>
    %2340 = arith.mulf %2339, %2265 : vector<1x128xf32>
    %2341 = arith.addf %2340, %2266 : vector<1x128xf32>
    %2342 = math.absf %2341 : vector<1x128xf32>
    %2343 = arith.mulf %2338, %2342 : vector<1x128xf32>
    %2344 = vector.extract_strided_slice %2343 {offsets = [0, 0], sizes = [1, 32], strides = [1, 1]} : vector<1x128xf32> to vector<1x32xf32>
    %2345 = vector.extract_strided_slice %2343 {offsets = [0, 32], sizes = [1, 32], strides = [1, 1]} : vector<1x128xf32> to vector<1x32xf32>
    %2346 = arith.addf %2344, %2345 : vector<1x32xf32>
    %2347 = vector.extract_strided_slice %2343 {offsets = [0, 64], sizes = [1, 32], strides = [1, 1]} : vector<1x128xf32> to vector<1x32xf32>
    %2348 = arith.addf %2346, %2347 : vector<1x32xf32>
    %2349 = vector.extract_strided_slice %2343 {offsets = [0, 96], sizes = [1, 32], strides = [1, 1]} : vector<1x128xf32> to vector<1x32xf32>
    %2350 = arith.addf %2348, %2349 : vector<1x32xf32>
    %2351 = vector.broadcast %2337 : vector<1x1xf32> to vector<1x32xf32>
    %2352 = arith.mulf %2351, %2268 : vector<1x32xf32>
    %2353 = arith.addf %2352, %2269 : vector<1x32xf32>
    %2354 = arith.addf %2350, %2353 : vector<1x32xf32>
    %cst_69 = arith.constant 0.000000e+00 : f32
    %2355 = vector.broadcast %cst_69 : f32 to vector<1x32xf32>
    %2356 = arith.maximumf %2354, %2355 : vector<1x32xf32>
    %2357 = vector.broadcast %2337 : vector<1x1xf32> to vector<1x32xf32>
    %2358 = arith.mulf %2357, %2270 : vector<1x32xf32>
    %2359 = arith.addf %2358, %2271 : vector<1x32xf32>
    %2360 = math.absf %2359 : vector<1x32xf32>
    %2361 = arith.mulf %2356, %2360 : vector<1x32xf32>
    %cst_70 = arith.constant dense<0.000000e+00> : vector<1xf32>
    %2362 = vector.multi_reduction <add>, %2361, %cst_70 [1] : vector<1x32xf32> to vector<1xf32>
    %2363 = vector.shape_cast %2362 : vector<1xf32> to vector<1x1xf32>
    %2364 = vector.broadcast %2273 : f32 to vector<1x1xf32>
    %2365 = arith.mulf %2337, %2364 : vector<1x1xf32>
    %2366 = arith.addf %2363, %2365 : vector<1x1xf32>
    %2367 = vector.broadcast %2274 : f32 to vector<1x1xf32>
    %2368 = arith.addf %2366, %2367 : vector<1x1xf32>
    %c1_71 = arith.constant 1 : index
    %c0_72 = arith.constant 0 : index
    %2369 = vector.load %arg3[%c1_71, %c0_72] : memref<2x1xf32, #tpu.memory_space<vmem>>, vector<1x1xf32>
    tpu.vector_store %arg3[%c1_71, %c0_72], %2368 {strides = array<i32>} : memref<2x1xf32, #tpu.memory_space<vmem>>, vector<1x1xf32>,
    return
  }
}

</mosaic_0001>

<llo_original>
// kernel: tpu_custom_call.1
$region0: #{tpu_custom_call.1}
  #allocation0 [shape = 'u32[]', space=smem, size = 0x4, offset = 0x4, fixed_abs, tag = 'smem constant byte address 0x4 - core index']
  #allocation1 [shape = 'u32[144,128]{1,0:T(1,128)}', space=vmem, size = 0x12000, scoped, tag = 'internal scratch']
  %s0 = inlined_call_operand.hbm [shape: f32[463], index: 0, kind: input, shape index: {}]
  %s1 = inlined_call_operand.hbm [shape: f32[5,8,256], index: 1, kind: input, shape index: {}]
  %s2 = inlined_call_operand.hbm [shape: f32[10,256], index: 2, kind: input, shape index: {}]
  %s3 = inlined_call_operand.vmem [shape: f32[2,1], index: 3, kind: output, shape index: {}]
  %s4 = sld [smem:[#allocation0]]
  $region34: #{tpu_custom_call.1} parent=0
    _
  %s6 = ssub.s32 1, %s4
  %s7 = scalar_select 0, %s6, %s4
  $region1: #{tpu_custom_call.1} parent=0
    #allocation2 [shape = 'u8[2048]{0}', space=smem, size = 0x800, scoped, tag = 'input window, operand 0, single buffered']
    #allocation3 [shape = 's32[1]{0}', space=sflag, size = 0x4, scoped, tag = 'scoped memory for tpu_custom_call.1']
    #allocation4 [shape = 's32[1]{0}', space=sflag, size = 0x4, scoped, tag = 'scoped memory for tpu_custom_call.1']
    #allocation5 [shape = 'u8[40960]{0}', space=vmem, size = 0xa000, scoped, tag = 'input window, operand 1, single buffered']
    #allocation6 [shape = 'u8[16384]{0}', space=vmem, size = 0x4000, scoped, tag = 'input window, operand 2, single buffered']
    #allocation7 [shape = 's32[1]{0}', space=sflag, size = 0x4, scoped, tag = 'scoped memory for tpu_custom_call.1']
    %8 = vsyncpa [#allocation4], 0
    %9 = vsyncpa [#allocation3], 0
    %10 = vsyncpa [#allocation7], 0
    // Predicated region
    $region2: #{tpu_custom_call.1} parent=1 // pred_check
      _
    $region3: #{tpu_custom_call.1} parent=1 // pred_check_branch
      %12 = sbr.rel (0) target = $region5
    $region4: #{tpu_custom_call.1} parent=1 // pred_region
      %s14 = ssub.s32 64, 64
      %15 = vsyncadd [#allocation4], %s14
      %18 = dma.hbm_to_smem %s0, 64, [#allocation2], [#allocation4]
    $region5: #{tpu_custom_call.1} parent=1 // pred_fallthru
      _
    // Predicated region
    $region6: #{tpu_custom_call.1} parent=1 // pred_check
      _
    $region7: #{tpu_custom_call.1} parent=1 // pred_check_branch
      %20 = sbr.rel (0) target = $region9
    $region8: #{tpu_custom_call.1} parent=1 // pred_region
      %s22 = ssub.s32 1280, 1280
      %23 = vsyncadd [#allocation3], %s22
      %s24 = sshll.u32 [#allocation5], 4
      %s25 = int_to_ptr.vmem [resolvable:$true] %s24
      %30 = dma.hbm_to_vmem [thread:$0]  %s1, 1280, %s25, [#allocation3], 256, 256, 16
    $region9: #{tpu_custom_call.1} parent=1 // pred_fallthru
      _
    // Predicated region
    $region10: #{tpu_custom_call.1} parent=1 // pred_check
      _
    $region11: #{tpu_custom_call.1} parent=1 // pred_check_branch
      %32 = sbr.rel (0) target = $region13
    $region12: #{tpu_custom_call.1} parent=1 // pred_region
      %s34 = ssub.s32 512, 512
      %35 = vsyncadd [#allocation7], %s34
      %s36 = sshll.u32 [#allocation6], 4
      %s37 = int_to_ptr.vmem [resolvable:$true] %s36
      %42 = dma.hbm_to_vmem [thread:$0]  %s2, 512, %s37, [#allocation7], 256, 256, 16
    $region13: #{tpu_custom_call.1} parent=1 // pred_fallthru
      _
    // Predicated region
    $region14: #{tpu_custom_call.1} parent=1 // pred_check
      _
    $region15: #{tpu_custom_call.1} parent=1 // pred_check_branch
      %44 = sbr.rel (0) target = $region17
    $region16: #{tpu_custom_call.1} parent=1 // pred_region
      %45 = dma.done [#allocation4], 64
    $region17: #{tpu_custom_call.1} parent=1 // pred_fallthru
      _
    // Predicated region
    $region18: #{tpu_custom_call.1} parent=1 // pred_check
      _
    $region19: #{tpu_custom_call.1} parent=1 // pred_check_branch
      %47 = sbr.rel (0) target = $region21
    $region20: #{tpu_custom_call.1} parent=1 // pred_region
      %48 = dma.done [#allocation3], 1280
    $region21: #{tpu_custom_call.1} parent=1 // pred_fallthru
      _
    // Predicated region
    $region22: #{tpu_custom_call.1} parent=1 // pred_check
      _
    $region23: #{tpu_custom_call.1} parent=1 // pred_check_branch
      %50 = sbr.rel (0) target = $region25
    $region24: #{tpu_custom_call.1} parent=1 // pred_region
      %51 = dma.done [#allocation7], 512
    $region25: #{tpu_custom_call.1} parent=1 // pred_fallthru
      _
    %52 = sfence
    %v53 = vld [vmem:[#allocation6] ss:$8 sm:$0x3]
    %v54 = vld [vmem:[#allocation5] sm:$0xff]
    %v55 = vld [vmem:[#allocation5 + $0x8] sm:$0xff]
    %s56 = sld [smem:[#allocation2]]
    %v57 = vstv %s56
    %v58 = vmul.f32 %v57, %v54
    %v59 = vmul.f32 %v57, %v55
    %v60 = vadd.f32 %v58, 0.0
    %v61 = vadd.f32 %v59, 0.0
    %s62 = sld [smem:[#allocation2 + $0x2d]]
    %v63 = vstv %s62
    %v64 = vmul.f32 %v63, %v54
    %v65 = vmul.f32 %v63, %v55
    %v66 = vadd.f32 %v64, 0.0
    %v67 = vadd.f32 %v65, 0.0
    %s68 = sld [smem:[#allocation2 + $0x5a]]
    %v69 = vstv %s68
    %v70 = vmul.f32 %v69, %v54
    %v71 = vmul.f32 %v69, %v55
    %v72 = vadd.f32 %v70, 0.0
    %v73 = vadd.f32 %v71, 0.0
    %s74 = sld [smem:[#allocation2 + $0x87]]
    %v75 = vstv %s74
    %v76 = vmul.f32 %v75, %v54
    %v77 = vmul.f32 %v75, %v55
    %v78 = vadd.f32 %v76, 0.0
    %v79 = vadd.f32 %v77, 0.0
    %s80 = sld [smem:[#allocation2 + $0xb4]]
    %v81 = vstv %s80
    %v82 = vmul.f32 %v81, %v54
    %v83 = vmul.f32 %v81, %v55
    %v84 = vadd.f32 %v82, 0.0
    %v85 = vadd.f32 %v83, 0.0
    %88 = vrot.lane.b32.xlu0 %v54, 127
    %v89 = vpop.permute.xlu0 %88
    %90 = vrot.lane.b32.xlu0 %v55, 127
    %v91 = vpop.permute.xlu0 %90
    %vm92 = vcmask 1039360
    %v93 = vsel %vm92, %v89, %v91
    %v97 = vsel %vm92, %v91, %v89
    %s98 = sld [smem:[#allocation2 + $0x1]]
    %v99 = vstv %s98
    %v100 = vmul.f32 %v99, %v93
    %v101 = vmul.f32 %v99, %v97
    %v102 = vadd.f32 %v60, %v100
    %v103 = vadd.f32 %v61, %v101
    %s104 = sld [smem:[#allocation2 + $0x2e]]
    %v105 = vstv %s104
    %v106 = vmul.f32 %v105, %v93
    %v107 = vmul.f32 %v105, %v97
    %v108 = vadd.f32 %v66, %v106
    %v109 = vadd.f32 %v67, %v107
    %s110 = sld [smem:[#allocation2 + $0x5b]]
    %v111 = vstv %s110
    %v112 = vmul.f32 %v111, %v93
    %v113 = vmul.f32 %v111, %v97
    %v114 = vadd.f32 %v72, %v112
    %v115 = vadd.f32 %v73, %v113
    %s116 = sld [smem:[#allocation2 + $0x88]]
    %v117 = vstv %s116
    %v118 = vmul.f32 %v117, %v93
    %v119 = vmul.f32 %v117, %v97
    %v120 = vadd.f32 %v78, %v118
    %v121 = vadd.f32 %v79, %v119
    %s122 = sld [smem:[#allocation2 + $0xb5]]
    %v123 = vstv %s122
    %v124 = vmul.f32 %v123, %v93
    %v125 = vmul.f32 %v123, %v97
    %v126 = vadd.f32 %v84, %v124
    %v127 = vadd.f32 %v85, %v125
    %128 = vrot.lane.b32.xlu0 %v54, 126
    %v129 = vpop.permute.xlu0 %128
    %130 = vrot.lane.b32.xlu0 %v55, 126
    %v131 = vpop.permute.xlu0 %130
    %vm132 = vcmask 1031168
    %v133 = vsel %vm132, %v129, %v131
    %v137 = vsel %vm132, %v131, %v129
    %s138 = sld [smem:[#allocation2 + $0x2]]
    %v139 = vstv %s138
    %v140 = vmul.f32 %v139, %v133
    %v141 = vmul.f32 %v139, %v137
    %v142 = vadd.f32 %v102, %v140
    %v143 = vadd.f32 %v103, %v141
    %s144 = sld [smem:[#allocation2 + $0x2f]]
    %v145 = vstv %s144
    %v146 = vmul.f32 %v145, %v133
    %v147 = vmul.f32 %v145, %v137
    %v148 = vadd.f32 %v108, %v146
    %v149 = vadd.f32 %v109, %v147
    %s150 = sld [smem:[#allocation2 + $0x5c]]
    %v151 = vstv %s150
    %v152 = vmul.f32 %v151, %v133
    %v153 = vmul.f32 %v151, %v137
    %v154 = vadd.f32 %v114, %v152
    %v155 = vadd.f32 %v115, %v153
    %s156 = sld [smem:[#allocation2 + $0x89]]
    %v157 = vstv %s156
    %v158 = vmul.f32 %v157, %v133
    %v159 = vmul.f32 %v157, %v137
    %v160 = vadd.f32 %v120, %v158
    %v161 = vadd.f32 %v121, %v159
    %s162 = sld [smem:[#allocation2 + $0xb6]]
    %v163 = vstv %s162
    %v164 = vmul.f32 %v163, %v133
    %v165 = vmul.f32 %v163, %v137
    %v166 = vadd.f32 %v126, %v164
    %v167 = vadd.f32 %v127, %v165
    %168 = vrot.lane.b32.xlu0 %v54, 112
    %v169 = vpop.permute.xlu0 %168
    %170 = vrot.lane.b32.xlu0 %v55, 112
    %v171 = vpop.permute.xlu0 %170
    %vm172 = vcmask 916480
    %v173 = vsel %vm172, %v169, %v171
    %v177 = vsel %vm172, %v171, %v169
    %s178 = sld [smem:[#allocation2 + $0x3]]
    %v179 = vstv %s178
    %v180 = vmul.f32 %v179, %v173
    %v181 = vmul.f32 %v179, %v177
    %v182 = vadd.f32 %v142, %v180
    %v183 = vadd.f32 %v143, %v181
    %s184 = sld [smem:[#allocation2 + $0x30]]
    %v185 = vstv %s184
    %v186 = vmul.f32 %v185, %v173
    %v187 = vmul.f32 %v185, %v177
    %v188 = vadd.f32 %v148, %v186
    %v189 = vadd.f32 %v149, %v187
    %s190 = sld [smem:[#allocation2 + $0x5d]]
    %v191 = vstv %s190
    %v192 = vmul.f32 %v191, %v173
    %v193 = vmul.f32 %v191, %v177
    %v194 = vadd.f32 %v154, %v192
    %v195 = vadd.f32 %v155, %v193
    %s196 = sld [smem:[#allocation2 + $0x8a]]
    %v197 = vstv %s196
    %v198 = vmul.f32 %v197, %v173
    %v199 = vmul.f32 %v197, %v177
    %v200 = vadd.f32 %v160, %v198
    %v201 = vadd.f32 %v161, %v199
    %s202 = sld [smem:[#allocation2 + $0xb7]]
    %v203 = vstv %s202
    %v204 = vmul.f32 %v203, %v173
    %v205 = vmul.f32 %v203, %v177
    %v206 = vadd.f32 %v166, %v204
    %v207 = vadd.f32 %v167, %v205
    %208 = vrot.lane.b32.xlu0 %v54, 111
    %v209 = vpop.permute.xlu0 %208
    %210 = vrot.lane.b32.xlu0 %v55, 111
    %v211 = vpop.permute.xlu0 %210
    %vm212 = vcmask 908288
    %v213 = vsel %vm212, %v209, %v211
    %v217 = vsel %vm212, %v211, %v209
    %s218 = sld [smem:[#allocation2 + $0x4]]
    %v219 = vstv %s218
    %v220 = vmul.f32 %v219, %v213
    %v221 = vmul.f32 %v219, %v217
    %v222 = vadd.f32 %v182, %v220
    %v223 = vadd.f32 %v183, %v221
    %s224 = sld [smem:[#allocation2 + $0x31]]
    %v225 = vstv %s224
    %v226 = vmul.f32 %v225, %v213
    %v227 = vmul.f32 %v225, %v217
    %v228 = vadd.f32 %v188, %v226
    %v229 = vadd.f32 %v189, %v227
    %s230 = sld [smem:[#allocation2 + $0x5e]]
    %v231 = vstv %s230
    %v232 = vmul.f32 %v231, %v213
    %v233 = vmul.f32 %v231, %v217
    %v234 = vadd.f32 %v194, %v232
    %v235 = vadd.f32 %v195, %v233
    %s236 = sld [smem:[#allocation2 + $0x8b]]
    %v237 = vstv %s236
    %v238 = vmul.f32 %v237, %v213
    %v239 = vmul.f32 %v237, %v217
    %v240 = vadd.f32 %v200, %v238
    %v241 = vadd.f32 %v201, %v239
    %s242 = sld [smem:[#allocation2 + $0xb8]]
    %v243 = vstv %s242
    %v244 = vmul.f32 %v243, %v213
    %v245 = vmul.f32 %v243, %v217
    %v246 = vadd.f32 %v206, %v244
    %v247 = vadd.f32 %v207, %v245
    %248 = vrot.lane.b32.xlu0 %v54, 110
    %v249 = vpop.permute.xlu0 %248
    %250 = vrot.lane.b32.xlu0 %v55, 110
    %v251 = vpop.permute.xlu0 %250
    %vm252 = vcmask 900096
    %v253 = vsel %vm252, %v249, %v251
    %v257 = vsel %vm252, %v251, %v249
    %s258 = sld [smem:[#allocation2 + $0x5]]
    %v259 = vstv %s258
    %v260 = vmul.f32 %v259, %v253
    %v261 = vmul.f32 %v259, %v257
    %v262 = vadd.f32 %v222, %v260
    %v263 = vadd.f32 %v223, %v261
    %s264 = sld [smem:[#allocation2 + $0x32]]
    %v265 = vstv %s264
    %v266 = vmul.f32 %v265, %v253
    %v267 = vmul.f32 %v265, %v257
    %v268 = vadd.f32 %v228, %v266
    %v269 = vadd.f32 %v229, %v267
    %s270 = sld [smem:[#allocation2 + $0x5f]]
    %v271 = vstv %s270
    %v272 = vmul.f32 %v271, %v253
    %v273 = vmul.f32 %v271, %v257
    %v274 = vadd.f32 %v234, %v272
    %v275 = vadd.f32 %v235, %v273
    %s276 = sld [smem:[#allocation2 + $0x8c]]
    %v277 = vstv %s276
    %v278 = vmul.f32 %v277, %v253
    %v279 = vmul.f32 %v277, %v257
    %v280 = vadd.f32 %v240, %v278
    %v281 = vadd.f32 %v241, %v279
    %s282 = sld [smem:[#allocation2 + $0xb9]]
    %v283 = vstv %s282
    %v284 = vmul.f32 %v283, %v253
    %v285 = vmul.f32 %v283, %v257
    %v286 = vadd.f32 %v246, %v284
    %v287 = vadd.f32 %v247, %v285
    %288 = vrot.lane.b32.xlu0 %v54, 96
    %v289 = vpop.permute.xlu0 %288
    %290 = vrot.lane.b32.xlu0 %v55, 96
    %v291 = vpop.permute.xlu0 %290
    %vm292 = vcmask 785408
    %v293 = vsel %vm292, %v289, %v291
    %v297 = vsel %vm292, %v291, %v289
    %s298 = sld [smem:[#allocation2 + $0x6]]
    %v299 = vstv %s298
    %v300 = vmul.f32 %v299, %v293
    %v301 = vmul.f32 %v299, %v297
    %v302 = vadd.f32 %v262, %v300
    %v303 = vadd.f32 %v263, %v301
    %s304 = sld [smem:[#allocation2 + $0x33]]
    %v305 = vstv %s304
    %v306 = vmul.f32 %v305, %v293
    %v307 = vmul.f32 %v305, %v297
    %v308 = vadd.f32 %v268, %v306
    %v309 = vadd.f32 %v269, %v307
    %s310 = sld [smem:[#allocation2 + $0x60]]
    %v311 = vstv %s310
    %v312 = vmul.f32 %v311, %v293
    %v313 = vmul.f32 %v311, %v297
    %v314 = vadd.f32 %v274, %v312
    %v315 = vadd.f32 %v275, %v313
    %s316 = sld [smem:[#allocation2 + $0x8d]]
    %v317 = vstv %s316
    %v318 = vmul.f32 %v317, %v293
    %v319 = vmul.f32 %v317, %v297
    %v320 = vadd.f32 %v280, %v318
    %v321 = vadd.f32 %v281, %v319
    %s322 = sld [smem:[#allocation2 + $0xba]]
    %v323 = vstv %s322
    %v324 = vmul.f32 %v323, %v293
    %v325 = vmul.f32 %v323, %v297
    %v326 = vadd.f32 %v286, %v324
    %v327 = vadd.f32 %v287, %v325
    %328 = vrot.lane.b32.xlu0 %v54, 95
    %v329 = vpop.permute.xlu0 %328
    %330 = vrot.lane.b32.xlu0 %v55, 95
    %v331 = vpop.permute.xlu0 %330
    %vm332 = vcmask 777216
    %v333 = vsel %vm332, %v329, %v331
    %v337 = vsel %vm332, %v331, %v329
    %s338 = sld [smem:[#allocation2 + $0x7]]
    %v339 = vstv %s338
    %v340 = vmul.f32 %v339, %v333
    %v341 = vmul.f32 %v339, %v337
    %v342 = vadd.f32 %v302, %v340
    %v343 = vadd.f32 %v303, %v341
    %s344 = sld [smem:[#allocation2 + $0x34]]
    %v345 = vstv %s344
    %v346 = vmul.f32 %v345, %v333
    %v347 = vmul.f32 %v345, %v337
    %v348 = vadd.f32 %v308, %v346
    %v349 = vadd.f32 %v309, %v347
    %s350 = sld [smem:[#allocation2 + $0x61]]
    %v351 = vstv %s350
    %v352 = vmul.f32 %v351, %v333
    %v353 = vmul.f32 %v351, %v337
    %v354 = vadd.f32 %v314, %v352
    %v355 = vadd.f32 %v315, %v353
    %s356 = sld [smem:[#allocation2 + $0x8e]]
    %v357 = vstv %s356
    %v358 = vmul.f32 %v357, %v333
    %v359 = vmul.f32 %v357, %v337
    %v360 = vadd.f32 %v320, %v358
    %v361 = vadd.f32 %v321, %v359
    %s362 = sld [smem:[#allocation2 + $0xbb]]
    %v363 = vstv %s362
    %v364 = vmul.f32 %v363, %v333
    %v365 = vmul.f32 %v363, %v337
    %v366 = vadd.f32 %v326, %v364
    %v367 = vadd.f32 %v327, %v365
    %368 = vrot.lane.b32.xlu0 %v54, 94
    %v369 = vpop.permute.xlu0 %368
    %370 = vrot.lane.b32.xlu0 %v55, 94
    %v371 = vpop.permute.xlu0 %370
    %vm372 = vcmask 769024
    %v373 = vsel %vm372, %v369, %v371
    %v377 = vsel %vm372, %v371, %v369
    %s378 = sld [smem:[#allocation2 + $0x8]]
    %v379 = vstv %s378
    %v380 = vmul.f32 %v379, %v373
    %v381 = vmul.f32 %v379, %v377
    %v382 = vadd.f32 %v342, %v380
    %v383 = vadd.f32 %v343, %v381
    %s384 = sld [smem:[#allocation2 + $0x35]]
    %v385 = vstv %s384
    %v386 = vmul.f32 %v385, %v373
    %v387 = vmul.f32 %v385, %v377
    %v388 = vadd.f32 %v348, %v386
    %v389 = vadd.f32 %v349, %v387
    %s390 = sld [smem:[#allocation2 + $0x62]]
    %v391 = vstv %s390
    %v392 = vmul.f32 %v391, %v373
    %v393 = vmul.f32 %v391, %v377
    %v394 = vadd.f32 %v354, %v392
    %v395 = vadd.f32 %v355, %v393
    %s396 = sld [smem:[#allocation2 + $0x8f]]
    %v397 = vstv %s396
    %v398 = vmul.f32 %v397, %v373
    %v399 = vmul.f32 %v397, %v377
    %v400 = vadd.f32 %v360, %v398
    %v401 = vadd.f32 %v361, %v399
    %s402 = sld [smem:[#allocation2 + $0xbc]]
    %v403 = vstv %s402
    %v404 = vmul.f32 %v403, %v373
    %v405 = vmul.f32 %v403, %v377
    %v406 = vadd.f32 %v366, %v404
    %v407 = vadd.f32 %v367, %v405
    %s408 = scalar_lea.vmem [#allocation5], 16
    %v409 = vld [vmem:[%s408] sm:$0xff]
    %v410 = vld [vmem:[%s408 + $0x8] sm:$0xff]
    %s411 = sld [smem:[#allocation2 + $0x9]]
    %v412 = vstv %s411
    %v413 = vmul.f32 %v412, %v409
    %v414 = vmul.f32 %v412, %v410
    %v415 = vadd.f32 %v382, %v413
    %v416 = vadd.f32 %v383, %v414
    %s417 = sld [smem:[#allocation2 + $0x36]]
    %v418 = vstv %s417
    %v419 = vmul.f32 %v418, %v409
    %v420 = vmul.f32 %v418, %v410
    %v421 = vadd.f32 %v388, %v419
    %v422 = vadd.f32 %v389, %v420
    %s423 = sld [smem:[#allocation2 + $0x63]]
    %v424 = vstv %s423
    %v425 = vmul.f32 %v424, %v409
    %v426 = vmul.f32 %v424, %v410
    %v427 = vadd.f32 %v394, %v425
    %v428 = vadd.f32 %v395, %v426
    %s429 = sld [smem:[#allocation2 + $0x90]]
    %v430 = vstv %s429
    %v431 = vmul.f32 %v430, %v409
    %v432 = vmul.f32 %v430, %v410
    %v433 = vadd.f32 %v400, %v431
    %v434 = vadd.f32 %v401, %v432
    %s435 = sld [smem:[#allocation2 + $0xbd]]
    %v436 = vstv %s435
    %v437 = vmul.f32 %v436, %v409
    %v438 = vmul.f32 %v436, %v410
    %v439 = vadd.f32 %v406, %v437
    %v440 = vadd.f32 %v407, %v438
    %443 = vrot.lane.b32.xlu0 %v409, 127
    %v444 = vpop.permute.xlu0 %443
    %445 = vrot.lane.b32.xlu0 %v410, 127
    %v446 = vpop.permute.xlu0 %445
    %v447 = vsel %vm92, %v444, %v446
    %v451 = vsel %vm92, %v446, %v444
    %s452 = sld [smem:[#allocation2 + $0xa]]
    %v453 = vstv %s452
    %v454 = vmul.f32 %v453, %v447
    %v455 = vmul.f32 %v453, %v451
    %v456 = vadd.f32 %v415, %v454
    %v457 = vadd.f32 %v416, %v455
    %s458 = sld [smem:[#allocation2 + $0x37]]
    %v459 = vstv %s458
    %v460 = vmul.f32 %v459, %v447
    %v461 = vmul.f32 %v459, %v451
    %v462 = vadd.f32 %v421, %v460
    %v463 = vadd.f32 %v422, %v461
    %s464 = sld [smem:[#allocation2 + $0x64]]
    %v465 = vstv %s464
    %v466 = vmul.f32 %v465, %v447
    %v467 = vmul.f32 %v465, %v451
    %v468 = vadd.f32 %v427, %v466
    %v469 = vadd.f32 %v428, %v467
    %s470 = sld [smem:[#allocation2 + $0x91]]
    %v471 = vstv %s470
    %v472 = vmul.f32 %v471, %v447
    %v473 = vmul.f32 %v471, %v451
    %v474 = vadd.f32 %v433, %v472
    %v475 = vadd.f32 %v434, %v473
    %s476 = sld [smem:[#allocation2 + $0xbe]]
    %v477 = vstv %s476
    %v478 = vmul.f32 %v477, %v447
    %v479 = vmul.f32 %v477, %v451
    %v480 = vadd.f32 %v439, %v478
    %v481 = vadd.f32 %v440, %v479
    %482 = vrot.lane.b32.xlu0 %v409, 126
    %v483 = vpop.permute.xlu0 %482
    %484 = vrot.lane.b32.xlu0 %v410, 126
    %v485 = vpop.permute.xlu0 %484
    %v486 = vsel %vm132, %v483, %v485
    %v490 = vsel %vm132, %v485, %v483
    %s491 = sld [smem:[#allocation2 + $0xb]]
    %v492 = vstv %s491
    %v493 = vmul.f32 %v492, %v486
    %v494 = vmul.f32 %v492, %v490
    %v495 = vadd.f32 %v456, %v493
    %v496 = vadd.f32 %v457, %v494
    %s497 = sld [smem:[#allocation2 + $0x38]]
    %v498 = vstv %s497
    %v499 = vmul.f32 %v498, %v486
    %v500 = vmul.f32 %v498, %v490
    %v501 = vadd.f32 %v462, %v499
    %v502 = vadd.f32 %v463, %v500
    %s503 = sld [smem:[#allocation2 + $0x65]]
    %v504 = vstv %s503
    %v505 = vmul.f32 %v504, %v486
    %v506 = vmul.f32 %v504, %v490
    %v507 = vadd.f32 %v468, %v505
    %v508 = vadd.f32 %v469, %v506
    %s509 = sld [smem:[#allocation2 + $0x92]]
    %v510 = vstv %s509
    %v511 = vmul.f32 %v510, %v486
    %v512 = vmul.f32 %v510, %v490
    %v513 = vadd.f32 %v474, %v511
    %v514 = vadd.f32 %v475, %v512
    %s515 = sld [smem:[#allocation2 + $0xbf]]
    %v516 = vstv %s515
    %v517 = vmul.f32 %v516, %v486
    %v518 = vmul.f32 %v516, %v490
    %v519 = vadd.f32 %v480, %v517
    %v520 = vadd.f32 %v481, %v518
    %521 = vrot.lane.b32.xlu0 %v409, 112
    %v522 = vpop.permute.xlu0 %521
    %523 = vrot.lane.b32.xlu0 %v410, 112
    %v524 = vpop.permute.xlu0 %523
    %v525 = vsel %vm172, %v522, %v524
    %v529 = vsel %vm172, %v524, %v522
    %s530 = sld [smem:[#allocation2 + $0xc]]
    %v531 = vstv %s530
    %v532 = vmul.f32 %v531, %v525
    %v533 = vmul.f32 %v531, %v529
    %v534 = vadd.f32 %v495, %v532
    %v535 = vadd.f32 %v496, %v533
    %s536 = sld [smem:[#allocation2 + $0x39]]
    %v537 = vstv %s536
    %v538 = vmul.f32 %v537, %v525
    %v539 = vmul.f32 %v537, %v529
    %v540 = vadd.f32 %v501, %v538
    %v541 = vadd.f32 %v502, %v539
    %s542 = sld [smem:[#allocation2 + $0x66]]
    %v543 = vstv %s542
    %v544 = vmul.f32 %v543, %v525
    %v545 = vmul.f32 %v543, %v529
    %v546 = vadd.f32 %v507, %v544
    %v547 = vadd.f32 %v508, %v545
    %s548 = sld [smem:[#allocation2 + $0x93]]
    %v549 = vstv %s548
    %v550 = vmul.f32 %v549, %v525
    %v551 = vmul.f32 %v549, %v529
    %v552 = vadd.f32 %v513, %v550
    %v553 = vadd.f32 %v514, %v551
    %s554 = sld [smem:[#allocation2 + $0xc0]]
    %v555 = vstv %s554
    %v556 = vmul.f32 %v555, %v525
    %v557 = vmul.f32 %v555, %v529
    %v558 = vadd.f32 %v519, %v556
    %v559 = vadd.f32 %v520, %v557
    %560 = vrot.lane.b32.xlu0 %v409, 111
    %v561 = vpop.permute.xlu0 %560
    %562 = vrot.lane.b32.xlu0 %v410, 111
    %v563 = vpop.permute.xlu0 %562
    %v564 = vsel %vm212, %v561, %v563
    %v568 = vsel %vm212, %v563, %v561
    %s569 = sld [smem:[#allocation2 + $0xd]]
    %v570 = vstv %s569
    %v571 = vmul.f32 %v570, %v564
    %v572 = vmul.f32 %v570, %v568
    %v573 = vadd.f32 %v534, %v571
    %v574 = vadd.f32 %v535, %v572
    %s575 = sld [smem:[#allocation2 + $0x3a]]
    %v576 = vstv %s575
    %v577 = vmul.f32 %v576, %v564
    %v578 = vmul.f32 %v576, %v568
    %v579 = vadd.f32 %v540, %v577
    %v580 = vadd.f32 %v541, %v578
    %s581 = sld [smem:[#allocation2 + $0x67]]
    %v582 = vstv %s581
    %v583 = vmul.f32 %v582, %v564
    %v584 = vmul.f32 %v582, %v568
    %v585 = vadd.f32 %v546, %v583
    %v586 = vadd.f32 %v547, %v584
    %s587 = sld [smem:[#allocation2 + $0x94]]
    %v588 = vstv %s587
    %v589 = vmul.f32 %v588, %v564
    %v590 = vmul.f32 %v588, %v568
    %v591 = vadd.f32 %v552, %v589
    %v592 = vadd.f32 %v553, %v590
    %s593 = sld [smem:[#allocation2 + $0xc1]]
    %v594 = vstv %s593
    %v595 = vmul.f32 %v594, %v564
    %v596 = vmul.f32 %v594, %v568
    %v597 = vadd.f32 %v558, %v595
    %v598 = vadd.f32 %v559, %v596
    %599 = vrot.lane.b32.xlu0 %v409, 110
    %v600 = vpop.permute.xlu0 %599
    %601 = vrot.lane.b32.xlu0 %v410, 110
    %v602 = vpop.permute.xlu0 %601
    %v603 = vsel %vm252, %v600, %v602
    %v607 = vsel %vm252, %v602, %v600
    %s608 = sld [smem:[#allocation2 + $0xe]]
    %v609 = vstv %s608
    %v610 = vmul.f32 %v609, %v603
    %v611 = vmul.f32 %v609, %v607
    %v612 = vadd.f32 %v573, %v610
    %v613 = vadd.f32 %v574, %v611
    %s614 = sld [smem:[#allocation2 + $0x3b]]
    %v615 = vstv %s614
    %v616 = vmul.f32 %v615, %v603
    %v617 = vmul.f32 %v615, %v607
    %v618 = vadd.f32 %v579, %v616
    %v619 = vadd.f32 %v580, %v617
    %s620 = sld [smem:[#allocation2 + $0x68]]
    %v621 = vstv %s620
    %v622 = vmul.f32 %v621, %v603
    %v623 = vmul.f32 %v621, %v607
    %v624 = vadd.f32 %v585, %v622
    %v625 = vadd.f32 %v586, %v623
    %s626 = sld [smem:[#allocation2 + $0x95]]
    %v627 = vstv %s626
    %v628 = vmul.f32 %v627, %v603
    %v629 = vmul.f32 %v627, %v607
    %v630 = vadd.f32 %v591, %v628
    %v631 = vadd.f32 %v592, %v629
    %s632 = sld [smem:[#allocation2 + $0xc2]]
    %v633 = vstv %s632
    %v634 = vmul.f32 %v633, %v603
    %v635 = vmul.f32 %v633, %v607
    %v636 = vadd.f32 %v597, %v634
    %v637 = vadd.f32 %v598, %v635
    %638 = vrot.lane.b32.xlu0 %v409, 96
    %v639 = vpop.permute.xlu0 %638
    %640 = vrot.lane.b32.xlu0 %v410, 96
    %v641 = vpop.permute.xlu0 %640
    %v642 = vsel %vm292, %v639, %v641
    %v646 = vsel %vm292, %v641, %v639
    %s647 = sld [smem:[#allocation2 + $0xf]]
    %v648 = vstv %s647
    %v649 = vmul.f32 %v648, %v642
    %v650 = vmul.f32 %v648, %v646
    %v651 = vadd.f32 %v612, %v649
    %v652 = vadd.f32 %v613, %v650
    %s653 = sld [smem:[#allocation2 + $0x3c]]
    %v654 = vstv %s653
    %v655 = vmul.f32 %v654, %v642
    %v656 = vmul.f32 %v654, %v646
    %v657 = vadd.f32 %v618, %v655
    %v658 = vadd.f32 %v619, %v656
    %s659 = sld [smem:[#allocation2 + $0x69]]
    %v660 = vstv %s659
    %v661 = vmul.f32 %v660, %v642
    %v662 = vmul.f32 %v660, %v646
    %v663 = vadd.f32 %v624, %v661
    %v664 = vadd.f32 %v625, %v662
    %s665 = sld [smem:[#allocation2 + $0x96]]
    %v666 = vstv %s665
    %v667 = vmul.f32 %v666, %v642
    %v668 = vmul.f32 %v666, %v646
    %v669 = vadd.f32 %v630, %v667
    %v670 = vadd.f32 %v631, %v668
    %s671 = sld [smem:[#allocation2 + $0xc3]]
    %v672 = vstv %s671
    %v673 = vmul.f32 %v672, %v642
    %v674 = vmul.f32 %v672, %v646
    %v675 = vadd.f32 %v636, %v673
    %v676 = vadd.f32 %v637, %v674
    %677 = vrot.lane.b32.xlu0 %v409, 95
    %v678 = vpop.permute.xlu0 %677
    %679 = vrot.lane.b32.xlu0 %v410, 95
    %v680 = vpop.permute.xlu0 %679
    %v681 = vsel %vm332, %v678, %v680
    %v685 = vsel %vm332, %v680, %v678
    %s686 = sld [smem:[#allocation2 + $0x10]]
    %v687 = vstv %s686
    %v688 = vmul.f32 %v687, %v681
    %v689 = vmul.f32 %v687, %v685
    %v690 = vadd.f32 %v651, %v688
    %v691 = vadd.f32 %v652, %v689
    %s692 = sld [smem:[#allocation2 + $0x3d]]
    %v693 = vstv %s692
    %v694 = vmul.f32 %v693, %v681
    %v695 = vmul.f32 %v693, %v685
    %v696 = vadd.f32 %v657, %v694
    %v697 = vadd.f32 %v658, %v695
    %s698 = sld [smem:[#allocation2 + $0x6a]]
    %v699 = vstv %s698
    %v700 = vmul.f32 %v699, %v681
    %v701 = vmul.f32 %v699, %v685
    %v702 = vadd.f32 %v663, %v700
    %v703 = vadd.f32 %v664, %v701
    %s704 = sld [smem:[#allocation2 + $0x97]]
    %v705 = vstv %s704
    %v706 = vmul.f32 %v705, %v681
    %v707 = vmul.f32 %v705, %v685
    %v708 = vadd.f32 %v669, %v706
    %v709 = vadd.f32 %v670, %v707
    %s710 = sld [smem:[#allocation2 + $0xc4]]
    %v711 = vstv %s710
    %v712 = vmul.f32 %v711, %v681
    %v713 = vmul.f32 %v711, %v685
    %v714 = vadd.f32 %v675, %v712
    %v715 = vadd.f32 %v676, %v713
    %716 = vrot.lane.b32.xlu0 %v409, 94
    %v717 = vpop.permute.xlu0 %716
    %718 = vrot.lane.b32.xlu0 %v410, 94
    %v719 = vpop.permute.xlu0 %718
    %v720 = vsel %vm372, %v717, %v719
    %v724 = vsel %vm372, %v719, %v717
    %s725 = sld [smem:[#allocation2 + $0x11]]
    %v726 = vstv %s725
    %v727 = vmul.f32 %v726, %v720
    %v728 = vmul.f32 %v726, %v724
    %v729 = vadd.f32 %v690, %v727
    %v730 = vadd.f32 %v691, %v728
    %s731 = sld [smem:[#allocation2 + $0x3e]]
    %v732 = vstv %s731
    %v733 = vmul.f32 %v732, %v720
    %v734 = vmul.f32 %v732, %v724
    %v735 = vadd.f32 %v696, %v733
    %v736 = vadd.f32 %v697, %v734
    %s737 = sld [smem:[#allocation2 + $0x6b]]
    %v738 = vstv %s737
    %v739 = vmul.f32 %v738, %v720
    %v740 = vmul.f32 %v738, %v724
    %v741 = vadd.f32 %v702, %v739
    %v742 = vadd.f32 %v703, %v740
    %s743 = sld [smem:[#allocation2 + $0x98]]
    %v744 = vstv %s743
    %v745 = vmul.f32 %v744, %v720
    %v746 = vmul.f32 %v744, %v724
    %v747 = vadd.f32 %v708, %v745
    %v748 = vadd.f32 %v709, %v746
    %s749 = sld [smem:[#allocation2 + $0xc5]]
    %v750 = vstv %s749
    %v751 = vmul.f32 %v750, %v720
    %v752 = vmul.f32 %v750, %v724
    %v753 = vadd.f32 %v714, %v751
    %v754 = vadd.f32 %v715, %v752
    %s755 = scalar_lea.vmem [#allocation5], 32
    %v756 = vld [vmem:[%s755] sm:$0xff]
    %v757 = vld [vmem:[%s755 + $0x8] sm:$0xff]
    %s758 = sld [smem:[#allocation2 + $0x12]]
    %v759 = vstv %s758
    %v760 = vmul.f32 %v759, %v756
    %v761 = vmul.f32 %v759, %v757
    %v762 = vadd.f32 %v729, %v760
    %v763 = vadd.f32 %v730, %v761
    %s764 = sld [smem:[#allocation2 + $0x3f]]
    %v765 = vstv %s764
    %v766 = vmul.f32 %v765, %v756
    %v767 = vmul.f32 %v765, %v757
    %v768 = vadd.f32 %v735, %v766
    %v769 = vadd.f32 %v736, %v767
    %s770 = sld [smem:[#allocation2 + $0x6c]]
    %v771 = vstv %s770
    %v772 = vmul.f32 %v771, %v756
    %v773 = vmul.f32 %v771, %v757
    %v774 = vadd.f32 %v741, %v772
    %v775 = vadd.f32 %v742, %v773
    %s776 = sld [smem:[#allocation2 + $0x99]]
    %v777 = vstv %s776
    %v778 = vmul.f32 %v777, %v756
    %v779 = vmul.f32 %v777, %v757
    %v780 = vadd.f32 %v747, %v778
    %v781 = vadd.f32 %v748, %v779
    %s782 = sld [smem:[#allocation2 + $0xc6]]
    %v783 = vstv %s782
    %v784 = vmul.f32 %v783, %v756
    %v785 = vmul.f32 %v783, %v757
    %v786 = vadd.f32 %v753, %v784
    %v787 = vadd.f32 %v754, %v785
    %790 = vrot.lane.b32.xlu0 %v756, 127
    %v791 = vpop.permute.xlu0 %790
    %792 = vrot.lane.b32.xlu0 %v757, 127
    %v793 = vpop.permute.xlu0 %792
    %v794 = vsel %vm92, %v791, %v793
    %v798 = vsel %vm92, %v793, %v791
    %s799 = sld [smem:[#allocation2 + $0x13]]
    %v800 = vstv %s799
    %v801 = vmul.f32 %v800, %v794
    %v802 = vmul.f32 %v800, %v798
    %v803 = vadd.f32 %v762, %v801
    %v804 = vadd.f32 %v763, %v802
    %s805 = sld [smem:[#allocation2 + $0x40]]
    %v806 = vstv %s805
    %v807 = vmul.f32 %v806, %v794
    %v808 = vmul.f32 %v806, %v798
    %v809 = vadd.f32 %v768, %v807
    %v810 = vadd.f32 %v769, %v808
    %s811 = sld [smem:[#allocation2 + $0x6d]]
    %v812 = vstv %s811
    %v813 = vmul.f32 %v812, %v794
    %v814 = vmul.f32 %v812, %v798
    %v815 = vadd.f32 %v774, %v813
    %v816 = vadd.f32 %v775, %v814
    %s817 = sld [smem:[#allocation2 + $0x9a]]
    %v818 = vstv %s817
    %v819 = vmul.f32 %v818, %v794
    %v820 = vmul.f32 %v818, %v798
    %v821 = vadd.f32 %v780, %v819
    %v822 = vadd.f32 %v781, %v820
    %s823 = sld [smem:[#allocation2 + $0xc7]]
    %v824 = vstv %s823
    %v825 = vmul.f32 %v824, %v794
    %v826 = vmul.f32 %v824, %v798
    %v827 = vadd.f32 %v786, %v825
    %v828 = vadd.f32 %v787, %v826
    %829 = vrot.lane.b32.xlu0 %v756, 126
    %v830 = vpop.permute.xlu0 %829
    %831 = vrot.lane.b32.xlu0 %v757, 126
    %v832 = vpop.permute.xlu0 %831
    %v833 = vsel %vm132, %v830, %v832
    %v837 = vsel %vm132, %v832, %v830
    %s838 = sld [smem:[#allocation2 + $0x14]]
    %v839 = vstv %s838
    %v840 = vmul.f32 %v839, %v833
    %v841 = vmul.f32 %v839, %v837
    %v842 = vadd.f32 %v803, %v840
    %v843 = vadd.f32 %v804, %v841
    %s844 = sld [smem:[#allocation2 + $0x41]]
    %v845 = vstv %s844
    %v846 = vmul.f32 %v845, %v833
    %v847 = vmul.f32 %v845, %v837
    %v848 = vadd.f32 %v809, %v846
    %v849 = vadd.f32 %v810, %v847
    %s850 = sld [smem:[#allocation2 + $0x6e]]
    %v851 = vstv %s850
    %v852 = vmul.f32 %v851, %v833
    %v853 = vmul.f32 %v851, %v837
    %v854 = vadd.f32 %v815, %v852
    %v855 = vadd.f32 %v816, %v853
    %s856 = sld [smem:[#allocation2 + $0x9b]]
    %v857 = vstv %s856
    %v858 = vmul.f32 %v857, %v833
    %v859 = vmul.f32 %v857, %v837
    %v860 = vadd.f32 %v821, %v858
    %v861 = vadd.f32 %v822, %v859
    %s862 = sld [smem:[#allocation2 + $0xc8]]
    %v863 = vstv %s862
    %v864 = vmul.f32 %v863, %v833
    %v865 = vmul.f32 %v863, %v837
    %v866 = vadd.f32 %v827, %v864
    %v867 = vadd.f32 %v828, %v865
    %868 = vrot.lane.b32.xlu0 %v756, 112
    %v869 = vpop.permute.xlu0 %868
    %870 = vrot.lane.b32.xlu0 %v757, 112
    %v871 = vpop.permute.xlu0 %870
    %v872 = vsel %vm172, %v869, %v871
    %v876 = vsel %vm172, %v871, %v869
    %s877 = sld [smem:[#allocation2 + $0x15]]
    %v878 = vstv %s877
    %v879 = vmul.f32 %v878, %v872
    %v880 = vmul.f32 %v878, %v876
    %v881 = vadd.f32 %v842, %v879
    %v882 = vadd.f32 %v843, %v880
    %s883 = sld [smem:[#allocation2 + $0x42]]
    %v884 = vstv %s883
    %v885 = vmul.f32 %v884, %v872
    %v886 = vmul.f32 %v884, %v876
    %v887 = vadd.f32 %v848, %v885
    %v888 = vadd.f32 %v849, %v886
    %s889 = sld [smem:[#allocation2 + $0x6f]]
    %v890 = vstv %s889
    %v891 = vmul.f32 %v890, %v872
    %v892 = vmul.f32 %v890, %v876
    %v893 = vadd.f32 %v854, %v891
    %v894 = vadd.f32 %v855, %v892
    %s895 = sld [smem:[#allocation2 + $0x9c]]
    %v896 = vstv %s895
    %v897 = vmul.f32 %v896, %v872
    %v898 = vmul.f32 %v896, %v876
    %v899 = vadd.f32 %v860, %v897
    %v900 = vadd.f32 %v861, %v898
    %s901 = sld [smem:[#allocation2 + $0xc9]]
    %v902 = vstv %s901
    %v903 = vmul.f32 %v902, %v872
    %v904 = vmul.f32 %v902, %v876
    %v905 = vadd.f32 %v866, %v903
    %v906 = vadd.f32 %v867, %v904
    %907 = vrot.lane.b32.xlu0 %v756, 111
    %v908 = vpop.permute.xlu0 %907
    %909 = vrot.lane.b32.xlu0 %v757, 111
    %v910 = vpop.permute.xlu0 %909
    %v911 = vsel %vm212, %v908, %v910
    %v915 = vsel %vm212, %v910, %v908
    %s916 = sld [smem:[#allocation2 + $0x16]]
    %v917 = vstv %s916
    %v918 = vmul.f32 %v917, %v911
    %v919 = vmul.f32 %v917, %v915
    %v920 = vadd.f32 %v881, %v918
    %v921 = vadd.f32 %v882, %v919
    %s922 = sld [smem:[#allocation2 + $0x43]]
    %v923 = vstv %s922
    %v924 = vmul.f32 %v923, %v911
    %v925 = vmul.f32 %v923, %v915
    %v926 = vadd.f32 %v887, %v924
    %v927 = vadd.f32 %v888, %v925
    %s928 = sld [smem:[#allocation2 + $0x70]]
    %v929 = vstv %s928
    %v930 = vmul.f32 %v929, %v911
    %v931 = vmul.f32 %v929, %v915
    %v932 = vadd.f32 %v893, %v930
    %v933 = vadd.f32 %v894, %v931
    %s934 = sld [smem:[#allocation2 + $0x9d]]
    %v935 = vstv %s934
    %v936 = vmul.f32 %v935, %v911
    %v937 = vmul.f32 %v935, %v915
    %v938 = vadd.f32 %v899, %v936
    %v939 = vadd.f32 %v900, %v937
    %s940 = sld [smem:[#allocation2 + $0xca]]
    %v941 = vstv %s940
    %v942 = vmul.f32 %v941, %v911
    %v943 = vmul.f32 %v941, %v915
    %v944 = vadd.f32 %v905, %v942
    %v945 = vadd.f32 %v906, %v943
    %946 = vrot.lane.b32.xlu0 %v756, 110
    %v947 = vpop.permute.xlu0 %946
    %948 = vrot.lane.b32.xlu0 %v757, 110
    %v949 = vpop.permute.xlu0 %948
    %v950 = vsel %vm252, %v947, %v949
    %v954 = vsel %vm252, %v949, %v947
    %s955 = sld [smem:[#allocation2 + $0x17]]
    %v956 = vstv %s955
    %v957 = vmul.f32 %v956, %v950
    %v958 = vmul.f32 %v956, %v954
    %v959 = vadd.f32 %v920, %v957
    %v960 = vadd.f32 %v921, %v958
    %s961 = sld [smem:[#allocation2 + $0x44]]
    %v962 = vstv %s961
    %v963 = vmul.f32 %v962, %v950
    %v964 = vmul.f32 %v962, %v954
    %v965 = vadd.f32 %v926, %v963
    %v966 = vadd.f32 %v927, %v964
    %s967 = sld [smem:[#allocation2 + $0x71]]
    %v968 = vstv %s967
    %v969 = vmul.f32 %v968, %v950
    %v970 = vmul.f32 %v968, %v954
    %v971 = vadd.f32 %v932, %v969
    %v972 = vadd.f32 %v933, %v970
    %s973 = sld [smem:[#allocation2 + $0x9e]]
    %v974 = vstv %s973
    %v975 = vmul.f32 %v974, %v950
    %v976 = vmul.f32 %v974, %v954
    %v977 = vadd.f32 %v938, %v975
    %v978 = vadd.f32 %v939, %v976
    %s979 = sld [smem:[#allocation2 + $0xcb]]
    %v980 = vstv %s979
    %v981 = vmul.f32 %v980, %v950
    %v982 = vmul.f32 %v980, %v954
    %v983 = vadd.f32 %v944, %v981
    %v984 = vadd.f32 %v945, %v982
    %985 = vrot.lane.b32.xlu0 %v756, 96
    %v986 = vpop.permute.xlu0 %985
    %987 = vrot.lane.b32.xlu0 %v757, 96
    %v988 = vpop.permute.xlu0 %987
    %v989 = vsel %vm292, %v986, %v988
    %v993 = vsel %vm292, %v988, %v986
    %s994 = sld [smem:[#allocation2 + $0x18]]
    %v995 = vstv %s994
    %v996 = vmul.f32 %v995, %v989
    %v997 = vmul.f32 %v995, %v993
    %v998 = vadd.f32 %v959, %v996
    %v999 = vadd.f32 %v960, %v997
    %s1000 = sld [smem:[#allocation2 + $0x45]]
    %v1001 = vstv %s1000
    %v1002 = vmul.f32 %v1001, %v989
    %v1003 = vmul.f32 %v1001, %v993
    %v1004 = vadd.f32 %v965, %v1002
    %v1005 = vadd.f32 %v966, %v1003
    %s1006 = sld [smem:[#allocation2 + $0x72]]
    %v1007 = vstv %s1006
    %v1008 = vmul.f32 %v1007, %v989
    %v1009 = vmul.f32 %v1007, %v993
    %v1010 = vadd.f32 %v971, %v1008
    %v1011 = vadd.f32 %v972, %v1009
    %s1012 = sld [smem:[#allocation2 + $0x9f]]
    %v1013 = vstv %s1012
    %v1014 = vmul.f32 %v1013, %v989
    %v1015 = vmul.f32 %v1013, %v993
    %v1016 = vadd.f32 %v977, %v1014
    %v1017 = vadd.f32 %v978, %v1015
    %s1018 = sld [smem:[#allocation2 + $0xcc]]
    %v1019 = vstv %s1018
    %v1020 = vmul.f32 %v1019, %v989
    %v1021 = vmul.f32 %v1019, %v993
    %v1022 = vadd.f32 %v983, %v1020
    %v1023 = vadd.f32 %v984, %v1021
    %1024 = vrot.lane.b32.xlu0 %v756, 95
    %v1025 = vpop.permute.xlu0 %1024
    %1026 = vrot.lane.b32.xlu0 %v757, 95
    %v1027 = vpop.permute.xlu0 %1026
    %v1028 = vsel %vm332, %v1025, %v1027
    %v1032 = vsel %vm332, %v1027, %v1025
    %s1033 = sld [smem:[#allocation2 + $0x19]]
    %v1034 = vstv %s1033
    %v1035 = vmul.f32 %v1034, %v1028
    %v1036 = vmul.f32 %v1034, %v1032
    %v1037 = vadd.f32 %v998, %v1035
    %v1038 = vadd.f32 %v999, %v1036
    %s1039 = sld [smem:[#allocation2 + $0x46]]
    %v1040 = vstv %s1039
    %v1041 = vmul.f32 %v1040, %v1028
    %v1042 = vmul.f32 %v1040, %v1032
    %v1043 = vadd.f32 %v1004, %v1041
    %v1044 = vadd.f32 %v1005, %v1042
    %s1045 = sld [smem:[#allocation2 + $0x73]]
    %v1046 = vstv %s1045
    %v1047 = vmul.f32 %v1046, %v1028
    %v1048 = vmul.f32 %v1046, %v1032
    %v1049 = vadd.f32 %v1010, %v1047
    %v1050 = vadd.f32 %v1011, %v1048
    %s1051 = sld [smem:[#allocation2 + $0xa0]]
    %v1052 = vstv %s1051
    %v1053 = vmul.f32 %v1052, %v1028
    %v1054 = vmul.f32 %v1052, %v1032
    %v1055 = vadd.f32 %v1016, %v1053
    %v1056 = vadd.f32 %v1017, %v1054
    %s1057 = sld [smem:[#allocation2 + $0xcd]]
    %v1058 = vstv %s1057
    %v1059 = vmul.f32 %v1058, %v1028
    %v1060 = vmul.f32 %v1058, %v1032
    %v1061 = vadd.f32 %v1022, %v1059
    %v1062 = vadd.f32 %v1023, %v1060
    %1063 = vrot.lane.b32.xlu0 %v756, 94
    %v1064 = vpop.permute.xlu0 %1063
    %1065 = vrot.lane.b32.xlu0 %v757, 94
    %v1066 = vpop.permute.xlu0 %1065
    %v1067 = vsel %vm372, %v1064, %v1066
    %v1071 = vsel %vm372, %v1066, %v1064
    %s1072 = sld [smem:[#allocation2 + $0x1a]]
    %v1073 = vstv %s1072
    %v1074 = vmul.f32 %v1073, %v1067
    %v1075 = vmul.f32 %v1073, %v1071
    %v1076 = vadd.f32 %v1037, %v1074
    %v1077 = vadd.f32 %v1038, %v1075
    %s1078 = sld [smem:[#allocation2 + $0x47]]
    %v1079 = vstv %s1078
    %v1080 = vmul.f32 %v1079, %v1067
    %v1081 = vmul.f32 %v1079, %v1071
    %v1082 = vadd.f32 %v1043, %v1080
    %v1083 = vadd.f32 %v1044, %v1081
    %s1084 = sld [smem:[#allocation2 + $0x74]]
    %v1085 = vstv %s1084
    %v1086 = vmul.f32 %v1085, %v1067
    %v1087 = vmul.f32 %v1085, %v1071
    %v1088 = vadd.f32 %v1049, %v1086
    %v1089 = vadd.f32 %v1050, %v1087
    %s1090 = sld [smem:[#allocation2 + $0xa1]]
    %v1091 = vstv %s1090
    %v1092 = vmul.f32 %v1091, %v1067
    %v1093 = vmul.f32 %v1091, %v1071
    %v1094 = vadd.f32 %v1055, %v1092
    %v1095 = vadd.f32 %v1056, %v1093
    %s1096 = sld [smem:[#allocation2 + $0xce]]
    %v1097 = vstv %s1096
    %v1098 = vmul.f32 %v1097, %v1067
    %v1099 = vmul.f32 %v1097, %v1071
    %v1100 = vadd.f32 %v1061, %v1098
    %v1101 = vadd.f32 %v1062, %v1099
    %s1102 = scalar_lea.vmem [#allocation5], 48
    %v1103 = vld [vmem:[%s1102] sm:$0xff]
    %v1104 = vld [vmem:[%s1102 + $0x8] sm:$0xff]
    %s1105 = sld [smem:[#allocation2 + $0x1b]]
    %v1106 = vstv %s1105
    %v1107 = vmul.f32 %v1106, %v1103
    %v1108 = vmul.f32 %v1106, %v1104
    %v1109 = vadd.f32 %v1076, %v1107
    %v1110 = vadd.f32 %v1077, %v1108
    %s1111 = sld [smem:[#allocation2 + $0x48]]
    %v1112 = vstv %s1111
    %v1113 = vmul.f32 %v1112, %v1103
    %v1114 = vmul.f32 %v1112, %v1104
    %v1115 = vadd.f32 %v1082, %v1113
    %v1116 = vadd.f32 %v1083, %v1114
    %s1117 = sld [smem:[#allocation2 + $0x75]]
    %v1118 = vstv %s1117
    %v1119 = vmul.f32 %v1118, %v1103
    %v1120 = vmul.f32 %v1118, %v1104
    %v1121 = vadd.f32 %v1088, %v1119
    %v1122 = vadd.f32 %v1089, %v1120
    %s1123 = sld [smem:[#allocation2 + $0xa2]]
    %v1124 = vstv %s1123
    %v1125 = vmul.f32 %v1124, %v1103
    %v1126 = vmul.f32 %v1124, %v1104
    %v1127 = vadd.f32 %v1094, %v1125
    %v1128 = vadd.f32 %v1095, %v1126
    %s1129 = sld [smem:[#allocation2 + $0xcf]]
    %v1130 = vstv %s1129
    %v1131 = vmul.f32 %v1130, %v1103
    %v1132 = vmul.f32 %v1130, %v1104
    %v1133 = vadd.f32 %v1100, %v1131
    %v1134 = vadd.f32 %v1101, %v1132
    %1137 = vrot.lane.b32.xlu0 %v1103, 127
    %v1138 = vpop.permute.xlu0 %1137
    %1139 = vrot.lane.b32.xlu0 %v1104, 127
    %v1140 = vpop.permute.xlu0 %1139
    %v1141 = vsel %vm92, %v1138, %v1140
    %v1145 = vsel %vm92, %v1140, %v1138
    %s1146 = sld [smem:[#allocation2 + $0x1c]]
    %v1147 = vstv %s1146
    %v1148 = vmul.f32 %v1147, %v1141
    %v1149 = vmul.f32 %v1147, %v1145
    %v1150 = vadd.f32 %v1109, %v1148
    %v1151 = vadd.f32 %v1110, %v1149
    %s1152 = sld [smem:[#allocation2 + $0x49]]
    %v1153 = vstv %s1152
    %v1154 = vmul.f32 %v1153, %v1141
    %v1155 = vmul.f32 %v1153, %v1145
    %v1156 = vadd.f32 %v1115, %v1154
    %v1157 = vadd.f32 %v1116, %v1155
    %s1158 = sld [smem:[#allocation2 + $0x76]]
    %v1159 = vstv %s1158
    %v1160 = vmul.f32 %v1159, %v1141
    %v1161 = vmul.f32 %v1159, %v1145
    %v1162 = vadd.f32 %v1121, %v1160
    %v1163 = vadd.f32 %v1122, %v1161
    %s1164 = sld [smem:[#allocation2 + $0xa3]]
    %v1165 = vstv %s1164
    %v1166 = vmul.f32 %v1165, %v1141
    %v1167 = vmul.f32 %v1165, %v1145
    %v1168 = vadd.f32 %v1127, %v1166
    %v1169 = vadd.f32 %v1128, %v1167
    %s1170 = sld [smem:[#allocation2 + $0xd0]]
    %v1171 = vstv %s1170
    %v1172 = vmul.f32 %v1171, %v1141
    %v1173 = vmul.f32 %v1171, %v1145
    %v1174 = vadd.f32 %v1133, %v1172
    %v1175 = vadd.f32 %v1134, %v1173
    %1176 = vrot.lane.b32.xlu0 %v1103, 126
    %v1177 = vpop.permute.xlu0 %1176
    %1178 = vrot.lane.b32.xlu0 %v1104, 126
    %v1179 = vpop.permute.xlu0 %1178
    %v1180 = vsel %vm132, %v1177, %v1179
    %v1184 = vsel %vm132, %v1179, %v1177
    %s1185 = sld [smem:[#allocation2 + $0x1d]]
    %v1186 = vstv %s1185
    %v1187 = vmul.f32 %v1186, %v1180
    %v1188 = vmul.f32 %v1186, %v1184
    %v1189 = vadd.f32 %v1150, %v1187
    %v1190 = vadd.f32 %v1151, %v1188
    %s1191 = sld [smem:[#allocation2 + $0x4a]]
    %v1192 = vstv %s1191
    %v1193 = vmul.f32 %v1192, %v1180
    %v1194 = vmul.f32 %v1192, %v1184
    %v1195 = vadd.f32 %v1156, %v1193
    %v1196 = vadd.f32 %v1157, %v1194
    %s1197 = sld [smem:[#allocation2 + $0x77]]
    %v1198 = vstv %s1197
    %v1199 = vmul.f32 %v1198, %v1180
    %v1200 = vmul.f32 %v1198, %v1184
    %v1201 = vadd.f32 %v1162, %v1199
    %v1202 = vadd.f32 %v1163, %v1200
    %s1203 = sld [smem:[#allocation2 + $0xa4]]
    %v1204 = vstv %s1203
    %v1205 = vmul.f32 %v1204, %v1180
    %v1206 = vmul.f32 %v1204, %v1184
    %v1207 = vadd.f32 %v1168, %v1205
    %v1208 = vadd.f32 %v1169, %v1206
    %s1209 = sld [smem:[#allocation2 + $0xd1]]
    %v1210 = vstv %s1209
    %v1211 = vmul.f32 %v1210, %v1180
    %v1212 = vmul.f32 %v1210, %v1184
    %v1213 = vadd.f32 %v1174, %v1211
    %v1214 = vadd.f32 %v1175, %v1212
    %1215 = vrot.lane.b32.xlu0 %v1103, 112
    %v1216 = vpop.permute.xlu0 %1215
    %1217 = vrot.lane.b32.xlu0 %v1104, 112
    %v1218 = vpop.permute.xlu0 %1217
    %v1219 = vsel %vm172, %v1216, %v1218
    %v1223 = vsel %vm172, %v1218, %v1216
    %s1224 = sld [smem:[#allocation2 + $0x1e]]
    %v1225 = vstv %s1224
    %v1226 = vmul.f32 %v1225, %v1219
    %v1227 = vmul.f32 %v1225, %v1223
    %v1228 = vadd.f32 %v1189, %v1226
    %v1229 = vadd.f32 %v1190, %v1227
    %s1230 = sld [smem:[#allocation2 + $0x4b]]
    %v1231 = vstv %s1230
    %v1232 = vmul.f32 %v1231, %v1219
    %v1233 = vmul.f32 %v1231, %v1223
    %v1234 = vadd.f32 %v1195, %v1232
    %v1235 = vadd.f32 %v1196, %v1233
    %s1236 = sld [smem:[#allocation2 + $0x78]]
    %v1237 = vstv %s1236
    %v1238 = vmul.f32 %v1237, %v1219
    %v1239 = vmul.f32 %v1237, %v1223
    %v1240 = vadd.f32 %v1201, %v1238
    %v1241 = vadd.f32 %v1202, %v1239
    %s1242 = sld [smem:[#allocation2 + $0xa5]]
    %v1243 = vstv %s1242
    %v1244 = vmul.f32 %v1243, %v1219
    %v1245 = vmul.f32 %v1243, %v1223
    %v1246 = vadd.f32 %v1207, %v1244
    %v1247 = vadd.f32 %v1208, %v1245
    %s1248 = sld [smem:[#allocation2 + $0xd2]]
    %v1249 = vstv %s1248
    %v1250 = vmul.f32 %v1249, %v1219
    %v1251 = vmul.f32 %v1249, %v1223
    %v1252 = vadd.f32 %v1213, %v1250
    %v1253 = vadd.f32 %v1214, %v1251
    %1254 = vrot.lane.b32.xlu0 %v1103, 111
    %v1255 = vpop.permute.xlu0 %1254
    %1256 = vrot.lane.b32.xlu0 %v1104, 111
    %v1257 = vpop.permute.xlu0 %1256
    %v1258 = vsel %vm212, %v1255, %v1257
    %v1262 = vsel %vm212, %v1257, %v1255
    %s1263 = sld [smem:[#allocation2 + $0x1f]]
    %v1264 = vstv %s1263
    %v1265 = vmul.f32 %v1264, %v1258
    %v1266 = vmul.f32 %v1264, %v1262
    %v1267 = vadd.f32 %v1228, %v1265
    %v1268 = vadd.f32 %v1229, %v1266
    %s1269 = sld [smem:[#allocation2 + $0x4c]]
    %v1270 = vstv %s1269
    %v1271 = vmul.f32 %v1270, %v1258
    %v1272 = vmul.f32 %v1270, %v1262
    %v1273 = vadd.f32 %v1234, %v1271
    %v1274 = vadd.f32 %v1235, %v1272
    %s1275 = sld [smem:[#allocation2 + $0x79]]
    %v1276 = vstv %s1275
    %v1277 = vmul.f32 %v1276, %v1258
    %v1278 = vmul.f32 %v1276, %v1262
    %v1279 = vadd.f32 %v1240, %v1277
    %v1280 = vadd.f32 %v1241, %v1278
    %s1281 = sld [smem:[#allocation2 + $0xa6]]
    %v1282 = vstv %s1281
    %v1283 = vmul.f32 %v1282, %v1258
    %v1284 = vmul.f32 %v1282, %v1262
    %v1285 = vadd.f32 %v1246, %v1283
    %v1286 = vadd.f32 %v1247, %v1284
    %s1287 = sld [smem:[#allocation2 + $0xd3]]
    %v1288 = vstv %s1287
    %v1289 = vmul.f32 %v1288, %v1258
    %v1290 = vmul.f32 %v1288, %v1262
    %v1291 = vadd.f32 %v1252, %v1289
    %v1292 = vadd.f32 %v1253, %v1290
    %1293 = vrot.lane.b32.xlu0 %v1103, 110
    %v1294 = vpop.permute.xlu0 %1293
    %1295 = vrot.lane.b32.xlu0 %v1104, 110
    %v1296 = vpop.permute.xlu0 %1295
    %v1297 = vsel %vm252, %v1294, %v1296
    %v1301 = vsel %vm252, %v1296, %v1294
    %s1302 = sld [smem:[#allocation2 + $0x20]]
    %v1303 = vstv %s1302
    %v1304 = vmul.f32 %v1303, %v1297
    %v1305 = vmul.f32 %v1303, %v1301
    %v1306 = vadd.f32 %v1267, %v1304
    %v1307 = vadd.f32 %v1268, %v1305
    %s1308 = sld [smem:[#allocation2 + $0x4d]]
    %v1309 = vstv %s1308
    %v1310 = vmul.f32 %v1309, %v1297
    %v1311 = vmul.f32 %v1309, %v1301
    %v1312 = vadd.f32 %v1273, %v1310
    %v1313 = vadd.f32 %v1274, %v1311
    %s1314 = sld [smem:[#allocation2 + $0x7a]]
    %v1315 = vstv %s1314
    %v1316 = vmul.f32 %v1315, %v1297
    %v1317 = vmul.f32 %v1315, %v1301
    %v1318 = vadd.f32 %v1279, %v1316
    %v1319 = vadd.f32 %v1280, %v1317
    %s1320 = sld [smem:[#allocation2 + $0xa7]]
    %v1321 = vstv %s1320
    %v1322 = vmul.f32 %v1321, %v1297
    %v1323 = vmul.f32 %v1321, %v1301
    %v1324 = vadd.f32 %v1285, %v1322
    %v1325 = vadd.f32 %v1286, %v1323
    %s1326 = sld [smem:[#allocation2 + $0xd4]]
    %v1327 = vstv %s1326
    %v1328 = vmul.f32 %v1327, %v1297
    %v1329 = vmul.f32 %v1327, %v1301
    %v1330 = vadd.f32 %v1291, %v1328
    %v1331 = vadd.f32 %v1292, %v1329
    %1332 = vrot.lane.b32.xlu0 %v1103, 96
    %v1333 = vpop.permute.xlu0 %1332
    %1334 = vrot.lane.b32.xlu0 %v1104, 96
    %v1335 = vpop.permute.xlu0 %1334
    %v1336 = vsel %vm292, %v1333, %v1335
    %v1340 = vsel %vm292, %v1335, %v1333
    %s1341 = sld [smem:[#allocation2 + $0x21]]
    %v1342 = vstv %s1341
    %v1343 = vmul.f32 %v1342, %v1336
    %v1344 = vmul.f32 %v1342, %v1340
    %v1345 = vadd.f32 %v1306, %v1343
    %v1346 = vadd.f32 %v1307, %v1344
    %s1347 = sld [smem:[#allocation2 + $0x4e]]
    %v1348 = vstv %s1347
    %v1349 = vmul.f32 %v1348, %v1336
    %v1350 = vmul.f32 %v1348, %v1340
    %v1351 = vadd.f32 %v1312, %v1349
    %v1352 = vadd.f32 %v1313, %v1350
    %s1353 = sld [smem:[#allocation2 + $0x7b]]
    %v1354 = vstv %s1353
    %v1355 = vmul.f32 %v1354, %v1336
    %v1356 = vmul.f32 %v1354, %v1340
    %v1357 = vadd.f32 %v1318, %v1355
    %v1358 = vadd.f32 %v1319, %v1356
    %s1359 = sld [smem:[#allocation2 + $0xa8]]
    %v1360 = vstv %s1359
    %v1361 = vmul.f32 %v1360, %v1336
    %v1362 = vmul.f32 %v1360, %v1340
    %v1363 = vadd.f32 %v1324, %v1361
    %v1364 = vadd.f32 %v1325, %v1362
    %s1365 = sld [smem:[#allocation2 + $0xd5]]
    %v1366 = vstv %s1365
    %v1367 = vmul.f32 %v1366, %v1336
    %v1368 = vmul.f32 %v1366, %v1340
    %v1369 = vadd.f32 %v1330, %v1367
    %v1370 = vadd.f32 %v1331, %v1368
    %1371 = vrot.lane.b32.xlu0 %v1103, 95
    %v1372 = vpop.permute.xlu0 %1371
    %1373 = vrot.lane.b32.xlu0 %v1104, 95
    %v1374 = vpop.permute.xlu0 %1373
    %v1375 = vsel %vm332, %v1372, %v1374
    %v1379 = vsel %vm332, %v1374, %v1372
    %s1380 = sld [smem:[#allocation2 + $0x22]]
    %v1381 = vstv %s1380
    %v1382 = vmul.f32 %v1381, %v1375
    %v1383 = vmul.f32 %v1381, %v1379
    %v1384 = vadd.f32 %v1345, %v1382
    %v1385 = vadd.f32 %v1346, %v1383
    %s1386 = sld [smem:[#allocation2 + $0x4f]]
    %v1387 = vstv %s1386
    %v1388 = vmul.f32 %v1387, %v1375
    %v1389 = vmul.f32 %v1387, %v1379
    %v1390 = vadd.f32 %v1351, %v1388
    %v1391 = vadd.f32 %v1352, %v1389
    %s1392 = sld [smem:[#allocation2 + $0x7c]]
    %v1393 = vstv %s1392
    %v1394 = vmul.f32 %v1393, %v1375
    %v1395 = vmul.f32 %v1393, %v1379
    %v1396 = vadd.f32 %v1357, %v1394
    %v1397 = vadd.f32 %v1358, %v1395
    %s1398 = sld [smem:[#allocation2 + $0xa9]]
    %v1399 = vstv %s1398
    %v1400 = vmul.f32 %v1399, %v1375
    %v1401 = vmul.f32 %v1399, %v1379
    %v1402 = vadd.f32 %v1363, %v1400
    %v1403 = vadd.f32 %v1364, %v1401
    %s1404 = sld [smem:[#allocation2 + $0xd6]]
    %v1405 = vstv %s1404
    %v1406 = vmul.f32 %v1405, %v1375
    %v1407 = vmul.f32 %v1405, %v1379
    %v1408 = vadd.f32 %v1369, %v1406
    %v1409 = vadd.f32 %v1370, %v1407
    %1410 = vrot.lane.b32.xlu0 %v1103, 94
    %v1411 = vpop.permute.xlu0 %1410
    %1412 = vrot.lane.b32.xlu0 %v1104, 94
    %v1413 = vpop.permute.xlu0 %1412
    %v1414 = vsel %vm372, %v1411, %v1413
    %v1418 = vsel %vm372, %v1413, %v1411
    %s1419 = sld [smem:[#allocation2 + $0x23]]
    %v1420 = vstv %s1419
    %v1421 = vmul.f32 %v1420, %v1414
    %v1422 = vmul.f32 %v1420, %v1418
    %v1423 = vadd.f32 %v1384, %v1421
    %v1424 = vadd.f32 %v1385, %v1422
    %s1425 = sld [smem:[#allocation2 + $0x50]]
    %v1426 = vstv %s1425
    %v1427 = vmul.f32 %v1426, %v1414
    %v1428 = vmul.f32 %v1426, %v1418
    %v1429 = vadd.f32 %v1390, %v1427
    %v1430 = vadd.f32 %v1391, %v1428
    %s1431 = sld [smem:[#allocation2 + $0x7d]]
    %v1432 = vstv %s1431
    %v1433 = vmul.f32 %v1432, %v1414
    %v1434 = vmul.f32 %v1432, %v1418
    %v1435 = vadd.f32 %v1396, %v1433
    %v1436 = vadd.f32 %v1397, %v1434
    %s1437 = sld [smem:[#allocation2 + $0xaa]]
    %v1438 = vstv %s1437
    %v1439 = vmul.f32 %v1438, %v1414
    %v1440 = vmul.f32 %v1438, %v1418
    %v1441 = vadd.f32 %v1402, %v1439
    %v1442 = vadd.f32 %v1403, %v1440
    %s1443 = sld [smem:[#allocation2 + $0xd7]]
    %v1444 = vstv %s1443
    %v1445 = vmul.f32 %v1444, %v1414
    %v1446 = vmul.f32 %v1444, %v1418
    %v1447 = vadd.f32 %v1408, %v1445
    %v1448 = vadd.f32 %v1409, %v1446
    %s1449 = scalar_lea.vmem [#allocation5], 64
    %v1450 = vld [vmem:[%s1449] sm:$0xff]
    %v1451 = vld [vmem:[%s1449 + $0x8] sm:$0xff]
    %s1452 = sld [smem:[#allocation2 + $0x24]]
    %v1453 = vstv %s1452
    %v1454 = vmul.f32 %v1453, %v1450
    %v1455 = vmul.f32 %v1453, %v1451
    %v1456 = vadd.f32 %v1423, %v1454
    %v1457 = vadd.f32 %v1424, %v1455
    %s1458 = sld [smem:[#allocation2 + $0x51]]
    %v1459 = vstv %s1458
    %v1460 = vmul.f32 %v1459, %v1450
    %v1461 = vmul.f32 %v1459, %v1451
    %v1462 = vadd.f32 %v1429, %v1460
    %v1463 = vadd.f32 %v1430, %v1461
    %s1464 = sld [smem:[#allocation2 + $0x7e]]
    %v1465 = vstv %s1464
    %v1466 = vmul.f32 %v1465, %v1450
    %v1467 = vmul.f32 %v1465, %v1451
    %v1468 = vadd.f32 %v1435, %v1466
    %v1469 = vadd.f32 %v1436, %v1467
    %s1470 = sld [smem:[#allocation2 + $0xab]]
    %v1471 = vstv %s1470
    %v1472 = vmul.f32 %v1471, %v1450
    %v1473 = vmul.f32 %v1471, %v1451
    %v1474 = vadd.f32 %v1441, %v1472
    %v1475 = vadd.f32 %v1442, %v1473
    %s1476 = sld [smem:[#allocation2 + $0xd8]]
    %v1477 = vstv %s1476
    %v1478 = vmul.f32 %v1477, %v1450
    %v1479 = vmul.f32 %v1477, %v1451
    %v1480 = vadd.f32 %v1447, %v1478
    %v1481 = vadd.f32 %v1448, %v1479
    %1484 = vrot.lane.b32.xlu0 %v1450, 127
    %v1485 = vpop.permute.xlu0 %1484
    %1486 = vrot.lane.b32.xlu0 %v1451, 127
    %v1487 = vpop.permute.xlu0 %1486
    %v1488 = vsel %vm92, %v1485, %v1487
    %v1492 = vsel %vm92, %v1487, %v1485
    %s1493 = sld [smem:[#allocation2 + $0x25]]
    %v1494 = vstv %s1493
    %v1495 = vmul.f32 %v1494, %v1488
    %v1496 = vmul.f32 %v1494, %v1492
    %v1497 = vadd.f32 %v1456, %v1495
    %v1498 = vadd.f32 %v1457, %v1496
    %s1499 = sld [smem:[#allocation2 + $0x52]]
    %v1500 = vstv %s1499
    %v1501 = vmul.f32 %v1500, %v1488
    %v1502 = vmul.f32 %v1500, %v1492
    %v1503 = vadd.f32 %v1462, %v1501
    %v1504 = vadd.f32 %v1463, %v1502
    %s1505 = sld [smem:[#allocation2 + $0x7f]]
    %v1506 = vstv %s1505
    %v1507 = vmul.f32 %v1506, %v1488
    %v1508 = vmul.f32 %v1506, %v1492
    %v1509 = vadd.f32 %v1468, %v1507
    %v1510 = vadd.f32 %v1469, %v1508
    %s1511 = sld [smem:[#allocation2 + $0xac]]
    %v1512 = vstv %s1511
    %v1513 = vmul.f32 %v1512, %v1488
    %v1514 = vmul.f32 %v1512, %v1492
    %v1515 = vadd.f32 %v1474, %v1513
    %v1516 = vadd.f32 %v1475, %v1514
    %s1517 = sld [smem:[#allocation2 + $0xd9]]
    %v1518 = vstv %s1517
    %v1519 = vmul.f32 %v1518, %v1488
    %v1520 = vmul.f32 %v1518, %v1492
    %v1521 = vadd.f32 %v1480, %v1519
    %v1522 = vadd.f32 %v1481, %v1520
    %1523 = vrot.lane.b32.xlu0 %v1450, 126
    %v1524 = vpop.permute.xlu0 %1523
    %1525 = vrot.lane.b32.xlu0 %v1451, 126
    %v1526 = vpop.permute.xlu0 %1525
    %v1527 = vsel %vm132, %v1524, %v1526
    %v1531 = vsel %vm132, %v1526, %v1524
    %s1532 = sld [smem:[#allocation2 + $0x26]]
    %v1533 = vstv %s1532
    %v1534 = vmul.f32 %v1533, %v1527
    %v1535 = vmul.f32 %v1533, %v1531
    %v1536 = vadd.f32 %v1497, %v1534
    %v1537 = vadd.f32 %v1498, %v1535
    %s1538 = sld [smem:[#allocation2 + $0x53]]
    %v1539 = vstv %s1538
    %v1540 = vmul.f32 %v1539, %v1527
    %v1541 = vmul.f32 %v1539, %v1531
    %v1542 = vadd.f32 %v1503, %v1540
    %v1543 = vadd.f32 %v1504, %v1541
    %s1544 = sld [smem:[#allocation2 + $0x80]]
    %v1545 = vstv %s1544
    %v1546 = vmul.f32 %v1545, %v1527
    %v1547 = vmul.f32 %v1545, %v1531
    %v1548 = vadd.f32 %v1509, %v1546
    %v1549 = vadd.f32 %v1510, %v1547
    %s1550 = sld [smem:[#allocation2 + $0xad]]
    %v1551 = vstv %s1550
    %v1552 = vmul.f32 %v1551, %v1527
    %v1553 = vmul.f32 %v1551, %v1531
    %v1554 = vadd.f32 %v1515, %v1552
    %v1555 = vadd.f32 %v1516, %v1553
    %s1556 = sld [smem:[#allocation2 + $0xda]]
    %v1557 = vstv %s1556
    %v1558 = vmul.f32 %v1557, %v1527
    %v1559 = vmul.f32 %v1557, %v1531
    %v1560 = vadd.f32 %v1521, %v1558
    %v1561 = vadd.f32 %v1522, %v1559
    %1562 = vrot.lane.b32.xlu0 %v1450, 112
    %v1563 = vpop.permute.xlu0 %1562
    %1564 = vrot.lane.b32.xlu0 %v1451, 112
    %v1565 = vpop.permute.xlu0 %1564
    %v1566 = vsel %vm172, %v1563, %v1565
    %v1570 = vsel %vm172, %v1565, %v1563
    %s1571 = sld [smem:[#allocation2 + $0x27]]
    %v1572 = vstv %s1571
    %v1573 = vmul.f32 %v1572, %v1566
    %v1574 = vmul.f32 %v1572, %v1570
    %v1575 = vadd.f32 %v1536, %v1573
    %v1576 = vadd.f32 %v1537, %v1574
    %s1577 = sld [smem:[#allocation2 + $0x54]]
    %v1578 = vstv %s1577
    %v1579 = vmul.f32 %v1578, %v1566
    %v1580 = vmul.f32 %v1578, %v1570
    %v1581 = vadd.f32 %v1542, %v1579
    %v1582 = vadd.f32 %v1543, %v1580
    %s1583 = sld [smem:[#allocation2 + $0x81]]
    %v1584 = vstv %s1583
    %v1585 = vmul.f32 %v1584, %v1566
    %v1586 = vmul.f32 %v1584, %v1570
    %v1587 = vadd.f32 %v1548, %v1585
    %v1588 = vadd.f32 %v1549, %v1586
    %s1589 = sld [smem:[#allocation2 + $0xae]]
    %v1590 = vstv %s1589
    %v1591 = vmul.f32 %v1590, %v1566
    %v1592 = vmul.f32 %v1590, %v1570
    %v1593 = vadd.f32 %v1554, %v1591
    %v1594 = vadd.f32 %v1555, %v1592
    %s1595 = sld [smem:[#allocation2 + $0xdb]]
    %v1596 = vstv %s1595
    %v1597 = vmul.f32 %v1596, %v1566
    %v1598 = vmul.f32 %v1596, %v1570
    %v1599 = vadd.f32 %v1560, %v1597
    %v1600 = vadd.f32 %v1561, %v1598
    %1601 = vrot.lane.b32.xlu0 %v1450, 111
    %v1602 = vpop.permute.xlu0 %1601
    %1603 = vrot.lane.b32.xlu0 %v1451, 111
    %v1604 = vpop.permute.xlu0 %1603
    %v1605 = vsel %vm212, %v1602, %v1604
    %v1609 = vsel %vm212, %v1604, %v1602
    %s1610 = sld [smem:[#allocation2 + $0x28]]
    %v1611 = vstv %s1610
    %v1612 = vmul.f32 %v1611, %v1605
    %v1613 = vmul.f32 %v1611, %v1609
    %v1614 = vadd.f32 %v1575, %v1612
    %v1615 = vadd.f32 %v1576, %v1613
    %s1616 = sld [smem:[#allocation2 + $0x55]]
    %v1617 = vstv %s1616
    %v1618 = vmul.f32 %v1617, %v1605
    %v1619 = vmul.f32 %v1617, %v1609
    %v1620 = vadd.f32 %v1581, %v1618
    %v1621 = vadd.f32 %v1582, %v1619
    %s1622 = sld [smem:[#allocation2 + $0x82]]
    %v1623 = vstv %s1622
    %v1624 = vmul.f32 %v1623, %v1605
    %v1625 = vmul.f32 %v1623, %v1609
    %v1626 = vadd.f32 %v1587, %v1624
    %v1627 = vadd.f32 %v1588, %v1625
    %s1628 = sld [smem:[#allocation2 + $0xaf]]
    %v1629 = vstv %s1628
    %v1630 = vmul.f32 %v1629, %v1605
    %v1631 = vmul.f32 %v1629, %v1609
    %v1632 = vadd.f32 %v1593, %v1630
    %v1633 = vadd.f32 %v1594, %v1631
    %s1634 = sld [smem:[#allocation2 + $0xdc]]
    %v1635 = vstv %s1634
    %v1636 = vmul.f32 %v1635, %v1605
    %v1637 = vmul.f32 %v1635, %v1609
    %v1638 = vadd.f32 %v1599, %v1636
    %v1639 = vadd.f32 %v1600, %v1637
    %1640 = vrot.lane.b32.xlu0 %v1450, 110
    %v1641 = vpop.permute.xlu0 %1640
    %1642 = vrot.lane.b32.xlu0 %v1451, 110
    %v1643 = vpop.permute.xlu0 %1642
    %v1644 = vsel %vm252, %v1641, %v1643
    %v1648 = vsel %vm252, %v1643, %v1641
    %s1649 = sld [smem:[#allocation2 + $0x29]]
    %v1650 = vstv %s1649
    %v1651 = vmul.f32 %v1650, %v1644
    %v1652 = vmul.f32 %v1650, %v1648
    %v1653 = vadd.f32 %v1614, %v1651
    %v1654 = vadd.f32 %v1615, %v1652
    %s1655 = sld [smem:[#allocation2 + $0x56]]
    %v1656 = vstv %s1655
    %v1657 = vmul.f32 %v1656, %v1644
    %v1658 = vmul.f32 %v1656, %v1648
    %v1659 = vadd.f32 %v1620, %v1657
    %v1660 = vadd.f32 %v1621, %v1658
    %s1661 = sld [smem:[#allocation2 + $0x83]]
    %v1662 = vstv %s1661
    %v1663 = vmul.f32 %v1662, %v1644
    %v1664 = vmul.f32 %v1662, %v1648
    %v1665 = vadd.f32 %v1626, %v1663
    %v1666 = vadd.f32 %v1627, %v1664
    %s1667 = sld [smem:[#allocation2 + $0xb0]]
    %v1668 = vstv %s1667
    %v1669 = vmul.f32 %v1668, %v1644
    %v1670 = vmul.f32 %v1668, %v1648
    %v1671 = vadd.f32 %v1632, %v1669
    %v1672 = vadd.f32 %v1633, %v1670
    %s1673 = sld [smem:[#allocation2 + $0xdd]]
    %v1674 = vstv %s1673
    %v1675 = vmul.f32 %v1674, %v1644
    %v1676 = vmul.f32 %v1674, %v1648
    %v1677 = vadd.f32 %v1638, %v1675
    %v1678 = vadd.f32 %v1639, %v1676
    %1679 = vrot.lane.b32.xlu0 %v1450, 96
    %v1680 = vpop.permute.xlu0 %1679
    %1681 = vrot.lane.b32.xlu0 %v1451, 96
    %v1682 = vpop.permute.xlu0 %1681
    %v1683 = vsel %vm292, %v1680, %v1682
    %v1687 = vsel %vm292, %v1682, %v1680
    %s1688 = sld [smem:[#allocation2 + $0x2a]]
    %v1689 = vstv %s1688
    %v1690 = vmul.f32 %v1689, %v1683
    %v1691 = vmul.f32 %v1689, %v1687
    %v1692 = vadd.f32 %v1653, %v1690
    %v1693 = vadd.f32 %v1654, %v1691
    %s1694 = sld [smem:[#allocation2 + $0x57]]
    %v1695 = vstv %s1694
    %v1696 = vmul.f32 %v1695, %v1683
    %v1697 = vmul.f32 %v1695, %v1687
    %v1698 = vadd.f32 %v1659, %v1696
    %v1699 = vadd.f32 %v1660, %v1697
    %s1700 = sld [smem:[#allocation2 + $0x84]]
    %v1701 = vstv %s1700
    %v1702 = vmul.f32 %v1701, %v1683
    %v1703 = vmul.f32 %v1701, %v1687
    %v1704 = vadd.f32 %v1665, %v1702
    %v1705 = vadd.f32 %v1666, %v1703
    %s1706 = sld [smem:[#allocation2 + $0xb1]]
    %v1707 = vstv %s1706
    %v1708 = vmul.f32 %v1707, %v1683
    %v1709 = vmul.f32 %v1707, %v1687
    %v1710 = vadd.f32 %v1671, %v1708
    %v1711 = vadd.f32 %v1672, %v1709
    %s1712 = sld [smem:[#allocation2 + $0xde]]
    %v1713 = vstv %s1712
    %v1714 = vmul.f32 %v1713, %v1683
    %v1715 = vmul.f32 %v1713, %v1687
    %v1716 = vadd.f32 %v1677, %v1714
    %v1717 = vadd.f32 %v1678, %v1715
    %1718 = vrot.lane.b32.xlu0 %v1450, 95
    %v1719 = vpop.permute.xlu0 %1718
    %1720 = vrot.lane.b32.xlu0 %v1451, 95
    %v1721 = vpop.permute.xlu0 %1720
    %v1722 = vsel %vm332, %v1719, %v1721
    %v1726 = vsel %vm332, %v1721, %v1719
    %s1727 = sld [smem:[#allocation2 + $0x2b]]
    %v1728 = vstv %s1727
    %v1729 = vmul.f32 %v1728, %v1722
    %v1730 = vmul.f32 %v1728, %v1726
    %v1731 = vadd.f32 %v1692, %v1729
    %v1732 = vadd.f32 %v1693, %v1730
    %s1733 = sld [smem:[#allocation2 + $0x58]]
    %v1734 = vstv %s1733
    %v1735 = vmul.f32 %v1734, %v1722
    %v1736 = vmul.f32 %v1734, %v1726
    %v1737 = vadd.f32 %v1698, %v1735
    %v1738 = vadd.f32 %v1699, %v1736
    %s1739 = sld [smem:[#allocation2 + $0x85]]
    %v1740 = vstv %s1739
    %v1741 = vmul.f32 %v1740, %v1722
    %v1742 = vmul.f32 %v1740, %v1726
    %v1743 = vadd.f32 %v1704, %v1741
    %v1744 = vadd.f32 %v1705, %v1742
    %s1745 = sld [smem:[#allocation2 + $0xb2]]
    %v1746 = vstv %s1745
    %v1747 = vmul.f32 %v1746, %v1722
    %v1748 = vmul.f32 %v1746, %v1726
    %v1749 = vadd.f32 %v1710, %v1747
    %v1750 = vadd.f32 %v1711, %v1748
    %s1751 = sld [smem:[#allocation2 + $0xdf]]
    %v1752 = vstv %s1751
    %v1753 = vmul.f32 %v1752, %v1722
    %v1754 = vmul.f32 %v1752, %v1726
    %v1755 = vadd.f32 %v1716, %v1753
    %v1756 = vadd.f32 %v1717, %v1754
    %1757 = vrot.lane.b32.xlu0 %v1450, 94
    %v1758 = vpop.permute.xlu0 %1757
    %1759 = vrot.lane.b32.xlu0 %v1451, 94
    %v1760 = vpop.permute.xlu0 %1759
    %v1761 = vsel %vm372, %v1758, %v1760
    %v1765 = vsel %vm372, %v1760, %v1758
    %s1766 = sld [smem:[#allocation2 + $0x2c]]
    %v1767 = vstv %s1766
    %v1768 = vmul.f32 %v1767, %v1761
    %v1769 = vmul.f32 %v1767, %v1765
    %v1770 = vadd.f32 %v1731, %v1768
    %v1771 = vadd.f32 %v1732, %v1769
    %s1772 = sld [smem:[#allocation2 + $0x59]]
    %v1773 = vstv %s1772
    %v1774 = vmul.f32 %v1773, %v1761
    %v1775 = vmul.f32 %v1773, %v1765
    %v1776 = vadd.f32 %v1737, %v1774
    %v1777 = vadd.f32 %v1738, %v1775
    %s1778 = sld [smem:[#allocation2 + $0x86]]
    %v1779 = vstv %s1778
    %v1780 = vmul.f32 %v1779, %v1761
    %v1781 = vmul.f32 %v1779, %v1765
    %v1782 = vadd.f32 %v1743, %v1780
    %v1783 = vadd.f32 %v1744, %v1781
    %s1784 = sld [smem:[#allocation2 + $0xb3]]
    %v1785 = vstv %s1784
    %v1786 = vmul.f32 %v1785, %v1761
    %v1787 = vmul.f32 %v1785, %v1765
    %v1788 = vadd.f32 %v1749, %v1786
    %v1789 = vadd.f32 %v1750, %v1787
    %s1790 = sld [smem:[#allocation2 + $0xe0]]
    %v1791 = vstv %s1790
    %v1792 = vmul.f32 %v1791, %v1761
    %v1793 = vmul.f32 %v1791, %v1765
    %v1794 = vadd.f32 %v1755, %v1792
    %v1795 = vadd.f32 %v1756, %v1793
    %s1796 = sld [smem:[#allocation2 + $0xe1]]
    %v1797 = vstv %s1796
    %v1798 = vadd.f32 %v1770, %v1797
    %v1799 = vadd.f32 %v1771, %v1797
    %v1800 = vmax.f32 %v1798, 0.0
    %v1801 = vmax.f32 %v1799, 0.0
    %1804 = vrot.lane.b32.xlu0 %v1800, 127
    %v1805 = vpop.permute.xlu0 %1804
    %1806 = vrot.lane.b32.xlu0 %v1801, 127
    %v1807 = vpop.permute.xlu0 %1806
    %v1808 = vsel %vm92, %v1805, %v1807
    %v1812 = vsel %vm92, %v1807, %v1805
    %v1813 = vmax.f32 %v1800, %v1808
    %v1814 = vmax.f32 %v1801, %v1812
    %1815 = vrot.lane.b32.xlu0 %v1800, 112
    %v1816 = vpop.permute.xlu0 %1815
    %1817 = vrot.lane.b32.xlu0 %v1801, 112
    %v1818 = vpop.permute.xlu0 %1817
    %v1819 = vsel %vm172, %v1816, %v1818
    %v1823 = vsel %vm172, %v1818, %v1816
    %1824 = vrot.lane.b32.xlu0 %v1800, 111
    %v1825 = vpop.permute.xlu0 %1824
    %1826 = vrot.lane.b32.xlu0 %v1801, 111
    %v1827 = vpop.permute.xlu0 %1826
    %v1828 = vsel %vm212, %v1825, %v1827
    %v1832 = vsel %vm212, %v1827, %v1825
    %v1833 = vmax.f32 %v1819, %v1828
    %v1834 = vmax.f32 %v1823, %v1832
    %v1835 = vmax.f32 %v1813, %v1833
    %v1836 = vmax.f32 %v1814, %v1834
    %v1838 = vlaneseq
    %v1839 = vshrl.u32 %v1838, 7
    %v1840 = vsub.s32 0, %v1839
    %v1841 = vrot.slane %v53, %v1840
    %v1842 = vlaneseq
    %v1843 = vshrl.u32 %v1842, 7
    %v1844 = vsub.s32 1, %v1843
    %v1845 = vrot.slane %v53, %v1844
    %v1848 = vmul.f32 %v1835, %v1841
    %v1849 = vmul.f32 %v1836, %v1845
    %s1850 = sld [smem:[#allocation2 + $0xe2]]
    %v1851 = vstv %s1850
    %v1852 = vadd.f32 %v1776, %v1851
    %v1853 = vadd.f32 %v1777, %v1851
    %v1854 = vmax.f32 %v1852, 0.0
    %v1855 = vmax.f32 %v1853, 0.0
    %1858 = vrot.lane.b32.xlu0 %v1854, 127
    %v1859 = vpop.permute.xlu0 %1858
    %1860 = vrot.lane.b32.xlu0 %v1855, 127
    %v1861 = vpop.permute.xlu0 %1860
    %v1862 = vsel %vm92, %v1859, %v1861
    %v1866 = vsel %vm92, %v1861, %v1859
    %v1867 = vmax.f32 %v1854, %v1862
    %v1868 = vmax.f32 %v1855, %v1866
    %1869 = vrot.lane.b32.xlu0 %v1854, 112
    %v1870 = vpop.permute.xlu0 %1869
    %1871 = vrot.lane.b32.xlu0 %v1855, 112
    %v1872 = vpop.permute.xlu0 %1871
    %v1873 = vsel %vm172, %v1870, %v1872
    %v1877 = vsel %vm172, %v1872, %v1870
    %1878 = vrot.lane.b32.xlu0 %v1854, 111
    %v1879 = vpop.permute.xlu0 %1878
    %1880 = vrot.lane.b32.xlu0 %v1855, 111
    %v1881 = vpop.permute.xlu0 %1880
    %v1882 = vsel %vm212, %v1879, %v1881
    %v1886 = vsel %vm212, %v1881, %v1879
    %v1887 = vmax.f32 %v1873, %v1882
    %v1888 = vmax.f32 %v1877, %v1886
    %v1889 = vmax.f32 %v1867, %v1887
    %v1890 = vmax.f32 %v1868, %v1888
    %v1891 = vmul.f32 %v1889, %v1841
    %v1892 = vmul.f32 %v1890, %v1845
    %s1893 = sld [smem:[#allocation2 + $0xe3]]
    %v1894 = vstv %s1893
    %v1895 = vadd.f32 %v1782, %v1894
    %v1896 = vadd.f32 %v1783, %v1894
    %v1897 = vmax.f32 %v1895, 0.0
    %v1898 = vmax.f32 %v1896, 0.0
    %1901 = vrot.lane.b32.xlu0 %v1897, 127
    %v1902 = vpop.permute.xlu0 %1901
    %1903 = vrot.lane.b32.xlu0 %v1898, 127
    %v1904 = vpop.permute.xlu0 %1903
    %v1905 = vsel %vm92, %v1902, %v1904
    %v1909 = vsel %vm92, %v1904, %v1902
    %v1910 = vmax.f32 %v1897, %v1905
    %v1911 = vmax.f32 %v1898, %v1909
    %1912 = vrot.lane.b32.xlu0 %v1897, 112
    %v1913 = vpop.permute.xlu0 %1912
    %1914 = vrot.lane.b32.xlu0 %v1898, 112
    %v1915 = vpop.permute.xlu0 %1914
    %v1916 = vsel %vm172, %v1913, %v1915
    %v1920 = vsel %vm172, %v1915, %v1913
    %1921 = vrot.lane.b32.xlu0 %v1897, 111
    %v1922 = vpop.permute.xlu0 %1921
    %1923 = vrot.lane.b32.xlu0 %v1898, 111
    %v1924 = vpop.permute.xlu0 %1923
    %v1925 = vsel %vm212, %v1922, %v1924
    %v1929 = vsel %vm212, %v1924, %v1922
    %v1930 = vmax.f32 %v1916, %v1925
    %v1931 = vmax.f32 %v1920, %v1929
    %v1932 = vmax.f32 %v1910, %v1930
    %v1933 = vmax.f32 %v1911, %v1931
    %v1934 = vmul.f32 %v1932, %v1841
    %v1935 = vmul.f32 %v1933, %v1845
    %s1936 = sld [smem:[#allocation2 + $0xe4]]
    %v1937 = vstv %s1936
    %v1938 = vadd.f32 %v1788, %v1937
    %v1939 = vadd.f32 %v1789, %v1937
    %v1940 = vmax.f32 %v1938, 0.0
    %v1941 = vmax.f32 %v1939, 0.0
    %1944 = vrot.lane.b32.xlu0 %v1940, 127
    %v1945 = vpop.permute.xlu0 %1944
    %1946 = vrot.lane.b32.xlu0 %v1941, 127
    %v1947 = vpop.permute.xlu0 %1946
    %v1948 = vsel %vm92, %v1945, %v1947
    %v1952 = vsel %vm92, %v1947, %v1945
    %v1953 = vmax.f32 %v1940, %v1948
    %v1954 = vmax.f32 %v1941, %v1952
    %1955 = vrot.lane.b32.xlu0 %v1940, 112
    %v1956 = vpop.permute.xlu0 %1955
    %1957 = vrot.lane.b32.xlu0 %v1941, 112
    %v1958 = vpop.permute.xlu0 %1957
    %v1959 = vsel %vm172, %v1956, %v1958
    %v1963 = vsel %vm172, %v1958, %v1956
    %1964 = vrot.lane.b32.xlu0 %v1940, 111
    %v1965 = vpop.permute.xlu0 %1964
    %1966 = vrot.lane.b32.xlu0 %v1941, 111
    %v1967 = vpop.permute.xlu0 %1966
    %v1968 = vsel %vm212, %v1965, %v1967
    %v1972 = vsel %vm212, %v1967, %v1965
    %v1973 = vmax.f32 %v1959, %v1968
    %v1974 = vmax.f32 %v1963, %v1972
    %v1975 = vmax.f32 %v1953, %v1973
    %v1976 = vmax.f32 %v1954, %v1974
    %v1977 = vmul.f32 %v1975, %v1841
    %v1978 = vmul.f32 %v1976, %v1845
    %s1979 = sld [smem:[#allocation2 + $0xe5]]
    %v1980 = vstv %s1979
    %v1981 = vadd.f32 %v1794, %v1980
    %v1982 = vadd.f32 %v1795, %v1980
    %v1983 = vmax.f32 %v1981, 0.0
    %v1984 = vmax.f32 %v1982, 0.0
    %1987 = vrot.lane.b32.xlu0 %v1983, 127
    %v1988 = vpop.permute.xlu0 %1987
    %1989 = vrot.lane.b32.xlu0 %v1984, 127
    %v1990 = vpop.permute.xlu0 %1989
    %v1991 = vsel %vm92, %v1988, %v1990
    %v1995 = vsel %vm92, %v1990, %v1988
    %v1996 = vmax.f32 %v1983, %v1991
    %v1997 = vmax.f32 %v1984, %v1995
    %1998 = vrot.lane.b32.xlu0 %v1983, 112
    %v1999 = vpop.permute.xlu0 %1998
    %2000 = vrot.lane.b32.xlu0 %v1984, 112
    %v2001 = vpop.permute.xlu0 %2000
    %v2002 = vsel %vm172, %v1999, %v2001
    %v2006 = vsel %vm172, %v2001, %v1999
    %2007 = vrot.lane.b32.xlu0 %v1983, 111
    %v2008 = vpop.permute.xlu0 %2007
    %2009 = vrot.lane.b32.xlu0 %v1984, 111
    %v2010 = vpop.permute.xlu0 %2009
    %v2011 = vsel %vm212, %v2008, %v2010
    %v2015 = vsel %vm212, %v2010, %v2008
    %v2016 = vmax.f32 %v2002, %v2011
    %v2017 = vmax.f32 %v2006, %v2015
    %v2018 = vmax.f32 %v1996, %v2016
    %v2019 = vmax.f32 %v1997, %v2017
    %v2020 = vmul.f32 %v2018, %v1841
    %v2021 = vmul.f32 %v2019, %v1845
    %2023 = vrot.lane.b32.xlu0 %v1849, 34
    %v2024 = vpop.permute.xlu0 %2023
    %2027 = vrot.lane.b32.xlu0 %v1848, 34
    %v2028 = vpop.permute.xlu0 %2027
    %vm2029 = vcmask 277504
    %v2030 = vsel %vm2029, %v2028, %v2024
    %v2033 = vsel %vm2029, %v2024, %v2028
    %s2034 = sld [smem:[#allocation2 + $0xe6]]
    %v2035 = vstv %s2034
    %v2036 = vmul.f32 %v2035, %v2033
    %v2037 = vmul.f32 %v2035, %v2030
    %v2038 = vadd.f32 %v2036, 0.0
    %v2039 = vadd.f32 %v2037, 0.0
    %s2040 = sld [smem:[#allocation2 + $0x113]]
    %v2041 = vstv %s2040
    %v2042 = vmul.f32 %v2041, %v2033
    %v2043 = vmul.f32 %v2041, %v2030
    %v2044 = vadd.f32 %v2042, 0.0
    %v2045 = vadd.f32 %v2043, 0.0
    %s2046 = sld [smem:[#allocation2 + $0x140]]
    %v2047 = vstv %s2046
    %v2048 = vmul.f32 %v2047, %v2033
    %v2049 = vmul.f32 %v2047, %v2030
    %v2050 = vadd.f32 %v2048, 0.0
    %v2051 = vadd.f32 %v2049, 0.0
    %s2052 = sld [smem:[#allocation2 + $0x16d]]
    %v2053 = vstv %s2052
    %v2054 = vmul.f32 %v2053, %v2033
    %v2055 = vmul.f32 %v2053, %v2030
    %v2056 = vadd.f32 %v2054, 0.0
    %v2057 = vadd.f32 %v2055, 0.0
    %s2058 = sld [smem:[#allocation2 + $0x19a]]
    %v2059 = vstv %s2058
    %v2060 = vmul.f32 %v2059, %v2033
    %v2061 = vmul.f32 %v2059, %v2030
    %v2062 = vadd.f32 %v2060, 0.0
    %v2063 = vadd.f32 %v2061, 0.0
    %2064 = vrot.lane.b32.xlu0 %v1849, 32
    %v2065 = vpop.permute.xlu0 %2064
    %2067 = vrot.lane.b32.xlu0 %v1848, 32
    %v2068 = vpop.permute.xlu0 %2067
    %vm2069 = vcmask 261120
    %v2070 = vsel %vm2069, %v2068, %v2065
    %v2073 = vsel %vm2069, %v2065, %v2068
    %s2074 = sld [smem:[#allocation2 + $0xe7]]
    %v2075 = vstv %s2074
    %v2076 = vmul.f32 %v2075, %v2073
    %v2077 = vmul.f32 %v2075, %v2070
    %v2078 = vadd.f32 %v2038, %v2076
    %v2079 = vadd.f32 %v2039, %v2077
    %s2080 = sld [smem:[#allocation2 + $0x114]]
    %v2081 = vstv %s2080
    %v2082 = vmul.f32 %v2081, %v2073
    %v2083 = vmul.f32 %v2081, %v2070
    %v2084 = vadd.f32 %v2044, %v2082
    %v2085 = vadd.f32 %v2045, %v2083
    %s2086 = sld [smem:[#allocation2 + $0x141]]
    %v2087 = vstv %s2086
    %v2088 = vmul.f32 %v2087, %v2073
    %v2089 = vmul.f32 %v2087, %v2070
    %v2090 = vadd.f32 %v2050, %v2088
    %v2091 = vadd.f32 %v2051, %v2089
    %s2092 = sld [smem:[#allocation2 + $0x16e]]
    %v2093 = vstv %s2092
    %v2094 = vmul.f32 %v2093, %v2073
    %v2095 = vmul.f32 %v2093, %v2070
    %v2096 = vadd.f32 %v2056, %v2094
    %v2097 = vadd.f32 %v2057, %v2095
    %s2098 = sld [smem:[#allocation2 + $0x19b]]
    %v2099 = vstv %s2098
    %v2100 = vmul.f32 %v2099, %v2073
    %v2101 = vmul.f32 %v2099, %v2070
    %v2102 = vadd.f32 %v2062, %v2100
    %v2103 = vadd.f32 %v2063, %v2101
    %2104 = vrot.lane.b32.xlu0 %v1849, 30
    %v2105 = vpop.permute.xlu0 %2104
    %2107 = vrot.lane.b32.xlu0 %v1848, 30
    %v2108 = vpop.permute.xlu0 %2107
    %vm2109 = vcmask 244736
    %v2110 = vsel %vm2109, %v2108, %v2105
    %v2113 = vsel %vm2109, %v2105, %v2108
    %s2114 = sld [smem:[#allocation2 + $0xe8]]
    %v2115 = vstv %s2114
    %v2116 = vmul.f32 %v2115, %v2113
    %v2117 = vmul.f32 %v2115, %v2110
    %v2118 = vadd.f32 %v2078, %v2116
    %v2119 = vadd.f32 %v2079, %v2117
    %s2120 = sld [smem:[#allocation2 + $0x115]]
    %v2121 = vstv %s2120
    %v2122 = vmul.f32 %v2121, %v2113
    %v2123 = vmul.f32 %v2121, %v2110
    %v2124 = vadd.f32 %v2084, %v2122
    %v2125 = vadd.f32 %v2085, %v2123
    %s2126 = sld [smem:[#allocation2 + $0x142]]
    %v2127 = vstv %s2126
    %v2128 = vmul.f32 %v2127, %v2113
    %v2129 = vmul.f32 %v2127, %v2110
    %v2130 = vadd.f32 %v2090, %v2128
    %v2131 = vadd.f32 %v2091, %v2129
    %s2132 = sld [smem:[#allocation2 + $0x16f]]
    %v2133 = vstv %s2132
    %v2134 = vmul.f32 %v2133, %v2113
    %v2135 = vmul.f32 %v2133, %v2110
    %v2136 = vadd.f32 %v2096, %v2134
    %v2137 = vadd.f32 %v2097, %v2135
    %s2138 = sld [smem:[#allocation2 + $0x19c]]
    %v2139 = vstv %s2138
    %v2140 = vmul.f32 %v2139, %v2113
    %v2141 = vmul.f32 %v2139, %v2110
    %v2142 = vadd.f32 %v2102, %v2140
    %v2143 = vadd.f32 %v2103, %v2141
    %2144 = vrot.lane.b32.xlu0 %v1849, 2
    %v2145 = vpop.permute.xlu0 %2144
    %2147 = vrot.lane.b32.xlu0 %v1848, 2
    %v2148 = vpop.permute.xlu0 %2147
    %vm2149 = vcmask 15360
    %v2150 = vsel %vm2149, %v2148, %v2145
    %v2153 = vsel %vm2149, %v2145, %v2148
    %s2154 = sld [smem:[#allocation2 + $0xe9]]
    %v2155 = vstv %s2154
    %v2156 = vmul.f32 %v2155, %v2153
    %v2157 = vmul.f32 %v2155, %v2150
    %v2158 = vadd.f32 %v2118, %v2156
    %v2159 = vadd.f32 %v2119, %v2157
    %s2160 = sld [smem:[#allocation2 + $0x116]]
    %v2161 = vstv %s2160
    %v2162 = vmul.f32 %v2161, %v2153
    %v2163 = vmul.f32 %v2161, %v2150
    %v2164 = vadd.f32 %v2124, %v2162
    %v2165 = vadd.f32 %v2125, %v2163
    %s2166 = sld [smem:[#allocation2 + $0x143]]
    %v2167 = vstv %s2166
    %v2168 = vmul.f32 %v2167, %v2153
    %v2169 = vmul.f32 %v2167, %v2150
    %v2170 = vadd.f32 %v2130, %v2168
    %v2171 = vadd.f32 %v2131, %v2169
    %s2172 = sld [smem:[#allocation2 + $0x170]]
    %v2173 = vstv %s2172
    %v2174 = vmul.f32 %v2173, %v2153
    %v2175 = vmul.f32 %v2173, %v2150
    %v2176 = vadd.f32 %v2136, %v2174
    %v2177 = vadd.f32 %v2137, %v2175
    %s2178 = sld [smem:[#allocation2 + $0x19d]]
    %v2179 = vstv %s2178
    %v2180 = vmul.f32 %v2179, %v2153
    %v2181 = vmul.f32 %v2179, %v2150
    %v2182 = vadd.f32 %v2142, %v2180
    %v2183 = vadd.f32 %v2143, %v2181
    %s2184 = sld [smem:[#allocation2 + $0xea]]
    %v2185 = vstv %s2184
    %v2186 = vmul.f32 %v2185, %v1848
    %v2187 = vmul.f32 %v2185, %v1849
    %v2188 = vadd.f32 %v2158, %v2186
    %v2189 = vadd.f32 %v2159, %v2187
    %s2190 = sld [smem:[#allocation2 + $0x117]]
    %v2191 = vstv %s2190
    %v2192 = vmul.f32 %v2191, %v1848
    %v2193 = vmul.f32 %v2191, %v1849
    %v2194 = vadd.f32 %v2164, %v2192
    %v2195 = vadd.f32 %v2165, %v2193
    %s2196 = sld [smem:[#allocation2 + $0x144]]
    %v2197 = vstv %s2196
    %v2198 = vmul.f32 %v2197, %v1848
    %v2199 = vmul.f32 %v2197, %v1849
    %v2200 = vadd.f32 %v2170, %v2198
    %v2201 = vadd.f32 %v2171, %v2199
    %s2202 = sld [smem:[#allocation2 + $0x171]]
    %v2203 = vstv %s2202
    %v2204 = vmul.f32 %v2203, %v1848
    %v2205 = vmul.f32 %v2203, %v1849
    %v2206 = vadd.f32 %v2176, %v2204
    %v2207 = vadd.f32 %v2177, %v2205
    %s2208 = sld [smem:[#allocation2 + $0x19e]]
    %v2209 = vstv %s2208
    %v2210 = vmul.f32 %v2209, %v1848
    %v2211 = vmul.f32 %v2209, %v1849
    %v2212 = vadd.f32 %v2182, %v2210
    %v2213 = vadd.f32 %v2183, %v2211
    %2214 = vrot.lane.b32.xlu0 %v1848, 126
    %v2215 = vpop.permute.xlu0 %2214
    %2216 = vrot.lane.b32.xlu0 %v1849, 126
    %v2217 = vpop.permute.xlu0 %2216
    %v2218 = vsel %vm132, %v2215, %v2217
    %v2222 = vsel %vm132, %v2217, %v2215
    %s2223 = sld [smem:[#allocation2 + $0xeb]]
    %v2224 = vstv %s2223
    %v2225 = vmul.f32 %v2224, %v2218
    %v2226 = vmul.f32 %v2224, %v2222
    %v2227 = vadd.f32 %v2188, %v2225
    %v2228 = vadd.f32 %v2189, %v2226
    %s2229 = sld [smem:[#allocation2 + $0x118]]
    %v2230 = vstv %s2229
    %v2231 = vmul.f32 %v2230, %v2218
    %v2232 = vmul.f32 %v2230, %v2222
    %v2233 = vadd.f32 %v2194, %v2231
    %v2234 = vadd.f32 %v2195, %v2232
    %s2235 = sld [smem:[#allocation2 + $0x145]]
    %v2236 = vstv %s2235
    %v2237 = vmul.f32 %v2236, %v2218
    %v2238 = vmul.f32 %v2236, %v2222
    %v2239 = vadd.f32 %v2200, %v2237
    %v2240 = vadd.f32 %v2201, %v2238
    %s2241 = sld [smem:[#allocation2 + $0x172]]
    %v2242 = vstv %s2241
    %v2243 = vmul.f32 %v2242, %v2218
    %v2244 = vmul.f32 %v2242, %v2222
    %v2245 = vadd.f32 %v2206, %v2243
    %v2246 = vadd.f32 %v2207, %v2244
    %s2247 = sld [smem:[#allocation2 + $0x19f]]
    %v2248 = vstv %s2247
    %v2249 = vmul.f32 %v2248, %v2218
    %v2250 = vmul.f32 %v2248, %v2222
    %v2251 = vadd.f32 %v2212, %v2249
    %v2252 = vadd.f32 %v2213, %v2250
    %2253 = vrot.lane.b32.xlu0 %v1848, 98
    %v2254 = vpop.permute.xlu0 %2253
    %2255 = vrot.lane.b32.xlu0 %v1849, 98
    %v2256 = vpop.permute.xlu0 %2255
    %vm2257 = vcmask 801792
    %v2258 = vsel %vm2257, %v2254, %v2256
    %v2262 = vsel %vm2257, %v2256, %v2254
    %s2263 = sld [smem:[#allocation2 + $0xec]]
    %v2264 = vstv %s2263
    %v2265 = vmul.f32 %v2264, %v2258
    %v2266 = vmul.f32 %v2264, %v2262
    %v2267 = vadd.f32 %v2227, %v2265
    %v2268 = vadd.f32 %v2228, %v2266
    %s2269 = sld [smem:[#allocation2 + $0x119]]
    %v2270 = vstv %s2269
    %v2271 = vmul.f32 %v2270, %v2258
    %v2272 = vmul.f32 %v2270, %v2262
    %v2273 = vadd.f32 %v2233, %v2271
    %v2274 = vadd.f32 %v2234, %v2272
    %s2275 = sld [smem:[#allocation2 + $0x146]]
    %v2276 = vstv %s2275
    %v2277 = vmul.f32 %v2276, %v2258
    %v2278 = vmul.f32 %v2276, %v2262
    %v2279 = vadd.f32 %v2239, %v2277
    %v2280 = vadd.f32 %v2240, %v2278
    %s2281 = sld [smem:[#allocation2 + $0x173]]
    %v2282 = vstv %s2281
    %v2283 = vmul.f32 %v2282, %v2258
    %v2284 = vmul.f32 %v2282, %v2262
    %v2285 = vadd.f32 %v2245, %v2283
    %v2286 = vadd.f32 %v2246, %v2284
    %s2287 = sld [smem:[#allocation2 + $0x1a0]]
    %v2288 = vstv %s2287
    %v2289 = vmul.f32 %v2288, %v2258
    %v2290 = vmul.f32 %v2288, %v2262
    %v2291 = vadd.f32 %v2251, %v2289
    %v2292 = vadd.f32 %v2252, %v2290
    %2293 = vrot.lane.b32.xlu0 %v1848, 96
    %v2294 = vpop.permute.xlu0 %2293
    %2295 = vrot.lane.b32.xlu0 %v1849, 96
    %v2296 = vpop.permute.xlu0 %2295
    %v2297 = vsel %vm292, %v2294, %v2296
    %v2301 = vsel %vm292, %v2296, %v2294
    %s2302 = sld [smem:[#allocation2 + $0xed]]
    %v2303 = vstv %s2302
    %v2304 = vmul.f32 %v2303, %v2297
    %v2305 = vmul.f32 %v2303, %v2301
    %v2306 = vadd.f32 %v2267, %v2304
    %v2307 = vadd.f32 %v2268, %v2305
    %s2308 = sld [smem:[#allocation2 + $0x11a]]
    %v2309 = vstv %s2308
    %v2310 = vmul.f32 %v2309, %v2297
    %v2311 = vmul.f32 %v2309, %v2301
    %v2312 = vadd.f32 %v2273, %v2310
    %v2313 = vadd.f32 %v2274, %v2311
    %s2314 = sld [smem:[#allocation2 + $0x147]]
    %v2315 = vstv %s2314
    %v2316 = vmul.f32 %v2315, %v2297
    %v2317 = vmul.f32 %v2315, %v2301
    %v2318 = vadd.f32 %v2279, %v2316
    %v2319 = vadd.f32 %v2280, %v2317
    %s2320 = sld [smem:[#allocation2 + $0x174]]
    %v2321 = vstv %s2320
    %v2322 = vmul.f32 %v2321, %v2297
    %v2323 = vmul.f32 %v2321, %v2301
    %v2324 = vadd.f32 %v2285, %v2322
    %v2325 = vadd.f32 %v2286, %v2323
    %s2326 = sld [smem:[#allocation2 + $0x1a1]]
    %v2327 = vstv %s2326
    %v2328 = vmul.f32 %v2327, %v2297
    %v2329 = vmul.f32 %v2327, %v2301
    %v2330 = vadd.f32 %v2291, %v2328
    %v2331 = vadd.f32 %v2292, %v2329
    %2332 = vrot.lane.b32.xlu0 %v1848, 94
    %v2333 = vpop.permute.xlu0 %2332
    %2334 = vrot.lane.b32.xlu0 %v1849, 94
    %v2335 = vpop.permute.xlu0 %2334
    %v2336 = vsel %vm372, %v2333, %v2335
    %v2340 = vsel %vm372, %v2335, %v2333
    %s2341 = sld [smem:[#allocation2 + $0xee]]
    %v2342 = vstv %s2341
    %v2343 = vmul.f32 %v2342, %v2336
    %v2344 = vmul.f32 %v2342, %v2340
    %v2345 = vadd.f32 %v2306, %v2343
    %v2346 = vadd.f32 %v2307, %v2344
    %s2347 = sld [smem:[#allocation2 + $0x11b]]
    %v2348 = vstv %s2347
    %v2349 = vmul.f32 %v2348, %v2336
    %v2350 = vmul.f32 %v2348, %v2340
    %v2351 = vadd.f32 %v2312, %v2349
    %v2352 = vadd.f32 %v2313, %v2350
    %s2353 = sld [smem:[#allocation2 + $0x148]]
    %v2354 = vstv %s2353
    %v2355 = vmul.f32 %v2354, %v2336
    %v2356 = vmul.f32 %v2354, %v2340
    %v2357 = vadd.f32 %v2318, %v2355
    %v2358 = vadd.f32 %v2319, %v2356
    %s2359 = sld [smem:[#allocation2 + $0x175]]
    %v2360 = vstv %s2359
    %v2361 = vmul.f32 %v2360, %v2336
    %v2362 = vmul.f32 %v2360, %v2340
    %v2363 = vadd.f32 %v2324, %v2361
    %v2364 = vadd.f32 %v2325, %v2362
    %s2365 = sld [smem:[#allocation2 + $0x1a2]]
    %v2366 = vstv %s2365
    %v2367 = vmul.f32 %v2366, %v2336
    %v2368 = vmul.f32 %v2366, %v2340
    %v2369 = vadd.f32 %v2330, %v2367
    %v2370 = vadd.f32 %v2331, %v2368
    %2372 = vrot.lane.b32.xlu0 %v1892, 34
    %v2373 = vpop.permute.xlu0 %2372
    %2376 = vrot.lane.b32.xlu0 %v1891, 34
    %v2377 = vpop.permute.xlu0 %2376
    %v2378 = vsel %vm2029, %v2377, %v2373
    %v2381 = vsel %vm2029, %v2373, %v2377
    %s2382 = sld [smem:[#allocation2 + $0xef]]
    %v2383 = vstv %s2382
    %v2384 = vmul.f32 %v2383, %v2381
    %v2385 = vmul.f32 %v2383, %v2378
    %v2386 = vadd.f32 %v2345, %v2384
    %v2387 = vadd.f32 %v2346, %v2385
    %s2388 = sld [smem:[#allocation2 + $0x11c]]
    %v2389 = vstv %s2388
    %v2390 = vmul.f32 %v2389, %v2381
    %v2391 = vmul.f32 %v2389, %v2378
    %v2392 = vadd.f32 %v2351, %v2390
    %v2393 = vadd.f32 %v2352, %v2391
    %s2394 = sld [smem:[#allocation2 + $0x149]]
    %v2395 = vstv %s2394
    %v2396 = vmul.f32 %v2395, %v2381
    %v2397 = vmul.f32 %v2395, %v2378
    %v2398 = vadd.f32 %v2357, %v2396
    %v2399 = vadd.f32 %v2358, %v2397
    %s2400 = sld [smem:[#allocation2 + $0x176]]
    %v2401 = vstv %s2400
    %v2402 = vmul.f32 %v2401, %v2381
    %v2403 = vmul.f32 %v2401, %v2378
    %v2404 = vadd.f32 %v2363, %v2402
    %v2405 = vadd.f32 %v2364, %v2403
    %s2406 = sld [smem:[#allocation2 + $0x1a3]]
    %v2407 = vstv %s2406
    %v2408 = vmul.f32 %v2407, %v2381
    %v2409 = vmul.f32 %v2407, %v2378
    %v2410 = vadd.f32 %v2369, %v2408
    %v2411 = vadd.f32 %v2370, %v2409
    %2412 = vrot.lane.b32.xlu0 %v1892, 32
    %v2413 = vpop.permute.xlu0 %2412
    %2415 = vrot.lane.b32.xlu0 %v1891, 32
    %v2416 = vpop.permute.xlu0 %2415
    %v2417 = vsel %vm2069, %v2416, %v2413
    %v2420 = vsel %vm2069, %v2413, %v2416
    %s2421 = sld [smem:[#allocation2 + $0xf0]]
    %v2422 = vstv %s2421
    %v2423 = vmul.f32 %v2422, %v2420
    %v2424 = vmul.f32 %v2422, %v2417
    %v2425 = vadd.f32 %v2386, %v2423
    %v2426 = vadd.f32 %v2387, %v2424
    %s2427 = sld [smem:[#allocation2 + $0x11d]]
    %v2428 = vstv %s2427
    %v2429 = vmul.f32 %v2428, %v2420
    %v2430 = vmul.f32 %v2428, %v2417
    %v2431 = vadd.f32 %v2392, %v2429
    %v2432 = vadd.f32 %v2393, %v2430
    %s2433 = sld [smem:[#allocation2 + $0x14a]]
    %v2434 = vstv %s2433
    %v2435 = vmul.f32 %v2434, %v2420
    %v2436 = vmul.f32 %v2434, %v2417
    %v2437 = vadd.f32 %v2398, %v2435
    %v2438 = vadd.f32 %v2399, %v2436
    %s2439 = sld [smem:[#allocation2 + $0x177]]
    %v2440 = vstv %s2439
    %v2441 = vmul.f32 %v2440, %v2420
    %v2442 = vmul.f32 %v2440, %v2417
    %v2443 = vadd.f32 %v2404, %v2441
    %v2444 = vadd.f32 %v2405, %v2442
    %s2445 = sld [smem:[#allocation2 + $0x1a4]]
    %v2446 = vstv %s2445
    %v2447 = vmul.f32 %v2446, %v2420
    %v2448 = vmul.f32 %v2446, %v2417
    %v2449 = vadd.f32 %v2410, %v2447
    %v2450 = vadd.f32 %v2411, %v2448
    %2451 = vrot.lane.b32.xlu0 %v1892, 30
    %v2452 = vpop.permute.xlu0 %2451
    %2454 = vrot.lane.b32.xlu0 %v1891, 30
    %v2455 = vpop.permute.xlu0 %2454
    %v2456 = vsel %vm2109, %v2455, %v2452
    %v2459 = vsel %vm2109, %v2452, %v2455
    %s2460 = sld [smem:[#allocation2 + $0xf1]]
    %v2461 = vstv %s2460
    %v2462 = vmul.f32 %v2461, %v2459
    %v2463 = vmul.f32 %v2461, %v2456
    %v2464 = vadd.f32 %v2425, %v2462
    %v2465 = vadd.f32 %v2426, %v2463
    %s2466 = sld [smem:[#allocation2 + $0x11e]]
    %v2467 = vstv %s2466
    %v2468 = vmul.f32 %v2467, %v2459
    %v2469 = vmul.f32 %v2467, %v2456
    %v2470 = vadd.f32 %v2431, %v2468
    %v2471 = vadd.f32 %v2432, %v2469
    %s2472 = sld [smem:[#allocation2 + $0x14b]]
    %v2473 = vstv %s2472
    %v2474 = vmul.f32 %v2473, %v2459
    %v2475 = vmul.f32 %v2473, %v2456
    %v2476 = vadd.f32 %v2437, %v2474
    %v2477 = vadd.f32 %v2438, %v2475
    %s2478 = sld [smem:[#allocation2 + $0x178]]
    %v2479 = vstv %s2478
    %v2480 = vmul.f32 %v2479, %v2459
    %v2481 = vmul.f32 %v2479, %v2456
    %v2482 = vadd.f32 %v2443, %v2480
    %v2483 = vadd.f32 %v2444, %v2481
    %s2484 = sld [smem:[#allocation2 + $0x1a5]]
    %v2485 = vstv %s2484
    %v2486 = vmul.f32 %v2485, %v2459
    %v2487 = vmul.f32 %v2485, %v2456
    %v2488 = vadd.f32 %v2449, %v2486
    %v2489 = vadd.f32 %v2450, %v2487
    %2490 = vrot.lane.b32.xlu0 %v1892, 2
    %v2491 = vpop.permute.xlu0 %2490
    %2493 = vrot.lane.b32.xlu0 %v1891, 2
    %v2494 = vpop.permute.xlu0 %2493
    %v2495 = vsel %vm2149, %v2494, %v2491
    %v2498 = vsel %vm2149, %v2491, %v2494
    %s2499 = sld [smem:[#allocation2 + $0xf2]]
    %v2500 = vstv %s2499
    %v2501 = vmul.f32 %v2500, %v2498
    %v2502 = vmul.f32 %v2500, %v2495
    %v2503 = vadd.f32 %v2464, %v2501
    %v2504 = vadd.f32 %v2465, %v2502
    %s2505 = sld [smem:[#allocation2 + $0x11f]]
    %v2506 = vstv %s2505
    %v2507 = vmul.f32 %v2506, %v2498
    %v2508 = vmul.f32 %v2506, %v2495
    %v2509 = vadd.f32 %v2470, %v2507
    %v2510 = vadd.f32 %v2471, %v2508
    %s2511 = sld [smem:[#allocation2 + $0x14c]]
    %v2512 = vstv %s2511
    %v2513 = vmul.f32 %v2512, %v2498
    %v2514 = vmul.f32 %v2512, %v2495
    %v2515 = vadd.f32 %v2476, %v2513
    %v2516 = vadd.f32 %v2477, %v2514
    %s2517 = sld [smem:[#allocation2 + $0x179]]
    %v2518 = vstv %s2517
    %v2519 = vmul.f32 %v2518, %v2498
    %v2520 = vmul.f32 %v2518, %v2495
    %v2521 = vadd.f32 %v2482, %v2519
    %v2522 = vadd.f32 %v2483, %v2520
    %s2523 = sld [smem:[#allocation2 + $0x1a6]]
    %v2524 = vstv %s2523
    %v2525 = vmul.f32 %v2524, %v2498
    %v2526 = vmul.f32 %v2524, %v2495
    %v2527 = vadd.f32 %v2488, %v2525
    %v2528 = vadd.f32 %v2489, %v2526
    %s2529 = sld [smem:[#allocation2 + $0xf3]]
    %v2530 = vstv %s2529
    %v2531 = vmul.f32 %v2530, %v1891
    %v2532 = vmul.f32 %v2530, %v1892
    %v2533 = vadd.f32 %v2503, %v2531
    %v2534 = vadd.f32 %v2504, %v2532
    %s2535 = sld [smem:[#allocation2 + $0x120]]
    %v2536 = vstv %s2535
    %v2537 = vmul.f32 %v2536, %v1891
    %v2538 = vmul.f32 %v2536, %v1892
    %v2539 = vadd.f32 %v2509, %v2537
    %v2540 = vadd.f32 %v2510, %v2538
    %s2541 = sld [smem:[#allocation2 + $0x14d]]
    %v2542 = vstv %s2541
    %v2543 = vmul.f32 %v2542, %v1891
    %v2544 = vmul.f32 %v2542, %v1892
    %v2545 = vadd.f32 %v2515, %v2543
    %v2546 = vadd.f32 %v2516, %v2544
    %s2547 = sld [smem:[#allocation2 + $0x17a]]
    %v2548 = vstv %s2547
    %v2549 = vmul.f32 %v2548, %v1891
    %v2550 = vmul.f32 %v2548, %v1892
    %v2551 = vadd.f32 %v2521, %v2549
    %v2552 = vadd.f32 %v2522, %v2550
    %s2553 = sld [smem:[#allocation2 + $0x1a7]]
    %v2554 = vstv %s2553
    %v2555 = vmul.f32 %v2554, %v1891
    %v2556 = vmul.f32 %v2554, %v1892
    %v2557 = vadd.f32 %v2527, %v2555
    %v2558 = vadd.f32 %v2528, %v2556
    %2559 = vrot.lane.b32.xlu0 %v1891, 126
    %v2560 = vpop.permute.xlu0 %2559
    %2561 = vrot.lane.b32.xlu0 %v1892, 126
    %v2562 = vpop.permute.xlu0 %2561
    %v2563 = vsel %vm132, %v2560, %v2562
    %v2567 = vsel %vm132, %v2562, %v2560
    %s2568 = sld [smem:[#allocation2 + $0xf4]]
    %v2569 = vstv %s2568
    %v2570 = vmul.f32 %v2569, %v2563
    %v2571 = vmul.f32 %v2569, %v2567
    %v2572 = vadd.f32 %v2533, %v2570
    %v2573 = vadd.f32 %v2534, %v2571
    %s2574 = sld [smem:[#allocation2 + $0x121]]
    %v2575 = vstv %s2574
    %v2576 = vmul.f32 %v2575, %v2563
    %v2577 = vmul.f32 %v2575, %v2567
    %v2578 = vadd.f32 %v2539, %v2576
    %v2579 = vadd.f32 %v2540, %v2577
    %s2580 = sld [smem:[#allocation2 + $0x14e]]
    %v2581 = vstv %s2580
    %v2582 = vmul.f32 %v2581, %v2563
    %v2583 = vmul.f32 %v2581, %v2567
    %v2584 = vadd.f32 %v2545, %v2582
    %v2585 = vadd.f32 %v2546, %v2583
    %s2586 = sld [smem:[#allocation2 + $0x17b]]
    %v2587 = vstv %s2586
    %v2588 = vmul.f32 %v2587, %v2563
    %v2589 = vmul.f32 %v2587, %v2567
    %v2590 = vadd.f32 %v2551, %v2588
    %v2591 = vadd.f32 %v2552, %v2589
    %s2592 = sld [smem:[#allocation2 + $0x1a8]]
    %v2593 = vstv %s2592
    %v2594 = vmul.f32 %v2593, %v2563
    %v2595 = vmul.f32 %v2593, %v2567
    %v2596 = vadd.f32 %v2557, %v2594
    %v2597 = vadd.f32 %v2558, %v2595
    %2598 = vrot.lane.b32.xlu0 %v1891, 98
    %v2599 = vpop.permute.xlu0 %2598
    %2600 = vrot.lane.b32.xlu0 %v1892, 98
    %v2601 = vpop.permute.xlu0 %2600
    %v2602 = vsel %vm2257, %v2599, %v2601
    %v2606 = vsel %vm2257, %v2601, %v2599
    %s2607 = sld [smem:[#allocation2 + $0xf5]]
    %v2608 = vstv %s2607
    %v2609 = vmul.f32 %v2608, %v2602
    %v2610 = vmul.f32 %v2608, %v2606
    %v2611 = vadd.f32 %v2572, %v2609
    %v2612 = vadd.f32 %v2573, %v2610
    %s2613 = sld [smem:[#allocation2 + $0x122]]
    %v2614 = vstv %s2613
    %v2615 = vmul.f32 %v2614, %v2602
    %v2616 = vmul.f32 %v2614, %v2606
    %v2617 = vadd.f32 %v2578, %v2615
    %v2618 = vadd.f32 %v2579, %v2616
    %s2619 = sld [smem:[#allocation2 + $0x14f]]
    %v2620 = vstv %s2619
    %v2621 = vmul.f32 %v2620, %v2602
    %v2622 = vmul.f32 %v2620, %v2606
    %v2623 = vadd.f32 %v2584, %v2621
    %v2624 = vadd.f32 %v2585, %v2622
    %s2625 = sld [smem:[#allocation2 + $0x17c]]
    %v2626 = vstv %s2625
    %v2627 = vmul.f32 %v2626, %v2602
    %v2628 = vmul.f32 %v2626, %v2606
    %v2629 = vadd.f32 %v2590, %v2627
    %v2630 = vadd.f32 %v2591, %v2628
    %s2631 = sld [smem:[#allocation2 + $0x1a9]]
    %v2632 = vstv %s2631
    %v2633 = vmul.f32 %v2632, %v2602
    %v2634 = vmul.f32 %v2632, %v2606
    %v2635 = vadd.f32 %v2596, %v2633
    %v2636 = vadd.f32 %v2597, %v2634
    %2637 = vrot.lane.b32.xlu0 %v1891, 96
    %v2638 = vpop.permute.xlu0 %2637
    %2639 = vrot.lane.b32.xlu0 %v1892, 96
    %v2640 = vpop.permute.xlu0 %2639
    %v2641 = vsel %vm292, %v2638, %v2640
    %v2645 = vsel %vm292, %v2640, %v2638
    %s2646 = sld [smem:[#allocation2 + $0xf6]]
    %v2647 = vstv %s2646
    %v2648 = vmul.f32 %v2647, %v2641
    %v2649 = vmul.f32 %v2647, %v2645
    %v2650 = vadd.f32 %v2611, %v2648
    %v2651 = vadd.f32 %v2612, %v2649
    %s2652 = sld [smem:[#allocation2 + $0x123]]
    %v2653 = vstv %s2652
    %v2654 = vmul.f32 %v2653, %v2641
    %v2655 = vmul.f32 %v2653, %v2645
    %v2656 = vadd.f32 %v2617, %v2654
    %v2657 = vadd.f32 %v2618, %v2655
    %s2658 = sld [smem:[#allocation2 + $0x150]]
    %v2659 = vstv %s2658
    %v2660 = vmul.f32 %v2659, %v2641
    %v2661 = vmul.f32 %v2659, %v2645
    %v2662 = vadd.f32 %v2623, %v2660
    %v2663 = vadd.f32 %v2624, %v2661
    %s2664 = sld [smem:[#allocation2 + $0x17d]]
    %v2665 = vstv %s2664
    %v2666 = vmul.f32 %v2665, %v2641
    %v2667 = vmul.f32 %v2665, %v2645
    %v2668 = vadd.f32 %v2629, %v2666
    %v2669 = vadd.f32 %v2630, %v2667
    %s2670 = sld [smem:[#allocation2 + $0x1aa]]
    %v2671 = vstv %s2670
    %v2672 = vmul.f32 %v2671, %v2641
    %v2673 = vmul.f32 %v2671, %v2645
    %v2674 = vadd.f32 %v2635, %v2672
    %v2675 = vadd.f32 %v2636, %v2673
    %2676 = vrot.lane.b32.xlu0 %v1891, 94
    %v2677 = vpop.permute.xlu0 %2676
    %2678 = vrot.lane.b32.xlu0 %v1892, 94
    %v2679 = vpop.permute.xlu0 %2678
    %v2680 = vsel %vm372, %v2677, %v2679
    %v2684 = vsel %vm372, %v2679, %v2677
    %s2685 = sld [smem:[#allocation2 + $0xf7]]
    %v2686 = vstv %s2685
    %v2687 = vmul.f32 %v2686, %v2680
    %v2688 = vmul.f32 %v2686, %v2684
    %v2689 = vadd.f32 %v2650, %v2687
    %v2690 = vadd.f32 %v2651, %v2688
    %s2691 = sld [smem:[#allocation2 + $0x124]]
    %v2692 = vstv %s2691
    %v2693 = vmul.f32 %v2692, %v2680
    %v2694 = vmul.f32 %v2692, %v2684
    %v2695 = vadd.f32 %v2656, %v2693
    %v2696 = vadd.f32 %v2657, %v2694
    %s2697 = sld [smem:[#allocation2 + $0x151]]
    %v2698 = vstv %s2697
    %v2699 = vmul.f32 %v2698, %v2680
    %v2700 = vmul.f32 %v2698, %v2684
    %v2701 = vadd.f32 %v2662, %v2699
    %v2702 = vadd.f32 %v2663, %v2700
    %s2703 = sld [smem:[#allocation2 + $0x17e]]
    %v2704 = vstv %s2703
    %v2705 = vmul.f32 %v2704, %v2680
    %v2706 = vmul.f32 %v2704, %v2684
    %v2707 = vadd.f32 %v2668, %v2705
    %v2708 = vadd.f32 %v2669, %v2706
    %s2709 = sld [smem:[#allocation2 + $0x1ab]]
    %v2710 = vstv %s2709
    %v2711 = vmul.f32 %v2710, %v2680
    %v2712 = vmul.f32 %v2710, %v2684
    %v2713 = vadd.f32 %v2674, %v2711
    %v2714 = vadd.f32 %v2675, %v2712
    %2716 = vrot.lane.b32.xlu0 %v1935, 34
    %v2717 = vpop.permute.xlu0 %2716
    %2720 = vrot.lane.b32.xlu0 %v1934, 34
    %v2721 = vpop.permute.xlu0 %2720
    %v2722 = vsel %vm2029, %v2721, %v2717
    %v2725 = vsel %vm2029, %v2717, %v2721
    %s2726 = sld [smem:[#allocation2 + $0xf8]]
    %v2727 = vstv %s2726
    %v2728 = vmul.f32 %v2727, %v2725
    %v2729 = vmul.f32 %v2727, %v2722
    %v2730 = vadd.f32 %v2689, %v2728
    %v2731 = vadd.f32 %v2690, %v2729
    %s2732 = sld [smem:[#allocation2 + $0x125]]
    %v2733 = vstv %s2732
    %v2734 = vmul.f32 %v2733, %v2725
    %v2735 = vmul.f32 %v2733, %v2722
    %v2736 = vadd.f32 %v2695, %v2734
    %v2737 = vadd.f32 %v2696, %v2735
    %s2738 = sld [smem:[#allocation2 + $0x152]]
    %v2739 = vstv %s2738
    %v2740 = vmul.f32 %v2739, %v2725
    %v2741 = vmul.f32 %v2739, %v2722
    %v2742 = vadd.f32 %v2701, %v2740
    %v2743 = vadd.f32 %v2702, %v2741
    %s2744 = sld [smem:[#allocation2 + $0x17f]]
    %v2745 = vstv %s2744
    %v2746 = vmul.f32 %v2745, %v2725
    %v2747 = vmul.f32 %v2745, %v2722
    %v2748 = vadd.f32 %v2707, %v2746
    %v2749 = vadd.f32 %v2708, %v2747
    %s2750 = sld [smem:[#allocation2 + $0x1ac]]
    %v2751 = vstv %s2750
    %v2752 = vmul.f32 %v2751, %v2725
    %v2753 = vmul.f32 %v2751, %v2722
    %v2754 = vadd.f32 %v2713, %v2752
    %v2755 = vadd.f32 %v2714, %v2753
    %2756 = vrot.lane.b32.xlu0 %v1935, 32
    %v2757 = vpop.permute.xlu0 %2756
    %2759 = vrot.lane.b32.xlu0 %v1934, 32
    %v2760 = vpop.permute.xlu0 %2759
    %v2761 = vsel %vm2069, %v2760, %v2757
    %v2764 = vsel %vm2069, %v2757, %v2760
    %s2765 = sld [smem:[#allocation2 + $0xf9]]
    %v2766 = vstv %s2765
    %v2767 = vmul.f32 %v2766, %v2764
    %v2768 = vmul.f32 %v2766, %v2761
    %v2769 = vadd.f32 %v2730, %v2767
    %v2770 = vadd.f32 %v2731, %v2768
    %s2771 = sld [smem:[#allocation2 + $0x126]]
    %v2772 = vstv %s2771
    %v2773 = vmul.f32 %v2772, %v2764
    %v2774 = vmul.f32 %v2772, %v2761
    %v2775 = vadd.f32 %v2736, %v2773
    %v2776 = vadd.f32 %v2737, %v2774
    %s2777 = sld [smem:[#allocation2 + $0x153]]
    %v2778 = vstv %s2777
    %v2779 = vmul.f32 %v2778, %v2764
    %v2780 = vmul.f32 %v2778, %v2761
    %v2781 = vadd.f32 %v2742, %v2779
    %v2782 = vadd.f32 %v2743, %v2780
    %s2783 = sld [smem:[#allocation2 + $0x180]]
    %v2784 = vstv %s2783
    %v2785 = vmul.f32 %v2784, %v2764
    %v2786 = vmul.f32 %v2784, %v2761
    %v2787 = vadd.f32 %v2748, %v2785
    %v2788 = vadd.f32 %v2749, %v2786
    %s2789 = sld [smem:[#allocation2 + $0x1ad]]
    %v2790 = vstv %s2789
    %v2791 = vmul.f32 %v2790, %v2764
    %v2792 = vmul.f32 %v2790, %v2761
    %v2793 = vadd.f32 %v2754, %v2791
    %v2794 = vadd.f32 %v2755, %v2792
    %2795 = vrot.lane.b32.xlu0 %v1935, 30
    %v2796 = vpop.permute.xlu0 %2795
    %2798 = vrot.lane.b32.xlu0 %v1934, 30
    %v2799 = vpop.permute.xlu0 %2798
    %v2800 = vsel %vm2109, %v2799, %v2796
    %v2803 = vsel %vm2109, %v2796, %v2799
    %s2804 = sld [smem:[#allocation2 + $0xfa]]
    %v2805 = vstv %s2804
    %v2806 = vmul.f32 %v2805, %v2803
    %v2807 = vmul.f32 %v2805, %v2800
    %v2808 = vadd.f32 %v2769, %v2806
    %v2809 = vadd.f32 %v2770, %v2807
    %s2810 = sld [smem:[#allocation2 + $0x127]]
    %v2811 = vstv %s2810
    %v2812 = vmul.f32 %v2811, %v2803
    %v2813 = vmul.f32 %v2811, %v2800
    %v2814 = vadd.f32 %v2775, %v2812
    %v2815 = vadd.f32 %v2776, %v2813
    %s2816 = sld [smem:[#allocation2 + $0x154]]
    %v2817 = vstv %s2816
    %v2818 = vmul.f32 %v2817, %v2803
    %v2819 = vmul.f32 %v2817, %v2800
    %v2820 = vadd.f32 %v2781, %v2818
    %v2821 = vadd.f32 %v2782, %v2819
    %s2822 = sld [smem:[#allocation2 + $0x181]]
    %v2823 = vstv %s2822
    %v2824 = vmul.f32 %v2823, %v2803
    %v2825 = vmul.f32 %v2823, %v2800
    %v2826 = vadd.f32 %v2787, %v2824
    %v2827 = vadd.f32 %v2788, %v2825
    %s2828 = sld [smem:[#allocation2 + $0x1ae]]
    %v2829 = vstv %s2828
    %v2830 = vmul.f32 %v2829, %v2803
    %v2831 = vmul.f32 %v2829, %v2800
    %v2832 = vadd.f32 %v2793, %v2830
    %v2833 = vadd.f32 %v2794, %v2831
    %2834 = vrot.lane.b32.xlu0 %v1935, 2
    %v2835 = vpop.permute.xlu0 %2834
    %2837 = vrot.lane.b32.xlu0 %v1934, 2
    %v2838 = vpop.permute.xlu0 %2837
    %v2839 = vsel %vm2149, %v2838, %v2835
    %v2842 = vsel %vm2149, %v2835, %v2838
    %s2843 = sld [smem:[#allocation2 + $0xfb]]
    %v2844 = vstv %s2843
    %v2845 = vmul.f32 %v2844, %v2842
    %v2846 = vmul.f32 %v2844, %v2839
    %v2847 = vadd.f32 %v2808, %v2845
    %v2848 = vadd.f32 %v2809, %v2846
    %s2849 = sld [smem:[#allocation2 + $0x128]]
    %v2850 = vstv %s2849
    %v2851 = vmul.f32 %v2850, %v2842
    %v2852 = vmul.f32 %v2850, %v2839
    %v2853 = vadd.f32 %v2814, %v2851
    %v2854 = vadd.f32 %v2815, %v2852
    %s2855 = sld [smem:[#allocation2 + $0x155]]
    %v2856 = vstv %s2855
    %v2857 = vmul.f32 %v2856, %v2842
    %v2858 = vmul.f32 %v2856, %v2839
    %v2859 = vadd.f32 %v2820, %v2857
    %v2860 = vadd.f32 %v2821, %v2858
    %s2861 = sld [smem:[#allocation2 + $0x182]]
    %v2862 = vstv %s2861
    %v2863 = vmul.f32 %v2862, %v2842
    %v2864 = vmul.f32 %v2862, %v2839
    %v2865 = vadd.f32 %v2826, %v2863
    %v2866 = vadd.f32 %v2827, %v2864
    %s2867 = sld [smem:[#allocation2 + $0x1af]]
    %v2868 = vstv %s2867
    %v2869 = vmul.f32 %v2868, %v2842
    %v2870 = vmul.f32 %v2868, %v2839
    %v2871 = vadd.f32 %v2832, %v2869
    %v2872 = vadd.f32 %v2833, %v2870
    %s2873 = sld [smem:[#allocation2 + $0xfc]]
    %v2874 = vstv %s2873
    %v2875 = vmul.f32 %v2874, %v1934
    %v2876 = vmul.f32 %v2874, %v1935
    %v2877 = vadd.f32 %v2847, %v2875
    %v2878 = vadd.f32 %v2848, %v2876
    %s2879 = sld [smem:[#allocation2 + $0x129]]
    %v2880 = vstv %s2879
    %v2881 = vmul.f32 %v2880, %v1934
    %v2882 = vmul.f32 %v2880, %v1935
    %v2883 = vadd.f32 %v2853, %v2881
    %v2884 = vadd.f32 %v2854, %v2882
    %s2885 = sld [smem:[#allocation2 + $0x156]]
    %v2886 = vstv %s2885
    %v2887 = vmul.f32 %v2886, %v1934
    %v2888 = vmul.f32 %v2886, %v1935
    %v2889 = vadd.f32 %v2859, %v2887
    %v2890 = vadd.f32 %v2860, %v2888
    %s2891 = sld [smem:[#allocation2 + $0x183]]
    %v2892 = vstv %s2891
    %v2893 = vmul.f32 %v2892, %v1934
    %v2894 = vmul.f32 %v2892, %v1935
    %v2895 = vadd.f32 %v2865, %v2893
    %v2896 = vadd.f32 %v2866, %v2894
    %s2897 = sld [smem:[#allocation2 + $0x1b0]]
    %v2898 = vstv %s2897
    %v2899 = vmul.f32 %v2898, %v1934
    %v2900 = vmul.f32 %v2898, %v1935
    %v2901 = vadd.f32 %v2871, %v2899
    %v2902 = vadd.f32 %v2872, %v2900
    %2903 = vrot.lane.b32.xlu0 %v1934, 126
    %v2904 = vpop.permute.xlu0 %2903
    %2905 = vrot.lane.b32.xlu0 %v1935, 126
    %v2906 = vpop.permute.xlu0 %2905
    %v2907 = vsel %vm132, %v2904, %v2906
    %v2911 = vsel %vm132, %v2906, %v2904
    %s2912 = sld [smem:[#allocation2 + $0xfd]]
    %v2913 = vstv %s2912
    %v2914 = vmul.f32 %v2913, %v2907
    %v2915 = vmul.f32 %v2913, %v2911
    %v2916 = vadd.f32 %v2877, %v2914
    %v2917 = vadd.f32 %v2878, %v2915
    %s2918 = sld [smem:[#allocation2 + $0x12a]]
    %v2919 = vstv %s2918
    %v2920 = vmul.f32 %v2919, %v2907
    %v2921 = vmul.f32 %v2919, %v2911
    %v2922 = vadd.f32 %v2883, %v2920
    %v2923 = vadd.f32 %v2884, %v2921
    %s2924 = sld [smem:[#allocation2 + $0x157]]
    %v2925 = vstv %s2924
    %v2926 = vmul.f32 %v2925, %v2907
    %v2927 = vmul.f32 %v2925, %v2911
    %v2928 = vadd.f32 %v2889, %v2926
    %v2929 = vadd.f32 %v2890, %v2927
    %s2930 = sld [smem:[#allocation2 + $0x184]]
    %v2931 = vstv %s2930
    %v2932 = vmul.f32 %v2931, %v2907
    %v2933 = vmul.f32 %v2931, %v2911
    %v2934 = vadd.f32 %v2895, %v2932
    %v2935 = vadd.f32 %v2896, %v2933
    %s2936 = sld [smem:[#allocation2 + $0x1b1]]
    %v2937 = vstv %s2936
    %v2938 = vmul.f32 %v2937, %v2907
    %v2939 = vmul.f32 %v2937, %v2911
    %v2940 = vadd.f32 %v2901, %v2938
    %v2941 = vadd.f32 %v2902, %v2939
    %2942 = vrot.lane.b32.xlu0 %v1934, 98
    %v2943 = vpop.permute.xlu0 %2942
    %2944 = vrot.lane.b32.xlu0 %v1935, 98
    %v2945 = vpop.permute.xlu0 %2944
    %v2946 = vsel %vm2257, %v2943, %v2945
    %v2950 = vsel %vm2257, %v2945, %v2943
    %s2951 = sld [smem:[#allocation2 + $0xfe]]
    %v2952 = vstv %s2951
    %v2953 = vmul.f32 %v2952, %v2946
    %v2954 = vmul.f32 %v2952, %v2950
    %v2955 = vadd.f32 %v2916, %v2953
    %v2956 = vadd.f32 %v2917, %v2954
    %s2957 = sld [smem:[#allocation2 + $0x12b]]
    %v2958 = vstv %s2957
    %v2959 = vmul.f32 %v2958, %v2946
    %v2960 = vmul.f32 %v2958, %v2950
    %v2961 = vadd.f32 %v2922, %v2959
    %v2962 = vadd.f32 %v2923, %v2960
    %s2963 = sld [smem:[#allocation2 + $0x158]]
    %v2964 = vstv %s2963
    %v2965 = vmul.f32 %v2964, %v2946
    %v2966 = vmul.f32 %v2964, %v2950
    %v2967 = vadd.f32 %v2928, %v2965
    %v2968 = vadd.f32 %v2929, %v2966
    %s2969 = sld [smem:[#allocation2 + $0x185]]
    %v2970 = vstv %s2969
    %v2971 = vmul.f32 %v2970, %v2946
    %v2972 = vmul.f32 %v2970, %v2950
    %v2973 = vadd.f32 %v2934, %v2971
    %v2974 = vadd.f32 %v2935, %v2972
    %s2975 = sld [smem:[#allocation2 + $0x1b2]]
    %v2976 = vstv %s2975
    %v2977 = vmul.f32 %v2976, %v2946
    %v2978 = vmul.f32 %v2976, %v2950
    %v2979 = vadd.f32 %v2940, %v2977
    %v2980 = vadd.f32 %v2941, %v2978
    %2981 = vrot.lane.b32.xlu0 %v1934, 96
    %v2982 = vpop.permute.xlu0 %2981
    %2983 = vrot.lane.b32.xlu0 %v1935, 96
    %v2984 = vpop.permute.xlu0 %2983
    %v2985 = vsel %vm292, %v2982, %v2984
    %v2989 = vsel %vm292, %v2984, %v2982
    %s2990 = sld [smem:[#allocation2 + $0xff]]
    %v2991 = vstv %s2990
    %v2992 = vmul.f32 %v2991, %v2985
    %v2993 = vmul.f32 %v2991, %v2989
    %v2994 = vadd.f32 %v2955, %v2992
    %v2995 = vadd.f32 %v2956, %v2993
    %s2996 = sld [smem:[#allocation2 + $0x12c]]
    %v2997 = vstv %s2996
    %v2998 = vmul.f32 %v2997, %v2985
    %v2999 = vmul.f32 %v2997, %v2989
    %v3000 = vadd.f32 %v2961, %v2998
    %v3001 = vadd.f32 %v2962, %v2999
    %s3002 = sld [smem:[#allocation2 + $0x159]]
    %v3003 = vstv %s3002
    %v3004 = vmul.f32 %v3003, %v2985
    %v3005 = vmul.f32 %v3003, %v2989
    %v3006 = vadd.f32 %v2967, %v3004
    %v3007 = vadd.f32 %v2968, %v3005
    %s3008 = sld [smem:[#allocation2 + $0x186]]
    %v3009 = vstv %s3008
    %v3010 = vmul.f32 %v3009, %v2985
    %v3011 = vmul.f32 %v3009, %v2989
    %v3012 = vadd.f32 %v2973, %v3010
    %v3013 = vadd.f32 %v2974, %v3011
    %s3014 = sld [smem:[#allocation2 + $0x1b3]]
    %v3015 = vstv %s3014
    %v3016 = vmul.f32 %v3015, %v2985
    %v3017 = vmul.f32 %v3015, %v2989
    %v3018 = vadd.f32 %v2979, %v3016
    %v3019 = vadd.f32 %v2980, %v3017
    %3020 = vrot.lane.b32.xlu0 %v1934, 94
    %v3021 = vpop.permute.xlu0 %3020
    %3022 = vrot.lane.b32.xlu0 %v1935, 94
    %v3023 = vpop.permute.xlu0 %3022
    %v3024 = vsel %vm372, %v3021, %v3023
    %v3028 = vsel %vm372, %v3023, %v3021
    %s3029 = sld [smem:[#allocation2 + $0x100]]
    %v3030 = vstv %s3029
    %v3031 = vmul.f32 %v3030, %v3024
    %v3032 = vmul.f32 %v3030, %v3028
    %v3033 = vadd.f32 %v2994, %v3031
    %v3034 = vadd.f32 %v2995, %v3032
    %s3035 = sld [smem:[#allocation2 + $0x12d]]
    %v3036 = vstv %s3035
    %v3037 = vmul.f32 %v3036, %v3024
    %v3038 = vmul.f32 %v3036, %v3028
    %v3039 = vadd.f32 %v3000, %v3037
    %v3040 = vadd.f32 %v3001, %v3038
    %s3041 = sld [smem:[#allocation2 + $0x15a]]
    %v3042 = vstv %s3041
    %v3043 = vmul.f32 %v3042, %v3024
    %v3044 = vmul.f32 %v3042, %v3028
    %v3045 = vadd.f32 %v3006, %v3043
    %v3046 = vadd.f32 %v3007, %v3044
    %s3047 = sld [smem:[#allocation2 + $0x187]]
    %v3048 = vstv %s3047
    %v3049 = vmul.f32 %v3048, %v3024
    %v3050 = vmul.f32 %v3048, %v3028
    %v3051 = vadd.f32 %v3012, %v3049
    %v3052 = vadd.f32 %v3013, %v3050
    %s3053 = sld [smem:[#allocation2 + $0x1b4]]
    %v3054 = vstv %s3053
    %v3055 = vmul.f32 %v3054, %v3024
    %v3056 = vmul.f32 %v3054, %v3028
    %v3057 = vadd.f32 %v3018, %v3055
    %v3058 = vadd.f32 %v3019, %v3056
    %3060 = vrot.lane.b32.xlu0 %v1978, 34
    %v3061 = vpop.permute.xlu0 %3060
    %3064 = vrot.lane.b32.xlu0 %v1977, 34
    %v3065 = vpop.permute.xlu0 %3064
    %v3066 = vsel %vm2029, %v3065, %v3061
    %v3069 = vsel %vm2029, %v3061, %v3065
    %s3070 = sld [smem:[#allocation2 + $0x101]]
    %v3071 = vstv %s3070
    %v3072 = vmul.f32 %v3071, %v3069
    %v3073 = vmul.f32 %v3071, %v3066
    %v3074 = vadd.f32 %v3033, %v3072
    %v3075 = vadd.f32 %v3034, %v3073
    %s3076 = sld [smem:[#allocation2 + $0x12e]]
    %v3077 = vstv %s3076
    %v3078 = vmul.f32 %v3077, %v3069
    %v3079 = vmul.f32 %v3077, %v3066
    %v3080 = vadd.f32 %v3039, %v3078
    %v3081 = vadd.f32 %v3040, %v3079
    %s3082 = sld [smem:[#allocation2 + $0x15b]]
    %v3083 = vstv %s3082
    %v3084 = vmul.f32 %v3083, %v3069
    %v3085 = vmul.f32 %v3083, %v3066
    %v3086 = vadd.f32 %v3045, %v3084
    %v3087 = vadd.f32 %v3046, %v3085
    %s3088 = sld [smem:[#allocation2 + $0x188]]
    %v3089 = vstv %s3088
    %v3090 = vmul.f32 %v3089, %v3069
    %v3091 = vmul.f32 %v3089, %v3066
    %v3092 = vadd.f32 %v3051, %v3090
    %v3093 = vadd.f32 %v3052, %v3091
    %s3094 = sld [smem:[#allocation2 + $0x1b5]]
    %v3095 = vstv %s3094
    %v3096 = vmul.f32 %v3095, %v3069
    %v3097 = vmul.f32 %v3095, %v3066
    %v3098 = vadd.f32 %v3057, %v3096
    %v3099 = vadd.f32 %v3058, %v3097
    %3100 = vrot.lane.b32.xlu0 %v1978, 32
    %v3101 = vpop.permute.xlu0 %3100
    %3103 = vrot.lane.b32.xlu0 %v1977, 32
    %v3104 = vpop.permute.xlu0 %3103
    %v3105 = vsel %vm2069, %v3104, %v3101
    %v3108 = vsel %vm2069, %v3101, %v3104
    %s3109 = sld [smem:[#allocation2 + $0x102]]
    %v3110 = vstv %s3109
    %v3111 = vmul.f32 %v3110, %v3108
    %v3112 = vmul.f32 %v3110, %v3105
    %v3113 = vadd.f32 %v3074, %v3111
    %v3114 = vadd.f32 %v3075, %v3112
    %s3115 = sld [smem:[#allocation2 + $0x12f]]
    %v3116 = vstv %s3115
    %v3117 = vmul.f32 %v3116, %v3108
    %v3118 = vmul.f32 %v3116, %v3105
    %v3119 = vadd.f32 %v3080, %v3117
    %v3120 = vadd.f32 %v3081, %v3118
    %s3121 = sld [smem:[#allocation2 + $0x15c]]
    %v3122 = vstv %s3121
    %v3123 = vmul.f32 %v3122, %v3108
    %v3124 = vmul.f32 %v3122, %v3105
    %v3125 = vadd.f32 %v3086, %v3123
    %v3126 = vadd.f32 %v3087, %v3124
    %s3127 = sld [smem:[#allocation2 + $0x189]]
    %v3128 = vstv %s3127
    %v3129 = vmul.f32 %v3128, %v3108
    %v3130 = vmul.f32 %v3128, %v3105
    %v3131 = vadd.f32 %v3092, %v3129
    %v3132 = vadd.f32 %v3093, %v3130
    %s3133 = sld [smem:[#allocation2 + $0x1b6]]
    %v3134 = vstv %s3133
    %v3135 = vmul.f32 %v3134, %v3108
    %v3136 = vmul.f32 %v3134, %v3105
    %v3137 = vadd.f32 %v3098, %v3135
    %v3138 = vadd.f32 %v3099, %v3136
    %3139 = vrot.lane.b32.xlu0 %v1978, 30
    %v3140 = vpop.permute.xlu0 %3139
    %3142 = vrot.lane.b32.xlu0 %v1977, 30
    %v3143 = vpop.permute.xlu0 %3142
    %v3144 = vsel %vm2109, %v3143, %v3140
    %v3147 = vsel %vm2109, %v3140, %v3143
    %s3148 = sld [smem:[#allocation2 + $0x103]]
    %v3149 = vstv %s3148
    %v3150 = vmul.f32 %v3149, %v3147
    %v3151 = vmul.f32 %v3149, %v3144
    %v3152 = vadd.f32 %v3113, %v3150
    %v3153 = vadd.f32 %v3114, %v3151
    %s3154 = sld [smem:[#allocation2 + $0x130]]
    %v3155 = vstv %s3154
    %v3156 = vmul.f32 %v3155, %v3147
    %v3157 = vmul.f32 %v3155, %v3144
    %v3158 = vadd.f32 %v3119, %v3156
    %v3159 = vadd.f32 %v3120, %v3157
    %s3160 = sld [smem:[#allocation2 + $0x15d]]
    %v3161 = vstv %s3160
    %v3162 = vmul.f32 %v3161, %v3147
    %v3163 = vmul.f32 %v3161, %v3144
    %v3164 = vadd.f32 %v3125, %v3162
    %v3165 = vadd.f32 %v3126, %v3163
    %s3166 = sld [smem:[#allocation2 + $0x18a]]
    %v3167 = vstv %s3166
    %v3168 = vmul.f32 %v3167, %v3147
    %v3169 = vmul.f32 %v3167, %v3144
    %v3170 = vadd.f32 %v3131, %v3168
    %v3171 = vadd.f32 %v3132, %v3169
    %s3172 = sld [smem:[#allocation2 + $0x1b7]]
    %v3173 = vstv %s3172
    %v3174 = vmul.f32 %v3173, %v3147
    %v3175 = vmul.f32 %v3173, %v3144
    %v3176 = vadd.f32 %v3137, %v3174
    %v3177 = vadd.f32 %v3138, %v3175
    %3178 = vrot.lane.b32.xlu0 %v1978, 2
    %v3179 = vpop.permute.xlu0 %3178
    %3181 = vrot.lane.b32.xlu0 %v1977, 2
    %v3182 = vpop.permute.xlu0 %3181
    %v3183 = vsel %vm2149, %v3182, %v3179
    %v3186 = vsel %vm2149, %v3179, %v3182
    %s3187 = sld [smem:[#allocation2 + $0x104]]
    %v3188 = vstv %s3187
    %v3189 = vmul.f32 %v3188, %v3186
    %v3190 = vmul.f32 %v3188, %v3183
    %v3191 = vadd.f32 %v3152, %v3189
    %v3192 = vadd.f32 %v3153, %v3190
    %s3193 = sld [smem:[#allocation2 + $0x131]]
    %v3194 = vstv %s3193
    %v3195 = vmul.f32 %v3194, %v3186
    %v3196 = vmul.f32 %v3194, %v3183
    %v3197 = vadd.f32 %v3158, %v3195
    %v3198 = vadd.f32 %v3159, %v3196
    %s3199 = sld [smem:[#allocation2 + $0x15e]]
    %v3200 = vstv %s3199
    %v3201 = vmul.f32 %v3200, %v3186
    %v3202 = vmul.f32 %v3200, %v3183
    %v3203 = vadd.f32 %v3164, %v3201
    %v3204 = vadd.f32 %v3165, %v3202
    %s3205 = sld [smem:[#allocation2 + $0x18b]]
    %v3206 = vstv %s3205
    %v3207 = vmul.f32 %v3206, %v3186
    %v3208 = vmul.f32 %v3206, %v3183
    %v3209 = vadd.f32 %v3170, %v3207
    %v3210 = vadd.f32 %v3171, %v3208
    %s3211 = sld [smem:[#allocation2 + $0x1b8]]
    %v3212 = vstv %s3211
    %v3213 = vmul.f32 %v3212, %v3186
    %v3214 = vmul.f32 %v3212, %v3183
    %v3215 = vadd.f32 %v3176, %v3213
    %v3216 = vadd.f32 %v3177, %v3214
    %s3217 = sld [smem:[#allocation2 + $0x105]]
    %v3218 = vstv %s3217
    %v3219 = vmul.f32 %v3218, %v1977
    %v3220 = vmul.f32 %v3218, %v1978
    %v3221 = vadd.f32 %v3191, %v3219
    %v3222 = vadd.f32 %v3192, %v3220
    %s3223 = sld [smem:[#allocation2 + $0x132]]
    %v3224 = vstv %s3223
    %v3225 = vmul.f32 %v3224, %v1977
    %v3226 = vmul.f32 %v3224, %v1978
    %v3227 = vadd.f32 %v3197, %v3225
    %v3228 = vadd.f32 %v3198, %v3226
    %s3229 = sld [smem:[#allocation2 + $0x15f]]
    %v3230 = vstv %s3229
    %v3231 = vmul.f32 %v3230, %v1977
    %v3232 = vmul.f32 %v3230, %v1978
    %v3233 = vadd.f32 %v3203, %v3231
    %v3234 = vadd.f32 %v3204, %v3232
    %s3235 = sld [smem:[#allocation2 + $0x18c]]
    %v3236 = vstv %s3235
    %v3237 = vmul.f32 %v3236, %v1977
    %v3238 = vmul.f32 %v3236, %v1978
    %v3239 = vadd.f32 %v3209, %v3237
    %v3240 = vadd.f32 %v3210, %v3238
    %s3241 = sld [smem:[#allocation2 + $0x1b9]]
    %v3242 = vstv %s3241
    %v3243 = vmul.f32 %v3242, %v1977
    %v3244 = vmul.f32 %v3242, %v1978
    %v3245 = vadd.f32 %v3215, %v3243
    %v3246 = vadd.f32 %v3216, %v3244
    %3247 = vrot.lane.b32.xlu0 %v1977, 126
    %v3248 = vpop.permute.xlu0 %3247
    %3249 = vrot.lane.b32.xlu0 %v1978, 126
    %v3250 = vpop.permute.xlu0 %3249
    %v3251 = vsel %vm132, %v3248, %v3250
    %v3255 = vsel %vm132, %v3250, %v3248
    %s3256 = sld [smem:[#allocation2 + $0x106]]
    %v3257 = vstv %s3256
    %v3258 = vmul.f32 %v3257, %v3251
    %v3259 = vmul.f32 %v3257, %v3255
    %v3260 = vadd.f32 %v3221, %v3258
    %v3261 = vadd.f32 %v3222, %v3259
    %s3262 = sld [smem:[#allocation2 + $0x133]]
    %v3263 = vstv %s3262
    %v3264 = vmul.f32 %v3263, %v3251
    %v3265 = vmul.f32 %v3263, %v3255
    %v3266 = vadd.f32 %v3227, %v3264
    %v3267 = vadd.f32 %v3228, %v3265
    %s3268 = sld [smem:[#allocation2 + $0x160]]
    %v3269 = vstv %s3268
    %v3270 = vmul.f32 %v3269, %v3251
    %v3271 = vmul.f32 %v3269, %v3255
    %v3272 = vadd.f32 %v3233, %v3270
    %v3273 = vadd.f32 %v3234, %v3271
    %s3274 = sld [smem:[#allocation2 + $0x18d]]
    %v3275 = vstv %s3274
    %v3276 = vmul.f32 %v3275, %v3251
    %v3277 = vmul.f32 %v3275, %v3255
    %v3278 = vadd.f32 %v3239, %v3276
    %v3279 = vadd.f32 %v3240, %v3277
    %s3280 = sld [smem:[#allocation2 + $0x1ba]]
    %v3281 = vstv %s3280
    %v3282 = vmul.f32 %v3281, %v3251
    %v3283 = vmul.f32 %v3281, %v3255
    %v3284 = vadd.f32 %v3245, %v3282
    %v3285 = vadd.f32 %v3246, %v3283
    %3286 = vrot.lane.b32.xlu0 %v1977, 98
    %v3287 = vpop.permute.xlu0 %3286
    %3288 = vrot.lane.b32.xlu0 %v1978, 98
    %v3289 = vpop.permute.xlu0 %3288
    %v3290 = vsel %vm2257, %v3287, %v3289
    %v3294 = vsel %vm2257, %v3289, %v3287
    %s3295 = sld [smem:[#allocation2 + $0x107]]
    %v3296 = vstv %s3295
    %v3297 = vmul.f32 %v3296, %v3290
    %v3298 = vmul.f32 %v3296, %v3294
    %v3299 = vadd.f32 %v3260, %v3297
    %v3300 = vadd.f32 %v3261, %v3298
    %s3301 = sld [smem:[#allocation2 + $0x134]]
    %v3302 = vstv %s3301
    %v3303 = vmul.f32 %v3302, %v3290
    %v3304 = vmul.f32 %v3302, %v3294
    %v3305 = vadd.f32 %v3266, %v3303
    %v3306 = vadd.f32 %v3267, %v3304
    %s3307 = sld [smem:[#allocation2 + $0x161]]
    %v3308 = vstv %s3307
    %v3309 = vmul.f32 %v3308, %v3290
    %v3310 = vmul.f32 %v3308, %v3294
    %v3311 = vadd.f32 %v3272, %v3309
    %v3312 = vadd.f32 %v3273, %v3310
    %s3313 = sld [smem:[#allocation2 + $0x18e]]
    %v3314 = vstv %s3313
    %v3315 = vmul.f32 %v3314, %v3290
    %v3316 = vmul.f32 %v3314, %v3294
    %v3317 = vadd.f32 %v3278, %v3315
    %v3318 = vadd.f32 %v3279, %v3316
    %s3319 = sld [smem:[#allocation2 + $0x1bb]]
    %v3320 = vstv %s3319
    %v3321 = vmul.f32 %v3320, %v3290
    %v3322 = vmul.f32 %v3320, %v3294
    %v3323 = vadd.f32 %v3284, %v3321
    %v3324 = vadd.f32 %v3285, %v3322
    %3325 = vrot.lane.b32.xlu0 %v1977, 96
    %v3326 = vpop.permute.xlu0 %3325
    %3327 = vrot.lane.b32.xlu0 %v1978, 96
    %v3328 = vpop.permute.xlu0 %3327
    %v3329 = vsel %vm292, %v3326, %v3328
    %v3333 = vsel %vm292, %v3328, %v3326
    %s3334 = sld [smem:[#allocation2 + $0x108]]
    %v3335 = vstv %s3334
    %v3336 = vmul.f32 %v3335, %v3329
    %v3337 = vmul.f32 %v3335, %v3333
    %v3338 = vadd.f32 %v3299, %v3336
    %v3339 = vadd.f32 %v3300, %v3337
    %s3340 = sld [smem:[#allocation2 + $0x135]]
    %v3341 = vstv %s3340
    %v3342 = vmul.f32 %v3341, %v3329
    %v3343 = vmul.f32 %v3341, %v3333
    %v3344 = vadd.f32 %v3305, %v3342
    %v3345 = vadd.f32 %v3306, %v3343
    %s3346 = sld [smem:[#allocation2 + $0x162]]
    %v3347 = vstv %s3346
    %v3348 = vmul.f32 %v3347, %v3329
    %v3349 = vmul.f32 %v3347, %v3333
    %v3350 = vadd.f32 %v3311, %v3348
    %v3351 = vadd.f32 %v3312, %v3349
    %s3352 = sld [smem:[#allocation2 + $0x18f]]
    %v3353 = vstv %s3352
    %v3354 = vmul.f32 %v3353, %v3329
    %v3355 = vmul.f32 %v3353, %v3333
    %v3356 = vadd.f32 %v3317, %v3354
    %v3357 = vadd.f32 %v3318, %v3355
    %s3358 = sld [smem:[#allocation2 + $0x1bc]]
    %v3359 = vstv %s3358
    %v3360 = vmul.f32 %v3359, %v3329
    %v3361 = vmul.f32 %v3359, %v3333
    %v3362 = vadd.f32 %v3323, %v3360
    %v3363 = vadd.f32 %v3324, %v3361
    %3364 = vrot.lane.b32.xlu0 %v1977, 94
    %v3365 = vpop.permute.xlu0 %3364
    %3366 = vrot.lane.b32.xlu0 %v1978, 94
    %v3367 = vpop.permute.xlu0 %3366
    %v3368 = vsel %vm372, %v3365, %v3367
    %v3372 = vsel %vm372, %v3367, %v3365
    %s3373 = sld [smem:[#allocation2 + $0x109]]
    %v3374 = vstv %s3373
    %v3375 = vmul.f32 %v3374, %v3368
    %v3376 = vmul.f32 %v3374, %v3372
    %v3377 = vadd.f32 %v3338, %v3375
    %v3378 = vadd.f32 %v3339, %v3376
    %s3379 = sld [smem:[#allocation2 + $0x136]]
    %v3380 = vstv %s3379
    %v3381 = vmul.f32 %v3380, %v3368
    %v3382 = vmul.f32 %v3380, %v3372
    %v3383 = vadd.f32 %v3344, %v3381
    %v3384 = vadd.f32 %v3345, %v3382
    %s3385 = sld [smem:[#allocation2 + $0x163]]
    %v3386 = vstv %s3385
    %v3387 = vmul.f32 %v3386, %v3368
    %v3388 = vmul.f32 %v3386, %v3372
    %v3389 = vadd.f32 %v3350, %v3387
    %v3390 = vadd.f32 %v3351, %v3388
    %s3391 = sld [smem:[#allocation2 + $0x190]]
    %v3392 = vstv %s3391
    %v3393 = vmul.f32 %v3392, %v3368
    %v3394 = vmul.f32 %v3392, %v3372
    %v3395 = vadd.f32 %v3356, %v3393
    %v3396 = vadd.f32 %v3357, %v3394
    %s3397 = sld [smem:[#allocation2 + $0x1bd]]
    %v3398 = vstv %s3397
    %v3399 = vmul.f32 %v3398, %v3368
    %v3400 = vmul.f32 %v3398, %v3372
    %v3401 = vadd.f32 %v3362, %v3399
    %v3402 = vadd.f32 %v3363, %v3400
    %3404 = vrot.lane.b32.xlu0 %v2021, 34
    %v3405 = vpop.permute.xlu0 %3404
    %3408 = vrot.lane.b32.xlu0 %v2020, 34
    %v3409 = vpop.permute.xlu0 %3408
    %v3410 = vsel %vm2029, %v3409, %v3405
    %v3413 = vsel %vm2029, %v3405, %v3409
    %s3414 = sld [smem:[#allocation2 + $0x10a]]
    %v3415 = vstv %s3414
    %v3416 = vmul.f32 %v3415, %v3413
    %v3417 = vmul.f32 %v3415, %v3410
    %v3418 = vadd.f32 %v3377, %v3416
    %v3419 = vadd.f32 %v3378, %v3417
    %s3420 = sld [smem:[#allocation2 + $0x137]]
    %v3421 = vstv %s3420
    %v3422 = vmul.f32 %v3421, %v3413
    %v3423 = vmul.f32 %v3421, %v3410
    %v3424 = vadd.f32 %v3383, %v3422
    %v3425 = vadd.f32 %v3384, %v3423
    %s3426 = sld [smem:[#allocation2 + $0x164]]
    %v3427 = vstv %s3426
    %v3428 = vmul.f32 %v3427, %v3413
    %v3429 = vmul.f32 %v3427, %v3410
    %v3430 = vadd.f32 %v3389, %v3428
    %v3431 = vadd.f32 %v3390, %v3429
    %s3432 = sld [smem:[#allocation2 + $0x191]]
    %v3433 = vstv %s3432
    %v3434 = vmul.f32 %v3433, %v3413
    %v3435 = vmul.f32 %v3433, %v3410
    %v3436 = vadd.f32 %v3395, %v3434
    %v3437 = vadd.f32 %v3396, %v3435
    %s3438 = sld [smem:[#allocation2 + $0x1be]]
    %v3439 = vstv %s3438
    %v3440 = vmul.f32 %v3439, %v3413
    %v3441 = vmul.f32 %v3439, %v3410
    %v3442 = vadd.f32 %v3401, %v3440
    %v3443 = vadd.f32 %v3402, %v3441
    %3444 = vrot.lane.b32.xlu0 %v2021, 32
    %v3445 = vpop.permute.xlu0 %3444
    %3447 = vrot.lane.b32.xlu0 %v2020, 32
    %v3448 = vpop.permute.xlu0 %3447
    %v3449 = vsel %vm2069, %v3448, %v3445
    %v3452 = vsel %vm2069, %v3445, %v3448
    %s3453 = sld [smem:[#allocation2 + $0x10b]]
    %v3454 = vstv %s3453
    %v3455 = vmul.f32 %v3454, %v3452
    %v3456 = vmul.f32 %v3454, %v3449
    %v3457 = vadd.f32 %v3418, %v3455
    %v3458 = vadd.f32 %v3419, %v3456
    %s3459 = sld [smem:[#allocation2 + $0x138]]
    %v3460 = vstv %s3459
    %v3461 = vmul.f32 %v3460, %v3452
    %v3462 = vmul.f32 %v3460, %v3449
    %v3463 = vadd.f32 %v3424, %v3461
    %v3464 = vadd.f32 %v3425, %v3462
    %s3465 = sld [smem:[#allocation2 + $0x165]]
    %v3466 = vstv %s3465
    %v3467 = vmul.f32 %v3466, %v3452
    %v3468 = vmul.f32 %v3466, %v3449
    %v3469 = vadd.f32 %v3430, %v3467
    %v3470 = vadd.f32 %v3431, %v3468
    %s3471 = sld [smem:[#allocation2 + $0x192]]
    %v3472 = vstv %s3471
    %v3473 = vmul.f32 %v3472, %v3452
    %v3474 = vmul.f32 %v3472, %v3449
    %v3475 = vadd.f32 %v3436, %v3473
    %v3476 = vadd.f32 %v3437, %v3474
    %s3477 = sld [smem:[#allocation2 + $0x1bf]]
    %v3478 = vstv %s3477
    %v3479 = vmul.f32 %v3478, %v3452
    %v3480 = vmul.f32 %v3478, %v3449
    %v3481 = vadd.f32 %v3442, %v3479
    %v3482 = vadd.f32 %v3443, %v3480
    %3483 = vrot.lane.b32.xlu0 %v2021, 30
    %v3484 = vpop.permute.xlu0 %3483
    %3486 = vrot.lane.b32.xlu0 %v2020, 30
    %v3487 = vpop.permute.xlu0 %3486
    %v3488 = vsel %vm2109, %v3487, %v3484
    %v3491 = vsel %vm2109, %v3484, %v3487
    %s3492 = sld [smem:[#allocation2 + $0x10c]]
    %v3493 = vstv %s3492
    %v3494 = vmul.f32 %v3493, %v3491
    %v3495 = vmul.f32 %v3493, %v3488
    %v3496 = vadd.f32 %v3457, %v3494
    %v3497 = vadd.f32 %v3458, %v3495
    %s3498 = sld [smem:[#allocation2 + $0x139]]
    %v3499 = vstv %s3498
    %v3500 = vmul.f32 %v3499, %v3491
    %v3501 = vmul.f32 %v3499, %v3488
    %v3502 = vadd.f32 %v3463, %v3500
    %v3503 = vadd.f32 %v3464, %v3501
    %s3504 = sld [smem:[#allocation2 + $0x166]]
    %v3505 = vstv %s3504
    %v3506 = vmul.f32 %v3505, %v3491
    %v3507 = vmul.f32 %v3505, %v3488
    %v3508 = vadd.f32 %v3469, %v3506
    %v3509 = vadd.f32 %v3470, %v3507
    %s3510 = sld [smem:[#allocation2 + $0x193]]
    %v3511 = vstv %s3510
    %v3512 = vmul.f32 %v3511, %v3491
    %v3513 = vmul.f32 %v3511, %v3488
    %v3514 = vadd.f32 %v3475, %v3512
    %v3515 = vadd.f32 %v3476, %v3513
    %s3516 = sld [smem:[#allocation2 + $0x1c0]]
    %v3517 = vstv %s3516
    %v3518 = vmul.f32 %v3517, %v3491
    %v3519 = vmul.f32 %v3517, %v3488
    %v3520 = vadd.f32 %v3481, %v3518
    %v3521 = vadd.f32 %v3482, %v3519
    %3522 = vrot.lane.b32.xlu0 %v2021, 2
    %v3523 = vpop.permute.xlu0 %3522
    %3525 = vrot.lane.b32.xlu0 %v2020, 2
    %v3526 = vpop.permute.xlu0 %3525
    %v3527 = vsel %vm2149, %v3526, %v3523
    %v3530 = vsel %vm2149, %v3523, %v3526
    %s3531 = sld [smem:[#allocation2 + $0x10d]]
    %v3532 = vstv %s3531
    %v3533 = vmul.f32 %v3532, %v3530
    %v3534 = vmul.f32 %v3532, %v3527
    %v3535 = vadd.f32 %v3496, %v3533
    %v3536 = vadd.f32 %v3497, %v3534
    %s3537 = sld [smem:[#allocation2 + $0x13a]]
    %v3538 = vstv %s3537
    %v3539 = vmul.f32 %v3538, %v3530
    %v3540 = vmul.f32 %v3538, %v3527
    %v3541 = vadd.f32 %v3502, %v3539
    %v3542 = vadd.f32 %v3503, %v3540
    %s3543 = sld [smem:[#allocation2 + $0x167]]
    %v3544 = vstv %s3543
    %v3545 = vmul.f32 %v3544, %v3530
    %v3546 = vmul.f32 %v3544, %v3527
    %v3547 = vadd.f32 %v3508, %v3545
    %v3548 = vadd.f32 %v3509, %v3546
    %s3549 = sld [smem:[#allocation2 + $0x194]]
    %v3550 = vstv %s3549
    %v3551 = vmul.f32 %v3550, %v3530
    %v3552 = vmul.f32 %v3550, %v3527
    %v3553 = vadd.f32 %v3514, %v3551
    %v3554 = vadd.f32 %v3515, %v3552
    %s3555 = sld [smem:[#allocation2 + $0x1c1]]
    %v3556 = vstv %s3555
    %v3557 = vmul.f32 %v3556, %v3530
    %v3558 = vmul.f32 %v3556, %v3527
    %v3559 = vadd.f32 %v3520, %v3557
    %v3560 = vadd.f32 %v3521, %v3558
    %s3561 = sld [smem:[#allocation2 + $0x10e]]
    %v3562 = vstv %s3561
    %v3563 = vmul.f32 %v3562, %v2020
    %v3564 = vmul.f32 %v3562, %v2021
    %v3565 = vadd.f32 %v3535, %v3563
    %v3566 = vadd.f32 %v3536, %v3564
    %s3567 = sld [smem:[#allocation2 + $0x13b]]
    %v3568 = vstv %s3567
    %v3569 = vmul.f32 %v3568, %v2020
    %v3570 = vmul.f32 %v3568, %v2021
    %v3571 = vadd.f32 %v3541, %v3569
    %v3572 = vadd.f32 %v3542, %v3570
    %s3573 = sld [smem:[#allocation2 + $0x168]]
    %v3574 = vstv %s3573
    %v3575 = vmul.f32 %v3574, %v2020
    %v3576 = vmul.f32 %v3574, %v2021
    %v3577 = vadd.f32 %v3547, %v3575
    %v3578 = vadd.f32 %v3548, %v3576
    %s3579 = sld [smem:[#allocation2 + $0x195]]
    %v3580 = vstv %s3579
    %v3581 = vmul.f32 %v3580, %v2020
    %v3582 = vmul.f32 %v3580, %v2021
    %v3583 = vadd.f32 %v3553, %v3581
    %v3584 = vadd.f32 %v3554, %v3582
    %s3585 = sld [smem:[#allocation2 + $0x1c2]]
    %v3586 = vstv %s3585
    %v3587 = vmul.f32 %v3586, %v2020
    %v3588 = vmul.f32 %v3586, %v2021
    %v3589 = vadd.f32 %v3559, %v3587
    %v3590 = vadd.f32 %v3560, %v3588
    %3591 = vrot.lane.b32.xlu0 %v2020, 126
    %v3592 = vpop.permute.xlu0 %3591
    %3593 = vrot.lane.b32.xlu0 %v2021, 126
    %v3594 = vpop.permute.xlu0 %3593
    %v3595 = vsel %vm132, %v3592, %v3594
    %v3599 = vsel %vm132, %v3594, %v3592
    %s3600 = sld [smem:[#allocation2 + $0x10f]]
    %v3601 = vstv %s3600
    %v3602 = vmul.f32 %v3601, %v3595
    %v3603 = vmul.f32 %v3601, %v3599
    %v3604 = vadd.f32 %v3565, %v3602
    %v3605 = vadd.f32 %v3566, %v3603
    %s3606 = sld [smem:[#allocation2 + $0x13c]]
    %v3607 = vstv %s3606
    %v3608 = vmul.f32 %v3607, %v3595
    %v3609 = vmul.f32 %v3607, %v3599
    %v3610 = vadd.f32 %v3571, %v3608
    %v3611 = vadd.f32 %v3572, %v3609
    %s3612 = sld [smem:[#allocation2 + $0x169]]
    %v3613 = vstv %s3612
    %v3614 = vmul.f32 %v3613, %v3595
    %v3615 = vmul.f32 %v3613, %v3599
    %v3616 = vadd.f32 %v3577, %v3614
    %v3617 = vadd.f32 %v3578, %v3615
    %s3618 = sld [smem:[#allocation2 + $0x196]]
    %v3619 = vstv %s3618
    %v3620 = vmul.f32 %v3619, %v3595
    %v3621 = vmul.f32 %v3619, %v3599
    %v3622 = vadd.f32 %v3583, %v3620
    %v3623 = vadd.f32 %v3584, %v3621
    %s3624 = sld [smem:[#allocation2 + $0x1c3]]
    %v3625 = vstv %s3624
    %v3626 = vmul.f32 %v3625, %v3595
    %v3627 = vmul.f32 %v3625, %v3599
    %v3628 = vadd.f32 %v3589, %v3626
    %v3629 = vadd.f32 %v3590, %v3627
    %3630 = vrot.lane.b32.xlu0 %v2020, 98
    %v3631 = vpop.permute.xlu0 %3630
    %3632 = vrot.lane.b32.xlu0 %v2021, 98
    %v3633 = vpop.permute.xlu0 %3632
    %v3634 = vsel %vm2257, %v3631, %v3633
    %v3638 = vsel %vm2257, %v3633, %v3631
    %s3639 = sld [smem:[#allocation2 + $0x110]]
    %v3640 = vstv %s3639
    %v3641 = vmul.f32 %v3640, %v3634
    %v3642 = vmul.f32 %v3640, %v3638
    %v3643 = vadd.f32 %v3604, %v3641
    %v3644 = vadd.f32 %v3605, %v3642
    %s3645 = sld [smem:[#allocation2 + $0x13d]]
    %v3646 = vstv %s3645
    %v3647 = vmul.f32 %v3646, %v3634
    %v3648 = vmul.f32 %v3646, %v3638
    %v3649 = vadd.f32 %v3610, %v3647
    %v3650 = vadd.f32 %v3611, %v3648
    %s3651 = sld [smem:[#allocation2 + $0x16a]]
    %v3652 = vstv %s3651
    %v3653 = vmul.f32 %v3652, %v3634
    %v3654 = vmul.f32 %v3652, %v3638
    %v3655 = vadd.f32 %v3616, %v3653
    %v3656 = vadd.f32 %v3617, %v3654
    %s3657 = sld [smem:[#allocation2 + $0x197]]
    %v3658 = vstv %s3657
    %v3659 = vmul.f32 %v3658, %v3634
    %v3660 = vmul.f32 %v3658, %v3638
    %v3661 = vadd.f32 %v3622, %v3659
    %v3662 = vadd.f32 %v3623, %v3660
    %s3663 = sld [smem:[#allocation2 + $0x1c4]]
    %v3664 = vstv %s3663
    %v3665 = vmul.f32 %v3664, %v3634
    %v3666 = vmul.f32 %v3664, %v3638
    %v3667 = vadd.f32 %v3628, %v3665
    %v3668 = vadd.f32 %v3629, %v3666
    %3669 = vrot.lane.b32.xlu0 %v2020, 96
    %v3670 = vpop.permute.xlu0 %3669
    %3671 = vrot.lane.b32.xlu0 %v2021, 96
    %v3672 = vpop.permute.xlu0 %3671
    %v3673 = vsel %vm292, %v3670, %v3672
    %v3677 = vsel %vm292, %v3672, %v3670
    %s3678 = sld [smem:[#allocation2 + $0x111]]
    %v3679 = vstv %s3678
    %v3680 = vmul.f32 %v3679, %v3673
    %v3681 = vmul.f32 %v3679, %v3677
    %v3682 = vadd.f32 %v3643, %v3680
    %v3683 = vadd.f32 %v3644, %v3681
    %s3684 = sld [smem:[#allocation2 + $0x13e]]
    %v3685 = vstv %s3684
    %v3686 = vmul.f32 %v3685, %v3673
    %v3687 = vmul.f32 %v3685, %v3677
    %v3688 = vadd.f32 %v3649, %v3686
    %v3689 = vadd.f32 %v3650, %v3687
    %s3690 = sld [smem:[#allocation2 + $0x16b]]
    %v3691 = vstv %s3690
    %v3692 = vmul.f32 %v3691, %v3673
    %v3693 = vmul.f32 %v3691, %v3677
    %v3694 = vadd.f32 %v3655, %v3692
    %v3695 = vadd.f32 %v3656, %v3693
    %s3696 = sld [smem:[#allocation2 + $0x198]]
    %v3697 = vstv %s3696
    %v3698 = vmul.f32 %v3697, %v3673
    %v3699 = vmul.f32 %v3697, %v3677
    %v3700 = vadd.f32 %v3661, %v3698
    %v3701 = vadd.f32 %v3662, %v3699
    %s3702 = sld [smem:[#allocation2 + $0x1c5]]
    %v3703 = vstv %s3702
    %v3704 = vmul.f32 %v3703, %v3673
    %v3705 = vmul.f32 %v3703, %v3677
    %v3706 = vadd.f32 %v3667, %v3704
    %v3707 = vadd.f32 %v3668, %v3705
    %3708 = vrot.lane.b32.xlu0 %v2020, 94
    %v3709 = vpop.permute.xlu0 %3708
    %3710 = vrot.lane.b32.xlu0 %v2021, 94
    %v3711 = vpop.permute.xlu0 %3710
    %v3712 = vsel %vm372, %v3709, %v3711
    %v3716 = vsel %vm372, %v3711, %v3709
    %s3717 = sld [smem:[#allocation2 + $0x112]]
    %v3718 = vstv %s3717
    %v3719 = vmul.f32 %v3718, %v3712
    %v3720 = vmul.f32 %v3718, %v3716
    %v3721 = vadd.f32 %v3682, %v3719
    %v3722 = vadd.f32 %v3683, %v3720
    %s3723 = sld [smem:[#allocation2 + $0x13f]]
    %v3724 = vstv %s3723
    %v3725 = vmul.f32 %v3724, %v3712
    %v3726 = vmul.f32 %v3724, %v3716
    %v3727 = vadd.f32 %v3688, %v3725
    %v3728 = vadd.f32 %v3689, %v3726
    %s3729 = sld [smem:[#allocation2 + $0x16c]]
    %v3730 = vstv %s3729
    %v3731 = vmul.f32 %v3730, %v3712
    %v3732 = vmul.f32 %v3730, %v3716
    %v3733 = vadd.f32 %v3694, %v3731
    %v3734 = vadd.f32 %v3695, %v3732
    %s3735 = sld [smem:[#allocation2 + $0x199]]
    %v3736 = vstv %s3735
    %v3737 = vmul.f32 %v3736, %v3712
    %v3738 = vmul.f32 %v3736, %v3716
    %v3739 = vadd.f32 %v3700, %v3737
    %v3740 = vadd.f32 %v3701, %v3738
    %s3741 = sld [smem:[#allocation2 + $0x1c6]]
    %v3742 = vstv %s3741
    %v3743 = vmul.f32 %v3742, %v3712
    %v3744 = vmul.f32 %v3742, %v3716
    %v3745 = vadd.f32 %v3706, %v3743
    %v3746 = vadd.f32 %v3707, %v3744
    %s3747 = sld [smem:[#allocation2 + $0x1c7]]
    %v3748 = vstv %s3747
    %v3749 = vadd.f32 %v3721, %v3748
    %v3750 = vadd.f32 %v3722, %v3748
    %v3751 = vmax.f32 %v3749, 0.0
    %v3752 = vmax.f32 %v3750, 0.0
    %3755 = vrot.lane.b32.xlu0 %v3751, 126
    %v3756 = vpop.permute.xlu0 %3755
    %3757 = vrot.lane.b32.xlu0 %v3752, 126
    %v3758 = vpop.permute.xlu0 %3757
    %v3759 = vsel %vm132, %v3756, %v3758
    %v3763 = vsel %vm132, %v3758, %v3756
    %v3764 = vmax.f32 %v3751, %v3759
    %v3765 = vmax.f32 %v3752, %v3763
    %3766 = vrot.lane.b32.xlu0 %v3751, 96
    %v3767 = vpop.permute.xlu0 %3766
    %3768 = vrot.lane.b32.xlu0 %v3752, 96
    %v3769 = vpop.permute.xlu0 %3768
    %v3770 = vsel %vm292, %v3767, %v3769
    %v3774 = vsel %vm292, %v3769, %v3767
    %3775 = vrot.lane.b32.xlu0 %v3751, 94
    %v3776 = vpop.permute.xlu0 %3775
    %3777 = vrot.lane.b32.xlu0 %v3752, 94
    %v3778 = vpop.permute.xlu0 %3777
    %v3779 = vsel %vm372, %v3776, %v3778
    %v3783 = vsel %vm372, %v3778, %v3776
    %v3784 = vmax.f32 %v3770, %v3779
    %v3785 = vmax.f32 %v3774, %v3783
    %v3786 = vmax.f32 %v3764, %v3784
    %v3787 = vmax.f32 %v3765, %v3785
    %s3788 = scalar_lea.vmem [#allocation6], 5
    %v3789 = vld [vmem:[%s3788] ss:$8 sm:$0x3]
    %v3791 = vlaneseq
    %v3792 = vshrl.u32 %v3791, 7
    %v3793 = vsub.s32 0, %v3792
    %v3794 = vrot.slane %v3789, %v3793
    %v3795 = vlaneseq
    %v3796 = vshrl.u32 %v3795, 7
    %v3797 = vsub.s32 1, %v3796
    %v3798 = vrot.slane %v3789, %v3797
    %v3801 = vmul.f32 %v3786, %v3794
    %v3802 = vmul.f32 %v3787, %v3798
    %v3803 = vadd.f32 %v3801, 0.0
    %v3804 = vadd.f32 %v3802, 0.0
    %s3805 = sld [smem:[#allocation2 + $0x1c8]]
    %v3806 = vstv %s3805
    %v3807 = vadd.f32 %v3727, %v3806
    %v3808 = vadd.f32 %v3728, %v3806
    %v3809 = vmax.f32 %v3807, 0.0
    %v3810 = vmax.f32 %v3808, 0.0
    %3813 = vrot.lane.b32.xlu0 %v3809, 126
    %v3814 = vpop.permute.xlu0 %3813
    %3815 = vrot.lane.b32.xlu0 %v3810, 126
    %v3816 = vpop.permute.xlu0 %3815
    %v3817 = vsel %vm132, %v3814, %v3816
    %v3821 = vsel %vm132, %v3816, %v3814
    %v3822 = vmax.f32 %v3809, %v3817
    %v3823 = vmax.f32 %v3810, %v3821
    %3824 = vrot.lane.b32.xlu0 %v3809, 96
    %v3825 = vpop.permute.xlu0 %3824
    %3826 = vrot.lane.b32.xlu0 %v3810, 96
    %v3827 = vpop.permute.xlu0 %3826
    %v3828 = vsel %vm292, %v3825, %v3827
    %v3832 = vsel %vm292, %v3827, %v3825
    %3833 = vrot.lane.b32.xlu0 %v3809, 94
    %v3834 = vpop.permute.xlu0 %3833
    %3835 = vrot.lane.b32.xlu0 %v3810, 94
    %v3836 = vpop.permute.xlu0 %3835
    %v3837 = vsel %vm372, %v3834, %v3836
    %v3841 = vsel %vm372, %v3836, %v3834
    %v3842 = vmax.f32 %v3828, %v3837
    %v3843 = vmax.f32 %v3832, %v3841
    %v3844 = vmax.f32 %v3822, %v3842
    %v3845 = vmax.f32 %v3823, %v3843
    %s3846 = scalar_lea.vmem [#allocation6], 6
    %v3847 = vld [vmem:[%s3846] ss:$8 sm:$0x3]
    %v3849 = vlaneseq
    %v3850 = vshrl.u32 %v3849, 7
    %v3851 = vsub.s32 0, %v3850
    %v3852 = vrot.slane %v3847, %v3851
    %v3853 = vlaneseq
    %v3854 = vshrl.u32 %v3853, 7
    %v3855 = vsub.s32 1, %v3854
    %v3856 = vrot.slane %v3847, %v3855
    %v3859 = vmul.f32 %v3844, %v3852
    %v3860 = vmul.f32 %v3845, %v3856
    %v3861 = vadd.f32 %v3803, %v3859
    %v3862 = vadd.f32 %v3804, %v3860
    %s3863 = sld [smem:[#allocation2 + $0x1c9]]
    %v3864 = vstv %s3863
    %v3865 = vadd.f32 %v3733, %v3864
    %v3866 = vadd.f32 %v3734, %v3864
    %v3867 = vmax.f32 %v3865, 0.0
    %v3868 = vmax.f32 %v3866, 0.0
    %3871 = vrot.lane.b32.xlu0 %v3867, 126
    %v3872 = vpop.permute.xlu0 %3871
    %3873 = vrot.lane.b32.xlu0 %v3868, 126
    %v3874 = vpop.permute.xlu0 %3873
    %v3875 = vsel %vm132, %v3872, %v3874
    %v3879 = vsel %vm132, %v3874, %v3872
    %v3880 = vmax.f32 %v3867, %v3875
    %v3881 = vmax.f32 %v3868, %v3879
    %3882 = vrot.lane.b32.xlu0 %v3867, 96
    %v3883 = vpop.permute.xlu0 %3882
    %3884 = vrot.lane.b32.xlu0 %v3868, 96
    %v3885 = vpop.permute.xlu0 %3884
    %v3886 = vsel %vm292, %v3883, %v3885
    %v3890 = vsel %vm292, %v3885, %v3883
    %3891 = vrot.lane.b32.xlu0 %v3867, 94
    %v3892 = vpop.permute.xlu0 %3891
    %3893 = vrot.lane.b32.xlu0 %v3868, 94
    %v3894 = vpop.permute.xlu0 %3893
    %v3895 = vsel %vm372, %v3892, %v3894
    %v3899 = vsel %vm372, %v3894, %v3892
    %v3900 = vmax.f32 %v3886, %v3895
    %v3901 = vmax.f32 %v3890, %v3899
    %v3902 = vmax.f32 %v3880, %v3900
    %v3903 = vmax.f32 %v3881, %v3901
    %s3904 = scalar_lea.vmem [#allocation6], 7
    %v3905 = vld [vmem:[%s3904] ss:$8 sm:$0x3]
    %v3907 = vlaneseq
    %v3908 = vshrl.u32 %v3907, 7
    %v3909 = vsub.s32 0, %v3908
    %v3910 = vrot.slane %v3905, %v3909
    %v3911 = vlaneseq
    %v3912 = vshrl.u32 %v3911, 7
    %v3913 = vsub.s32 1, %v3912
    %v3914 = vrot.slane %v3905, %v3913
    %v3917 = vmul.f32 %v3902, %v3910
    %v3918 = vmul.f32 %v3903, %v3914
    %v3919 = vadd.f32 %v3861, %v3917
    %v3920 = vadd.f32 %v3862, %v3918
    %s3921 = sld [smem:[#allocation2 + $0x1ca]]
    %v3922 = vstv %s3921
    %v3923 = vadd.f32 %v3739, %v3922
    %v3924 = vadd.f32 %v3740, %v3922
    %v3925 = vmax.f32 %v3923, 0.0
    %v3926 = vmax.f32 %v3924, 0.0
    %3929 = vrot.lane.b32.xlu0 %v3925, 126
    %v3930 = vpop.permute.xlu0 %3929
    %3931 = vrot.lane.b32.xlu0 %v3926, 126
    %v3932 = vpop.permute.xlu0 %3931
    %v3933 = vsel %vm132, %v3930, %v3932
    %v3937 = vsel %vm132, %v3932, %v3930
    %v3938 = vmax.f32 %v3925, %v3933
    %v3939 = vmax.f32 %v3926, %v3937
    %3940 = vrot.lane.b32.xlu0 %v3925, 96
    %v3941 = vpop.permute.xlu0 %3940
    %3942 = vrot.lane.b32.xlu0 %v3926, 96
    %v3943 = vpop.permute.xlu0 %3942
    %v3944 = vsel %vm292, %v3941, %v3943
    %v3948 = vsel %vm292, %v3943, %v3941
    %3949 = vrot.lane.b32.xlu0 %v3925, 94
    %v3950 = vpop.permute.xlu0 %3949
    %3951 = vrot.lane.b32.xlu0 %v3926, 94
    %v3952 = vpop.permute.xlu0 %3951
    %v3953 = vsel %vm372, %v3950, %v3952
    %v3957 = vsel %vm372, %v3952, %v3950
    %v3958 = vmax.f32 %v3944, %v3953
    %v3959 = vmax.f32 %v3948, %v3957
    %v3960 = vmax.f32 %v3938, %v3958
    %v3961 = vmax.f32 %v3939, %v3959
    %s3962 = scalar_lea.vmem [#allocation6], 16
    %v3963 = vld [vmem:[%s3962] ss:$8 sm:$0x3]
    %v3965 = vlaneseq
    %v3966 = vshrl.u32 %v3965, 7
    %v3967 = vsub.s32 0, %v3966
    %v3968 = vrot.slane %v3963, %v3967
    %v3969 = vlaneseq
    %v3970 = vshrl.u32 %v3969, 7
    %v3971 = vsub.s32 1, %v3970
    %v3972 = vrot.slane %v3963, %v3971
    %v3975 = vmul.f32 %v3960, %v3968
    %v3976 = vmul.f32 %v3961, %v3972
    %v3977 = vadd.f32 %v3919, %v3975
    %v3978 = vadd.f32 %v3920, %v3976
    %s3979 = sld [smem:[#allocation2 + $0x1cb]]
    %v3980 = vstv %s3979
    %v3981 = vadd.f32 %v3745, %v3980
    %v3982 = vadd.f32 %v3746, %v3980
    %v3983 = vmax.f32 %v3981, 0.0
    %v3984 = vmax.f32 %v3982, 0.0
    %3987 = vrot.lane.b32.xlu0 %v3983, 126
    %v3988 = vpop.permute.xlu0 %3987
    %3989 = vrot.lane.b32.xlu0 %v3984, 126
    %v3990 = vpop.permute.xlu0 %3989
    %v3991 = vsel %vm132, %v3988, %v3990
    %v3995 = vsel %vm132, %v3990, %v3988
    %v3996 = vmax.f32 %v3983, %v3991
    %v3997 = vmax.f32 %v3984, %v3995
    %3998 = vrot.lane.b32.xlu0 %v3983, 96
    %v3999 = vpop.permute.xlu0 %3998
    %4000 = vrot.lane.b32.xlu0 %v3984, 96
    %v4001 = vpop.permute.xlu0 %4000
    %v4002 = vsel %vm292, %v3999, %v4001
    %v4006 = vsel %vm292, %v4001, %v3999
    %4007 = vrot.lane.b32.xlu0 %v3983, 94
    %v4008 = vpop.permute.xlu0 %4007
    %4009 = vrot.lane.b32.xlu0 %v3984, 94
    %v4010 = vpop.permute.xlu0 %4009
    %v4011 = vsel %vm372, %v4008, %v4010
    %v4015 = vsel %vm372, %v4010, %v4008
    %v4016 = vmax.f32 %v4002, %v4011
    %v4017 = vmax.f32 %v4006, %v4015
    %v4018 = vmax.f32 %v3996, %v4016
    %v4019 = vmax.f32 %v3997, %v4017
    %s4020 = scalar_lea.vmem [#allocation6], 17
    %v4021 = vld [vmem:[%s4020] ss:$8 sm:$0x3]
    %v4023 = vlaneseq
    %v4024 = vshrl.u32 %v4023, 7
    %v4025 = vsub.s32 0, %v4024
    %v4026 = vrot.slane %v4021, %v4025
    %v4027 = vlaneseq
    %v4028 = vshrl.u32 %v4027, 7
    %v4029 = vsub.s32 1, %v4028
    %v4030 = vrot.slane %v4021, %v4029
    %v4033 = vmul.f32 %v4018, %v4026
    %v4034 = vmul.f32 %v4019, %v4030
    %v4035 = vadd.f32 %v3977, %v4033
    %v4036 = vadd.f32 %v3978, %v4034
    %v4037 = vadd.f32 %v4035, %v4036
    %4038 = vadd.xlane.f32.xlu0 %v4037
    %v4039 = vpop.xlane.xlu0 %4038
    %s4040 = scalar_lea.vmem [#allocation6], 1
    %v4041 = vld [vmem:[%s4040] ss:$8 sm:$0x3]
    %s4042 = scalar_lea.vmem [#allocation6], 2
    %v4043 = vld [vmem:[%s4042] ss:$8 sm:$0x3]
    %s4044 = sld [smem:[#allocation2 + $0x1cc]]
    %s4045 = sld [smem:[#allocation2 + $0x1cd]]
    %s4046 = sld [smem:[#allocation2 + $0x1ce]]
    %v4047 = vlaneseq
    %v4048 = vshrl.u32 %v4047, 7
    %vm4049 = vcmp.ge.s32.totalorder %v4048, 0
    %vm4050 = vcmp.lt.s32.totalorder %v4048, 4
    %vm4051 = vmand %vm4049, %vm4050
    %v4052 = vsel %vm4051, 1.0, 0.0
    %v4053 = vmul.f32 %v4039, %v4052
    %v4054 = vrot.slane %v4053, 4
    %v4055 = vadd.f32 %v4053, %v4054
    %v4056 = vrot.slane %v4055, 2
    %v4057 = vadd.f32 %v4055, %v4056
    %v4058 = vrot.slane %v4057, 1
    %v4059 = vadd.f32 %v4057, %v4058
    %v4060 = vmul.f32 %v4059, 0.25
    %v4061 = vstv %s4044
    %v4062 = vadd.f32 %v4060, %v4061
    %v4063 = vld [vmem:[#allocation6 + $0x3] ss:$0 sm:$0xff]
    %v4064 = vmul.f32 %v4062, %v4041
    %v4066 = vrot.slane %v4041, 1
    %v4068 = vadd.f32 %v4064, %v4066
    %v4069 = vand.u32 2147483647, %v4068
    %v4070 = vmul.f32 %v4063, %v4069
    %4072 = vrot.lane.b32.xlu0 %v4070, 96
    %v4073 = vpop.permute.xlu0 %4072
    %v4075 = vadd.f32 %v4070, %v4073
    %4076 = vrot.lane.b32.xlu0 %v4070, 64
    %v4077 = vpop.permute.xlu0 %4076
    %v4079 = vadd.f32 %v4075, %v4077
    %4080 = vrot.lane.b32.xlu0 %v4070, 32
    %v4081 = vpop.permute.xlu0 %4080
    %v4083 = vadd.f32 %v4079, %v4081
    %v4084 = vmul.f32 %v4062, %v4043
    %4086 = vrot.lane.b32.xlu0 %v4043, 96
    %v4087 = vpop.permute.xlu0 %4086
    %v4089 = vadd.f32 %v4084, %v4087
    %v4090 = vadd.f32 %v4083, %v4089
    %v4091 = vmax.f32 %v4090, 0.0
    %v4092 = vand.u32 2147483647, %v4089
    %v4094 = vlaneseq
    %v4095 = vshrl.u32 %v4094, 7
    %v4096 = vsub.s32 0, %v4095
    %v4097 = vrot.slane %v4092, %v4096
    %4098 = vrot.lane.b32.xlu0 %v4097, 64
    %v4099 = vpop.permute.xlu0 %4098
    %v4101 = vmul.f32 %v4091, %v4099
    %vm4102 = vcmask 253952
    %v4103 = vsel %vm4102, %v4101, 0.0
    %4104 = vadd.xlane.f32.xlu0 %v4103
    %v4105 = vpop.xlane.xlu0 %4104
    %v4106 = vstv %s4045
    %v4107 = vmul.f32 %v4062, %v4106
    %v4108 = vadd.f32 %v4105, %v4107
    %v4109 = vstv %s4046
    %v4110 = vadd.f32 %v4108, %v4109
    %vm4111 = vcmask 0
    %4112 = vst.msk [vmem:[%s3] sm:$0x1] %vm4111, %v4110
    %vm4113 = vcmp.ge.s32.totalorder %v4048, 4
    %vm4114 = vcmp.lt.s32.totalorder %v4048, 8
    %vm4115 = vmand %vm4113, %vm4114
    %v4116 = vsel %vm4115, 1.0, 0.0
    %v4117 = vmul.f32 %v4039, %v4116
    %v4118 = vrot.slane %v4117, 4
    %v4119 = vadd.f32 %v4117, %v4118
    %v4120 = vrot.slane %v4119, 2
    %v4121 = vadd.f32 %v4119, %v4120
    %v4122 = vrot.slane %v4121, 1
    %v4123 = vadd.f32 %v4121, %v4122
    %v4124 = vmul.f32 %v4123, 0.25
    %v4125 = vadd.f32 %v4124, %v4061
    %v4126 = vld [vmem:[#allocation6 + $0x4] ss:$0 sm:$0xff]
    %v4127 = vmul.f32 %v4125, %v4041
    %v4128 = vadd.f32 %v4127, %v4066
    %v4129 = vand.u32 2147483647, %v4128
    %v4130 = vmul.f32 %v4126, %v4129
    %4132 = vrot.lane.b32.xlu0 %v4130, 96
    %v4133 = vpop.permute.xlu0 %4132
    %v4135 = vadd.f32 %v4130, %v4133
    %4136 = vrot.lane.b32.xlu0 %v4130, 64
    %v4137 = vpop.permute.xlu0 %4136
    %v4139 = vadd.f32 %v4135, %v4137
    %4140 = vrot.lane.b32.xlu0 %v4130, 32
    %v4141 = vpop.permute.xlu0 %4140
    %v4143 = vadd.f32 %v4139, %v4141
    %v4144 = vmul.f32 %v4125, %v4043
    %v4145 = vadd.f32 %v4144, %v4087
    %v4146 = vadd.f32 %v4143, %v4145
    %v4147 = vmax.f32 %v4146, 0.0
    %v4148 = vand.u32 2147483647, %v4145
    %v4150 = vlaneseq
    %v4151 = vshrl.u32 %v4150, 7
    %v4152 = vsub.s32 0, %v4151
    %v4153 = vrot.slane %v4148, %v4152
    %4154 = vrot.lane.b32.xlu0 %v4153, 64
    %v4155 = vpop.permute.xlu0 %4154
    %v4157 = vmul.f32 %v4147, %v4155
    %v4158 = vsel %vm4102, %v4157, 0.0
    %4159 = vadd.xlane.f32.xlu0 %v4158
    %v4160 = vpop.xlane.xlu0 %4159
    %v4161 = vmul.f32 %v4125, %v4106
    %v4162 = vadd.f32 %v4160, %v4161
    %v4163 = vadd.f32 %v4162, %v4109
    %4164 = vst.msk [vmem:[%s3 + $0x1] sm:$0x1] %vm4111, %v4163
    // Predicated region
    $region26: #{tpu_custom_call.1} parent=1 // pred_check
      _
    $region27: #{tpu_custom_call.1} parent=1 // pred_check_branch
      %4166 = sbr.rel (0) target = $region29
    $region28: #{tpu_custom_call.1} parent=1 // pred_region
      _
    $region29: #{tpu_custom_call.1} parent=1 // pred_fallthru
      _
    // Predicated region
    $region30: #{tpu_custom_call.1} parent=1 // pred_check
      _
    $region31: #{tpu_custom_call.1} parent=1 // pred_check_branch
      %4168 = sbr.rel (0) target = $region33
    $region32: #{tpu_custom_call.1} parent=1 // pred_region
      _
    $region33: #{tpu_custom_call.1} parent=1 // pred_fallthru
      _
    %4169 = vsyncpa [#allocation3], 1
    %4170 = vsyncpa [#allocation7], 1
    %4171 = vsyncpa [#allocation4], 1

</llo_original>
